<compile_context>
chip_gen: v7x
topology: tpu7x:2x2x1
jax: 0.10.0
libtpu: 0.0.40
codegen_flags: <defaults>
</compile_context>

<pallas_src>
import numpy as np
import jax
import jax.numpy as jnp
from jax.experimental import pallas as pl
from jax.experimental.pallas import tpu as pltpu


ACT_DTYPE = jnp.bfloat16   # activation / weight dtype on the MXU path (halves HBM traffic)
ACC_DTYPE = jnp.float32    # accumulation, bias and max() stay in f32
SUBLANE = 16               # bf16 sublane tile -> channel dims padded to a multiple of 16


def _pad_to(n, m):
    return ((n + m - 1) // m) * m


def _geom(h, w):
    wp = w + 2
    hp = h + 2
    lp = hp * wp                 # padded, flattened pixel count (lane axis)
    lq = lp - (2 * wp + 2)       # common length of one shifted 3x3 tap view
    return hp, wp, lp, lq


# ----------------------------------------------------------------------------
# Small constant 0/1 matrices (built once at trace time)
# ----------------------------------------------------------------------------

def _placement_matrix(h, w, dtype):
    """(Lq, Lp): moves conv output q=y*Wp+x into padded slot (y+1)*Wp+(x+1), zeros elsewhere."""
    _, wp, lp, lq = _geom(h, w)
    p = np.zeros((lq, lp), np.float32)
    for y in range(h):
        for x in range(w):
            p[y * wp + x, (y + 1) * wp + (x + 1)] = 1.0
    return jnp.asarray(p, dtype)


def _pool_select_matrix(h, w, dtype):
    """(Lq2, Lp_half): picks stride-2 points of the 2x2-max map into the half-res padded layout."""
    _, wp, _, lq = _geom(h, w)
    lq2 = lq - (wp + 1)
    ho, wo = h // 2, w // 2
    _, wpo, lpo, _ = _geom(ho, wo)
    s = np.zeros((lq2, lpo), np.float32)
    for i in range(ho):
        for j in range(wo):
            s[(2 * i) * wp + (2 * j), (i + 1) * wpo + (j + 1)] = 1.0
    return jnp.asarray(s, dtype)


def _deconv_scatter_matrices(h, w, dtype):
    """(4, Lp_in, Lp_out): scatter tap (a,b) of a k=2/s=2 deconv from (h,w) grid to (2h,2w) grid."""
    _, wpi, lpi, _ = _geom(h, w)
    _, wpo, lpo, _ = _geom(2 * h, 2 * w)
    s = np.zeros((4, lpi, lpo), np.float32)
    for a in range(2):
        for b in range(2):
            t = a * 2 + b
            for i in range(h):
                for j in range(w):
                    s[t, (i + 1) * wpi + (j + 1),
                      (2 * i + a + 1) * wpo + (2 * j + b + 1)] = 1.0
    return jnp.asarray(s, dtype)


def _valid_mask(h, w, dtype):
    """(1, Lp): 1 on image pixels, 0 on the zero-padding ring."""
    _, wp, lp, _ = _geom(h, w)
    m = np.zeros((h + 2, wp), np.float32)
    m[1:h + 1, 1:w + 1] = 1.0
    return jnp.asarray(m.reshape(1, lp), dtype)


# ----------------------------------------------------------------------------
# Layout converters (used once at network entry / exit)
# ----------------------------------------------------------------------------

def to_conv_ready(x_nchw, cpad):
    n, c, h, w = x_nchw.shape
    xp = jnp.pad(x_nchw, ((0, 0), (0, cpad - c), (1, 1), (1, 1)))
    return xp.reshape(n, cpad, (h + 2) * (w + 2)).astype(ACT_DTYPE)


def from_conv_ready(x, c_true, h, w):
    n, cpad, _ = x.shape
    img = x.reshape(n, cpad, h + 2, w + 2)[:, :c_true, 1:h + 1, 1:w + 1]
    return img.astype(jnp.float32)


# ----------------------------------------------------------------------------
# Fused Conv2d(3x3, pad=1) kernel: in-VMEM im2col + single MXU matmul
# optional fused epilogues: zero-padded re-layout, 2x2 max-pool
# ----------------------------------------------------------------------------

def _make_conv_kernel(cps, wp, lq, want_pool):
    nslab = len(cps)
    offs = tuple(kh * wp + kw for kh in range(3) for kw in range(3))
    lq2 = lq - (wp + 1)

    def kernel(*refs):
        x_refs = refs[:nslab]
        w_ref = refs[nslab]
        b_ref = refs[nslab + 1]
        p_ref = refs[nslab + 2]
        pos = nslab + 3
        s_ref = None
        if want_pool:
            s_ref = refs[pos]
            pos += 1
        o_same_ref = refs[pos]
        o_pool_ref = refs[pos + 1] if want_pool else None
        patch_ref = refs[-1]

        # --- in-VMEM im2col: 9 statically lane-shifted views per input slab ---
        base = 0
        for s in range(nslab):
            cp = cps[s]
            x = x_refs[s][0]                                     # (cp, Lp) bf16
            for t, off in enumerate(offs):
                patch_ref[base + t * cp: base + (t + 1) * cp, :] = x[:, off:off + lq]
            base += 9 * cp

        # --- one fused MXU matmul over K = 9 * sum(Cin), f32 accumulation + bias ---
        acc = jnp.dot(w_ref[...], patch_ref[...],
                      preferred_element_type=jnp.float32) + b_ref[...]   # (Coutp, Lq) f32

        # --- epilogue 1: re-emit the zero-padded ("conv-ready") layout at this resolution ---
        accb = acc.astype(o_same_ref.dtype)
        o_same_ref[0] = jnp.dot(accb, p_ref[...],
                                preferred_element_type=jnp.float32).astype(o_same_ref.dtype)

        # --- epilogue 2 (encoder only): fused 2x2/stride-2 max-pool, emitted at H/2 x W/2 ---
        if want_pool:
            m = jnp.maximum(
                jnp.maximum(acc[:, 0:lq2], acc[:, 1:1 + lq2]),
                jnp.maximum(acc[:, wp:wp + lq2], acc[:, wp + 1:wp + 1 + lq2]))
            o_pool_ref[0] = jnp.dot(m.astype(o_pool_ref.dtype), s_ref[...],
                                    preferred_element_type=jnp.float32
                                    ).astype(o_pool_ref.dtype)

    return kernel


def conv3x3(slabs, weight, bias, h, w, *, pool):
    """Conv2d(k=3, s=1, p=1, zeros, bias) over the channel-concat of `slabs`.

    slabs: list of (conv-ready activation (N, Cp_i, Lp), true_channel_count_i); slab order
           matches the channel order of `weight` (this is how the decoder concat is fused).
    Returns (same-resolution conv-ready output, pooled conv-ready output or None).
    """
    n = slabs[0][0].shape[0]
    _, wp, lp, lq = _geom(h, w)
    cout = weight.shape[0]
    coutp = _pad_to(cout, SUBLANE)

    # Per-slab fused weight (Coutp, 9*Cp_i); column order matches the patch rows built in-kernel.
    w_parts, cps = [], []
    c0 = 0
    for x, cin in slabs:
        cp = x.shape[1]
        cps.append(cp)
        wpart = weight[:, c0:c0 + cin]
        wpart = jnp.pad(wpart, ((0, coutp - cout), (0, cp - cin), (0, 0), (0, 0)))
        w_parts.append(jnp.transpose(wpart, (0, 2, 3, 1)).reshape(coutp, 9 * cp))
        c0 += cin
    w2 = jnp.concatenate(w_parts, axis=-1).astype(ACT_DTYPE)     # (Coutp, Ktot)
    ktot = w2.shape[1]
    b2 = jnp.pad(bias, (0, coutp - cout)).reshape(coutp, 1).astype(ACC_DTYPE)
    pmat = _placement_matrix(h, w, ACT_DTYPE)

    ins = [x for x, _ in slabs] + [w2, b2, pmat]
    in_specs = ([pl.BlockSpec((1, cp, lp), lambda i: (i, 0, 0)) for cp in cps]
                + [pl.BlockSpec(w2.shape, lambda i: (0, 0)),
                   pl.BlockSpec(b2.shape, lambda i: (0, 0)),
                   pl.BlockSpec(pmat.shape, lambda i: (0, 0))])
    out_shape = [jax.ShapeDtypeStruct((n, coutp, lp), ACT_DTYPE)]
    out_specs = [pl.BlockSpec((1, coutp, lp), lambda i: (i, 0, 0))]
    if pool:
        smat = _pool_select_matrix(h, w, ACT_DTYPE)
        ins.append(smat)
        in_specs.append(pl.BlockSpec(smat.shape, lambda i: (0, 0)))
        _, _, lpo, _ = _geom(h // 2, w // 2)
        out_shape.append(jax.ShapeDtypeStruct((n, coutp, lpo), ACT_DTYPE))
        out_specs.append(pl.BlockSpec((1, coutp, lpo), lambda i: (i, 0, 0)))

    outs = pl.pallas_call(
        _make_conv_kernel(tuple(cps), wp, lq, pool),
        out_shape=tuple(out_shape),
        grid_spec=pltpu.PrefetchScalarGridSpec(
            num_scalar_prefetch=0,
            grid=(n,),
            in_specs=in_specs,
            out_specs=tuple(out_specs),
            scratch_shapes=[pltpu.VMEM((ktot, lq), ACT_DTYPE)],
        ),
        compiler_params=pltpu.CompilerParams(dimension_semantics=("parallel",)),
    )(*ins)
    if not isinstance(outs, (tuple, list)):
        outs = (outs,)
    return (outs[0], outs[1]) if pool else (outs[0], None)


# ----------------------------------------------------------------------------
# ConvTranspose2d(kernel=2, stride=2): 4 matmuls + 4 scatter matmuls
# ----------------------------------------------------------------------------

def _deconv_kernel(x_ref, w_ref, s_ref, b_ref, m_ref, o_ref):
    x = x_ref[0]                                                  # (Cinp, Lp_in) bf16
    acc = None
    for t in range(4):                                            # taps (a, b) of the 2x2 kernel
        y = jnp.dot(w_ref[t], x, preferred_element_type=jnp.float32)          # (Coutp, Lp_in)
        z = jnp.dot(y.astype(x.dtype), s_ref[t],
                    preferred_element_type=jnp.float32)                        # (Coutp, Lp_out)
        acc = z if acc is None else acc + z
    out = (acc + b_ref[...]) * m_ref[...]                         # bias on pixels, 0 on the pad ring
    o_ref[0] = out.astype(o_ref.dtype)


def conv_transpose2x2(x, weight, bias, h, w):
    """ConvTranspose2d(k=2, s=2): conv-ready (N, Cinp, Lp_in) at (h, w) -> conv-ready at (2h, 2w)."""
    n, cinp, lpi = x.shape
    cin, cout = weight.shape[0], weight.shape[1]
    coutp = _pad_to(cout, SUBLANE)
    wt = jnp.transpose(weight, (2, 3, 1, 0)).reshape(4, cout, cin)     # [a*2+b, co, ci]
    wt = jnp.pad(wt, ((0, 0), (0, coutp - cout), (0, cinp - cin))).astype(ACT_DTYPE)
    smat = _deconv_scatter_matrices(h, w, ACT_DTYPE)
    lpo = smat.shape[-1]
    b2 = jnp.pad(bias, (0, coutp - cout)).reshape(coutp, 1).astype(ACC_DTYPE)
    mask = _valid_mask(2 * h, 2 * w, ACC_DTYPE)

    return pl.pallas_call(
        _deconv_kernel,
        out_shape=jax.ShapeDtypeStruct((n, coutp, lpo), ACT_DTYPE),
        grid_spec=pltpu.PrefetchScalarGridSpec(
            num_scalar_prefetch=0,
            grid=(n,),
            in_specs=[
                pl.BlockSpec((1, cinp, lpi), lambda i: (i, 0, 0)),
                pl.BlockSpec(wt.shape, lambda i: (0, 0, 0)),
                pl.BlockSpec(smat.shape, lambda i: (0, 0, 0)),
                pl.BlockSpec(b2.shape, lambda i: (0, 0)),
                pl.BlockSpec(mask.shape, lambda i: (0, 0)),
            ],
            out_specs=pl.BlockSpec((1, coutp, lpo), lambda i: (i, 0, 0)),
        ),
        compiler_params=pltpu.CompilerParams(dimension_semantics=("parallel",)),
    )(x, wt, smat, b2, mask)


# ----------------------------------------------------------------------------
# UNet forward (norm='identity', act='identity' -> no-ops after each conv)
# ----------------------------------------------------------------------------

def unet_forward(x_nchw, params):
    n, c, h0, w0 = x_nchw.shape
    enc, dec = params["enc"], params["dec"]
    depth = len(enc)

    x = to_conv_ready(x_nchw, _pad_to(c, SUBLANE))
    cin_true = c
    h, w = h0, w0

    # --- Encoder: MultiConv2d blocks; the last conv of each non-bottleneck level also
    #     emits the fused 2x2-max-pooled activation for the next level. ---
    skips = []
    for i, layer in enumerate(enc):
        for j, (wt, bi) in enumerate(layer):
            pool = (j == len(layer) - 1) and (i < depth - 1)
            same, pooled = conv3x3([(x, cin_true)], wt, bi, h, w, pool=pool)
            cin_true = wt.shape[0]
            if pool:
                skips.append((same, cin_true, h, w))
                x, h, w = pooled, h // 2, w // 2
            else:
                x = same

    # --- Decoder: ConvTranspose2d upsample, then MultiConv2d on the fused [skip, up] concat. ---
    for i, up in enumerate(dec):
        x = conv_transpose2x2(x, up["tw"], up["tb"], h, w)
        up_c = up["tw"].shape[1]
        h, w = 2 * h, 2 * w
        skip, skip_c, sh, sw = skips[-(i + 1)]
        # TODO(synk): torchvision CenterCrop of the skip is a no-op for padding=1 (sizes always
        # match); odd-gap cropping is not implemented in the fused conv-ready path.
        assert (sh, sw) == (h, w)
        for j, (wt, bi) in enumerate(up["convs"]):
            slabs = [(skip, skip_c), (x, up_c)] if j == 0 else [(x, cin_true)]
            x, _ = conv3x3(slabs, wt, bi, h, w, pool=False)
            cin_true = wt.shape[0]

    return from_conv_ready(x, cin_true, h0, w0)


# ----------------------------------------------------------------------------
# Deterministic parameter init (synthetic; shapes follow the module's __init__)
# ----------------------------------------------------------------------------

def init_params(key, in_channels=4, out_channels=(8, 16, 32), num_conv2d=1):
    def conv_init(k, cin, cout, ksz):
        k1, k2 = jax.random.split(k)
        w = jax.random.normal(k1, (cout, cin, ksz, ksz), jnp.float32) * 0.1
        b = jax.random.normal(k2, (cout,), jnp.float32) * 0.1
        return w, b

    keys = iter(jax.random.split(key, 64))

    enc = []
    cin = in_channels
    for cout in out_channels:
        layer = []
        for j in range(num_conv2d):
            layer.append(conv_init(next(keys), cin if j == 0 else cout, cout, 3))
        enc.append(layer)
        cin = cout

    dec = []
    dec_out = list(out_channels[::-1][1:])
    cin = out_channels[-1]
    for cout in dec_out:
        ka, kb = jax.random.split(next(keys))
        tw = jax.random.normal(ka, (cin, cout, 2, 2), jnp.float32) * 0.1  # ConvTranspose2d weight
        tb = jax.random.normal(kb, (cout,), jnp.float32) * 0.1
        convs = []
        for j in range(num_conv2d):
            convs.append(conv_init(next(keys), cin if j == 0 else cout, cout, 3))
        dec.append({"tw": tw, "tb": tb, "convs": convs})
        cin = cout

    return {"enc": enc, "dec": dec}


# ----------------------------------------------------------------------------

if __name__ == "__main__":
    key = jax.random.PRNGKey(0)
    kx, kp = jax.random.split(key)

    x = jax.random.normal(kx, (2, 4, 16, 16), jnp.float32)  # NCHW, like the torch module
    params = init_params(kp, in_channels=4, out_channels=(8, 16, 32), num_conv2d=1)

    fwd = jax.jit(unet_forward)
    out = jax.block_until_ready(fwd(x, params))

    assert out.shape == (2, 8, 16, 16), out.shape
    assert out.dtype == jnp.float32
    print("KERNEL_OK")
</pallas_src>

<mosaic_0001>
module attributes {stable_mosaic.version = 11 : i64} {
  func.func @kernel(%arg0: i32, %arg1: memref<1x16x324xbf16, #tpu.memory_space<vmem>>, %arg2: memref<16x144xbf16, #tpu.memory_space<vmem>>, %arg3: memref<16x1xf32, #tpu.memory_space<vmem>>, %arg4: memref<286x324xbf16, #tpu.memory_space<vmem>>, %arg5: memref<267x100xbf16, #tpu.memory_space<vmem>>, %arg6: memref<1x16x324xbf16, #tpu.memory_space<vmem>>, %arg7: memref<1x16x100xbf16, #tpu.memory_space<vmem>>, %arg8: memref<144x286xbf16, #tpu.memory_space<vmem>>) attributes {dimension_semantics = [#tpu.dimension_semantics<parallel>], iteration_bounds = array<i64: 2>, scalar_prefetch = 0 : i64, scratch_operands = 1 : i64, tpu.core_type = #tpu.core_type<tc>, window_params = [{transform_indices = @transform_0, window_bounds = array<i64: 1, 16, 324>}, {pipeline_mode = #tpu.pipeline_mode<synchronous>, transform_indices = @transform_1, window_bounds = array<i64: 16, 144>}, {pipeline_mode = #tpu.pipeline_mode<synchronous>, transform_indices = @transform_2, window_bounds = array<i64: 16, 1>}, {pipeline_mode = #tpu.pipeline_mode<synchronous>, transform_indices = @transform_3, window_bounds = array<i64: 286, 324>}, {pipeline_mode = #tpu.pipeline_mode<synchronous>, transform_indices = @transform_4, window_bounds = array<i64: 267, 100>}, {transform_indices = @transform_5, window_bounds = array<i64: 1, 16, 324>}, {transform_indices = @transform_6, window_bounds = array<i64: 1, 16, 100>}]} {
    %c0 = arith.constant 0 : index
    %c0_0 = arith.constant 0 : index
    %c0_1 = arith.constant 0 : index
    %0 = vector.load %arg1[%c0, %c0_0, %c0_1] : memref<1x16x324xbf16, #tpu.memory_space<vmem>>, vector<1x16x324xbf16>
    %1 = vector.shape_cast %0 : vector<1x16x324xbf16> to vector<16x324xbf16>
    %2 = vector.extract_strided_slice %1 {offsets = [0, 0], sizes = [16, 286], strides = [1, 1]} : vector<16x324xbf16> to vector<16x286xbf16>
    %c0_2 = arith.constant 0 : index
    %c0_3 = arith.constant 0 : index
    %3 = vector.load %arg8[%c0_2, %c0_3] : memref<144x286xbf16, #tpu.memory_space<vmem>>, vector<16x286xbf16>
    tpu.vector_store %arg8[%c0_2, %c0_3], %2 {strides = array<i32>} : memref<144x286xbf16, #tpu.memory_space<vmem>>, vector<16x286xbf16>,
    %4 = vector.extract_strided_slice %1 {offsets = [0, 1], sizes = [16, 286], strides = [1, 1]} : vector<16x324xbf16> to vector<16x286xbf16>
    %c16 = arith.constant 16 : index
    %c0_4 = arith.constant 0 : index
    %5 = vector.load %arg8[%c16, %c0_4] : memref<144x286xbf16, #tpu.memory_space<vmem>>, vector<16x286xbf16>
    tpu.vector_store %arg8[%c16, %c0_4], %4 {strides = array<i32>} : memref<144x286xbf16, #tpu.memory_space<vmem>>, vector<16x286xbf16>,
    %6 = vector.extract_strided_slice %1 {offsets = [0, 2], sizes = [16, 286], strides = [1, 1]} : vector<16x324xbf16> to vector<16x286xbf16>
    %c32 = arith.constant 32 : index
    %c0_5 = arith.constant 0 : index
    %7 = vector.load %arg8[%c32, %c0_5] : memref<144x286xbf16, #tpu.memory_space<vmem>>, vector<16x286xbf16>
    tpu.vector_store %arg8[%c32, %c0_5], %6 {strides = array<i32>} : memref<144x286xbf16, #tpu.memory_space<vmem>>, vector<16x286xbf16>,
    %8 = vector.extract_strided_slice %1 {offsets = [0, 18], sizes = [16, 286], strides = [1, 1]} : vector<16x324xbf16> to vector<16x286xbf16>
    %c48 = arith.constant 48 : index
    %c0_6 = arith.constant 0 : index
    %9 = vector.load %arg8[%c48, %c0_6] : memref<144x286xbf16, #tpu.memory_space<vmem>>, vector<16x286xbf16>
    tpu.vector_store %arg8[%c48, %c0_6], %8 {strides = array<i32>} : memref<144x286xbf16, #tpu.memory_space<vmem>>, vector<16x286xbf16>,
    %10 = vector.extract_strided_slice %1 {offsets = [0, 19], sizes = [16, 286], strides = [1, 1]} : vector<16x324xbf16> to vector<16x286xbf16>
    %c64 = arith.constant 64 : index
    %c0_7 = arith.constant 0 : index
    %11 = vector.load %arg8[%c64, %c0_7] : memref<144x286xbf16, #tpu.memory_space<vmem>>, vector<16x286xbf16>
    tpu.vector_store %arg8[%c64, %c0_7], %10 {strides = array<i32>} : memref<144x286xbf16, #tpu.memory_space<vmem>>, vector<16x286xbf16>,
    %12 = vector.extract_strided_slice %1 {offsets = [0, 20], sizes = [16, 286], strides = [1, 1]} : vector<16x324xbf16> to vector<16x286xbf16>
    %c80 = arith.constant 80 : index
    %c0_8 = arith.constant 0 : index
    %13 = vector.load %arg8[%c80, %c0_8] : memref<144x286xbf16, #tpu.memory_space<vmem>>, vector<16x286xbf16>
    tpu.vector_store %arg8[%c80, %c0_8], %12 {strides = array<i32>} : memref<144x286xbf16, #tpu.memory_space<vmem>>, vector<16x286xbf16>,
    %14 = vector.extract_strided_slice %1 {offsets = [0, 36], sizes = [16, 286], strides = [1, 1]} : vector<16x324xbf16> to vector<16x286xbf16>
    %c96 = arith.constant 96 : index
    %c0_9 = arith.constant 0 : index
    %15 = vector.load %arg8[%c96, %c0_9] : memref<144x286xbf16, #tpu.memory_space<vmem>>, vector<16x286xbf16>
    tpu.vector_store %arg8[%c96, %c0_9], %14 {strides = array<i32>} : memref<144x286xbf16, #tpu.memory_space<vmem>>, vector<16x286xbf16>,
    %16 = vector.extract_strided_slice %1 {offsets = [0, 37], sizes = [16, 286], strides = [1, 1]} : vector<16x324xbf16> to vector<16x286xbf16>
    %c112 = arith.constant 112 : index
    %c0_10 = arith.constant 0 : index
    %17 = vector.load %arg8[%c112, %c0_10] : memref<144x286xbf16, #tpu.memory_space<vmem>>, vector<16x286xbf16>
    tpu.vector_store %arg8[%c112, %c0_10], %16 {strides = array<i32>} : memref<144x286xbf16, #tpu.memory_space<vmem>>, vector<16x286xbf16>,
    %18 = vector.extract_strided_slice %1 {offsets = [0, 38], sizes = [16, 286], strides = [1, 1]} : vector<16x324xbf16> to vector<16x286xbf16>
    %c128 = arith.constant 128 : index
    %c0_11 = arith.constant 0 : index
    %19 = vector.load %arg8[%c128, %c0_11] : memref<144x286xbf16, #tpu.memory_space<vmem>>, vector<16x286xbf16>
    tpu.vector_store %arg8[%c128, %c0_11], %18 {strides = array<i32>} : memref<144x286xbf16, #tpu.memory_space<vmem>>, vector<16x286xbf16>,
    %c0_12 = arith.constant 0 : index
    %c0_13 = arith.constant 0 : index
    %20 = vector.load %arg2[%c0_12, %c0_13] : memref<16x144xbf16, #tpu.memory_space<vmem>>, vector<16x144xbf16>
    %c0_14 = arith.constant 0 : index
    %c0_15 = arith.constant 0 : index
    %21 = vector.load %arg8[%c0_14, %c0_15] : memref<144x286xbf16, #tpu.memory_space<vmem>>, vector<144x286xbf16>
    %cst = arith.constant dense<0.000000e+00> : vector<16x286xf32>
    %22 = tpu.matmul %20, %21, %cst {dimension_numbers = #tpu.dot_dimension_numbers<[1], [0], [0], [1], [0, 0, 1, 1], [], []>} : vector<16x144xbf16>, vector<144x286xbf16>, vector<16x286xf32> -> vector<16x286xf32>
    %c0_16 = arith.constant 0 : index
    %c0_17 = arith.constant 0 : index
    %23 = vector.load %arg3[%c0_16, %c0_17] : memref<16x1xf32, #tpu.memory_space<vmem>>, vector<16x1xf32>
    %24 = vector.broadcast %23 : vector<16x1xf32> to vector<16x286xf32>
    %25 = arith.addf %22, %24 : vector<16x286xf32>
    %26 = arith.truncf %25 : vector<16x286xf32> to vector<16x286xbf16>
    %c0_18 = arith.constant 0 : index
    %c0_19 = arith.constant 0 : index
    %27 = vector.load %arg4[%c0_18, %c0_19] : memref<286x324xbf16, #tpu.memory_space<vmem>>, vector<286x324xbf16>
    %cst_20 = arith.constant dense<0.000000e+00> : vector<16x324xf32>
    %28 = tpu.matmul %26, %27, %cst_20 {dimension_numbers = #tpu.dot_dimension_numbers<[1], [0], [0], [1], [0, 0, 1, 1], [], []>} : vector<16x286xbf16>, vector<286x324xbf16>, vector<16x324xf32> -> vector<16x324xf32>
    %29 = arith.truncf %28 : vector<16x324xf32> to vector<16x324xbf16>
    %c0_21 = arith.constant 0 : index
    %c0_22 = arith.constant 0 : index
    %c0_23 = arith.constant 0 : index
    %30 = vector.load %arg6[%c0_21, %c0_22, %c0_23] : memref<1x16x324xbf16, #tpu.memory_space<vmem>>, vector<1x16x324xbf16>
    %31 = vector.shape_cast %30 : vector<1x16x324xbf16> to vector<16x324xbf16>
    %32 = vector.shape_cast %29 : vector<16x324xbf16> to vector<1x16x324xbf16>
    tpu.vector_store %arg6[%c0_21, %c0_22, %c0_23], %32 {strides = array<i32>} : memref<1x16x324xbf16, #tpu.memory_space<vmem>>, vector<1x16x324xbf16>,
    %33 = vector.extract_strided_slice %25 {offsets = [0, 0], sizes = [16, 267], strides = [1, 1]} : vector<16x286xf32> to vector<16x267xf32>
    %34 = vector.extract_strided_slice %25 {offsets = [0, 1], sizes = [16, 267], strides = [1, 1]} : vector<16x286xf32> to vector<16x267xf32>
    %35 = arith.maximumf %33, %34 : vector<16x267xf32>
    %36 = vector.extract_strided_slice %25 {offsets = [0, 18], sizes = [16, 267], strides = [1, 1]} : vector<16x286xf32> to vector<16x267xf32>
    %37 = vector.extract_strided_slice %25 {offsets = [0, 19], sizes = [16, 267], strides = [1, 1]} : vector<16x286xf32> to vector<16x267xf32>
    %38 = arith.maximumf %36, %37 : vector<16x267xf32>
    %39 = arith.maximumf %35, %38 : vector<16x267xf32>
    %40 = arith.truncf %39 : vector<16x267xf32> to vector<16x267xbf16>
    %c0_24 = arith.constant 0 : index
    %c0_25 = arith.constant 0 : index
    %41 = vector.load %arg5[%c0_24, %c0_25] : memref<267x100xbf16, #tpu.memory_space<vmem>>, vector<267x100xbf16>
    %cst_26 = arith.constant dense<0.000000e+00> : vector<16x100xf32>
    %42 = tpu.matmul %40, %41, %cst_26 {dimension_numbers = #tpu.dot_dimension_numbers<[1], [0], [0], [1], [0, 0, 1, 1], [], []>} : vector<16x267xbf16>, vector<267x100xbf16>, vector<16x100xf32> -> vector<16x100xf32>
    %43 = arith.truncf %42 : vector<16x100xf32> to vector<16x100xbf16>
    %c0_27 = arith.constant 0 : index
    %c0_28 = arith.constant 0 : index
    %c0_29 = arith.constant 0 : index
    %44 = vector.load %arg7[%c0_27, %c0_28, %c0_29] : memref<1x16x100xbf16, #tpu.memory_space<vmem>>, vector<1x16x100xbf16>
    %45 = vector.shape_cast %44 : vector<1x16x100xbf16> to vector<16x100xbf16>
    %46 = vector.shape_cast %43 : vector<16x100xbf16> to vector<1x16x100xbf16>
    tpu.vector_store %arg7[%c0_27, %c0_28, %c0_29], %46 {strides = array<i32>} : memref<1x16x100xbf16, #tpu.memory_space<vmem>>, vector<1x16x100xbf16>,
    return
  }
  func.func @transform_0(%arg0: i32) -> (i32, i32, i32) {
    %c0_i32 = arith.constant 0 : i32
    %c0_i32_0 = arith.constant 0 : i32
    %c0_i32_1 = arith.constant 0 : i32
    return %arg0, %c0_i32, %c0_i32_0 : i32, i32, i32
  }
  func.func @transform_1(%arg0: i32) -> (i32, i32) {
    %c0_i32 = arith.constant 0 : i32
    %c0_i32_0 = arith.constant 0 : i32
    %c0_i32_1 = arith.constant 0 : i32
    return %c0_i32, %c0_i32_0 : i32, i32
  }
  func.func @transform_2(%arg0: i32) -> (i32, i32) {
    %c0_i32 = arith.constant 0 : i32
    %c0_i32_0 = arith.constant 0 : i32
    %c0_i32_1 = arith.constant 0 : i32
    return %c0_i32, %c0_i32_0 : i32, i32
  }
  func.func @transform_3(%arg0: i32) -> (i32, i32) {
    %c0_i32 = arith.constant 0 : i32
    %c0_i32_0 = arith.constant 0 : i32
    %c0_i32_1 = arith.constant 0 : i32
    return %c0_i32, %c0_i32_0 : i32, i32
  }
  func.func @transform_4(%arg0: i32) -> (i32, i32) {
    %c0_i32 = arith.constant 0 : i32
    %c0_i32_0 = arith.constant 0 : i32
    %c0_i32_1 = arith.constant 0 : i32
    return %c0_i32, %c0_i32_0 : i32, i32
  }
  func.func @transform_5(%arg0: i32) -> (i32, i32, i32) {
    %c0_i32 = arith.constant 0 : i32
    %c0_i32_0 = arith.constant 0 : i32
    %c0_i32_1 = arith.constant 0 : i32
    return %arg0, %c0_i32, %c0_i32_0 : i32, i32, i32
  }
  func.func @transform_6(%arg0: i32) -> (i32, i32, i32) {
    %c0_i32 = arith.constant 0 : i32
    %c0_i32_0 = arith.constant 0 : i32
    %c0_i32_1 = arith.constant 0 : i32
    return %arg0, %c0_i32, %c0_i32_0 : i32, i32, i32
  }
}

module attributes {stable_mosaic.version = 11 : i64} {
  func.func @kernel(%arg0: i32, %arg1: memref<1x16x100xbf16, #tpu.memory_space<vmem>>, %arg2: memref<16x144xbf16, #tpu.memory_space<vmem>>, %arg3: memref<16x1xf32, #tpu.memory_space<vmem>>, %arg4: memref<78x100xbf16, #tpu.memory_space<vmem>>, %arg5: memref<67x36xbf16, #tpu.memory_space<vmem>>, %arg6: memref<1x16x100xbf16, #tpu.memory_space<vmem>>, %arg7: memref<1x16x36xbf16, #tpu.memory_space<vmem>>, %arg8: memref<144x78xbf16, #tpu.memory_space<vmem>>) attributes {dimension_semantics = [#tpu.dimension_semantics<parallel>], iteration_bounds = array<i64: 2>, scalar_prefetch = 0 : i64, scratch_operands = 1 : i64, tpu.core_type = #tpu.core_type<tc>, window_params = [{transform_indices = @transform_0, window_bounds = array<i64: 1, 16, 100>}, {pipeline_mode = #tpu.pipeline_mode<synchronous>, transform_indices = @transform_1, window_bounds = array<i64: 16, 144>}, {pipeline_mode = #tpu.pipeline_mode<synchronous>, transform_indices = @transform_2, window_bounds = array<i64: 16, 1>}, {pipeline_mode = #tpu.pipeline_mode<synchronous>, transform_indices = @transform_3, window_bounds = array<i64: 78, 100>}, {pipeline_mode = #tpu.pipeline_mode<synchronous>, transform_indices = @transform_4, window_bounds = array<i64: 67, 36>}, {transform_indices = @transform_5, window_bounds = array<i64: 1, 16, 100>}, {transform_indices = @transform_6, window_bounds = array<i64: 1, 16, 36>}]} {
    %c0 = arith.constant 0 : index
    %c0_0 = arith.constant 0 : index
    %c0_1 = arith.constant 0 : index
    %0 = vector.load %arg1[%c0, %c0_0, %c0_1] : memref<1x16x100xbf16, #tpu.memory_space<vmem>>, vector<1x16x100xbf16>
    %1 = vector.shape_cast %0 : vector<1x16x100xbf16> to vector<16x100xbf16>
    %2 = vector.extract_strided_slice %1 {offsets = [0, 0], sizes = [16, 78], strides = [1, 1]} : vector<16x100xbf16> to vector<16x78xbf16>
    %c0_2 = arith.constant 0 : index
    %c0_3 = arith.constant 0 : index
    %3 = vector.load %arg8[%c0_2, %c0_3] : memref<144x78xbf16, #tpu.memory_space<vmem>>, vector<16x78xbf16>
    tpu.vector_store %arg8[%c0_2, %c0_3], %2 {strides = array<i32>} : memref<144x78xbf16, #tpu.memory_space<vmem>>, vector<16x78xbf16>,
    %4 = vector.extract_strided_slice %1 {offsets = [0, 1], sizes = [16, 78], strides = [1, 1]} : vector<16x100xbf16> to vector<16x78xbf16>
    %c16 = arith.constant 16 : index
    %c0_4 = arith.constant 0 : index
    %5 = vector.load %arg8[%c16, %c0_4] : memref<144x78xbf16, #tpu.memory_space<vmem>>, vector<16x78xbf16>
    tpu.vector_store %arg8[%c16, %c0_4], %4 {strides = array<i32>} : memref<144x78xbf16, #tpu.memory_space<vmem>>, vector<16x78xbf16>,
    %6 = vector.extract_strided_slice %1 {offsets = [0, 2], sizes = [16, 78], strides = [1, 1]} : vector<16x100xbf16> to vector<16x78xbf16>
    %c32 = arith.constant 32 : index
    %c0_5 = arith.constant 0 : index
    %7 = vector.load %arg8[%c32, %c0_5] : memref<144x78xbf16, #tpu.memory_space<vmem>>, vector<16x78xbf16>
    tpu.vector_store %arg8[%c32, %c0_5], %6 {strides = array<i32>} : memref<144x78xbf16, #tpu.memory_space<vmem>>, vector<16x78xbf16>,
    %8 = vector.extract_strided_slice %1 {offsets = [0, 10], sizes = [16, 78], strides = [1, 1]} : vector<16x100xbf16> to vector<16x78xbf16>
    %c48 = arith.constant 48 : index
    %c0_6 = arith.constant 0 : index
    %9 = vector.load %arg8[%c48, %c0_6] : memref<144x78xbf16, #tpu.memory_space<vmem>>, vector<16x78xbf16>
    tpu.vector_store %arg8[%c48, %c0_6], %8 {strides = array<i32>} : memref<144x78xbf16, #tpu.memory_space<vmem>>, vector<16x78xbf16>,
    %10 = vector.extract_strided_slice %1 {offsets = [0, 11], sizes = [16, 78], strides = [1, 1]} : vector<16x100xbf16> to vector<16x78xbf16>
    %c64 = arith.constant 64 : index
    %c0_7 = arith.constant 0 : index
    %11 = vector.load %arg8[%c64, %c0_7] : memref<144x78xbf16, #tpu.memory_space<vmem>>, vector<16x78xbf16>
    tpu.vector_store %arg8[%c64, %c0_7], %10 {strides = array<i32>} : memref<144x78xbf16, #tpu.memory_space<vmem>>, vector<16x78xbf16>,
    %12 = vector.extract_strided_slice %1 {offsets = [0, 12], sizes = [16, 78], strides = [1, 1]} : vector<16x100xbf16> to vector<16x78xbf16>
    %c80 = arith.constant 80 : index
    %c0_8 = arith.constant 0 : index
    %13 = vector.load %arg8[%c80, %c0_8] : memref<144x78xbf16, #tpu.memory_space<vmem>>, vector<16x78xbf16>
    tpu.vector_store %arg8[%c80, %c0_8], %12 {strides = array<i32>} : memref<144x78xbf16, #tpu.memory_space<vmem>>, vector<16x78xbf16>,
    %14 = vector.extract_strided_slice %1 {offsets = [0, 20], sizes = [16, 78], strides = [1, 1]} : vector<16x100xbf16> to vector<16x78xbf16>
    %c96 = arith.constant 96 : index
    %c0_9 = arith.constant 0 : index
    %15 = vector.load %arg8[%c96, %c0_9] : memref<144x78xbf16, #tpu.memory_space<vmem>>, vector<16x78xbf16>
    tpu.vector_store %arg8[%c96, %c0_9], %14 {strides = array<i32>} : memref<144x78xbf16, #tpu.memory_space<vmem>>, vector<16x78xbf16>,
    %16 = vector.extract_strided_slice %1 {offsets = [0, 21], sizes = [16, 78], strides = [1, 1]} : vector<16x100xbf16> to vector<16x78xbf16>
    %c112 = arith.constant 112 : index
    %c0_10 = arith.constant 0 : index
    %17 = vector.load %arg8[%c112, %c0_10] : memref<144x78xbf16, #tpu.memory_space<vmem>>, vector<16x78xbf16>
    tpu.vector_store %arg8[%c112, %c0_10], %16 {strides = array<i32>} : memref<144x78xbf16, #tpu.memory_space<vmem>>, vector<16x78xbf16>,
    %18 = vector.extract_strided_slice %1 {offsets = [0, 22], sizes = [16, 78], strides = [1, 1]} : vector<16x100xbf16> to vector<16x78xbf16>
    %c128 = arith.constant 128 : index
    %c0_11 = arith.constant 0 : index
    %19 = vector.load %arg8[%c128, %c0_11] : memref<144x78xbf16, #tpu.memory_space<vmem>>, vector<16x78xbf16>
    tpu.vector_store %arg8[%c128, %c0_11], %18 {strides = array<i32>} : memref<144x78xbf16, #tpu.memory_space<vmem>>, vector<16x78xbf16>,
    %c0_12 = arith.constant 0 : index
    %c0_13 = arith.constant 0 : index
    %20 = vector.load %arg2[%c0_12, %c0_13] : memref<16x144xbf16, #tpu.memory_space<vmem>>, vector<16x144xbf16>
    %c0_14 = arith.constant 0 : index
    %c0_15 = arith.constant 0 : index
    %21 = vector.load %arg8[%c0_14, %c0_15] : memref<144x78xbf16, #tpu.memory_space<vmem>>, vector<144x78xbf16>
    %cst = arith.constant dense<0.000000e+00> : vector<16x78xf32>
    %22 = tpu.matmul %20, %21, %cst {dimension_numbers = #tpu.dot_dimension_numbers<[1], [0], [0], [1], [0, 0, 1, 1], [], []>} : vector<16x144xbf16>, vector<144x78xbf16>, vector<16x78xf32> -> vector<16x78xf32>
    %c0_16 = arith.constant 0 : index
    %c0_17 = arith.constant 0 : index
    %23 = vector.load %arg3[%c0_16, %c0_17] : memref<16x1xf32, #tpu.memory_space<vmem>>, vector<16x1xf32>
    %24 = vector.broadcast %23 : vector<16x1xf32> to vector<16x78xf32>
    %25 = arith.addf %22, %24 : vector<16x78xf32>
    %26 = arith.truncf %25 : vector<16x78xf32> to vector<16x78xbf16>
    %c0_18 = arith.constant 0 : index
    %c0_19 = arith.constant 0 : index
    %27 = vector.load %arg4[%c0_18, %c0_19] : memref<78x100xbf16, #tpu.memory_space<vmem>>, vector<78x100xbf16>
    %cst_20 = arith.constant dense<0.000000e+00> : vector<16x100xf32>
    %28 = tpu.matmul %26, %27, %cst_20 {dimension_numbers = #tpu.dot_dimension_numbers<[1], [0], [0], [1], [0, 0, 1, 1], [], []>} : vector<16x78xbf16>, vector<78x100xbf16>, vector<16x100xf32> -> vector<16x100xf32>
    %29 = arith.truncf %28 : vector<16x100xf32> to vector<16x100xbf16>
    %c0_21 = arith.constant 0 : index
    %c0_22 = arith.constant 0 : index
    %c0_23 = arith.constant 0 : index
    %30 = vector.load %arg6[%c0_21, %c0_22, %c0_23] : memref<1x16x100xbf16, #tpu.memory_space<vmem>>, vector<1x16x100xbf16>
    %31 = vector.shape_cast %30 : vector<1x16x100xbf16> to vector<16x100xbf16>
    %32 = vector.shape_cast %29 : vector<16x100xbf16> to vector<1x16x100xbf16>
    tpu.vector_store %arg6[%c0_21, %c0_22, %c0_23], %32 {strides = array<i32>} : memref<1x16x100xbf16, #tpu.memory_space<vmem>>, vector<1x16x100xbf16>,
    %33 = vector.extract_strided_slice %25 {offsets = [0, 0], sizes = [16, 67], strides = [1, 1]} : vector<16x78xf32> to vector<16x67xf32>
    %34 = vector.extract_strided_slice %25 {offsets = [0, 1], sizes = [16, 67], strides = [1, 1]} : vector<16x78xf32> to vector<16x67xf32>
    %35 = arith.maximumf %33, %34 : vector<16x67xf32>
    %36 = vector.extract_strided_slice %25 {offsets = [0, 10], sizes = [16, 67], strides = [1, 1]} : vector<16x78xf32> to vector<16x67xf32>
    %37 = vector.extract_strided_slice %25 {offsets = [0, 11], sizes = [16, 67], strides = [1, 1]} : vector<16x78xf32> to vector<16x67xf32>
    %38 = arith.maximumf %36, %37 : vector<16x67xf32>
    %39 = arith.maximumf %35, %38 : vector<16x67xf32>
    %40 = arith.truncf %39 : vector<16x67xf32> to vector<16x67xbf16>
    %c0_24 = arith.constant 0 : index
    %c0_25 = arith.constant 0 : index
    %41 = vector.load %arg5[%c0_24, %c0_25] : memref<67x36xbf16, #tpu.memory_space<vmem>>, vector<67x36xbf16>
    %cst_26 = arith.constant dense<0.000000e+00> : vector<16x36xf32>
    %42 = tpu.matmul %40, %41, %cst_26 {dimension_numbers = #tpu.dot_dimension_numbers<[1], [0], [0], [1], [0, 0, 1, 1], [], []>} : vector<16x67xbf16>, vector<67x36xbf16>, vector<16x36xf32> -> vector<16x36xf32>
    %43 = arith.truncf %42 : vector<16x36xf32> to vector<16x36xbf16>
    %c0_27 = arith.constant 0 : index
    %c0_28 = arith.constant 0 : index
    %c0_29 = arith.constant 0 : index
    %44 = vector.load %arg7[%c0_27, %c0_28, %c0_29] : memref<1x16x36xbf16, #tpu.memory_space<vmem>>, vector<1x16x36xbf16>
    %45 = vector.shape_cast %44 : vector<1x16x36xbf16> to vector<16x36xbf16>
    %46 = vector.shape_cast %43 : vector<16x36xbf16> to vector<1x16x36xbf16>
    tpu.vector_store %arg7[%c0_27, %c0_28, %c0_29], %46 {strides = array<i32>} : memref<1x16x36xbf16, #tpu.memory_space<vmem>>, vector<1x16x36xbf16>,
    return
  }
  func.func @transform_0(%arg0: i32) -> (i32, i32, i32) {
    %c0_i32 = arith.constant 0 : i32
    %c0_i32_0 = arith.constant 0 : i32
    %c0_i32_1 = arith.constant 0 : i32
    return %arg0, %c0_i32, %c0_i32_0 : i32, i32, i32
  }
  func.func @transform_1(%arg0: i32) -> (i32, i32) {
    %c0_i32 = arith.constant 0 : i32
    %c0_i32_0 = arith.constant 0 : i32
    %c0_i32_1 = arith.constant 0 : i32
    return %c0_i32, %c0_i32_0 : i32, i32
  }
  func.func @transform_2(%arg0: i32) -> (i32, i32) {
    %c0_i32 = arith.constant 0 : i32
    %c0_i32_0 = arith.constant 0 : i32
    %c0_i32_1 = arith.constant 0 : i32
    return %c0_i32, %c0_i32_0 : i32, i32
  }
  func.func @transform_3(%arg0: i32) -> (i32, i32) {
    %c0_i32 = arith.constant 0 : i32
    %c0_i32_0 = arith.constant 0 : i32
    %c0_i32_1 = arith.constant 0 : i32
    return %c0_i32, %c0_i32_0 : i32, i32
  }
  func.func @transform_4(%arg0: i32) -> (i32, i32) {
    %c0_i32 = arith.constant 0 : i32
    %c0_i32_0 = arith.constant 0 : i32
    %c0_i32_1 = arith.constant 0 : i32
    return %c0_i32, %c0_i32_0 : i32, i32
  }
  func.func @transform_5(%arg0: i32) -> (i32, i32, i32) {
    %c0_i32 = arith.constant 0 : i32
    %c0_i32_0 = arith.constant 0 : i32
    %c0_i32_1 = arith.constant 0 : i32
    return %arg0, %c0_i32, %c0_i32_0 : i32, i32, i32
  }
  func.func @transform_6(%arg0: i32) -> (i32, i32, i32) {
    %c0_i32 = arith.constant 0 : i32
    %c0_i32_0 = arith.constant 0 : i32
    %c0_i32_1 = arith.constant 0 : i32
    return %arg0, %c0_i32, %c0_i32_0 : i32, i32, i32
  }
}

module attributes {stable_mosaic.version = 11 : i64} {
  func.func @_deconv_kernel(%arg0: i32, %arg1: memref<1x32x36xbf16, #tpu.memory_space<vmem>>, %arg2: memref<4x16x32xbf16, #tpu.memory_space<vmem>>, %arg3: memref<4x36x100xbf16, #tpu.memory_space<vmem>>, %arg4: memref<16x1xf32, #tpu.memory_space<vmem>>, %arg5: memref<1x100xf32, #tpu.memory_space<vmem>>, %arg6: memref<1x16x100xbf16, #tpu.memory_space<vmem>>) attributes {dimension_semantics = [#tpu.dimension_semantics<parallel>], iteration_bounds = array<i64: 2>, scalar_prefetch = 0 : i64, scratch_operands = 0 : i64, tpu.core_type = #tpu.core_type<tc>, window_params = [{transform_indices = @transform_0, window_bounds = array<i64: 1, 32, 36>}, {pipeline_mode = #tpu.pipeline_mode<synchronous>, transform_indices = @transform_1, window_bounds = array<i64: 4, 16, 32>}, {pipeline_mode = #tpu.pipeline_mode<synchronous>, transform_indices = @transform_2, window_bounds = array<i64: 4, 36, 100>}, {pipeline_mode = #tpu.pipeline_mode<synchronous>, transform_indices = @transform_3, window_bounds = array<i64: 16, 1>}, {pipeline_mode = #tpu.pipeline_mode<synchronous>, transform_indices = @transform_4, window_bounds = array<i64: 1, 100>}, {transform_indices = @transform_5, window_bounds = array<i64: 1, 16, 100>}]} {
    %c0 = arith.constant 0 : index
    %c0_0 = arith.constant 0 : index
    %c0_1 = arith.constant 0 : index
    %0 = vector.load %arg1[%c0, %c0_0, %c0_1] : memref<1x32x36xbf16, #tpu.memory_space<vmem>>, vector<1x32x36xbf16>
    %1 = vector.shape_cast %0 : vector<1x32x36xbf16> to vector<32x36xbf16>
    %c0_2 = arith.constant 0 : index
    %c0_3 = arith.constant 0 : index
    %c0_4 = arith.constant 0 : index
    %2 = vector.load %arg2[%c0_2, %c0_3, %c0_4] : memref<4x16x32xbf16, #tpu.memory_space<vmem>>, vector<1x16x32xbf16>
    %3 = vector.shape_cast %2 : vector<1x16x32xbf16> to vector<16x32xbf16>
    %cst = arith.constant dense<0.000000e+00> : vector<16x36xf32>
    %4 = tpu.matmul %3, %1, %cst {dimension_numbers = #tpu.dot_dimension_numbers<[1], [0], [0], [1], [0, 0, 1, 1], [], []>} : vector<16x32xbf16>, vector<32x36xbf16>, vector<16x36xf32> -> vector<16x36xf32>
    %5 = arith.truncf %4 : vector<16x36xf32> to vector<16x36xbf16>
    %c0_5 = arith.constant 0 : index
    %c0_6 = arith.constant 0 : index
    %c0_7 = arith.constant 0 : index
    %6 = vector.load %arg3[%c0_5, %c0_6, %c0_7] : memref<4x36x100xbf16, #tpu.memory_space<vmem>>, vector<1x36x100xbf16>
    %7 = vector.shape_cast %6 : vector<1x36x100xbf16> to vector<36x100xbf16>
    %cst_8 = arith.constant dense<0.000000e+00> : vector<16x100xf32>
    %8 = tpu.matmul %5, %7, %cst_8 {dimension_numbers = #tpu.dot_dimension_numbers<[1], [0], [0], [1], [0, 0, 1, 1], [], []>} : vector<16x36xbf16>, vector<36x100xbf16>, vector<16x100xf32> -> vector<16x100xf32>
    %c1 = arith.constant 1 : index
    %c0_9 = arith.constant 0 : index
    %c0_10 = arith.constant 0 : index
    %9 = vector.load %arg2[%c1, %c0_9, %c0_10] : memref<4x16x32xbf16, #tpu.memory_space<vmem>>, vector<1x16x32xbf16>
    %10 = vector.shape_cast %9 : vector<1x16x32xbf16> to vector<16x32xbf16>
    %cst_11 = arith.constant dense<0.000000e+00> : vector<16x36xf32>
    %11 = tpu.matmul %10, %1, %cst_11 {dimension_numbers = #tpu.dot_dimension_numbers<[1], [0], [0], [1], [0, 0, 1, 1], [], []>} : vector<16x32xbf16>, vector<32x36xbf16>, vector<16x36xf32> -> vector<16x36xf32>
    %12 = arith.truncf %11 : vector<16x36xf32> to vector<16x36xbf16>
    %c1_12 = arith.constant 1 : index
    %c0_13 = arith.constant 0 : index
    %c0_14 = arith.constant 0 : index
    %13 = vector.load %arg3[%c1_12, %c0_13, %c0_14] : memref<4x36x100xbf16, #tpu.memory_space<vmem>>, vector<1x36x100xbf16>
    %14 = vector.shape_cast %13 : vector<1x36x100xbf16> to vector<36x100xbf16>
    %cst_15 = arith.constant dense<0.000000e+00> : vector<16x100xf32>
    %15 = tpu.matmul %12, %14, %cst_15 {dimension_numbers = #tpu.dot_dimension_numbers<[1], [0], [0], [1], [0, 0, 1, 1], [], []>} : vector<16x36xbf16>, vector<36x100xbf16>, vector<16x100xf32> -> vector<16x100xf32>
    %16 = arith.addf %8, %15 : vector<16x100xf32>
    %c2 = arith.constant 2 : index
    %c0_16 = arith.constant 0 : index
    %c0_17 = arith.constant 0 : index
    %17 = vector.load %arg2[%c2, %c0_16, %c0_17] : memref<4x16x32xbf16, #tpu.memory_space<vmem>>, vector<1x16x32xbf16>
    %18 = vector.shape_cast %17 : vector<1x16x32xbf16> to vector<16x32xbf16>
    %cst_18 = arith.constant dense<0.000000e+00> : vector<16x36xf32>
    %19 = tpu.matmul %18, %1, %cst_18 {dimension_numbers = #tpu.dot_dimension_numbers<[1], [0], [0], [1], [0, 0, 1, 1], [], []>} : vector<16x32xbf16>, vector<32x36xbf16>, vector<16x36xf32> -> vector<16x36xf32>
    %20 = arith.truncf %19 : vector<16x36xf32> to vector<16x36xbf16>
    %c2_19 = arith.constant 2 : index
    %c0_20 = arith.constant 0 : index
    %c0_21 = arith.constant 0 : index
    %21 = vector.load %arg3[%c2_19, %c0_20, %c0_21] : memref<4x36x100xbf16, #tpu.memory_space<vmem>>, vector<1x36x100xbf16>
    %22 = vector.shape_cast %21 : vector<1x36x100xbf16> to vector<36x100xbf16>
    %cst_22 = arith.constant dense<0.000000e+00> : vector<16x100xf32>
    %23 = tpu.matmul %20, %22, %cst_22 {dimension_numbers = #tpu.dot_dimension_numbers<[1], [0], [0], [1], [0, 0, 1, 1], [], []>} : vector<16x36xbf16>, vector<36x100xbf16>, vector<16x100xf32> -> vector<16x100xf32>
    %24 = arith.addf %16, %23 : vector<16x100xf32>
    %c3 = arith.constant 3 : index
    %c0_23 = arith.constant 0 : index
    %c0_24 = arith.constant 0 : index
    %25 = vector.load %arg2[%c3, %c0_23, %c0_24] : memref<4x16x32xbf16, #tpu.memory_space<vmem>>, vector<1x16x32xbf16>
    %26 = vector.shape_cast %25 : vector<1x16x32xbf16> to vector<16x32xbf16>
    %cst_25 = arith.constant dense<0.000000e+00> : vector<16x36xf32>
    %27 = tpu.matmul %26, %1, %cst_25 {dimension_numbers = #tpu.dot_dimension_numbers<[1], [0], [0], [1], [0, 0, 1, 1], [], []>} : vector<16x32xbf16>, vector<32x36xbf16>, vector<16x36xf32> -> vector<16x36xf32>
    %28 = arith.truncf %27 : vector<16x36xf32> to vector<16x36xbf16>
    %c3_26 = arith.constant 3 : index
    %c0_27 = arith.constant 0 : index
    %c0_28 = arith.constant 0 : index
    %29 = vector.load %arg3[%c3_26, %c0_27, %c0_28] : memref<4x36x100xbf16, #tpu.memory_space<vmem>>, vector<1x36x100xbf16>
    %30 = vector.shape_cast %29 : vector<1x36x100xbf16> to vector<36x100xbf16>
    %cst_29 = arith.constant dense<0.000000e+00> : vector<16x100xf32>
    %31 = tpu.matmul %28, %30, %cst_29 {dimension_numbers = #tpu.dot_dimension_numbers<[1], [0], [0], [1], [0, 0, 1, 1], [], []>} : vector<16x36xbf16>, vector<36x100xbf16>, vector<16x100xf32> -> vector<16x100xf32>
    %32 = arith.addf %24, %31 : vector<16x100xf32>
    %c0_30 = arith.constant 0 : index
    %c0_31 = arith.constant 0 : index
    %33 = vector.load %arg4[%c0_30, %c0_31] : memref<16x1xf32, #tpu.memory_space<vmem>>, vector<16x1xf32>
    %34 = vector.broadcast %33 : vector<16x1xf32> to vector<16x100xf32>
    %35 = arith.addf %32, %34 : vector<16x100xf32>
    %c0_32 = arith.constant 0 : index
    %c0_33 = arith.constant 0 : index
    %36 = vector.load %arg5[%c0_32, %c0_33] : memref<1x100xf32, #tpu.memory_space<vmem>>, vector<1x100xf32>
    %37 = vector.broadcast %36 : vector<1x100xf32> to vector<16x100xf32>
    %38 = arith.mulf %35, %37 : vector<16x100xf32>
    %39 = arith.truncf %38 : vector<16x100xf32> to vector<16x100xbf16>
    %c0_34 = arith.constant 0 : index
    %c0_35 = arith.constant 0 : index
    %c0_36 = arith.constant 0 : index
    %40 = vector.load %arg6[%c0_34, %c0_35, %c0_36] : memref<1x16x100xbf16, #tpu.memory_space<vmem>>, vector<1x16x100xbf16>
    %41 = vector.shape_cast %40 : vector<1x16x100xbf16> to vector<16x100xbf16>
    %42 = vector.shape_cast %39 : vector<16x100xbf16> to vector<1x16x100xbf16>
    tpu.vector_store %arg6[%c0_34, %c0_35, %c0_36], %42 {strides = array<i32>} : memref<1x16x100xbf16, #tpu.memory_space<vmem>>, vector<1x16x100xbf16>,
    return
  }
  func.func @transform_0(%arg0: i32) -> (i32, i32, i32) {
    %c0_i32 = arith.constant 0 : i32
    %c0_i32_0 = arith.constant 0 : i32
    %c0_i32_1 = arith.constant 0 : i32
    return %arg0, %c0_i32, %c0_i32_0 : i32, i32, i32
  }
  func.func @transform_1(%arg0: i32) -> (i32, i32, i32) {
    %c0_i32 = arith.constant 0 : i32
    %c0_i32_0 = arith.constant 0 : i32
    %c0_i32_1 = arith.constant 0 : i32
    %c0_i32_2 = arith.constant 0 : i32
    return %c0_i32, %c0_i32_0, %c0_i32_1 : i32, i32, i32
  }
  func.func @transform_2(%arg0: i32) -> (i32, i32, i32) {
    %c0_i32 = arith.constant 0 : i32
    %c0_i32_0 = arith.constant 0 : i32
    %c0_i32_1 = arith.constant 0 : i32
    %c0_i32_2 = arith.constant 0 : i32
    return %c0_i32, %c0_i32_0, %c0_i32_1 : i32, i32, i32
  }
  func.func @transform_3(%arg0: i32) -> (i32, i32) {
    %c0_i32 = arith.constant 0 : i32
    %c0_i32_0 = arith.constant 0 : i32
    %c0_i32_1 = arith.constant 0 : i32
    return %c0_i32, %c0_i32_0 : i32, i32
  }
  func.func @transform_4(%arg0: i32) -> (i32, i32) {
    %c0_i32 = arith.constant 0 : i32
    %c0_i32_0 = arith.constant 0 : i32
    %c0_i32_1 = arith.constant 0 : i32
    return %c0_i32, %c0_i32_0 : i32, i32
  }
  func.func @transform_5(%arg0: i32) -> (i32, i32, i32) {
    %c0_i32 = arith.constant 0 : i32
    %c0_i32_0 = arith.constant 0 : i32
    %c0_i32_1 = arith.constant 0 : i32
    return %arg0, %c0_i32, %c0_i32_0 : i32, i32, i32
  }
}

module attributes {stable_mosaic.version = 11 : i64} {
  func.func @kernel(%arg0: i32, %arg1: memref<1x16x36xbf16, #tpu.memory_space<vmem>>, %arg2: memref<32x144xbf16, #tpu.memory_space<vmem>>, %arg3: memref<32x1xf32, #tpu.memory_space<vmem>>, %arg4: memref<22x36xbf16, #tpu.memory_space<vmem>>, %arg5: memref<1x32x36xbf16, #tpu.memory_space<vmem>>, %arg6: memref<144x22xbf16, #tpu.memory_space<vmem>>) attributes {dimension_semantics = [#tpu.dimension_semantics<parallel>], iteration_bounds = array<i64: 2>, scalar_prefetch = 0 : i64, scratch_operands = 1 : i64, tpu.core_type = #tpu.core_type<tc>, window_params = [{transform_indices = @transform_0, window_bounds = array<i64: 1, 16, 36>}, {pipeline_mode = #tpu.pipeline_mode<synchronous>, transform_indices = @transform_1, window_bounds = array<i64: 32, 144>}, {pipeline_mode = #tpu.pipeline_mode<synchronous>, transform_indices = @transform_2, window_bounds = array<i64: 32, 1>}, {pipeline_mode = #tpu.pipeline_mode<synchronous>, transform_indices = @transform_3, window_bounds = array<i64: 22, 36>}, {transform_indices = @transform_4, window_bounds = array<i64: 1, 32, 36>}]} {
    %c0 = arith.constant 0 : index
    %c0_0 = arith.constant 0 : index
    %c0_1 = arith.constant 0 : index
    %0 = vector.load %arg1[%c0, %c0_0, %c0_1] : memref<1x16x36xbf16, #tpu.memory_space<vmem>>, vector<1x16x36xbf16>
    %1 = vector.shape_cast %0 : vector<1x16x36xbf16> to vector<16x36xbf16>
    %2 = vector.extract_strided_slice %1 {offsets = [0, 0], sizes = [16, 22], strides = [1, 1]} : vector<16x36xbf16> to vector<16x22xbf16>
    %c0_2 = arith.constant 0 : index
    %c0_3 = arith.constant 0 : index
    %3 = vector.load %arg6[%c0_2, %c0_3] : memref<144x22xbf16, #tpu.memory_space<vmem>>, vector<16x22xbf16>
    tpu.vector_store %arg6[%c0_2, %c0_3], %2 {strides = array<i32>} : memref<144x22xbf16, #tpu.memory_space<vmem>>, vector<16x22xbf16>,
    %4 = vector.extract_strided_slice %1 {offsets = [0, 1], sizes = [16, 22], strides = [1, 1]} : vector<16x36xbf16> to vector<16x22xbf16>
    %c16 = arith.constant 16 : index
    %c0_4 = arith.constant 0 : index
    %5 = vector.load %arg6[%c16, %c0_4] : memref<144x22xbf16, #tpu.memory_space<vmem>>, vector<16x22xbf16>
    tpu.vector_store %arg6[%c16, %c0_4], %4 {strides = array<i32>} : memref<144x22xbf16, #tpu.memory_space<vmem>>, vector<16x22xbf16>,
    %6 = vector.extract_strided_slice %1 {offsets = [0, 2], sizes = [16, 22], strides = [1, 1]} : vector<16x36xbf16> to vector<16x22xbf16>
    %c32 = arith.constant 32 : index
    %c0_5 = arith.constant 0 : index
    %7 = vector.load %arg6[%c32, %c0_5] : memref<144x22xbf16, #tpu.memory_space<vmem>>, vector<16x22xbf16>
    tpu.vector_store %arg6[%c32, %c0_5], %6 {strides = array<i32>} : memref<144x22xbf16, #tpu.memory_space<vmem>>, vector<16x22xbf16>,
    %8 = vector.extract_strided_slice %1 {offsets = [0, 6], sizes = [16, 22], strides = [1, 1]} : vector<16x36xbf16> to vector<16x22xbf16>
    %c48 = arith.constant 48 : index
    %c0_6 = arith.constant 0 : index
    %9 = vector.load %arg6[%c48, %c0_6] : memref<144x22xbf16, #tpu.memory_space<vmem>>, vector<16x22xbf16>
    tpu.vector_store %arg6[%c48, %c0_6], %8 {strides = array<i32>} : memref<144x22xbf16, #tpu.memory_space<vmem>>, vector<16x22xbf16>,
    %10 = vector.extract_strided_slice %1 {offsets = [0, 7], sizes = [16, 22], strides = [1, 1]} : vector<16x36xbf16> to vector<16x22xbf16>
    %c64 = arith.constant 64 : index
    %c0_7 = arith.constant 0 : index
    %11 = vector.load %arg6[%c64, %c0_7] : memref<144x22xbf16, #tpu.memory_space<vmem>>, vector<16x22xbf16>
    tpu.vector_store %arg6[%c64, %c0_7], %10 {strides = array<i32>} : memref<144x22xbf16, #tpu.memory_space<vmem>>, vector<16x22xbf16>,
    %12 = vector.extract_strided_slice %1 {offsets = [0, 8], sizes = [16, 22], strides = [1, 1]} : vector<16x36xbf16> to vector<16x22xbf16>
    %c80 = arith.constant 80 : index
    %c0_8 = arith.constant 0 : index
    %13 = vector.load %arg6[%c80, %c0_8] : memref<144x22xbf16, #tpu.memory_space<vmem>>, vector<16x22xbf16>
    tpu.vector_store %arg6[%c80, %c0_8], %12 {strides = array<i32>} : memref<144x22xbf16, #tpu.memory_space<vmem>>, vector<16x22xbf16>,
    %14 = vector.extract_strided_slice %1 {offsets = [0, 12], sizes = [16, 22], strides = [1, 1]} : vector<16x36xbf16> to vector<16x22xbf16>
    %c96 = arith.constant 96 : index
    %c0_9 = arith.constant 0 : index
    %15 = vector.load %arg6[%c96, %c0_9] : memref<144x22xbf16, #tpu.memory_space<vmem>>, vector<16x22xbf16>
    tpu.vector_store %arg6[%c96, %c0_9], %14 {strides = array<i32>} : memref<144x22xbf16, #tpu.memory_space<vmem>>, vector<16x22xbf16>,
    %16 = vector.extract_strided_slice %1 {offsets = [0, 13], sizes = [16, 22], strides = [1, 1]} : vector<16x36xbf16> to vector<16x22xbf16>
    %c112 = arith.constant 112 : index
    %c0_10 = arith.constant 0 : index
    %17 = vector.load %arg6[%c112, %c0_10] : memref<144x22xbf16, #tpu.memory_space<vmem>>, vector<16x22xbf16>
    tpu.vector_store %arg6[%c112, %c0_10], %16 {strides = array<i32>} : memref<144x22xbf16, #tpu.memory_space<vmem>>, vector<16x22xbf16>,
    %18 = vector.extract_strided_slice %1 {offsets = [0, 14], sizes = [16, 22], strides = [1, 1]} : vector<16x36xbf16> to vector<16x22xbf16>
    %c128 = arith.constant 128 : index
    %c0_11 = arith.constant 0 : index
    %19 = vector.load %arg6[%c128, %c0_11] : memref<144x22xbf16, #tpu.memory_space<vmem>>, vector<16x22xbf16>
    tpu.vector_store %arg6[%c128, %c0_11], %18 {strides = array<i32>} : memref<144x22xbf16, #tpu.memory_space<vmem>>, vector<16x22xbf16>,
    %c0_12 = arith.constant 0 : index
    %c0_13 = arith.constant 0 : index
    %20 = vector.load %arg2[%c0_12, %c0_13] : memref<32x144xbf16, #tpu.memory_space<vmem>>, vector<32x144xbf16>
    %c0_14 = arith.constant 0 : index
    %c0_15 = arith.constant 0 : index
    %21 = vector.load %arg6[%c0_14, %c0_15] : memref<144x22xbf16, #tpu.memory_space<vmem>>, vector<144x22xbf16>
    %cst = arith.constant dense<0.000000e+00> : vector<32x22xf32>
    %22 = tpu.matmul %20, %21, %cst {dimension_numbers = #tpu.dot_dimension_numbers<[1], [0], [0], [1], [0, 0, 1, 1], [], []>} : vector<32x144xbf16>, vector<144x22xbf16>, vector<32x22xf32> -> vector<32x22xf32>
    %c0_16 = arith.constant 0 : index
    %c0_17 = arith.constant 0 : index
    %23 = vector.load %arg3[%c0_16, %c0_17] : memref<32x1xf32, #tpu.memory_space<vmem>>, vector<32x1xf32>
    %24 = vector.broadcast %23 : vector<32x1xf32> to vector<32x22xf32>
    %25 = arith.addf %22, %24 : vector<32x22xf32>
    %26 = arith.truncf %25 : vector<32x22xf32> to vector<32x22xbf16>
    %c0_18 = arith.constant 0 : index
    %c0_19 = arith.constant 0 : index
    %27 = vector.load %arg4[%c0_18, %c0_19] : memref<22x36xbf16, #tpu.memory_space<vmem>>, vector<22x36xbf16>
    %cst_20 = arith.constant dense<0.000000e+00> : vector<32x36xf32>
    %28 = tpu.matmul %26, %27, %cst_20 {dimension_numbers = #tpu.dot_dimension_numbers<[1], [0], [0], [1], [0, 0, 1, 1], [], []>} : vector<32x22xbf16>, vector<22x36xbf16>, vector<32x36xf32> -> vector<32x36xf32>
    %29 = arith.truncf %28 : vector<32x36xf32> to vector<32x36xbf16>
    %c0_21 = arith.constant 0 : index
    %c0_22 = arith.constant 0 : index
    %c0_23 = arith.constant 0 : index
    %30 = vector.load %arg5[%c0_21, %c0_22, %c0_23] : memref<1x32x36xbf16, #tpu.memory_space<vmem>>, vector<1x32x36xbf16>
    %31 = vector.shape_cast %30 : vector<1x32x36xbf16> to vector<32x36xbf16>
    %32 = vector.shape_cast %29 : vector<32x36xbf16> to vector<1x32x36xbf16>
    tpu.vector_store %arg5[%c0_21, %c0_22, %c0_23], %32 {strides = array<i32>} : memref<1x32x36xbf16, #tpu.memory_space<vmem>>, vector<1x32x36xbf16>,
    return
  }
  func.func @transform_0(%arg0: i32) -> (i32, i32, i32) {
    %c0_i32 = arith.constant 0 : i32
    %c0_i32_0 = arith.constant 0 : i32
    %c0_i32_1 = arith.constant 0 : i32
    return %arg0, %c0_i32, %c0_i32_0 : i32, i32, i32
  }
  func.func @transform_1(%arg0: i32) -> (i32, i32) {
    %c0_i32 = arith.constant 0 : i32
    %c0_i32_0 = arith.constant 0 : i32
    %c0_i32_1 = arith.constant 0 : i32
    return %c0_i32, %c0_i32_0 : i32, i32
  }
  func.func @transform_2(%arg0: i32) -> (i32, i32) {
    %c0_i32 = arith.constant 0 : i32
    %c0_i32_0 = arith.constant 0 : i32
    %c0_i32_1 = arith.constant 0 : i32
    return %c0_i32, %c0_i32_0 : i32, i32
  }
  func.func @transform_3(%arg0: i32) -> (i32, i32) {
    %c0_i32 = arith.constant 0 : i32
    %c0_i32_0 = arith.constant 0 : i32
    %c0_i32_1 = arith.constant 0 : i32
    return %c0_i32, %c0_i32_0 : i32, i32
  }
  func.func @transform_4(%arg0: i32) -> (i32, i32, i32) {
    %c0_i32 = arith.constant 0 : i32
    %c0_i32_0 = arith.constant 0 : i32
    %c0_i32_1 = arith.constant 0 : i32
    return %arg0, %c0_i32, %c0_i32_0 : i32, i32, i32
  }
}

module attributes {stable_mosaic.version = 11 : i64} {
  func.func @kernel(%arg0: i32, %arg1: memref<1x16x100xbf16, #tpu.memory_space<vmem>>, %arg2: memref<1x16x100xbf16, #tpu.memory_space<vmem>>, %arg3: memref<16x288xbf16, #tpu.memory_space<vmem>>, %arg4: memref<16x1xf32, #tpu.memory_space<vmem>>, %arg5: memref<78x100xbf16, #tpu.memory_space<vmem>>, %arg6: memref<1x16x100xbf16, #tpu.memory_space<vmem>>, %arg7: memref<288x78xbf16, #tpu.memory_space<vmem>>) attributes {dimension_semantics = [#tpu.dimension_semantics<parallel>], iteration_bounds = array<i64: 2>, scalar_prefetch = 0 : i64, scratch_operands = 1 : i64, tpu.core_type = #tpu.core_type<tc>, window_params = [{transform_indices = @transform_0, window_bounds = array<i64: 1, 16, 100>}, {transform_indices = @transform_1, window_bounds = array<i64: 1, 16, 100>}, {pipeline_mode = #tpu.pipeline_mode<synchronous>, transform_indices = @transform_2, window_bounds = array<i64: 16, 288>}, {pipeline_mode = #tpu.pipeline_mode<synchronous>, transform_indices = @transform_3, window_bounds = array<i64: 16, 1>}, {pipeline_mode = #tpu.pipeline_mode<synchronous>, transform_indices = @transform_4, window_bounds = array<i64: 78, 100>}, {transform_indices = @transform_5, window_bounds = array<i64: 1, 16, 100>}]} {
    %c0 = arith.constant 0 : index
    %c0_0 = arith.constant 0 : index
    %c0_1 = arith.constant 0 : index
    %0 = vector.load %arg1[%c0, %c0_0, %c0_1] : memref<1x16x100xbf16, #tpu.memory_space<vmem>>, vector<1x16x100xbf16>
    %1 = vector.shape_cast %0 : vector<1x16x100xbf16> to vector<16x100xbf16>
    %2 = vector.extract_strided_slice %1 {offsets = [0, 0], sizes = [16, 78], strides = [1, 1]} : vector<16x100xbf16> to vector<16x78xbf16>
    %c0_2 = arith.constant 0 : index
    %c0_3 = arith.constant 0 : index
    %3 = vector.load %arg7[%c0_2, %c0_3] : memref<288x78xbf16, #tpu.memory_space<vmem>>, vector<16x78xbf16>
    tpu.vector_store %arg7[%c0_2, %c0_3], %2 {strides = array<i32>} : memref<288x78xbf16, #tpu.memory_space<vmem>>, vector<16x78xbf16>,
    %4 = vector.extract_strided_slice %1 {offsets = [0, 1], sizes = [16, 78], strides = [1, 1]} : vector<16x100xbf16> to vector<16x78xbf16>
    %c16 = arith.constant 16 : index
    %c0_4 = arith.constant 0 : index
    %5 = vector.load %arg7[%c16, %c0_4] : memref<288x78xbf16, #tpu.memory_space<vmem>>, vector<16x78xbf16>
    tpu.vector_store %arg7[%c16, %c0_4], %4 {strides = array<i32>} : memref<288x78xbf16, #tpu.memory_space<vmem>>, vector<16x78xbf16>,
    %6 = vector.extract_strided_slice %1 {offsets = [0, 2], sizes = [16, 78], strides = [1, 1]} : vector<16x100xbf16> to vector<16x78xbf16>
    %c32 = arith.constant 32 : index
    %c0_5 = arith.constant 0 : index
    %7 = vector.load %arg7[%c32, %c0_5] : memref<288x78xbf16, #tpu.memory_space<vmem>>, vector<16x78xbf16>
    tpu.vector_store %arg7[%c32, %c0_5], %6 {strides = array<i32>} : memref<288x78xbf16, #tpu.memory_space<vmem>>, vector<16x78xbf16>,
    %8 = vector.extract_strided_slice %1 {offsets = [0, 10], sizes = [16, 78], strides = [1, 1]} : vector<16x100xbf16> to vector<16x78xbf16>
    %c48 = arith.constant 48 : index
    %c0_6 = arith.constant 0 : index
    %9 = vector.load %arg7[%c48, %c0_6] : memref<288x78xbf16, #tpu.memory_space<vmem>>, vector<16x78xbf16>
    tpu.vector_store %arg7[%c48, %c0_6], %8 {strides = array<i32>} : memref<288x78xbf16, #tpu.memory_space<vmem>>, vector<16x78xbf16>,
    %10 = vector.extract_strided_slice %1 {offsets = [0, 11], sizes = [16, 78], strides = [1, 1]} : vector<16x100xbf16> to vector<16x78xbf16>
    %c64 = arith.constant 64 : index
    %c0_7 = arith.constant 0 : index
    %11 = vector.load %arg7[%c64, %c0_7] : memref<288x78xbf16, #tpu.memory_space<vmem>>, vector<16x78xbf16>
    tpu.vector_store %arg7[%c64, %c0_7], %10 {strides = array<i32>} : memref<288x78xbf16, #tpu.memory_space<vmem>>, vector<16x78xbf16>,
    %12 = vector.extract_strided_slice %1 {offsets = [0, 12], sizes = [16, 78], strides = [1, 1]} : vector<16x100xbf16> to vector<16x78xbf16>
    %c80 = arith.constant 80 : index
    %c0_8 = arith.constant 0 : index
    %13 = vector.load %arg7[%c80, %c0_8] : memref<288x78xbf16, #tpu.memory_space<vmem>>, vector<16x78xbf16>
    tpu.vector_store %arg7[%c80, %c0_8], %12 {strides = array<i32>} : memref<288x78xbf16, #tpu.memory_space<vmem>>, vector<16x78xbf16>,
    %14 = vector.extract_strided_slice %1 {offsets = [0, 20], sizes = [16, 78], strides = [1, 1]} : vector<16x100xbf16> to vector<16x78xbf16>
    %c96 = arith.constant 96 : index
    %c0_9 = arith.constant 0 : index
    %15 = vector.load %arg7[%c96, %c0_9] : memref<288x78xbf16, #tpu.memory_space<vmem>>, vector<16x78xbf16>
    tpu.vector_store %arg7[%c96, %c0_9], %14 {strides = array<i32>} : memref<288x78xbf16, #tpu.memory_space<vmem>>, vector<16x78xbf16>,
    %16 = vector.extract_strided_slice %1 {offsets = [0, 21], sizes = [16, 78], strides = [1, 1]} : vector<16x100xbf16> to vector<16x78xbf16>
    %c112 = arith.constant 112 : index
    %c0_10 = arith.constant 0 : index
    %17 = vector.load %arg7[%c112, %c0_10] : memref<288x78xbf16, #tpu.memory_space<vmem>>, vector<16x78xbf16>
    tpu.vector_store %arg7[%c112, %c0_10], %16 {strides = array<i32>} : memref<288x78xbf16, #tpu.memory_space<vmem>>, vector<16x78xbf16>,
    %18 = vector.extract_strided_slice %1 {offsets = [0, 22], sizes = [16, 78], strides = [1, 1]} : vector<16x100xbf16> to vector<16x78xbf16>
    %c128 = arith.constant 128 : index
    %c0_11 = arith.constant 0 : index
    %19 = vector.load %arg7[%c128, %c0_11] : memref<288x78xbf16, #tpu.memory_space<vmem>>, vector<16x78xbf16>
    tpu.vector_store %arg7[%c128, %c0_11], %18 {strides = array<i32>} : memref<288x78xbf16, #tpu.memory_space<vmem>>, vector<16x78xbf16>,
    %c0_12 = arith.constant 0 : index
    %c0_13 = arith.constant 0 : index
    %c0_14 = arith.constant 0 : index
    %20 = vector.load %arg2[%c0_12, %c0_13, %c0_14] : memref<1x16x100xbf16, #tpu.memory_space<vmem>>, vector<1x16x100xbf16>
    %21 = vector.shape_cast %20 : vector<1x16x100xbf16> to vector<16x100xbf16>
    %22 = vector.extract_strided_slice %21 {offsets = [0, 0], sizes = [16, 78], strides = [1, 1]} : vector<16x100xbf16> to vector<16x78xbf16>
    %c144 = arith.constant 144 : index
    %c0_15 = arith.constant 0 : index
    %23 = vector.load %arg7[%c144, %c0_15] : memref<288x78xbf16, #tpu.memory_space<vmem>>, vector<16x78xbf16>
    tpu.vector_store %arg7[%c144, %c0_15], %22 {strides = array<i32>} : memref<288x78xbf16, #tpu.memory_space<vmem>>, vector<16x78xbf16>,
    %24 = vector.extract_strided_slice %21 {offsets = [0, 1], sizes = [16, 78], strides = [1, 1]} : vector<16x100xbf16> to vector<16x78xbf16>
    %c160 = arith.constant 160 : index
    %c0_16 = arith.constant 0 : index
    %25 = vector.load %arg7[%c160, %c0_16] : memref<288x78xbf16, #tpu.memory_space<vmem>>, vector<16x78xbf16>
    tpu.vector_store %arg7[%c160, %c0_16], %24 {strides = array<i32>} : memref<288x78xbf16, #tpu.memory_space<vmem>>, vector<16x78xbf16>,
    %26 = vector.extract_strided_slice %21 {offsets = [0, 2], sizes = [16, 78], strides = [1, 1]} : vector<16x100xbf16> to vector<16x78xbf16>
    %c176 = arith.constant 176 : index
    %c0_17 = arith.constant 0 : index
    %27 = vector.load %arg7[%c176, %c0_17] : memref<288x78xbf16, #tpu.memory_space<vmem>>, vector<16x78xbf16>
    tpu.vector_store %arg7[%c176, %c0_17], %26 {strides = array<i32>} : memref<288x78xbf16, #tpu.memory_space<vmem>>, vector<16x78xbf16>,
    %28 = vector.extract_strided_slice %21 {offsets = [0, 10], sizes = [16, 78], strides = [1, 1]} : vector<16x100xbf16> to vector<16x78xbf16>
    %c192 = arith.constant 192 : index
    %c0_18 = arith.constant 0 : index
    %29 = vector.load %arg7[%c192, %c0_18] : memref<288x78xbf16, #tpu.memory_space<vmem>>, vector<16x78xbf16>
    tpu.vector_store %arg7[%c192, %c0_18], %28 {strides = array<i32>} : memref<288x78xbf16, #tpu.memory_space<vmem>>, vector<16x78xbf16>,
    %30 = vector.extract_strided_slice %21 {offsets = [0, 11], sizes = [16, 78], strides = [1, 1]} : vector<16x100xbf16> to vector<16x78xbf16>
    %c208 = arith.constant 208 : index
    %c0_19 = arith.constant 0 : index
    %31 = vector.load %arg7[%c208, %c0_19] : memref<288x78xbf16, #tpu.memory_space<vmem>>, vector<16x78xbf16>
    tpu.vector_store %arg7[%c208, %c0_19], %30 {strides = array<i32>} : memref<288x78xbf16, #tpu.memory_space<vmem>>, vector<16x78xbf16>,
    %32 = vector.extract_strided_slice %21 {offsets = [0, 12], sizes = [16, 78], strides = [1, 1]} : vector<16x100xbf16> to vector<16x78xbf16>
    %c224 = arith.constant 224 : index
    %c0_20 = arith.constant 0 : index
    %33 = vector.load %arg7[%c224, %c0_20] : memref<288x78xbf16, #tpu.memory_space<vmem>>, vector<16x78xbf16>
    tpu.vector_store %arg7[%c224, %c0_20], %32 {strides = array<i32>} : memref<288x78xbf16, #tpu.memory_space<vmem>>, vector<16x78xbf16>,
    %34 = vector.extract_strided_slice %21 {offsets = [0, 20], sizes = [16, 78], strides = [1, 1]} : vector<16x100xbf16> to vector<16x78xbf16>
    %c240 = arith.constant 240 : index
    %c0_21 = arith.constant 0 : index
    %35 = vector.load %arg7[%c240, %c0_21] : memref<288x78xbf16, #tpu.memory_space<vmem>>, vector<16x78xbf16>
    tpu.vector_store %arg7[%c240, %c0_21], %34 {strides = array<i32>} : memref<288x78xbf16, #tpu.memory_space<vmem>>, vector<16x78xbf16>,
    %36 = vector.extract_strided_slice %21 {offsets = [0, 21], sizes = [16, 78], strides = [1, 1]} : vector<16x100xbf16> to vector<16x78xbf16>
    %c256 = arith.constant 256 : index
    %c0_22 = arith.constant 0 : index
    %37 = vector.load %arg7[%c256, %c0_22] : memref<288x78xbf16, #tpu.memory_space<vmem>>, vector<16x78xbf16>
    tpu.vector_store %arg7[%c256, %c0_22], %36 {strides = array<i32>} : memref<288x78xbf16, #tpu.memory_space<vmem>>, vector<16x78xbf16>,
    %38 = vector.extract_strided_slice %21 {offsets = [0, 22], sizes = [16, 78], strides = [1, 1]} : vector<16x100xbf16> to vector<16x78xbf16>
    %c272 = arith.constant 272 : index
    %c0_23 = arith.constant 0 : index
    %39 = vector.load %arg7[%c272, %c0_23] : memref<288x78xbf16, #tpu.memory_space<vmem>>, vector<16x78xbf16>
    tpu.vector_store %arg7[%c272, %c0_23], %38 {strides = array<i32>} : memref<288x78xbf16, #tpu.memory_space<vmem>>, vector<16x78xbf16>,
    %c0_24 = arith.constant 0 : index
    %c0_25 = arith.constant 0 : index
    %40 = vector.load %arg3[%c0_24, %c0_25] : memref<16x288xbf16, #tpu.memory_space<vmem>>, vector<16x288xbf16>
    %c0_26 = arith.constant 0 : index
    %c0_27 = arith.constant 0 : index
    %41 = vector.load %arg7[%c0_26, %c0_27] : memref<288x78xbf16, #tpu.memory_space<vmem>>, vector<288x78xbf16>
    %cst = arith.constant dense<0.000000e+00> : vector<16x78xf32>
    %42 = tpu.matmul %40, %41, %cst {dimension_numbers = #tpu.dot_dimension_numbers<[1], [0], [0], [1], [0, 0, 1, 1], [], []>} : vector<16x288xbf16>, vector<288x78xbf16>, vector<16x78xf32> -> vector<16x78xf32>
    %c0_28 = arith.constant 0 : index
    %c0_29 = arith.constant 0 : index
    %43 = vector.load %arg4[%c0_28, %c0_29] : memref<16x1xf32, #tpu.memory_space<vmem>>, vector<16x1xf32>
    %44 = vector.broadcast %43 : vector<16x1xf32> to vector<16x78xf32>
    %45 = arith.addf %42, %44 : vector<16x78xf32>
    %46 = arith.truncf %45 : vector<16x78xf32> to vector<16x78xbf16>
    %c0_30 = arith.constant 0 : index
    %c0_31 = arith.constant 0 : index
    %47 = vector.load %arg5[%c0_30, %c0_31] : memref<78x100xbf16, #tpu.memory_space<vmem>>, vector<78x100xbf16>
    %cst_32 = arith.constant dense<0.000000e+00> : vector<16x100xf32>
    %48 = tpu.matmul %46, %47, %cst_32 {dimension_numbers = #tpu.dot_dimension_numbers<[1], [0], [0], [1], [0, 0, 1, 1], [], []>} : vector<16x78xbf16>, vector<78x100xbf16>, vector<16x100xf32> -> vector<16x100xf32>
    %49 = arith.truncf %48 : vector<16x100xf32> to vector<16x100xbf16>
    %c0_33 = arith.constant 0 : index
    %c0_34 = arith.constant 0 : index
    %c0_35 = arith.constant 0 : index
    %50 = vector.load %arg6[%c0_33, %c0_34, %c0_35] : memref<1x16x100xbf16, #tpu.memory_space<vmem>>, vector<1x16x100xbf16>
    %51 = vector.shape_cast %50 : vector<1x16x100xbf16> to vector<16x100xbf16>
    %52 = vector.shape_cast %49 : vector<16x100xbf16> to vector<1x16x100xbf16>
    tpu.vector_store %arg6[%c0_33, %c0_34, %c0_35], %52 {strides = array<i32>} : memref<1x16x100xbf16, #tpu.memory_space<vmem>>, vector<1x16x100xbf16>,
    return
  }
  func.func @transform_0(%arg0: i32) -> (i32, i32, i32) {
    %c0_i32 = arith.constant 0 : i32
    %c0_i32_0 = arith.constant 0 : i32
    %c0_i32_1 = arith.constant 0 : i32
    return %arg0, %c0_i32, %c0_i32_0 : i32, i32, i32
  }
  func.func @transform_1(%arg0: i32) -> (i32, i32, i32) {
    %c0_i32 = arith.constant 0 : i32
    %c0_i32_0 = arith.constant 0 : i32
    %c0_i32_1 = arith.constant 0 : i32
    return %arg0, %c0_i32, %c0_i32_0 : i32, i32, i32
  }
  func.func @transform_2(%arg0: i32) -> (i32, i32) {
    %c0_i32 = arith.constant 0 : i32
    %c0_i32_0 = arith.constant 0 : i32
    %c0_i32_1 = arith.constant 0 : i32
    return %c0_i32, %c0_i32_0 : i32, i32
  }
  func.func @transform_3(%arg0: i32) -> (i32, i32) {
    %c0_i32 = arith.constant 0 : i32
    %c0_i32_0 = arith.constant 0 : i32
    %c0_i32_1 = arith.constant 0 : i32
    return %c0_i32, %c0_i32_0 : i32, i32
  }
  func.func @transform_4(%arg0: i32) -> (i32, i32) {
    %c0_i32 = arith.constant 0 : i32
    %c0_i32_0 = arith.constant 0 : i32
    %c0_i32_1 = arith.constant 0 : i32
    return %c0_i32, %c0_i32_0 : i32, i32
  }
  func.func @transform_5(%arg0: i32) -> (i32, i32, i32) {
    %c0_i32 = arith.constant 0 : i32
    %c0_i32_0 = arith.constant 0 : i32
    %c0_i32_1 = arith.constant 0 : i32
    return %arg0, %c0_i32, %c0_i32_0 : i32, i32, i32
  }
}

module attributes {stable_mosaic.version = 11 : i64} {
  func.func @_deconv_kernel(%arg0: i32, %arg1: memref<1x16x100xbf16, #tpu.memory_space<vmem>>, %arg2: memref<4x16x16xbf16, #tpu.memory_space<vmem>>, %arg3: memref<4x100x324xbf16, #tpu.memory_space<vmem>>, %arg4: memref<16x1xf32, #tpu.memory_space<vmem>>, %arg5: memref<1x324xf32, #tpu.memory_space<vmem>>, %arg6: memref<1x16x324xbf16, #tpu.memory_space<vmem>>) attributes {dimension_semantics = [#tpu.dimension_semantics<parallel>], iteration_bounds = array<i64: 2>, scalar_prefetch = 0 : i64, scratch_operands = 0 : i64, tpu.core_type = #tpu.core_type<tc>, window_params = [{transform_indices = @transform_0, window_bounds = array<i64: 1, 16, 100>}, {pipeline_mode = #tpu.pipeline_mode<synchronous>, transform_indices = @transform_1, window_bounds = array<i64: 4, 16, 16>}, {pipeline_mode = #tpu.pipeline_mode<synchronous>, transform_indices = @transform_2, window_bounds = array<i64: 4, 100, 324>}, {pipeline_mode = #tpu.pipeline_mode<synchronous>, transform_indices = @transform_3, window_bounds = array<i64: 16, 1>}, {pipeline_mode = #tpu.pipeline_mode<synchronous>, transform_indices = @transform_4, window_bounds = array<i64: 1, 324>}, {transform_indices = @transform_5, window_bounds = array<i64: 1, 16, 324>}]} {
    %c0 = arith.constant 0 : index
    %c0_0 = arith.constant 0 : index
    %c0_1 = arith.constant 0 : index
    %0 = vector.load %arg1[%c0, %c0_0, %c0_1] : memref<1x16x100xbf16, #tpu.memory_space<vmem>>, vector<1x16x100xbf16>
    %1 = vector.shape_cast %0 : vector<1x16x100xbf16> to vector<16x100xbf16>
    %c0_2 = arith.constant 0 : index
    %c0_3 = arith.constant 0 : index
    %c0_4 = arith.constant 0 : index
    %2 = vector.load %arg2[%c0_2, %c0_3, %c0_4] : memref<4x16x16xbf16, #tpu.memory_space<vmem>>, vector<1x16x16xbf16>
    %3 = vector.shape_cast %2 : vector<1x16x16xbf16> to vector<16x16xbf16>
    %cst = arith.constant dense<0.000000e+00> : vector<16x100xf32>
    %4 = tpu.matmul %3, %1, %cst {dimension_numbers = #tpu.dot_dimension_numbers<[1], [0], [0], [1], [0, 0, 1, 1], [], []>} : vector<16x16xbf16>, vector<16x100xbf16>, vector<16x100xf32> -> vector<16x100xf32>
    %5 = arith.truncf %4 : vector<16x100xf32> to vector<16x100xbf16>
    %c0_5 = arith.constant 0 : index
    %c0_6 = arith.constant 0 : index
    %c0_7 = arith.constant 0 : index
    %6 = vector.load %arg3[%c0_5, %c0_6, %c0_7] : memref<4x100x324xbf16, #tpu.memory_space<vmem>>, vector<1x100x324xbf16>
    %7 = vector.shape_cast %6 : vector<1x100x324xbf16> to vector<100x324xbf16>
    %cst_8 = arith.constant dense<0.000000e+00> : vector<16x324xf32>
    %8 = tpu.matmul %5, %7, %cst_8 {dimension_numbers = #tpu.dot_dimension_numbers<[1], [0], [0], [1], [0, 0, 1, 1], [], []>} : vector<16x100xbf16>, vector<100x324xbf16>, vector<16x324xf32> -> vector<16x324xf32>
    %c1 = arith.constant 1 : index
    %c0_9 = arith.constant 0 : index
    %c0_10 = arith.constant 0 : index
    %9 = vector.load %arg2[%c1, %c0_9, %c0_10] : memref<4x16x16xbf16, #tpu.memory_space<vmem>>, vector<1x16x16xbf16>
    %10 = vector.shape_cast %9 : vector<1x16x16xbf16> to vector<16x16xbf16>
    %cst_11 = arith.constant dense<0.000000e+00> : vector<16x100xf32>
    %11 = tpu.matmul %10, %1, %cst_11 {dimension_numbers = #tpu.dot_dimension_numbers<[1], [0], [0], [1], [0, 0, 1, 1], [], []>} : vector<16x16xbf16>, vector<16x100xbf16>, vector<16x100xf32> -> vector<16x100xf32>
    %12 = arith.truncf %11 : vector<16x100xf32> to vector<16x100xbf16>
    %c1_12 = arith.constant 1 : index
    %c0_13 = arith.constant 0 : index
    %c0_14 = arith.constant 0 : index
    %13 = vector.load %arg3[%c1_12, %c0_13, %c0_14] : memref<4x100x324xbf16, #tpu.memory_space<vmem>>, vector<1x100x324xbf16>
    %14 = vector.shape_cast %13 : vector<1x100x324xbf16> to vector<100x324xbf16>
    %cst_15 = arith.constant dense<0.000000e+00> : vector<16x324xf32>
    %15 = tpu.matmul %12, %14, %cst_15 {dimension_numbers = #tpu.dot_dimension_numbers<[1], [0], [0], [1], [0, 0, 1, 1], [], []>} : vector<16x100xbf16>, vector<100x324xbf16>, vector<16x324xf32> -> vector<16x324xf32>
    %16 = arith.addf %8, %15 : vector<16x324xf32>
    %c2 = arith.constant 2 : index
    %c0_16 = arith.constant 0 : index
    %c0_17 = arith.constant 0 : index
    %17 = vector.load %arg2[%c2, %c0_16, %c0_17] : memref<4x16x16xbf16, #tpu.memory_space<vmem>>, vector<1x16x16xbf16>
    %18 = vector.shape_cast %17 : vector<1x16x16xbf16> to vector<16x16xbf16>
    %cst_18 = arith.constant dense<0.000000e+00> : vector<16x100xf32>
    %19 = tpu.matmul %18, %1, %cst_18 {dimension_numbers = #tpu.dot_dimension_numbers<[1], [0], [0], [1], [0, 0, 1, 1], [], []>} : vector<16x16xbf16>, vector<16x100xbf16>, vector<16x100xf32> -> vector<16x100xf32>
    %20 = arith.truncf %19 : vector<16x100xf32> to vector<16x100xbf16>
    %c2_19 = arith.constant 2 : index
    %c0_20 = arith.constant 0 : index
    %c0_21 = arith.constant 0 : index
    %21 = vector.load %arg3[%c2_19, %c0_20, %c0_21] : memref<4x100x324xbf16, #tpu.memory_space<vmem>>, vector<1x100x324xbf16>
    %22 = vector.shape_cast %21 : vector<1x100x324xbf16> to vector<100x324xbf16>
    %cst_22 = arith.constant dense<0.000000e+00> : vector<16x324xf32>
    %23 = tpu.matmul %20, %22, %cst_22 {dimension_numbers = #tpu.dot_dimension_numbers<[1], [0], [0], [1], [0, 0, 1, 1], [], []>} : vector<16x100xbf16>, vector<100x324xbf16>, vector<16x324xf32> -> vector<16x324xf32>
    %24 = arith.addf %16, %23 : vector<16x324xf32>
    %c3 = arith.constant 3 : index
    %c0_23 = arith.constant 0 : index
    %c0_24 = arith.constant 0 : index
    %25 = vector.load %arg2[%c3, %c0_23, %c0_24] : memref<4x16x16xbf16, #tpu.memory_space<vmem>>, vector<1x16x16xbf16>
    %26 = vector.shape_cast %25 : vector<1x16x16xbf16> to vector<16x16xbf16>
    %cst_25 = arith.constant dense<0.000000e+00> : vector<16x100xf32>
    %27 = tpu.matmul %26, %1, %cst_25 {dimension_numbers = #tpu.dot_dimension_numbers<[1], [0], [0], [1], [0, 0, 1, 1], [], []>} : vector<16x16xbf16>, vector<16x100xbf16>, vector<16x100xf32> -> vector<16x100xf32>
    %28 = arith.truncf %27 : vector<16x100xf32> to vector<16x100xbf16>
    %c3_26 = arith.constant 3 : index
    %c0_27 = arith.constant 0 : index
    %c0_28 = arith.constant 0 : index
    %29 = vector.load %arg3[%c3_26, %c0_27, %c0_28] : memref<4x100x324xbf16, #tpu.memory_space<vmem>>, vector<1x100x324xbf16>
    %30 = vector.shape_cast %29 : vector<1x100x324xbf16> to vector<100x324xbf16>
    %cst_29 = arith.constant dense<0.000000e+00> : vector<16x324xf32>
    %31 = tpu.matmul %28, %30, %cst_29 {dimension_numbers = #tpu.dot_dimension_numbers<[1], [0], [0], [1], [0, 0, 1, 1], [], []>} : vector<16x100xbf16>, vector<100x324xbf16>, vector<16x324xf32> -> vector<16x324xf32>
    %32 = arith.addf %24, %31 : vector<16x324xf32>
    %c0_30 = arith.constant 0 : index
    %c0_31 = arith.constant 0 : index
    %33 = vector.load %arg4[%c0_30, %c0_31] : memref<16x1xf32, #tpu.memory_space<vmem>>, vector<16x1xf32>
    %34 = vector.broadcast %33 : vector<16x1xf32> to vector<16x324xf32>
    %35 = arith.addf %32, %34 : vector<16x324xf32>
    %c0_32 = arith.constant 0 : index
    %c0_33 = arith.constant 0 : index
    %36 = vector.load %arg5[%c0_32, %c0_33] : memref<1x324xf32, #tpu.memory_space<vmem>>, vector<1x324xf32>
    %37 = vector.broadcast %36 : vector<1x324xf32> to vector<16x324xf32>
    %38 = arith.mulf %35, %37 : vector<16x324xf32>
    %39 = arith.truncf %38 : vector<16x324xf32> to vector<16x324xbf16>
    %c0_34 = arith.constant 0 : index
    %c0_35 = arith.constant 0 : index
    %c0_36 = arith.constant 0 : index
    %40 = vector.load %arg6[%c0_34, %c0_35, %c0_36] : memref<1x16x324xbf16, #tpu.memory_space<vmem>>, vector<1x16x324xbf16>
    %41 = vector.shape_cast %40 : vector<1x16x324xbf16> to vector<16x324xbf16>
    %42 = vector.shape_cast %39 : vector<16x324xbf16> to vector<1x16x324xbf16>
    tpu.vector_store %arg6[%c0_34, %c0_35, %c0_36], %42 {strides = array<i32>} : memref<1x16x324xbf16, #tpu.memory_space<vmem>>, vector<1x16x324xbf16>,
    return
  }
  func.func @transform_0(%arg0: i32) -> (i32, i32, i32) {
    %c0_i32 = arith.constant 0 : i32
    %c0_i32_0 = arith.constant 0 : i32
    %c0_i32_1 = arith.constant 0 : i32
    return %arg0, %c0_i32, %c0_i32_0 : i32, i32, i32
  }
  func.func @transform_1(%arg0: i32) -> (i32, i32, i32) {
    %c0_i32 = arith.constant 0 : i32
    %c0_i32_0 = arith.constant 0 : i32
    %c0_i32_1 = arith.constant 0 : i32
    %c0_i32_2 = arith.constant 0 : i32
    return %c0_i32, %c0_i32_0, %c0_i32_1 : i32, i32, i32
  }
  func.func @transform_2(%arg0: i32) -> (i32, i32, i32) {
    %c0_i32 = arith.constant 0 : i32
    %c0_i32_0 = arith.constant 0 : i32
    %c0_i32_1 = arith.constant 0 : i32
    %c0_i32_2 = arith.constant 0 : i32
    return %c0_i32, %c0_i32_0, %c0_i32_1 : i32, i32, i32
  }
  func.func @transform_3(%arg0: i32) -> (i32, i32) {
    %c0_i32 = arith.constant 0 : i32
    %c0_i32_0 = arith.constant 0 : i32
    %c0_i32_1 = arith.constant 0 : i32
    return %c0_i32, %c0_i32_0 : i32, i32
  }
  func.func @transform_4(%arg0: i32) -> (i32, i32) {
    %c0_i32 = arith.constant 0 : i32
    %c0_i32_0 = arith.constant 0 : i32
    %c0_i32_1 = arith.constant 0 : i32
    return %c0_i32, %c0_i32_0 : i32, i32
  }
  func.func @transform_5(%arg0: i32) -> (i32, i32, i32) {
    %c0_i32 = arith.constant 0 : i32
    %c0_i32_0 = arith.constant 0 : i32
    %c0_i32_1 = arith.constant 0 : i32
    return %arg0, %c0_i32, %c0_i32_0 : i32, i32, i32
  }
}

module attributes {stable_mosaic.version = 11 : i64} {
  func.func @kernel(%arg0: i32, %arg1: memref<1x16x324xbf16, #tpu.memory_space<vmem>>, %arg2: memref<1x16x324xbf16, #tpu.memory_space<vmem>>, %arg3: memref<16x288xbf16, #tpu.memory_space<vmem>>, %arg4: memref<16x1xf32, #tpu.memory_space<vmem>>, %arg5: memref<286x324xbf16, #tpu.memory_space<vmem>>, %arg6: memref<1x16x324xbf16, #tpu.memory_space<vmem>>, %arg7: memref<288x286xbf16, #tpu.memory_space<vmem>>) attributes {dimension_semantics = [#tpu.dimension_semantics<parallel>], iteration_bounds = array<i64: 2>, scalar_prefetch = 0 : i64, scratch_operands = 1 : i64, tpu.core_type = #tpu.core_type<tc>, window_params = [{transform_indices = @transform_0, window_bounds = array<i64: 1, 16, 324>}, {transform_indices = @transform_1, window_bounds = array<i64: 1, 16, 324>}, {pipeline_mode = #tpu.pipeline_mode<synchronous>, transform_indices = @transform_2, window_bounds = array<i64: 16, 288>}, {pipeline_mode = #tpu.pipeline_mode<synchronous>, transform_indices = @transform_3, window_bounds = array<i64: 16, 1>}, {pipeline_mode = #tpu.pipeline_mode<synchronous>, transform_indices = @transform_4, window_bounds = array<i64: 286, 324>}, {transform_indices = @transform_5, window_bounds = array<i64: 1, 16, 324>}]} {
    %c0 = arith.constant 0 : index
    %c0_0 = arith.constant 0 : index
    %c0_1 = arith.constant 0 : index
    %0 = vector.load %arg1[%c0, %c0_0, %c0_1] : memref<1x16x324xbf16, #tpu.memory_space<vmem>>, vector<1x16x324xbf16>
    %1 = vector.shape_cast %0 : vector<1x16x324xbf16> to vector<16x324xbf16>
    %2 = vector.extract_strided_slice %1 {offsets = [0, 0], sizes = [16, 286], strides = [1, 1]} : vector<16x324xbf16> to vector<16x286xbf16>
    %c0_2 = arith.constant 0 : index
    %c0_3 = arith.constant 0 : index
    %3 = vector.load %arg7[%c0_2, %c0_3] : memref<288x286xbf16, #tpu.memory_space<vmem>>, vector<16x286xbf16>
    tpu.vector_store %arg7[%c0_2, %c0_3], %2 {strides = array<i32>} : memref<288x286xbf16, #tpu.memory_space<vmem>>, vector<16x286xbf16>,
    %4 = vector.extract_strided_slice %1 {offsets = [0, 1], sizes = [16, 286], strides = [1, 1]} : vector<16x324xbf16> to vector<16x286xbf16>
    %c16 = arith.constant 16 : index
    %c0_4 = arith.constant 0 : index
    %5 = vector.load %arg7[%c16, %c0_4] : memref<288x286xbf16, #tpu.memory_space<vmem>>, vector<16x286xbf16>
    tpu.vector_store %arg7[%c16, %c0_4], %4 {strides = array<i32>} : memref<288x286xbf16, #tpu.memory_space<vmem>>, vector<16x286xbf16>,
    %6 = vector.extract_strided_slice %1 {offsets = [0, 2], sizes = [16, 286], strides = [1, 1]} : vector<16x324xbf16> to vector<16x286xbf16>
    %c32 = arith.constant 32 : index
    %c0_5 = arith.constant 0 : index
    %7 = vector.load %arg7[%c32, %c0_5] : memref<288x286xbf16, #tpu.memory_space<vmem>>, vector<16x286xbf16>
    tpu.vector_store %arg7[%c32, %c0_5], %6 {strides = array<i32>} : memref<288x286xbf16, #tpu.memory_space<vmem>>, vector<16x286xbf16>,
    %8 = vector.extract_strided_slice %1 {offsets = [0, 18], sizes = [16, 286], strides = [1, 1]} : vector<16x324xbf16> to vector<16x286xbf16>
    %c48 = arith.constant 48 : index
    %c0_6 = arith.constant 0 : index
    %9 = vector.load %arg7[%c48, %c0_6] : memref<288x286xbf16, #tpu.memory_space<vmem>>, vector<16x286xbf16>
    tpu.vector_store %arg7[%c48, %c0_6], %8 {strides = array<i32>} : memref<288x286xbf16, #tpu.memory_space<vmem>>, vector<16x286xbf16>,
    %10 = vector.extract_strided_slice %1 {offsets = [0, 19], sizes = [16, 286], strides = [1, 1]} : vector<16x324xbf16> to vector<16x286xbf16>
    %c64 = arith.constant 64 : index
    %c0_7 = arith.constant 0 : index
    %11 = vector.load %arg7[%c64, %c0_7] : memref<288x286xbf16, #tpu.memory_space<vmem>>, vector<16x286xbf16>
    tpu.vector_store %arg7[%c64, %c0_7], %10 {strides = array<i32>} : memref<288x286xbf16, #tpu.memory_space<vmem>>, vector<16x286xbf16>,
    %12 = vector.extract_strided_slice %1 {offsets = [0, 20], sizes = [16, 286], strides = [1, 1]} : vector<16x324xbf16> to vector<16x286xbf16>
    %c80 = arith.constant 80 : index
    %c0_8 = arith.constant 0 : index
    %13 = vector.load %arg7[%c80, %c0_8] : memref<288x286xbf16, #tpu.memory_space<vmem>>, vector<16x286xbf16>
    tpu.vector_store %arg7[%c80, %c0_8], %12 {strides = array<i32>} : memref<288x286xbf16, #tpu.memory_space<vmem>>, vector<16x286xbf16>,
    %14 = vector.extract_strided_slice %1 {offsets = [0, 36], sizes = [16, 286], strides = [1, 1]} : vector<16x324xbf16> to vector<16x286xbf16>
    %c96 = arith.constant 96 : index
    %c0_9 = arith.constant 0 : index
    %15 = vector.load %arg7[%c96, %c0_9] : memref<288x286xbf16, #tpu.memory_space<vmem>>, vector<16x286xbf16>
    tpu.vector_store %arg7[%c96, %c0_9], %14 {strides = array<i32>} : memref<288x286xbf16, #tpu.memory_space<vmem>>, vector<16x286xbf16>,
    %16 = vector.extract_strided_slice %1 {offsets = [0, 37], sizes = [16, 286], strides = [1, 1]} : vector<16x324xbf16> to vector<16x286xbf16>
    %c112 = arith.constant 112 : index
    %c0_10 = arith.constant 0 : index
    %17 = vector.load %arg7[%c112, %c0_10] : memref<288x286xbf16, #tpu.memory_space<vmem>>, vector<16x286xbf16>
    tpu.vector_store %arg7[%c112, %c0_10], %16 {strides = array<i32>} : memref<288x286xbf16, #tpu.memory_space<vmem>>, vector<16x286xbf16>,
    %18 = vector.extract_strided_slice %1 {offsets = [0, 38], sizes = [16, 286], strides = [1, 1]} : vector<16x324xbf16> to vector<16x286xbf16>
    %c128 = arith.constant 128 : index
    %c0_11 = arith.constant 0 : index
    %19 = vector.load %arg7[%c128, %c0_11] : memref<288x286xbf16, #tpu.memory_space<vmem>>, vector<16x286xbf16>
    tpu.vector_store %arg7[%c128, %c0_11], %18 {strides = array<i32>} : memref<288x286xbf16, #tpu.memory_space<vmem>>, vector<16x286xbf16>,
    %c0_12 = arith.constant 0 : index
    %c0_13 = arith.constant 0 : index
    %c0_14 = arith.constant 0 : index
    %20 = vector.load %arg2[%c0_12, %c0_13, %c0_14] : memref<1x16x324xbf16, #tpu.memory_space<vmem>>, vector<1x16x324xbf16>
    %21 = vector.shape_cast %20 : vector<1x16x324xbf16> to vector<16x324xbf16>
    %22 = vector.extract_strided_slice %21 {offsets = [0, 0], sizes = [16, 286], strides = [1, 1]} : vector<16x324xbf16> to vector<16x286xbf16>
    %c144 = arith.constant 144 : index
    %c0_15 = arith.constant 0 : index
    %23 = vector.load %arg7[%c144, %c0_15] : memref<288x286xbf16, #tpu.memory_space<vmem>>, vector<16x286xbf16>
    tpu.vector_store %arg7[%c144, %c0_15], %22 {strides = array<i32>} : memref<288x286xbf16, #tpu.memory_space<vmem>>, vector<16x286xbf16>,
    %24 = vector.extract_strided_slice %21 {offsets = [0, 1], sizes = [16, 286], strides = [1, 1]} : vector<16x324xbf16> to vector<16x286xbf16>
    %c160 = arith.constant 160 : index
    %c0_16 = arith.constant 0 : index
    %25 = vector.load %arg7[%c160, %c0_16] : memref<288x286xbf16, #tpu.memory_space<vmem>>, vector<16x286xbf16>
    tpu.vector_store %arg7[%c160, %c0_16], %24 {strides = array<i32>} : memref<288x286xbf16, #tpu.memory_space<vmem>>, vector<16x286xbf16>,
    %26 = vector.extract_strided_slice %21 {offsets = [0, 2], sizes = [16, 286], strides = [1, 1]} : vector<16x324xbf16> to vector<16x286xbf16>
    %c176 = arith.constant 176 : index
    %c0_17 = arith.constant 0 : index
    %27 = vector.load %arg7[%c176, %c0_17] : memref<288x286xbf16, #tpu.memory_space<vmem>>, vector<16x286xbf16>
    tpu.vector_store %arg7[%c176, %c0_17], %26 {strides = array<i32>} : memref<288x286xbf16, #tpu.memory_space<vmem>>, vector<16x286xbf16>,
    %28 = vector.extract_strided_slice %21 {offsets = [0, 18], sizes = [16, 286], strides = [1, 1]} : vector<16x324xbf16> to vector<16x286xbf16>
    %c192 = arith.constant 192 : index
    %c0_18 = arith.constant 0 : index
    %29 = vector.load %arg7[%c192, %c0_18] : memref<288x286xbf16, #tpu.memory_space<vmem>>, vector<16x286xbf16>
    tpu.vector_store %arg7[%c192, %c0_18], %28 {strides = array<i32>} : memref<288x286xbf16, #tpu.memory_space<vmem>>, vector<16x286xbf16>,
    %30 = vector.extract_strided_slice %21 {offsets = [0, 19], sizes = [16, 286], strides = [1, 1]} : vector<16x324xbf16> to vector<16x286xbf16>
    %c208 = arith.constant 208 : index
    %c0_19 = arith.constant 0 : index
    %31 = vector.load %arg7[%c208, %c0_19] : memref<288x286xbf16, #tpu.memory_space<vmem>>, vector<16x286xbf16>
    tpu.vector_store %arg7[%c208, %c0_19], %30 {strides = array<i32>} : memref<288x286xbf16, #tpu.memory_space<vmem>>, vector<16x286xbf16>,
    %32 = vector.extract_strided_slice %21 {offsets = [0, 20], sizes = [16, 286], strides = [1, 1]} : vector<16x324xbf16> to vector<16x286xbf16>
    %c224 = arith.constant 224 : index
    %c0_20 = arith.constant 0 : index
    %33 = vector.load %arg7[%c224, %c0_20] : memref<288x286xbf16, #tpu.memory_space<vmem>>, vector<16x286xbf16>
    tpu.vector_store %arg7[%c224, %c0_20], %32 {strides = array<i32>} : memref<288x286xbf16, #tpu.memory_space<vmem>>, vector<16x286xbf16>,
    %34 = vector.extract_strided_slice %21 {offsets = [0, 36], sizes = [16, 286], strides = [1, 1]} : vector<16x324xbf16> to vector<16x286xbf16>
    %c240 = arith.constant 240 : index
    %c0_21 = arith.constant 0 : index
    %35 = vector.load %arg7[%c240, %c0_21] : memref<288x286xbf16, #tpu.memory_space<vmem>>, vector<16x286xbf16>
    tpu.vector_store %arg7[%c240, %c0_21], %34 {strides = array<i32>} : memref<288x286xbf16, #tpu.memory_space<vmem>>, vector<16x286xbf16>,
    %36 = vector.extract_strided_slice %21 {offsets = [0, 37], sizes = [16, 286], strides = [1, 1]} : vector<16x324xbf16> to vector<16x286xbf16>
    %c256 = arith.constant 256 : index
    %c0_22 = arith.constant 0 : index
    %37 = vector.load %arg7[%c256, %c0_22] : memref<288x286xbf16, #tpu.memory_space<vmem>>, vector<16x286xbf16>
    tpu.vector_store %arg7[%c256, %c0_22], %36 {strides = array<i32>} : memref<288x286xbf16, #tpu.memory_space<vmem>>, vector<16x286xbf16>,
    %38 = vector.extract_strided_slice %21 {offsets = [0, 38], sizes = [16, 286], strides = [1, 1]} : vector<16x324xbf16> to vector<16x286xbf16>
    %c272 = arith.constant 272 : index
    %c0_23 = arith.constant 0 : index
    %39 = vector.load %arg7[%c272, %c0_23] : memref<288x286xbf16, #tpu.memory_space<vmem>>, vector<16x286xbf16>
    tpu.vector_store %arg7[%c272, %c0_23], %38 {strides = array<i32>} : memref<288x286xbf16, #tpu.memory_space<vmem>>, vector<16x286xbf16>,
    %c0_24 = arith.constant 0 : index
    %c0_25 = arith.constant 0 : index
    %40 = vector.load %arg3[%c0_24, %c0_25] : memref<16x288xbf16, #tpu.memory_space<vmem>>, vector<16x288xbf16>
    %c0_26 = arith.constant 0 : index
    %c0_27 = arith.constant 0 : index
    %41 = vector.load %arg7[%c0_26, %c0_27] : memref<288x286xbf16, #tpu.memory_space<vmem>>, vector<288x286xbf16>
    %cst = arith.constant dense<0.000000e+00> : vector<16x286xf32>
    %42 = tpu.matmul %40, %41, %cst {dimension_numbers = #tpu.dot_dimension_numbers<[1], [0], [0], [1], [0, 0, 1, 1], [], []>} : vector<16x288xbf16>, vector<288x286xbf16>, vector<16x286xf32> -> vector<16x286xf32>
    %c0_28 = arith.constant 0 : index
    %c0_29 = arith.constant 0 : index
    %43 = vector.load %arg4[%c0_28, %c0_29] : memref<16x1xf32, #tpu.memory_space<vmem>>, vector<16x1xf32>
    %44 = vector.broadcast %43 : vector<16x1xf32> to vector<16x286xf32>
    %45 = arith.addf %42, %44 : vector<16x286xf32>
    %46 = arith.truncf %45 : vector<16x286xf32> to vector<16x286xbf16>
    %c0_30 = arith.constant 0 : index
    %c0_31 = arith.constant 0 : index
    %47 = vector.load %arg5[%c0_30, %c0_31] : memref<286x324xbf16, #tpu.memory_space<vmem>>, vector<286x324xbf16>
    %cst_32 = arith.constant dense<0.000000e+00> : vector<16x324xf32>
    %48 = tpu.matmul %46, %47, %cst_32 {dimension_numbers = #tpu.dot_dimension_numbers<[1], [0], [0], [1], [0, 0, 1, 1], [], []>} : vector<16x286xbf16>, vector<286x324xbf16>, vector<16x324xf32> -> vector<16x324xf32>
    %49 = arith.truncf %48 : vector<16x324xf32> to vector<16x324xbf16>
    %c0_33 = arith.constant 0 : index
    %c0_34 = arith.constant 0 : index
    %c0_35 = arith.constant 0 : index
    %50 = vector.load %arg6[%c0_33, %c0_34, %c0_35] : memref<1x16x324xbf16, #tpu.memory_space<vmem>>, vector<1x16x324xbf16>
    %51 = vector.shape_cast %50 : vector<1x16x324xbf16> to vector<16x324xbf16>
    %52 = vector.shape_cast %49 : vector<16x324xbf16> to vector<1x16x324xbf16>
    tpu.vector_store %arg6[%c0_33, %c0_34, %c0_35], %52 {strides = array<i32>} : memref<1x16x324xbf16, #tpu.memory_space<vmem>>, vector<1x16x324xbf16>,
    return
  }
  func.func @transform_0(%arg0: i32) -> (i32, i32, i32) {
    %c0_i32 = arith.constant 0 : i32
    %c0_i32_0 = arith.constant 0 : i32
    %c0_i32_1 = arith.constant 0 : i32
    return %arg0, %c0_i32, %c0_i32_0 : i32, i32, i32
  }
  func.func @transform_1(%arg0: i32) -> (i32, i32, i32) {
    %c0_i32 = arith.constant 0 : i32
    %c0_i32_0 = arith.constant 0 : i32
    %c0_i32_1 = arith.constant 0 : i32
    return %arg0, %c0_i32, %c0_i32_0 : i32, i32, i32
  }
  func.func @transform_2(%arg0: i32) -> (i32, i32) {
    %c0_i32 = arith.constant 0 : i32
    %c0_i32_0 = arith.constant 0 : i32
    %c0_i32_1 = arith.constant 0 : i32
    return %c0_i32, %c0_i32_0 : i32, i32
  }
  func.func @transform_3(%arg0: i32) -> (i32, i32) {
    %c0_i32 = arith.constant 0 : i32
    %c0_i32_0 = arith.constant 0 : i32
    %c0_i32_1 = arith.constant 0 : i32
    return %c0_i32, %c0_i32_0 : i32, i32
  }
  func.func @transform_4(%arg0: i32) -> (i32, i32) {
    %c0_i32 = arith.constant 0 : i32
    %c0_i32_0 = arith.constant 0 : i32
    %c0_i32_1 = arith.constant 0 : i32
    return %c0_i32, %c0_i32_0 : i32, i32
  }
  func.func @transform_5(%arg0: i32) -> (i32, i32, i32) {
    %c0_i32 = arith.constant 0 : i32
    %c0_i32_0 = arith.constant 0 : i32
    %c0_i32_1 = arith.constant 0 : i32
    return %arg0, %c0_i32, %c0_i32_0 : i32, i32, i32
  }
}

</mosaic_0001>

<llo_original>
// kernel: unet_forward.8
$region0: #{unet_forward.8}
  #allocation0 [shape = 'u32[]', space=smem, size = 0x4, offset = 0x4, fixed_abs, tag = 'smem constant byte address 0x4 - core index']
  #allocation1 [shape = 'u32[144,128]{1,0:T(1,128)}', space=vmem, size = 0x12000, scoped, tag = 'internal scratch']
  #allocation2 [shape = 'bf16[144,78]{1,0:T(16,128)(2,1)}', space=vmem, size = 0x9000, scoped, tag = 'scratch operand']
  %s0 = inlined_call_operand.vmem [shape: bf16[2,16,100], index: 0, kind: input, shape index: {}]
  %s1 = inlined_call_operand.vmem [shape: bf16[16,144], index: 1, kind: input, shape index: {}]
  %s2 = inlined_call_operand.vmem [shape: f32[16,1], index: 2, kind: input, shape index: {}]
  %s3 = inlined_call_operand.vmem [shape: bf16[78,100], index: 3, kind: input, shape index: {}]
  %s4 = inlined_call_operand.vmem [shape: bf16[67,36], index: 4, kind: input, shape index: {}]
  %s5 = inlined_call_operand.vmem [shape: bf16[2,16,100], index: 5, kind: output, shape index: {0}]
  %s6 = inlined_call_operand.vmem [shape: bf16[2,16,36], index: 6, kind: output, shape index: {1}]
  %7 = xla_tuple %s5, %s6
  %s8 = sld [smem:[#allocation0]]
  $region61: #{unet_forward.8} parent=0
    _
  %s10 = ssub.s32 1, %s8
  %s11 = scalar_select 0, %s10, %s8
  loop: start=0, step=1, limit=4
  $region2: #{unet_forward.8} parent=0 // loop_pre_header
    _
  $region3: #{unet_forward.8} parent=0 // loop_header
    %s13 = sphi 0, %s17
    %p14 = scmp.ge.s32.totalorder %s13, 4
    %s23 = sphi 0, %s25
    %s26 = sphi 0, %s23
    %s27 = sphi 0, %s26
    %s43 = sphi 0, %s27
    %s47 = sphi 0, %s47
    %s49 = sphi 0, %s47
    %s50 = sphi 0, %s49
    %s64 = sphi 0, %s50
    %s68 = sphi 0, %s68
    %s70 = sphi 0, %s68
    %s71 = sphi 0, %s70
    %s85 = sphi 0, %s71
    %s89 = sphi 0, %s89
    %s91 = sphi 0, %s89
    %s92 = sphi 0, %s91
    %s106 = sphi 0, %s92
    %s110 = sphi 0, %s110
    %s112 = sphi 0, %s110
    %s113 = sphi 0, %s112
    %s127 = sphi 0, %s113
    %s133 = sphi 0, %s135
    %s136 = sphi 0, %s133
    %s137 = sphi 0, %s136
    %s153 = sphi 0, %s137
    %s159 = sphi 0, %s161
    %s162 = sphi 0, %s159
    %s163 = sphi 0, %s162
    %s179 = sphi 0, %s163
  $region4: #{unet_forward.8} parent=0 // loop_header_branch
    %16 = sbr.rel (%p14) target = $region8
  $region5: #{unet_forward.8} parent=0 // loop_body
    %s18 = ssub.s32 %s13, 1
    %s19 = ssub.s32 %s13, 2
    %s20 = sadd.s32 %s13, 1
    %s21 = ssub.s32 %s13, %s20
    %p22 = scmp.eq.s32.totalorder %s21, 0
    %s24 = sadd.s32 %s23, 1
    %s25 = scalar_select %p22, %s23, %s24
    %p28 = pneg %p22
    %p29 = scmp.eq.s32.totalorder %s13, 1
    %p30 = por %p28, %p29
    %p31 = scmp.ne.s32.totalorder %s23, %s26
    %p32 = scmp.eq.s32.totalorder %s13, 0
    %p33 = por %p31, %p32
    %p34 = scmp.ne.s32.totalorder %s23, %s26
    %p35 = scmp.eq.s32.totalorder %s18, 1
    %p36 = por %p34, %p35
    %p37 = scmp.ne.s32.totalorder %s26, %s27
    %p38 = scmp.eq.s32.totalorder %s18, 0
    %p39 = por %p37, %p38
    %p40 = scmp.ne.s32.totalorder %s26, %s27
    %p41 = scmp.eq.s32.totalorder %s19, 1
    %p42 = por %p40, %p41
    %p44 = scmp.ne.s32.totalorder %s27, %s43
    %p45 = scmp.eq.s32.totalorder %s19, 0
    %p46 = por %p44, %p45
    %s48 = sadd.s32 %s47, 1
    %p51 = scmp.eq.s32.totalorder %s13, 1
    %p52 = scmp.ne.s32.totalorder %s47, %s49
    %p53 = scmp.eq.s32.totalorder %s13, 0
    %p54 = por %p52, %p53
    %p55 = scmp.ne.s32.totalorder %s47, %s49
    %p56 = scmp.eq.s32.totalorder %s18, 1
    %p57 = por %p55, %p56
    %p58 = scmp.ne.s32.totalorder %s49, %s50
    %p59 = scmp.eq.s32.totalorder %s18, 0
    %p60 = por %p58, %p59
    %p61 = scmp.ne.s32.totalorder %s49, %s50
    %p62 = scmp.eq.s32.totalorder %s19, 1
    %p63 = por %p61, %p62
    %p65 = scmp.ne.s32.totalorder %s50, %s64
    %p66 = scmp.eq.s32.totalorder %s19, 0
    %p67 = por %p65, %p66
    %s69 = sadd.s32 %s68, 1
    %p72 = scmp.eq.s32.totalorder %s13, 1
    %p73 = scmp.ne.s32.totalorder %s68, %s70
    %p74 = scmp.eq.s32.totalorder %s13, 0
    %p75 = por %p73, %p74
    %p76 = scmp.ne.s32.totalorder %s68, %s70
    %p77 = scmp.eq.s32.totalorder %s18, 1
    %p78 = por %p76, %p77
    %p79 = scmp.ne.s32.totalorder %s70, %s71
    %p80 = scmp.eq.s32.totalorder %s18, 0
    %p81 = por %p79, %p80
    %p82 = scmp.ne.s32.totalorder %s70, %s71
    %p83 = scmp.eq.s32.totalorder %s19, 1
    %p84 = por %p82, %p83
    %p86 = scmp.ne.s32.totalorder %s71, %s85
    %p87 = scmp.eq.s32.totalorder %s19, 0
    %p88 = por %p86, %p87
    %s90 = sadd.s32 %s89, 1
    %p93 = scmp.eq.s32.totalorder %s13, 1
    %p94 = scmp.ne.s32.totalorder %s89, %s91
    %p95 = scmp.eq.s32.totalorder %s13, 0
    %p96 = por %p94, %p95
    %p97 = scmp.ne.s32.totalorder %s89, %s91
    %p98 = scmp.eq.s32.totalorder %s18, 1
    %p99 = por %p97, %p98
    %p100 = scmp.ne.s32.totalorder %s91, %s92
    %p101 = scmp.eq.s32.totalorder %s18, 0
    %p102 = por %p100, %p101
    %p103 = scmp.ne.s32.totalorder %s91, %s92
    %p104 = scmp.eq.s32.totalorder %s19, 1
    %p105 = por %p103, %p104
    %p107 = scmp.ne.s32.totalorder %s92, %s106
    %p108 = scmp.eq.s32.totalorder %s19, 0
    %p109 = por %p107, %p108
    %s111 = sadd.s32 %s110, 1
    %p114 = scmp.eq.s32.totalorder %s13, 1
    %p115 = scmp.ne.s32.totalorder %s110, %s112
    %p116 = scmp.eq.s32.totalorder %s13, 0
    %p117 = por %p115, %p116
    %p118 = scmp.ne.s32.totalorder %s110, %s112
    %p119 = scmp.eq.s32.totalorder %s18, 1
    %p120 = por %p118, %p119
    %p121 = scmp.ne.s32.totalorder %s112, %s113
    %p122 = scmp.eq.s32.totalorder %s18, 0
    %p123 = por %p121, %p122
    %p124 = scmp.ne.s32.totalorder %s112, %s113
    %p125 = scmp.eq.s32.totalorder %s19, 1
    %p126 = por %p124, %p125
    %p128 = scmp.ne.s32.totalorder %s113, %s127
    %p129 = scmp.eq.s32.totalorder %s19, 0
    %p130 = por %p128, %p129
    %s131 = ssub.s32 %s13, %s20
    %p132 = scmp.eq.s32.totalorder %s131, 0
    %s134 = sadd.s32 %s133, 1
    %s135 = scalar_select %p132, %s133, %s134
    %p138 = pneg %p132
    %p139 = scmp.eq.s32.totalorder %s13, 1
    %p140 = por %p138, %p139
    %p141 = scmp.ne.s32.totalorder %s133, %s136
    %p142 = scmp.eq.s32.totalorder %s13, 0
    %p143 = por %p141, %p142
    %p144 = scmp.ne.s32.totalorder %s133, %s136
    %p145 = scmp.eq.s32.totalorder %s18, 1
    %p146 = por %p144, %p145
    %p147 = scmp.ne.s32.totalorder %s136, %s137
    %p148 = scmp.eq.s32.totalorder %s18, 0
    %p149 = por %p147, %p148
    %p150 = scmp.ne.s32.totalorder %s136, %s137
    %p151 = scmp.eq.s32.totalorder %s19, 1
    %p152 = por %p150, %p151
    %p154 = scmp.ne.s32.totalorder %s137, %s153
    %p155 = scmp.eq.s32.totalorder %s19, 0
    %p156 = por %p154, %p155
    %s157 = ssub.s32 %s13, %s20
    %p158 = scmp.eq.s32.totalorder %s157, 0
    %s160 = sadd.s32 %s159, 1
    %s161 = scalar_select %p158, %s159, %s160
    %p164 = pneg %p158
    %p165 = scmp.eq.s32.totalorder %s13, 1
    %p166 = por %p164, %p165
    %p167 = scmp.ne.s32.totalorder %s159, %s162
    %p168 = scmp.eq.s32.totalorder %s13, 0
    %p169 = por %p167, %p168
    %p170 = scmp.ne.s32.totalorder %s159, %s162
    %p171 = scmp.eq.s32.totalorder %s18, 1
    %p172 = por %p170, %p171
    %p173 = scmp.ne.s32.totalorder %s162, %s163
    %p174 = scmp.eq.s32.totalorder %s18, 0
    %p175 = por %p173, %p174
    %p176 = scmp.ne.s32.totalorder %s162, %s163
    %p177 = scmp.eq.s32.totalorder %s19, 1
    %p178 = por %p176, %p177
    %p180 = scmp.ne.s32.totalorder %s163, %s179
    %p181 = scmp.eq.s32.totalorder %s19, 0
    %p182 = por %p180, %p181
    %p183 = scmp.le.s32.totalorder 1, %s13
    %p184 = scmp.lt.s32.totalorder %s13, 3
    %p185 = pnand %p183, %p184
    %p186 = pneg %p185
    // Predicated region
    $region9: #{unet_forward.8} parent=5 // pred_check
      _
    $region10: #{unet_forward.8} parent=5 // pred_check_branch
      %188 = sbr.rel (%p185) target = $region12
    $region11: #{unet_forward.8} parent=5 // pred_region
      %s189 = ssub.s32 %s13, 1
      // Predicated region
      $region13: #{unet_forward.8} parent=11 // pred_check
        %p190 = pneg %p60
      $region14: #{unet_forward.8} parent=11 // pred_check_branch
        %192 = sbr.rel (%p190) target = $region16
      $region15: #{unet_forward.8} parent=11 // pred_region
        _
      $region16: #{unet_forward.8} parent=11 // pred_fallthru
        _
      // Predicated region
      $region17: #{unet_forward.8} parent=11 // pred_check
        %p193 = pneg %p81
      $region18: #{unet_forward.8} parent=11 // pred_check_branch
        %195 = sbr.rel (%p193) target = $region20
      $region19: #{unet_forward.8} parent=11 // pred_region
        _
      $region20: #{unet_forward.8} parent=11 // pred_fallthru
        _
      // Predicated region
      $region21: #{unet_forward.8} parent=11 // pred_check
        %p196 = pneg %p102
      $region22: #{unet_forward.8} parent=11 // pred_check_branch
        %198 = sbr.rel (%p196) target = $region24
      $region23: #{unet_forward.8} parent=11 // pred_region
        _
      $region24: #{unet_forward.8} parent=11 // pred_fallthru
        _
      // Predicated region
      $region25: #{unet_forward.8} parent=11 // pred_check
        %p199 = pneg %p123
      $region26: #{unet_forward.8} parent=11 // pred_check_branch
        %201 = sbr.rel (%p199) target = $region28
      $region27: #{unet_forward.8} parent=11 // pred_region
        _
      $region28: #{unet_forward.8} parent=11 // pred_fallthru
        _
    $region12: #{unet_forward.8} parent=5 // pred_fallthru
      _
    %p202 = scmp.lt.s32.totalorder %s13, 2
    // Predicated region
    $region29: #{unet_forward.8} parent=5 // pred_check
      %p203 = pneg %p202
    $region30: #{unet_forward.8} parent=5 // pred_check_branch
      %205 = sbr.rel (%p203) target = $region32
    $region31: #{unet_forward.8} parent=5 // pred_region
      // Predicated region
      $region33: #{unet_forward.8} parent=31 // pred_check
        %p206 = pneg %p33
      $region34: #{unet_forward.8} parent=31 // pred_check_branch
        %208 = sbr.rel (%p206) target = $region36
      $region35: #{unet_forward.8} parent=31 // pred_region
        %p209 = scmp.lt.s32.totalorder %s13, 1
        %s210 = scalar_select %p209, %s13, 1
        %s211 = smul.addr %s210, 2
        %s212 = smul.addr %s211, 4
        %s213 = scalar_lea.vmem %s0, %s212
      $region36: #{unet_forward.8} parent=31 // pred_fallthru
        _
    $region32: #{unet_forward.8} parent=5 // pred_fallthru
      _
    %p214 = scmp.le.s32.totalorder 1, %s13
    %p215 = scmp.lt.s32.totalorder %s13, 3
    %p216 = pnand %p214, %p215
    %p217 = pneg %p216
    // Predicated region
    $region37: #{unet_forward.8} parent=5 // pred_check
      _
    $region38: #{unet_forward.8} parent=5 // pred_check_branch
      %219 = sbr.rel (%p216) target = $region40
    $region39: #{unet_forward.8} parent=5 // pred_region
      %s220 = ssub.s32 %s13, 1
      %p221 = scmp.lt.s32.totalorder %s18, 1
      %s222 = scalar_select %p221, %s18, 1
      %s223 = smul.addr %s222, 2
      %s224 = smul.addr %s223, 4
      %s225 = scalar_lea.vmem %s0, %s224
      %p226 = pneg %p39
      %p227 = pneg %p36
      %p228 = pneg %p60
      %p229 = pneg %p57
      %p230 = pneg %p81
      %p231 = pneg %p78
      %p232 = pneg %p102
      %p233 = pneg %p99
      %p234 = pneg %p123
      %p235 = pneg %p120
      %p236 = pneg %p149
      %p237 = pneg %p146
      %p238 = scmp.lt.s32.totalorder %s18, 1
      %s239 = scalar_select %p238, %s18, 1
      %s240 = smul.addr %s239, 2
      %s241 = smul.addr %s240, 4
      %s242 = scalar_lea.vmem %s5, %s241
      %p243 = pneg %p175
      %p244 = pneg %p172
      %p245 = scmp.lt.s32.totalorder %s18, 1
      %s246 = scalar_select %p245, %s18, 1
      %s247 = smul.addr %s246, 2
      %s248 = smul.addr %s247, 4
      %s249 = scalar_lea.vmem %s6, %s248
      %p250 = scmp.lt.s32.totalorder %s18, 1
      %s251 = scalar_select %p250, %s18, 1
      %s252 = smul.addr %s251, 2
      %s253 = smul.addr %s252, 4
      %s254 = scalar_lea.vmem %s0, %s253
      %p255 = scmp.lt.s32.totalorder %s18, 1
      %s256 = scalar_select %p255, %s18, 1
      %s257 = smul.addr %s256, 2
      %s258 = smul.addr %s257, 4
      %s259 = scalar_lea.vmem %s5, %s258
      %p260 = scmp.lt.s32.totalorder %s18, 1
      %s261 = scalar_select %p260, %s18, 1
      %s262 = smul.addr %s261, 2
      %s263 = smul.addr %s262, 4
      %s264 = scalar_lea.vmem %s6, %s263
      %v266 = vld [vmem:[%s254] sm:$0xf]
      %v267 = vld [vmem:[%s254 + $0x4] sm:$0xf]
      %v270 = vunpack.c.l.b16 %v266
      %v271 = vunpack.c.l.b16 %v267
      %v272 = vpack.c.b16 %v271, %v270
      %vm274 = vcmask 637952
      %275 = vst.msk [vmem:[#allocation2] sm:$0xff] %vm274, %v272
      %276 = vrot.lane.b32.xlu0 %v272, 127
      %v277 = vpop.permute.xlu0 %276
      %279 = vst.msk [vmem:[#allocation2 + $0x8] sm:$0xff] %vm274, %v277
      %280 = vrot.lane.b32.xlu0 %v272, 126
      %v281 = vpop.permute.xlu0 %280
      %283 = vst.msk [vmem:[#allocation2 + $0x10] sm:$0xff] %vm274, %v281
      %284 = vrot.lane.b32.xlu0 %v272, 118
      %v285 = vpop.permute.xlu0 %284
      %287 = vst.msk [vmem:[#allocation2 + $0x18] sm:$0xff] %vm274, %v285
      %288 = vrot.lane.b32.xlu0 %v272, 117
      %v289 = vpop.permute.xlu0 %288
      %291 = vst.msk [vmem:[#allocation2 + $0x20] sm:$0xff] %vm274, %v289
      %292 = vrot.lane.b32.xlu0 %v272, 116
      %v293 = vpop.permute.xlu0 %292
      %295 = vst.msk [vmem:[#allocation2 + $0x28] sm:$0xff] %vm274, %v293
      %296 = vrot.lane.b32.xlu0 %v272, 108
      %v297 = vpop.permute.xlu0 %296
      %299 = vst.msk [vmem:[#allocation2 + $0x30] sm:$0xff] %vm274, %v297
      %300 = vrot.lane.b32.xlu0 %v272, 107
      %v301 = vpop.permute.xlu0 %300
      %303 = vst.msk [vmem:[#allocation2 + $0x38] sm:$0xff] %vm274, %v301
      %304 = vrot.lane.b32.xlu0 %v272, 106
      %v305 = vpop.permute.xlu0 %304
      %307 = vst.msk [vmem:[#allocation2 + $0x40] sm:$0xff] %vm274, %v305
      %v308 = vld [vmem:[%s1] sm:$0xff]
      %v309 = vld [vmem:[%s1 + $0x8] sm:$0xff]
      %v310 = vld [vmem:[#allocation2] sm:$0xff]
      %v311 = vld [vmem:[#allocation2 + $0x8] sm:$0xff]
      %v312 = vld [vmem:[#allocation2 + $0x10] sm:$0xff]
      %v313 = vld [vmem:[#allocation2 + $0x18] sm:$0xff]
      %v314 = vld [vmem:[#allocation2 + $0x20] sm:$0xff]
      %v315 = vld [vmem:[#allocation2 + $0x28] sm:$0xff]
      %v316 = vld [vmem:[#allocation2 + $0x30] sm:$0xff]
      %v317 = vld [vmem:[#allocation2 + $0x38] sm:$0xff]
      %v318 = vld [vmem:[#allocation2 + $0x40] sm:$0xff]
      %v319 = vld [vmem:[%s2] sm:$0xff]
      %v320 = vld [vmem:[%s2 + $0x8] sm:$0xff]
      %322 = vset.pattern.permute.xlu0 0
      %323 = vperm.xlu0 %322, %v319
      %v324 = vpop.permute.xlu0 %323
      %327 = vset.pattern.permute.xlu0 0
      %328 = vperm.xlu0 %327, %v320
      %v329 = vpop.permute.xlu0 %328
      %v333 = vunpack.c.l.b16 %v308
      %v334 = vunpack.c.h.b16 %v308
      %v335 = vunpack.c.l.b16 %v309
      %v336 = vunpack.c.h.b16 %v309
      %v337 = vpack.c.b16 %v335, %v333
      %v338 = vpack.c.b16 %v336, %v334
      %vm340 = vcmask 130048
      %v342 = vsel %vm340, %v338, 0
      %344 = vmatprep.subr.bf16.mxu0 0
      %345 = vmatpush1.bf16.msra.mxu0 %v310
      %346 = vmatprep.subr.bf16.mxu0 0
      %347 = vmatpush1.bf16.msra.mxu0 %v311
      %348 = vmatprep.subr.bf16.mxu0 0
      %349 = vmatpush1.bf16.msra.mxu0 %v312
      %350 = vmatprep.subr.bf16.mxu0 0
      %351 = vmatpush1.bf16.msra.mxu0 %v313
      %352 = vmatprep.subr.bf16.mxu0 0
      %353 = vmatpush1.bf16.msra.mxu0 %v314
      %354 = vmatprep.subr.bf16.mxu0 0
      %355 = vmatpush1.bf16.msra.mxu0 %v315
      %356 = vmatprep.subr.bf16.mxu0 0
      %357 = vmatpush1.bf16.msra.mxu0 %v316
      %358 = vmatprep.subr.bf16.mxu0 0
      %359 = vmatpush1.bf16.msra.mxu0 %v317
      %360 = vmatprep.subr.bf16.mxu0 0
      %361 = vmatpush1.bf16.msra.mxu0 %v318
      %362 = vmatprep.subr.bf16.mxu0 0
      %363 = vmatpush1.bf16.msra.mxu0 0
      %364 = vmatprep.subr.bf16.mxu0 0
      %365 = vmatpush1.bf16.msra.mxu0 0
      %366 = vmatprep.subr.bf16.mxu0 0
      %367 = vmatpush1.bf16.msra.mxu0 0
      %368 = vmatprep.subr.bf16.mxu0 0
      %369 = vmatpush1.bf16.msra.mxu0 0
      %370 = vmatprep.subr.bf16.mxu0 0
      %371 = vmatpush1.bf16.msra.mxu0 0
      %372 = vmatprep.subr.bf16.mxu0 0
      %373 = vmatpush1.bf16.msra.mxu0 0
      %374 = vmatprep.subr.bf16.mxu0 0
      %375 = vmatpush1.bf16.msra.mxu0 0
      %376 = vmatprep.mubr.bf16.mxu0 %v342
      %377 = vmatmul.mubr.bf16.gmra.mrb[0].mxu0 %v337
      %v378 = vpop.f32.mrb[0].mxu0
      %v379 = vadd.f32 %v324, %v378
      %v380 = vpop.f32.mrb[0].mxu0
      %v381 = vpop.f32.mrb[0].mxu0
      %v382 = vadd.f32 %v329, %v381
      %v383 = vpop.f32.mrb[0].mxu0
      %384 = vdwg.mxu0
      %v385 = vpack.c.bf16 %v382, %v379
      %v386 = vld [vmem:[%s3] sm:$0xf]
      %v387 = vld [vmem:[%s3 + $0x4] sm:$0xf]
      %v388 = vld [vmem:[%s3 + $0x8] sm:$0xf]
      %v389 = vld [vmem:[%s3 + $0xc] sm:$0xf]
      %v390 = vld [vmem:[%s3 + $0x10] sm:$0xf]
      %v391 = vld [vmem:[%s3 + $0x14] sm:$0xf]
      %v392 = vld [vmem:[%s3 + $0x18] sm:$0xf]
      %v393 = vld [vmem:[%s3 + $0x1c] sm:$0xf]
      %v394 = vld [vmem:[%s3 + $0x20] sm:$0xf]
      %v395 = vld [vmem:[%s3 + $0x24] sm:$0x7]
      %v406 = vunpack.c.l.b16 %v386
      %v407 = vunpack.c.l.b16 %v387
      %v408 = vunpack.c.l.b16 %v388
      %v409 = vunpack.c.l.b16 %v389
      %v410 = vunpack.c.l.b16 %v390
      %v411 = vunpack.c.l.b16 %v391
      %v412 = vunpack.c.l.b16 %v392
      %v413 = vunpack.c.l.b16 %v393
      %v414 = vunpack.c.l.b16 %v394
      %v415 = vunpack.c.l.b16 %v395
      %v416 = vpack.c.b16 %v407, %v406
      %v417 = vpack.c.b16 %v409, %v408
      %v418 = vpack.c.b16 %v411, %v410
      %v419 = vpack.c.b16 %v413, %v412
      %v420 = vpack.c.b16 %v415, %v414
      %v426 = vsel %vm274, %v385, 0
      %vm428 = vcmask 1046528
      %v430 = vsel %vm428, %v420, 0
      %432 = vmatprep.subr.bf16.mxu0 0
      %433 = vmatpush1.bf16.msra.mxu0 %v416
      %434 = vmatprep.subr.bf16.mxu0 0
      %435 = vmatpush1.bf16.msra.mxu0 %v417
      %436 = vmatprep.subr.bf16.mxu0 0
      %437 = vmatpush1.bf16.msra.mxu0 %v418
      %438 = vmatprep.subr.bf16.mxu0 0
      %439 = vmatpush1.bf16.msra.mxu0 %v419
      %440 = vmatprep.subr.bf16.mxu0 0
      %441 = vmatpush1.bf16.msra.mxu0 %v430
      %442 = vmatprep.subr.bf16.mxu0 0
      %443 = vmatpush1.bf16.msra.mxu0 0
      %444 = vmatprep.subr.bf16.mxu0 0
      %445 = vmatpush1.bf16.msra.mxu0 0
      %446 = vmatprep.subr.bf16.mxu0 0
      %447 = vmatpush1.bf16.msra.mxu0 0
      %448 = vmatprep.subr.bf16.mxu0 0
      %449 = vmatpush1.bf16.msra.mxu0 0
      %450 = vmatprep.subr.bf16.mxu0 0
      %451 = vmatpush1.bf16.msra.mxu0 0
      %452 = vmatprep.subr.bf16.mxu0 0
      %453 = vmatpush1.bf16.msra.mxu0 0
      %454 = vmatprep.subr.bf16.mxu0 0
      %455 = vmatpush1.bf16.msra.mxu0 0
      %456 = vmatprep.subr.bf16.mxu0 0
      %457 = vmatpush1.bf16.msra.mxu0 0
      %458 = vmatprep.subr.bf16.mxu0 0
      %459 = vmatpush1.bf16.msra.mxu0 0
      %460 = vmatprep.subr.bf16.mxu0 0
      %461 = vmatpush1.bf16.msra.mxu0 0
      %462 = vmatprep.subr.bf16.mxu0 0
      %463 = vmatpush1.bf16.msra.mxu0 0
      %464 = vmatprep.mubr.bf16.mxu0 0
      %465 = vmatmul.mubr.bf16.gmra.mrb[0].mxu0 %v426
      %v466 = vpop.f32.mrb[0].mxu0
      %v467 = vadd.f32 0.0, %v466
      %v468 = vpop.f32.mrb[0].mxu0
      %v469 = vpop.f32.mrb[0].mxu0
      %v470 = vadd.f32 0.0, %v469
      %v471 = vpop.f32.mrb[0].mxu0
      %472 = vdwg.mxu0
      %v473 = vpack.c.bf16 %v470, %v467
      %v475 = vunpack.c.l.b16 %v473
      %v476 = vunpack.c.h.b16 %v473
      %v477 = vpack.c.b16 %v475, %v475
      %v478 = vpack.c.b16 %v476, %v476
      %vm481 = vcmask 814080
      %482 = vst.msk [vmem:[%s259] sm:$0xf] %vm481, %v477
      %483 = vst.msk [vmem:[%s259 + $0x4] sm:$0xf] %vm481, %v478
      %486 = vrot.lane.b32.xlu0 %v379, 127
      %v487 = vpop.permute.xlu0 %486
      %488 = vrot.lane.b32.xlu0 %v382, 127
      %v489 = vpop.permute.xlu0 %488
      %v492 = vmax.f32 %v379, %v487
      %v493 = vmax.f32 %v382, %v489
      %496 = vrot.lane.b32.xlu0 %v492, 118
      %v497 = vpop.permute.xlu0 %496
      %498 = vrot.lane.b32.xlu0 %v493, 118
      %v499 = vpop.permute.xlu0 %498
      %v502 = vmax.f32 %v492, %v497
      %v503 = vmax.f32 %v493, %v499
      %v504 = vpack.c.bf16 %v503, %v502
      %v505 = vld [vmem:[%s4] sm:$0xf]
      %v506 = vld [vmem:[%s4 + $0x4] sm:$0xf]
      %v507 = vld [vmem:[%s4 + $0x8] sm:$0xf]
      %v508 = vld [vmem:[%s4 + $0xc] sm:$0xf]
      %v509 = vld [vmem:[%s4 + $0x10] sm:$0xf]
      %v510 = vld [vmem:[%s4 + $0x14] sm:$0xf]
      %v511 = vld [vmem:[%s4 + $0x18] sm:$0xf]
      %v512 = vld [vmem:[%s4 + $0x1c] sm:$0xf]
      %v513 = vld [vmem:[%s4 + $0x20] sm:$0x3]
      %v523 = vunpack.c.l.b16 %v505
      %v524 = vunpack.c.l.b16 %v506
      %v525 = vunpack.c.l.b16 %v507
      %v526 = vunpack.c.l.b16 %v508
      %v527 = vunpack.c.l.b16 %v509
      %v528 = vunpack.c.l.b16 %v510
      %v529 = vunpack.c.l.b16 %v511
      %v530 = vunpack.c.l.b16 %v512
      %v531 = vunpack.c.l.b16 %v513
      %v532 = vpack.c.b16 %v524, %v523
      %v533 = vpack.c.b16 %v526, %v525
      %v534 = vpack.c.b16 %v528, %v527
      %v535 = vpack.c.b16 %v530, %v529
      %v536 = vpack.c.b16 %v531, %v531
      %vm541 = vcmask 547840
      %v543 = vsel %vm541, %v504, 0
      %vm545 = vcmask 1040384
      %vm546 = vcmask 1041408
      %v547 = vsel %vm545, 4294967295, 65535
      %v548 = vsel %vm546, %v547, 0
      %v550 = vand.u32 %v536, %v548
      %552 = vmatprep.subr.bf16.mxu0 0
      %553 = vmatpush1.bf16.msra.mxu0 %v532
      %554 = vmatprep.subr.bf16.mxu0 0
      %555 = vmatpush1.bf16.msra.mxu0 %v533
      %556 = vmatprep.subr.bf16.mxu0 0
      %557 = vmatpush1.bf16.msra.mxu0 %v534
      %558 = vmatprep.subr.bf16.mxu0 0
      %559 = vmatpush1.bf16.msra.mxu0 %v535
      %560 = vmatprep.subr.bf16.mxu0 0
      %561 = vmatpush1.bf16.msra.mxu0 %v550
      %562 = vmatprep.subr.bf16.mxu0 0
      %563 = vmatpush1.bf16.msra.mxu0 0
      %564 = vmatprep.subr.bf16.mxu0 0
      %565 = vmatpush1.bf16.msra.mxu0 0
      %566 = vmatprep.subr.bf16.mxu0 0
      %567 = vmatpush1.bf16.msra.mxu0 0
      %568 = vmatprep.subr.bf16.mxu0 0
      %569 = vmatpush1.bf16.msra.mxu0 0
      %570 = vmatprep.subr.bf16.mxu0 0
      %571 = vmatpush1.bf16.msra.mxu0 0
      %572 = vmatprep.subr.bf16.mxu0 0
      %573 = vmatpush1.bf16.msra.mxu0 0
      %574 = vmatprep.subr.bf16.mxu0 0
      %575 = vmatpush1.bf16.msra.mxu0 0
      %576 = vmatprep.subr.bf16.mxu0 0
      %577 = vmatpush1.bf16.msra.mxu0 0
      %578 = vmatprep.subr.bf16.mxu0 0
      %579 = vmatpush1.bf16.msra.mxu0 0
      %580 = vmatprep.subr.bf16.mxu0 0
      %581 = vmatpush1.bf16.msra.mxu0 0
      %582 = vmatprep.subr.bf16.mxu0 0
      %583 = vmatpush1.bf16.msra.mxu0 0
      %584 = vmatprep.mubr.bf16.mxu0 0
      %585 = vmatmul.mubr.bf16.gmra.mrb[0].mxu0 %v543
      %v586 = vpop.f32.mrb[0].mxu0
      %v587 = vadd.f32 0.0, %v586
      %v588 = vpop.f32.mrb[0].mxu0
      %v589 = vpop.f32.mrb[0].mxu0
      %v590 = vadd.f32 0.0, %v589
      %v591 = vpop.f32.mrb[0].mxu0
      %592 = vdwg.mxu0
      %v593 = vpack.c.bf16 %v590, %v587
      %v595 = vunpack.c.l.b16 %v593
      %v596 = vunpack.c.h.b16 %v593
      %v597 = vpack.c.b16 %v595, %v595
      %v598 = vpack.c.b16 %v596, %v596
      %vm601 = vcmask 289792
      %602 = vst.msk [vmem:[%s264] sm:$0xf] %vm601, %v597
      %603 = vst.msk [vmem:[%s264 + $0x4] sm:$0xf] %vm601, %v598
      %p604 = scmp.lt.s32.totalorder %s18, 1
      %s605 = scalar_select %p604, %s18, 1
      %s606 = smul.addr %s605, 2
      %s607 = smul.addr %s606, 4
      %s608 = scalar_lea.vmem %s5, %s607
      %p609 = scmp.lt.s32.totalorder %s18, 1
      %s610 = scalar_select %p609, %s18, 1
      %s611 = smul.addr %s610, 2
      %s612 = smul.addr %s611, 4
      %s613 = scalar_lea.vmem %s6, %s612
      // Predicated region
      $region41: #{unet_forward.8} parent=39 // pred_check
        %p614 = pneg %p146
      $region42: #{unet_forward.8} parent=39 // pred_check_branch
        %616 = sbr.rel (%p614) target = $region44
      $region43: #{unet_forward.8} parent=39 // pred_region
        _
      $region44: #{unet_forward.8} parent=39 // pred_fallthru
        _
      // Predicated region
      $region45: #{unet_forward.8} parent=39 // pred_check
        %p617 = pneg %p172
      $region46: #{unet_forward.8} parent=39 // pred_check_branch
        %619 = sbr.rel (%p617) target = $region48
      $region47: #{unet_forward.8} parent=39 // pred_region
        _
      $region48: #{unet_forward.8} parent=39 // pred_fallthru
        _
    $region40: #{unet_forward.8} parent=5 // pred_fallthru
      _
    %p620 = scmp.le.s32.totalorder 2, %s13
    // Predicated region
    $region49: #{unet_forward.8} parent=5 // pred_check
      %p621 = pneg %p620
    $region50: #{unet_forward.8} parent=5 // pred_check_branch
      %623 = sbr.rel (%p621) target = $region52
    $region51: #{unet_forward.8} parent=5 // pred_region
      %s624 = ssub.s32 %s13, 2
      // Predicated region
      $region53: #{unet_forward.8} parent=51 // pred_check
        %p625 = pneg %p152
      $region54: #{unet_forward.8} parent=51 // pred_check_branch
        %627 = sbr.rel (%p625) target = $region56
      $region55: #{unet_forward.8} parent=51 // pred_region
        %p628 = scmp.lt.s32.totalorder %s19, 1
        %s629 = scalar_select %p628, %s19, 1
        %s630 = smul.addr %s629, 2
        %s631 = smul.addr %s630, 4
        %s632 = scalar_lea.vmem %s5, %s631
      $region56: #{unet_forward.8} parent=51 // pred_fallthru
        _
      // Predicated region
      $region57: #{unet_forward.8} parent=51 // pred_check
        %p633 = pneg %p178
      $region58: #{unet_forward.8} parent=51 // pred_check_branch
        %635 = sbr.rel (%p633) target = $region60
      $region59: #{unet_forward.8} parent=51 // pred_region
        %p636 = scmp.lt.s32.totalorder %s19, 1
        %s637 = scalar_select %p636, %s19, 1
        %s638 = smul.addr %s637, 2
        %s639 = smul.addr %s638, 4
        %s640 = scalar_lea.vmem %s6, %s639
      $region60: #{unet_forward.8} parent=51 // pred_fallthru
        _
    $region52: #{unet_forward.8} parent=5 // pred_fallthru
      _
  $region6: #{unet_forward.8} parent=0 // loop_footer
    %s17 = sadd.s32 1, %s13
  $region7: #{unet_forward.8} parent=0 // loop_footer_branch
    %12 = sbr.rel target = $region3
  $region8: #{unet_forward.8} parent=0 // loop_exit
    _

// kernel: unet_forward.9
$region0: #{unet_forward.9}
  #allocation0 [shape = 'u32[]', space=smem, size = 0x4, offset = 0x4, fixed_abs, tag = 'smem constant byte address 0x4 - core index']
  #allocation1 [shape = 'u32[144,128]{1,0:T(1,128)}', space=vmem, size = 0x12000, scoped, tag = 'internal scratch']
  #allocation2 [shape = 'bf16[144,22]{1,0:T(16,128)(2,1)}', space=vmem, size = 0x9000, scoped, tag = 'scratch operand']
  %s0 = inlined_call_operand.vmem [shape: bf16[2,16,36], index: 0, kind: input, shape index: {}]
  %s1 = inlined_call_operand.vmem [shape: bf16[32,144], index: 1, kind: input, shape index: {}]
  %s2 = inlined_call_operand.vmem [shape: f32[32,1], index: 2, kind: input, shape index: {}]
  %s3 = inlined_call_operand.vmem [shape: bf16[22,36], index: 3, kind: input, shape index: {}]
  %s4 = inlined_call_operand.vmem [shape: bf16[2,32,36], index: 4, kind: output, shape index: {}]
  %s5 = sld [smem:[#allocation0]]
  $region49: #{unet_forward.9} parent=0
    _
  %s7 = ssub.s32 1, %s5
  %s8 = scalar_select 0, %s7, %s5
  loop: start=0, step=1, limit=4
  $region2: #{unet_forward.9} parent=0 // loop_pre_header
    _
  $region3: #{unet_forward.9} parent=0 // loop_header
    %s10 = sphi 0, %s14
    %p11 = scmp.ge.s32.totalorder %s10, 4
    %s20 = sphi 0, %s22
    %s23 = sphi 0, %s20
    %s24 = sphi 0, %s23
    %s40 = sphi 0, %s24
    %s44 = sphi 0, %s44
    %s46 = sphi 0, %s44
    %s47 = sphi 0, %s46
    %s61 = sphi 0, %s47
    %s65 = sphi 0, %s65
    %s67 = sphi 0, %s65
    %s68 = sphi 0, %s67
    %s82 = sphi 0, %s68
    %s86 = sphi 0, %s86
    %s88 = sphi 0, %s86
    %s89 = sphi 0, %s88
    %s103 = sphi 0, %s89
    %s109 = sphi 0, %s111
    %s112 = sphi 0, %s109
    %s113 = sphi 0, %s112
    %s129 = sphi 0, %s113
  $region4: #{unet_forward.9} parent=0 // loop_header_branch
    %13 = sbr.rel (%p11) target = $region8
  $region5: #{unet_forward.9} parent=0 // loop_body
    %s15 = ssub.s32 %s10, 1
    %s16 = ssub.s32 %s10, 2
    %s17 = sadd.s32 %s10, 1
    %s18 = ssub.s32 %s10, %s17
    %p19 = scmp.eq.s32.totalorder %s18, 0
    %s21 = sadd.s32 %s20, 1
    %s22 = scalar_select %p19, %s20, %s21
    %p25 = pneg %p19
    %p26 = scmp.eq.s32.totalorder %s10, 1
    %p27 = por %p25, %p26
    %p28 = scmp.ne.s32.totalorder %s20, %s23
    %p29 = scmp.eq.s32.totalorder %s10, 0
    %p30 = por %p28, %p29
    %p31 = scmp.ne.s32.totalorder %s20, %s23
    %p32 = scmp.eq.s32.totalorder %s15, 1
    %p33 = por %p31, %p32
    %p34 = scmp.ne.s32.totalorder %s23, %s24
    %p35 = scmp.eq.s32.totalorder %s15, 0
    %p36 = por %p34, %p35
    %p37 = scmp.ne.s32.totalorder %s23, %s24
    %p38 = scmp.eq.s32.totalorder %s16, 1
    %p39 = por %p37, %p38
    %p41 = scmp.ne.s32.totalorder %s24, %s40
    %p42 = scmp.eq.s32.totalorder %s16, 0
    %p43 = por %p41, %p42
    %s45 = sadd.s32 %s44, 1
    %p48 = scmp.eq.s32.totalorder %s10, 1
    %p49 = scmp.ne.s32.totalorder %s44, %s46
    %p50 = scmp.eq.s32.totalorder %s10, 0
    %p51 = por %p49, %p50
    %p52 = scmp.ne.s32.totalorder %s44, %s46
    %p53 = scmp.eq.s32.totalorder %s15, 1
    %p54 = por %p52, %p53
    %p55 = scmp.ne.s32.totalorder %s46, %s47
    %p56 = scmp.eq.s32.totalorder %s15, 0
    %p57 = por %p55, %p56
    %p58 = scmp.ne.s32.totalorder %s46, %s47
    %p59 = scmp.eq.s32.totalorder %s16, 1
    %p60 = por %p58, %p59
    %p62 = scmp.ne.s32.totalorder %s47, %s61
    %p63 = scmp.eq.s32.totalorder %s16, 0
    %p64 = por %p62, %p63
    %s66 = sadd.s32 %s65, 1
    %p69 = scmp.eq.s32.totalorder %s10, 1
    %p70 = scmp.ne.s32.totalorder %s65, %s67
    %p71 = scmp.eq.s32.totalorder %s10, 0
    %p72 = por %p70, %p71
    %p73 = scmp.ne.s32.totalorder %s65, %s67
    %p74 = scmp.eq.s32.totalorder %s15, 1
    %p75 = por %p73, %p74
    %p76 = scmp.ne.s32.totalorder %s67, %s68
    %p77 = scmp.eq.s32.totalorder %s15, 0
    %p78 = por %p76, %p77
    %p79 = scmp.ne.s32.totalorder %s67, %s68
    %p80 = scmp.eq.s32.totalorder %s16, 1
    %p81 = por %p79, %p80
    %p83 = scmp.ne.s32.totalorder %s68, %s82
    %p84 = scmp.eq.s32.totalorder %s16, 0
    %p85 = por %p83, %p84
    %s87 = sadd.s32 %s86, 1
    %p90 = scmp.eq.s32.totalorder %s10, 1
    %p91 = scmp.ne.s32.totalorder %s86, %s88
    %p92 = scmp.eq.s32.totalorder %s10, 0
    %p93 = por %p91, %p92
    %p94 = scmp.ne.s32.totalorder %s86, %s88
    %p95 = scmp.eq.s32.totalorder %s15, 1
    %p96 = por %p94, %p95
    %p97 = scmp.ne.s32.totalorder %s88, %s89
    %p98 = scmp.eq.s32.totalorder %s15, 0
    %p99 = por %p97, %p98
    %p100 = scmp.ne.s32.totalorder %s88, %s89
    %p101 = scmp.eq.s32.totalorder %s16, 1
    %p102 = por %p100, %p101
    %p104 = scmp.ne.s32.totalorder %s89, %s103
    %p105 = scmp.eq.s32.totalorder %s16, 0
    %p106 = por %p104, %p105
    %s107 = ssub.s32 %s10, %s17
    %p108 = scmp.eq.s32.totalorder %s107, 0
    %s110 = sadd.s32 %s109, 1
    %s111 = scalar_select %p108, %s109, %s110
    %p114 = pneg %p108
    %p115 = scmp.eq.s32.totalorder %s10, 1
    %p116 = por %p114, %p115
    %p117 = scmp.ne.s32.totalorder %s109, %s112
    %p118 = scmp.eq.s32.totalorder %s10, 0
    %p119 = por %p117, %p118
    %p120 = scmp.ne.s32.totalorder %s109, %s112
    %p121 = scmp.eq.s32.totalorder %s15, 1
    %p122 = por %p120, %p121
    %p123 = scmp.ne.s32.totalorder %s112, %s113
    %p124 = scmp.eq.s32.totalorder %s15, 0
    %p125 = por %p123, %p124
    %p126 = scmp.ne.s32.totalorder %s112, %s113
    %p127 = scmp.eq.s32.totalorder %s16, 1
    %p128 = por %p126, %p127
    %p130 = scmp.ne.s32.totalorder %s113, %s129
    %p131 = scmp.eq.s32.totalorder %s16, 0
    %p132 = por %p130, %p131
    %p133 = scmp.le.s32.totalorder 1, %s10
    %p134 = scmp.lt.s32.totalorder %s10, 3
    %p135 = pnand %p133, %p134
    %p136 = pneg %p135
    // Predicated region
    $region9: #{unet_forward.9} parent=5 // pred_check
      _
    $region10: #{unet_forward.9} parent=5 // pred_check_branch
      %138 = sbr.rel (%p135) target = $region12
    $region11: #{unet_forward.9} parent=5 // pred_region
      %s139 = ssub.s32 %s10, 1
      // Predicated region
      $region13: #{unet_forward.9} parent=11 // pred_check
        %p140 = pneg %p57
      $region14: #{unet_forward.9} parent=11 // pred_check_branch
        %142 = sbr.rel (%p140) target = $region16
      $region15: #{unet_forward.9} parent=11 // pred_region
        _
      $region16: #{unet_forward.9} parent=11 // pred_fallthru
        _
      // Predicated region
      $region17: #{unet_forward.9} parent=11 // pred_check
        %p143 = pneg %p78
      $region18: #{unet_forward.9} parent=11 // pred_check_branch
        %145 = sbr.rel (%p143) target = $region20
      $region19: #{unet_forward.9} parent=11 // pred_region
        _
      $region20: #{unet_forward.9} parent=11 // pred_fallthru
        _
      // Predicated region
      $region21: #{unet_forward.9} parent=11 // pred_check
        %p146 = pneg %p99
      $region22: #{unet_forward.9} parent=11 // pred_check_branch
        %148 = sbr.rel (%p146) target = $region24
      $region23: #{unet_forward.9} parent=11 // pred_region
        _
      $region24: #{unet_forward.9} parent=11 // pred_fallthru
        _
    $region12: #{unet_forward.9} parent=5 // pred_fallthru
      _
    %p149 = scmp.lt.s32.totalorder %s10, 2
    // Predicated region
    $region25: #{unet_forward.9} parent=5 // pred_check
      %p150 = pneg %p149
    $region26: #{unet_forward.9} parent=5 // pred_check_branch
      %152 = sbr.rel (%p150) target = $region28
    $region27: #{unet_forward.9} parent=5 // pred_region
      // Predicated region
      $region29: #{unet_forward.9} parent=27 // pred_check
        %p153 = pneg %p30
      $region30: #{unet_forward.9} parent=27 // pred_check_branch
        %155 = sbr.rel (%p153) target = $region32
      $region31: #{unet_forward.9} parent=27 // pred_region
        %p156 = scmp.lt.s32.totalorder %s10, 1
        %s157 = scalar_select %p156, %s10, 1
        %s158 = smul.addr %s157, 2
        %s159 = smul.addr %s158, 4
        %s160 = scalar_lea.vmem %s0, %s159
      $region32: #{unet_forward.9} parent=27 // pred_fallthru
        _
    $region28: #{unet_forward.9} parent=5 // pred_fallthru
      _
    %p161 = scmp.le.s32.totalorder 1, %s10
    %p162 = scmp.lt.s32.totalorder %s10, 3
    %p163 = pnand %p161, %p162
    %p164 = pneg %p163
    // Predicated region
    $region33: #{unet_forward.9} parent=5 // pred_check
      _
    $region34: #{unet_forward.9} parent=5 // pred_check_branch
      %166 = sbr.rel (%p163) target = $region36
    $region35: #{unet_forward.9} parent=5 // pred_region
      %s167 = ssub.s32 %s10, 1
      %p168 = scmp.lt.s32.totalorder %s15, 1
      %s169 = scalar_select %p168, %s15, 1
      %s170 = smul.addr %s169, 2
      %s171 = smul.addr %s170, 4
      %s172 = scalar_lea.vmem %s0, %s171
      %p173 = pneg %p36
      %p174 = pneg %p33
      %p175 = pneg %p57
      %p176 = pneg %p54
      %p177 = pneg %p78
      %p178 = pneg %p75
      %p179 = pneg %p99
      %p180 = pneg %p96
      %p181 = pneg %p125
      %p182 = pneg %p122
      %p183 = scmp.lt.s32.totalorder %s15, 1
      %s184 = scalar_select %p183, %s15, 1
      %s185 = smul.addr %s184, 4
      %s186 = smul.addr %s185, 4
      %s187 = scalar_lea.vmem %s4, %s186
      %p188 = scmp.lt.s32.totalorder %s15, 1
      %s189 = scalar_select %p188, %s15, 1
      %s190 = smul.addr %s189, 2
      %s191 = smul.addr %s190, 4
      %s192 = scalar_lea.vmem %s0, %s191
      %p193 = scmp.lt.s32.totalorder %s15, 1
      %s194 = scalar_select %p193, %s15, 1
      %s195 = smul.addr %s194, 4
      %s196 = smul.addr %s195, 4
      %s197 = scalar_lea.vmem %s4, %s196
      %v199 = vld [vmem:[%s192] sm:$0xf]
      %v200 = vld [vmem:[%s192 + $0x4] sm:$0xf]
      %v203 = vunpack.c.l.b16 %v199
      %v204 = vunpack.c.l.b16 %v200
      %v205 = vpack.c.b16 %v204, %v203
      %vm207 = vcmask 179200
      %208 = vst.msk [vmem:[#allocation2] sm:$0xff] %vm207, %v205
      %209 = vrot.lane.b32.xlu0 %v205, 127
      %v210 = vpop.permute.xlu0 %209
      %212 = vst.msk [vmem:[#allocation2 + $0x8] sm:$0xff] %vm207, %v210
      %213 = vrot.lane.b32.xlu0 %v205, 126
      %v214 = vpop.permute.xlu0 %213
      %216 = vst.msk [vmem:[#allocation2 + $0x10] sm:$0xff] %vm207, %v214
      %217 = vrot.lane.b32.xlu0 %v205, 122
      %v218 = vpop.permute.xlu0 %217
      %220 = vst.msk [vmem:[#allocation2 + $0x18] sm:$0xff] %vm207, %v218
      %221 = vrot.lane.b32.xlu0 %v205, 121
      %v222 = vpop.permute.xlu0 %221
      %224 = vst.msk [vmem:[#allocation2 + $0x20] sm:$0xff] %vm207, %v222
      %225 = vrot.lane.b32.xlu0 %v205, 120
      %v226 = vpop.permute.xlu0 %225
      %228 = vst.msk [vmem:[#allocation2 + $0x28] sm:$0xff] %vm207, %v226
      %229 = vrot.lane.b32.xlu0 %v205, 116
      %v230 = vpop.permute.xlu0 %229
      %232 = vst.msk [vmem:[#allocation2 + $0x30] sm:$0xff] %vm207, %v230
      %233 = vrot.lane.b32.xlu0 %v205, 115
      %v234 = vpop.permute.xlu0 %233
      %236 = vst.msk [vmem:[#allocation2 + $0x38] sm:$0xff] %vm207, %v234
      %237 = vrot.lane.b32.xlu0 %v205, 114
      %v238 = vpop.permute.xlu0 %237
      %240 = vst.msk [vmem:[#allocation2 + $0x40] sm:$0xff] %vm207, %v238
      %v241 = vld [vmem:[%s1] sm:$0xff]
      %v242 = vld [vmem:[%s1 + $0x8] sm:$0xff]
      %v243 = vld [vmem:[%s1 + $0x10] sm:$0xff]
      %v244 = vld [vmem:[%s1 + $0x18] sm:$0xff]
      %v245 = vld [vmem:[#allocation2] sm:$0xff]
      %v246 = vld [vmem:[#allocation2 + $0x8] sm:$0xff]
      %v247 = vld [vmem:[#allocation2 + $0x10] sm:$0xff]
      %v248 = vld [vmem:[#allocation2 + $0x18] sm:$0xff]
      %v249 = vld [vmem:[#allocation2 + $0x20] sm:$0xff]
      %v250 = vld [vmem:[#allocation2 + $0x28] sm:$0xff]
      %v251 = vld [vmem:[#allocation2 + $0x30] sm:$0xff]
      %v252 = vld [vmem:[#allocation2 + $0x38] sm:$0xff]
      %v253 = vld [vmem:[#allocation2 + $0x40] sm:$0xff]
      %v254 = vld [vmem:[%s2] sm:$0xff]
      %v255 = vld [vmem:[%s2 + $0x8] sm:$0xff]
      %v256 = vld [vmem:[%s2 + $0x10] sm:$0xff]
      %v257 = vld [vmem:[%s2 + $0x18] sm:$0xff]
      %259 = vset.pattern.permute.xlu0 0
      %260 = vperm.xlu0 %259, %v254
      %v261 = vpop.permute.xlu0 %260
      %264 = vset.pattern.permute.xlu0 0
      %265 = vperm.xlu0 %264, %v255
      %v266 = vpop.permute.xlu0 %265
      %269 = vset.pattern.permute.xlu0 0
      %270 = vperm.xlu0 %269, %v256
      %v271 = vpop.permute.xlu0 %270
      %274 = vset.pattern.permute.xlu0 0
      %275 = vperm.xlu0 %274, %v257
      %v276 = vpop.permute.xlu0 %275
      %v282 = vunpack.c.l.b16 %v241
      %v283 = vunpack.c.h.b16 %v241
      %v284 = vunpack.c.l.b16 %v242
      %v285 = vunpack.c.h.b16 %v242
      %v286 = vunpack.c.l.b16 %v243
      %v287 = vunpack.c.h.b16 %v243
      %v288 = vunpack.c.l.b16 %v244
      %v289 = vunpack.c.h.b16 %v244
      %v290 = vpack.c.b16 %v284, %v282
      %v291 = vpack.c.b16 %v285, %v283
      %v292 = vpack.c.b16 %v288, %v286
      %v293 = vpack.c.b16 %v289, %v287
      %vm296 = vcmask 130048
      %v298 = vsel %vm296, %v291, 0
      %v301 = vsel %vm296, %v293, 0
      %303 = vmatprep.subr.bf16.mxu0 0
      %304 = vmatpush1.bf16.msra.mxu0 %v245
      %305 = vmatprep.subr.bf16.mxu0 0
      %306 = vmatpush1.bf16.msra.mxu0 %v246
      %307 = vmatprep.subr.bf16.mxu0 0
      %308 = vmatpush1.bf16.msra.mxu0 %v247
      %309 = vmatprep.subr.bf16.mxu0 0
      %310 = vmatpush1.bf16.msra.mxu0 %v248
      %311 = vmatprep.subr.bf16.mxu0 0
      %312 = vmatpush1.bf16.msra.mxu0 %v249
      %313 = vmatprep.subr.bf16.mxu0 0
      %314 = vmatpush1.bf16.msra.mxu0 %v250
      %315 = vmatprep.subr.bf16.mxu0 0
      %316 = vmatpush1.bf16.msra.mxu0 %v251
      %317 = vmatprep.subr.bf16.mxu0 0
      %318 = vmatpush1.bf16.msra.mxu0 %v252
      %319 = vmatprep.subr.bf16.mxu0 0
      %320 = vmatpush1.bf16.msra.mxu0 %v253
      %321 = vmatprep.subr.bf16.mxu0 0
      %322 = vmatpush1.bf16.msra.mxu0 0
      %323 = vmatprep.subr.bf16.mxu0 0
      %324 = vmatpush1.bf16.msra.mxu0 0
      %325 = vmatprep.subr.bf16.mxu0 0
      %326 = vmatpush1.bf16.msra.mxu0 0
      %327 = vmatprep.subr.bf16.mxu0 0
      %328 = vmatpush1.bf16.msra.mxu0 0
      %329 = vmatprep.subr.bf16.mxu0 0
      %330 = vmatpush1.bf16.msra.mxu0 0
      %331 = vmatprep.subr.bf16.mxu0 0
      %332 = vmatpush1.bf16.msra.mxu0 0
      %333 = vmatprep.subr.bf16.mxu0 0
      %334 = vmatpush1.bf16.msra.mxu0 0
      %335 = vmatprep.mubr.bf16.mxu0 %v298
      %336 = vmatmul.mubr.bf16.gmra.mrb[0].mxu0 %v290
      %v337 = vpop.f32.mrb[0].mxu0
      %v338 = vadd.f32 %v261, %v337
      %v339 = vpop.f32.mrb[0].mxu0
      %v340 = vpop.f32.mrb[0].mxu0
      %v341 = vadd.f32 %v266, %v340
      %v342 = vpop.f32.mrb[0].mxu0
      %343 = vmatprep.mubr.bf16.mxu0 %v301
      %344 = vmatmul.mubr.bf16.gmra.mrb[0].mxu0 %v292
      %v345 = vpop.f32.mrb[0].mxu0
      %v346 = vadd.f32 %v271, %v345
      %v347 = vpop.f32.mrb[0].mxu0
      %v348 = vpop.f32.mrb[0].mxu0
      %v349 = vadd.f32 %v276, %v348
      %v350 = vpop.f32.mrb[0].mxu0
      %351 = vdwg.mxu0
      %v352 = vpack.c.bf16 %v341, %v338
      %v353 = vpack.c.bf16 %v349, %v346
      %v354 = vld [vmem:[%s3] sm:$0xf]
      %v355 = vld [vmem:[%s3 + $0x4] sm:$0xf]
      %v356 = vld [vmem:[%s3 + $0x8] sm:$0x7]
      %v360 = vunpack.c.l.b16 %v354
      %v361 = vunpack.c.l.b16 %v355
      %v362 = vunpack.c.l.b16 %v356
      %v363 = vpack.c.b16 %v361, %v360
      %v364 = vpack.c.b16 %v362, %v362
      %v367 = vsel %vm207, %v352, 0
      %v370 = vsel %vm207, %v353, 0
      %vm372 = vcmask 1042432
      %v374 = vsel %vm372, %v364, 0
      %376 = vmatprep.subr.bf16.mxu0 0
      %377 = vmatpush1.bf16.msra.mxu0 %v363
      %378 = vmatprep.subr.bf16.mxu0 0
      %379 = vmatpush1.bf16.msra.mxu0 %v374
      %380 = vmatprep.subr.bf16.mxu0 0
      %381 = vmatpush1.bf16.msra.mxu0 0
      %382 = vmatprep.subr.bf16.mxu0 0
      %383 = vmatpush1.bf16.msra.mxu0 0
      %384 = vmatprep.subr.bf16.mxu0 0
      %385 = vmatpush1.bf16.msra.mxu0 0
      %386 = vmatprep.subr.bf16.mxu0 0
      %387 = vmatpush1.bf16.msra.mxu0 0
      %388 = vmatprep.subr.bf16.mxu0 0
      %389 = vmatpush1.bf16.msra.mxu0 0
      %390 = vmatprep.subr.bf16.mxu0 0
      %391 = vmatpush1.bf16.msra.mxu0 0
      %392 = vmatprep.subr.bf16.mxu0 0
      %393 = vmatpush1.bf16.msra.mxu0 0
      %394 = vmatprep.subr.bf16.mxu0 0
      %395 = vmatpush1.bf16.msra.mxu0 0
      %396 = vmatprep.subr.bf16.mxu0 0
      %397 = vmatpush1.bf16.msra.mxu0 0
      %398 = vmatprep.subr.bf16.mxu0 0
      %399 = vmatpush1.bf16.msra.mxu0 0
      %400 = vmatprep.subr.bf16.mxu0 0
      %401 = vmatpush1.bf16.msra.mxu0 0
      %402 = vmatprep.subr.bf16.mxu0 0
      %403 = vmatpush1.bf16.msra.mxu0 0
      %404 = vmatprep.subr.bf16.mxu0 0
      %405 = vmatpush1.bf16.msra.mxu0 0
      %406 = vmatprep.subr.bf16.mxu0 0
      %407 = vmatpush1.bf16.msra.mxu0 0
      %408 = vmatprep.mubr.bf16.mxu0 0
      %409 = vmatmul.mubr.bf16.gmra.mrb[0].mxu0 %v367
      %v410 = vpop.f32.mrb[0].mxu0
      %v411 = vadd.f32 0.0, %v410
      %v412 = vpop.f32.mrb[0].mxu0
      %v413 = vpop.f32.mrb[0].mxu0
      %v414 = vadd.f32 0.0, %v413
      %v415 = vpop.f32.mrb[0].mxu0
      %416 = vmatprep.mubr.bf16.mxu0 0
      %417 = vmatmul.mubr.bf16.gmra.mrb[0].mxu0 %v370
      %v418 = vpop.f32.mrb[0].mxu0
      %v419 = vadd.f32 0.0, %v418
      %v420 = vpop.f32.mrb[0].mxu0
      %v421 = vpop.f32.mrb[0].mxu0
      %v422 = vadd.f32 0.0, %v421
      %v423 = vpop.f32.mrb[0].mxu0
      %424 = vdwg.mxu0
      %v425 = vpack.c.bf16 %v414, %v411
      %v426 = vpack.c.bf16 %v422, %v419
      %v429 = vunpack.c.l.b16 %v425
      %v430 = vunpack.c.h.b16 %v425
      %v431 = vunpack.c.l.b16 %v426
      %v432 = vunpack.c.h.b16 %v426
      %v433 = vpack.c.b16 %v429, %v429
      %v434 = vpack.c.b16 %v430, %v430
      %v435 = vpack.c.b16 %v431, %v431
      %v436 = vpack.c.b16 %v432, %v432
      %vm441 = vcmask 289792
      %442 = vst.msk [vmem:[%s197] sm:$0xf] %vm441, %v433
      %443 = vst.msk [vmem:[%s197 + $0x4] sm:$0xf] %vm441, %v434
      %444 = vst.msk [vmem:[%s197 + $0x8] sm:$0xf] %vm441, %v435
      %445 = vst.msk [vmem:[%s197 + $0xc] sm:$0xf] %vm441, %v436
      %p446 = scmp.lt.s32.totalorder %s15, 1
      %s447 = scalar_select %p446, %s15, 1
      %s448 = smul.addr %s447, 4
      %s449 = smul.addr %s448, 4
      %s450 = scalar_lea.vmem %s4, %s449
      // Predicated region
      $region37: #{unet_forward.9} parent=35 // pred_check
        %p451 = pneg %p122
      $region38: #{unet_forward.9} parent=35 // pred_check_branch
        %453 = sbr.rel (%p451) target = $region40
      $region39: #{unet_forward.9} parent=35 // pred_region
        _
      $region40: #{unet_forward.9} parent=35 // pred_fallthru
        _
    $region36: #{unet_forward.9} parent=5 // pred_fallthru
      _
    %p454 = scmp.le.s32.totalorder 2, %s10
    // Predicated region
    $region41: #{unet_forward.9} parent=5 // pred_check
      %p455 = pneg %p454
    $region42: #{unet_forward.9} parent=5 // pred_check_branch
      %457 = sbr.rel (%p455) target = $region44
    $region43: #{unet_forward.9} parent=5 // pred_region
      %s458 = ssub.s32 %s10, 2
      // Predicated region
      $region45: #{unet_forward.9} parent=43 // pred_check
        %p459 = pneg %p128
      $region46: #{unet_forward.9} parent=43 // pred_check_branch
        %461 = sbr.rel (%p459) target = $region48
      $region47: #{unet_forward.9} parent=43 // pred_region
        %p462 = scmp.lt.s32.totalorder %s16, 1
        %s463 = scalar_select %p462, %s16, 1
        %s464 = smul.addr %s463, 4
        %s465 = smul.addr %s464, 4
        %s466 = scalar_lea.vmem %s4, %s465
      $region48: #{unet_forward.9} parent=43 // pred_fallthru
        _
    $region44: #{unet_forward.9} parent=5 // pred_fallthru
      _
  $region6: #{unet_forward.9} parent=0 // loop_footer
    %s14 = sadd.s32 1, %s10
  $region7: #{unet_forward.9} parent=0 // loop_footer_branch
    %9 = sbr.rel target = $region3
  $region8: #{unet_forward.9} parent=0 // loop_exit
    _

// kernel: unet_forward.10
$region0: #{unet_forward.10}
  #allocation0 [shape = 'u32[]', space=smem, size = 0x4, offset = 0x4, fixed_abs, tag = 'smem constant byte address 0x4 - core index']
  #allocation1 [shape = 'u32[144,128]{1,0:T(1,128)}', space=vmem, size = 0x12000, scoped, tag = 'internal scratch']
  %s0 = inlined_call_operand.vmem [shape: bf16[2,32,36], index: 0, kind: input, shape index: {}]
  %s1 = inlined_call_operand.vmem [shape: bf16[4,16,32], index: 1, kind: input, shape index: {}]
  %s2 = inlined_call_operand.vmem [shape: bf16[4,36,100], index: 2, kind: input, shape index: {}]
  %s3 = inlined_call_operand.vmem [shape: f32[16,1], index: 3, kind: input, shape index: {}]
  %s4 = inlined_call_operand.vmem [shape: f32[1,100], index: 4, kind: input, shape index: {}]
  %s5 = inlined_call_operand.vmem [shape: bf16[2,16,100], index: 5, kind: output, shape index: {}]
  %s6 = sld [smem:[#allocation0]]
  $region53: #{unet_forward.10} parent=0
    _
  %s8 = ssub.s32 1, %s6
  %s9 = scalar_select 0, %s8, %s6
  loop: start=0, step=1, limit=4
  $region2: #{unet_forward.10} parent=0 // loop_pre_header
    _
  $region3: #{unet_forward.10} parent=0 // loop_header
    %s11 = sphi 0, %s15
    %p12 = scmp.ge.s32.totalorder %s11, 4
    %s21 = sphi 0, %s23
    %s24 = sphi 0, %s21
    %s25 = sphi 0, %s24
    %s41 = sphi 0, %s25
    %s45 = sphi 0, %s45
    %s47 = sphi 0, %s45
    %s48 = sphi 0, %s47
    %s62 = sphi 0, %s48
    %s66 = sphi 0, %s66
    %s68 = sphi 0, %s66
    %s69 = sphi 0, %s68
    %s83 = sphi 0, %s69
    %s87 = sphi 0, %s87
    %s89 = sphi 0, %s87
    %s90 = sphi 0, %s89
    %s104 = sphi 0, %s90
    %s108 = sphi 0, %s108
    %s110 = sphi 0, %s108
    %s111 = sphi 0, %s110
    %s125 = sphi 0, %s111
    %s131 = sphi 0, %s133
    %s134 = sphi 0, %s131
    %s135 = sphi 0, %s134
    %s151 = sphi 0, %s135
  $region4: #{unet_forward.10} parent=0 // loop_header_branch
    %14 = sbr.rel (%p12) target = $region8
  $region5: #{unet_forward.10} parent=0 // loop_body
    %s16 = ssub.s32 %s11, 1
    %s17 = ssub.s32 %s11, 2
    %s18 = sadd.s32 %s11, 1
    %s19 = ssub.s32 %s11, %s18
    %p20 = scmp.eq.s32.totalorder %s19, 0
    %s22 = sadd.s32 %s21, 1
    %s23 = scalar_select %p20, %s21, %s22
    %p26 = pneg %p20
    %p27 = scmp.eq.s32.totalorder %s11, 1
    %p28 = por %p26, %p27
    %p29 = scmp.ne.s32.totalorder %s21, %s24
    %p30 = scmp.eq.s32.totalorder %s11, 0
    %p31 = por %p29, %p30
    %p32 = scmp.ne.s32.totalorder %s21, %s24
    %p33 = scmp.eq.s32.totalorder %s16, 1
    %p34 = por %p32, %p33
    %p35 = scmp.ne.s32.totalorder %s24, %s25
    %p36 = scmp.eq.s32.totalorder %s16, 0
    %p37 = por %p35, %p36
    %p38 = scmp.ne.s32.totalorder %s24, %s25
    %p39 = scmp.eq.s32.totalorder %s17, 1
    %p40 = por %p38, %p39
    %p42 = scmp.ne.s32.totalorder %s25, %s41
    %p43 = scmp.eq.s32.totalorder %s17, 0
    %p44 = por %p42, %p43
    %s46 = sadd.s32 %s45, 1
    %p49 = scmp.eq.s32.totalorder %s11, 1
    %p50 = scmp.ne.s32.totalorder %s45, %s47
    %p51 = scmp.eq.s32.totalorder %s11, 0
    %p52 = por %p50, %p51
    %p53 = scmp.ne.s32.totalorder %s45, %s47
    %p54 = scmp.eq.s32.totalorder %s16, 1
    %p55 = por %p53, %p54
    %p56 = scmp.ne.s32.totalorder %s47, %s48
    %p57 = scmp.eq.s32.totalorder %s16, 0
    %p58 = por %p56, %p57
    %p59 = scmp.ne.s32.totalorder %s47, %s48
    %p60 = scmp.eq.s32.totalorder %s17, 1
    %p61 = por %p59, %p60
    %p63 = scmp.ne.s32.totalorder %s48, %s62
    %p64 = scmp.eq.s32.totalorder %s17, 0
    %p65 = por %p63, %p64
    %s67 = sadd.s32 %s66, 1
    %p70 = scmp.eq.s32.totalorder %s11, 1
    %p71 = scmp.ne.s32.totalorder %s66, %s68
    %p72 = scmp.eq.s32.totalorder %s11, 0
    %p73 = por %p71, %p72
    %p74 = scmp.ne.s32.totalorder %s66, %s68
    %p75 = scmp.eq.s32.totalorder %s16, 1
    %p76 = por %p74, %p75
    %p77 = scmp.ne.s32.totalorder %s68, %s69
    %p78 = scmp.eq.s32.totalorder %s16, 0
    %p79 = por %p77, %p78
    %p80 = scmp.ne.s32.totalorder %s68, %s69
    %p81 = scmp.eq.s32.totalorder %s17, 1
    %p82 = por %p80, %p81
    %p84 = scmp.ne.s32.totalorder %s69, %s83
    %p85 = scmp.eq.s32.totalorder %s17, 0
    %p86 = por %p84, %p85
    %s88 = sadd.s32 %s87, 1
    %p91 = scmp.eq.s32.totalorder %s11, 1
    %p92 = scmp.ne.s32.totalorder %s87, %s89
    %p93 = scmp.eq.s32.totalorder %s11, 0
    %p94 = por %p92, %p93
    %p95 = scmp.ne.s32.totalorder %s87, %s89
    %p96 = scmp.eq.s32.totalorder %s16, 1
    %p97 = por %p95, %p96
    %p98 = scmp.ne.s32.totalorder %s89, %s90
    %p99 = scmp.eq.s32.totalorder %s16, 0
    %p100 = por %p98, %p99
    %p101 = scmp.ne.s32.totalorder %s89, %s90
    %p102 = scmp.eq.s32.totalorder %s17, 1
    %p103 = por %p101, %p102
    %p105 = scmp.ne.s32.totalorder %s90, %s104
    %p106 = scmp.eq.s32.totalorder %s17, 0
    %p107 = por %p105, %p106
    %s109 = sadd.s32 %s108, 1
    %p112 = scmp.eq.s32.totalorder %s11, 1
    %p113 = scmp.ne.s32.totalorder %s108, %s110
    %p114 = scmp.eq.s32.totalorder %s11, 0
    %p115 = por %p113, %p114
    %p116 = scmp.ne.s32.totalorder %s108, %s110
    %p117 = scmp.eq.s32.totalorder %s16, 1
    %p118 = por %p116, %p117
    %p119 = scmp.ne.s32.totalorder %s110, %s111
    %p120 = scmp.eq.s32.totalorder %s16, 0
    %p121 = por %p119, %p120
    %p122 = scmp.ne.s32.totalorder %s110, %s111
    %p123 = scmp.eq.s32.totalorder %s17, 1
    %p124 = por %p122, %p123
    %p126 = scmp.ne.s32.totalorder %s111, %s125
    %p127 = scmp.eq.s32.totalorder %s17, 0
    %p128 = por %p126, %p127
    %s129 = ssub.s32 %s11, %s18
    %p130 = scmp.eq.s32.totalorder %s129, 0
    %s132 = sadd.s32 %s131, 1
    %s133 = scalar_select %p130, %s131, %s132
    %p136 = pneg %p130
    %p137 = scmp.eq.s32.totalorder %s11, 1
    %p138 = por %p136, %p137
    %p139 = scmp.ne.s32.totalorder %s131, %s134
    %p140 = scmp.eq.s32.totalorder %s11, 0
    %p141 = por %p139, %p140
    %p142 = scmp.ne.s32.totalorder %s131, %s134
    %p143 = scmp.eq.s32.totalorder %s16, 1
    %p144 = por %p142, %p143
    %p145 = scmp.ne.s32.totalorder %s134, %s135
    %p146 = scmp.eq.s32.totalorder %s16, 0
    %p147 = por %p145, %p146
    %p148 = scmp.ne.s32.totalorder %s134, %s135
    %p149 = scmp.eq.s32.totalorder %s17, 1
    %p150 = por %p148, %p149
    %p152 = scmp.ne.s32.totalorder %s135, %s151
    %p153 = scmp.eq.s32.totalorder %s17, 0
    %p154 = por %p152, %p153
    %p155 = scmp.le.s32.totalorder 1, %s11
    %p156 = scmp.lt.s32.totalorder %s11, 3
    %p157 = pnand %p155, %p156
    %p158 = pneg %p157
    // Predicated region
    $region9: #{unet_forward.10} parent=5 // pred_check
      _
    $region10: #{unet_forward.10} parent=5 // pred_check_branch
      %160 = sbr.rel (%p157) target = $region12
    $region11: #{unet_forward.10} parent=5 // pred_region
      %s161 = ssub.s32 %s11, 1
      // Predicated region
      $region13: #{unet_forward.10} parent=11 // pred_check
        %p162 = pneg %p58
      $region14: #{unet_forward.10} parent=11 // pred_check_branch
        %164 = sbr.rel (%p162) target = $region16
      $region15: #{unet_forward.10} parent=11 // pred_region
        _
      $region16: #{unet_forward.10} parent=11 // pred_fallthru
        _
      // Predicated region
      $region17: #{unet_forward.10} parent=11 // pred_check
        %p165 = pneg %p79
      $region18: #{unet_forward.10} parent=11 // pred_check_branch
        %167 = sbr.rel (%p165) target = $region20
      $region19: #{unet_forward.10} parent=11 // pred_region
        _
      $region20: #{unet_forward.10} parent=11 // pred_fallthru
        _
      // Predicated region
      $region21: #{unet_forward.10} parent=11 // pred_check
        %p168 = pneg %p100
      $region22: #{unet_forward.10} parent=11 // pred_check_branch
        %170 = sbr.rel (%p168) target = $region24
      $region23: #{unet_forward.10} parent=11 // pred_region
        _
      $region24: #{unet_forward.10} parent=11 // pred_fallthru
        _
      // Predicated region
      $region25: #{unet_forward.10} parent=11 // pred_check
        %p171 = pneg %p121
      $region26: #{unet_forward.10} parent=11 // pred_check_branch
        %173 = sbr.rel (%p171) target = $region28
      $region27: #{unet_forward.10} parent=11 // pred_region
        _
      $region28: #{unet_forward.10} parent=11 // pred_fallthru
        _
    $region12: #{unet_forward.10} parent=5 // pred_fallthru
      _
    %p174 = scmp.lt.s32.totalorder %s11, 2
    // Predicated region
    $region29: #{unet_forward.10} parent=5 // pred_check
      %p175 = pneg %p174
    $region30: #{unet_forward.10} parent=5 // pred_check_branch
      %177 = sbr.rel (%p175) target = $region32
    $region31: #{unet_forward.10} parent=5 // pred_region
      // Predicated region
      $region33: #{unet_forward.10} parent=31 // pred_check
        %p178 = pneg %p31
      $region34: #{unet_forward.10} parent=31 // pred_check_branch
        %180 = sbr.rel (%p178) target = $region36
      $region35: #{unet_forward.10} parent=31 // pred_region
        %p181 = scmp.lt.s32.totalorder %s11, 1
        %s182 = scalar_select %p181, %s11, 1
        %s183 = smul.addr %s182, 4
        %s184 = smul.addr %s183, 4
        %s185 = scalar_lea.vmem %s0, %s184
      $region36: #{unet_forward.10} parent=31 // pred_fallthru
        _
    $region32: #{unet_forward.10} parent=5 // pred_fallthru
      _
    %p186 = scmp.le.s32.totalorder 1, %s11
    %p187 = scmp.lt.s32.totalorder %s11, 3
    %p188 = pnand %p186, %p187
    %p189 = pneg %p188
    // Predicated region
    $region37: #{unet_forward.10} parent=5 // pred_check
      _
    $region38: #{unet_forward.10} parent=5 // pred_check_branch
      %191 = sbr.rel (%p188) target = $region40
    $region39: #{unet_forward.10} parent=5 // pred_region
      %s192 = ssub.s32 %s11, 1
      %p193 = scmp.lt.s32.totalorder %s16, 1
      %s194 = scalar_select %p193, %s16, 1
      %s195 = smul.addr %s194, 4
      %s196 = smul.addr %s195, 4
      %s197 = scalar_lea.vmem %s0, %s196
      %p198 = pneg %p37
      %p199 = pneg %p34
      %p200 = pneg %p58
      %p201 = pneg %p55
      %p202 = pneg %p79
      %p203 = pneg %p76
      %p204 = pneg %p100
      %p205 = pneg %p97
      %p206 = pneg %p121
      %p207 = pneg %p118
      %p208 = pneg %p147
      %p209 = pneg %p144
      %p210 = scmp.lt.s32.totalorder %s16, 1
      %s211 = scalar_select %p210, %s16, 1
      %s212 = smul.addr %s211, 2
      %s213 = smul.addr %s212, 4
      %s214 = scalar_lea.vmem %s5, %s213
      %p215 = scmp.lt.s32.totalorder %s16, 1
      %s216 = scalar_select %p215, %s16, 1
      %s217 = smul.addr %s216, 4
      %s218 = smul.addr %s217, 4
      %s219 = scalar_lea.vmem %s0, %s218
      %p220 = scmp.lt.s32.totalorder %s16, 1
      %s221 = scalar_select %p220, %s16, 1
      %s222 = smul.addr %s221, 2
      %s223 = smul.addr %s222, 4
      %s224 = scalar_lea.vmem %s5, %s223
      %v226 = vld [vmem:[%s219] sm:$0xf]
      %v227 = vld [vmem:[%s219 + $0x4] sm:$0xf]
      %v228 = vld [vmem:[%s219 + $0x8] sm:$0xf]
      %v229 = vld [vmem:[%s219 + $0xc] sm:$0xf]
      %v230 = vld [vmem:[%s1] sm:$0xf]
      %v231 = vld [vmem:[%s1 + $0x4] sm:$0xf]
      %v234 = vunpack.c.l.b16 %v230
      %v235 = vunpack.c.l.b16 %v231
      %v236 = vpack.c.b16 %v235, %v234
      %v241 = vunpack.c.l.b16 %v226
      %v242 = vunpack.c.l.b16 %v227
      %v243 = vunpack.c.l.b16 %v228
      %v244 = vunpack.c.l.b16 %v229
      %v245 = vpack.c.b16 %v242, %v241
      %v246 = vpack.c.b16 %v244, %v243
      %vm249 = vcmask 261120
      %v251 = vsel %vm249, %v236, 0
      %253 = vmatprep.subr.bf16.mxu0 0
      %254 = vmatpush1.bf16.msra.mxu0 %v245
      %255 = vmatprep.subr.bf16.mxu0 0
      %256 = vmatpush1.bf16.msra.mxu0 %v246
      %257 = vmatprep.subr.bf16.mxu0 0
      %258 = vmatpush1.bf16.msra.mxu0 0
      %259 = vmatprep.subr.bf16.mxu0 0
      %260 = vmatpush1.bf16.msra.mxu0 0
      %261 = vmatprep.subr.bf16.mxu0 0
      %262 = vmatpush1.bf16.msra.mxu0 0
      %263 = vmatprep.subr.bf16.mxu0 0
      %264 = vmatpush1.bf16.msra.mxu0 0
      %265 = vmatprep.subr.bf16.mxu0 0
      %266 = vmatpush1.bf16.msra.mxu0 0
      %267 = vmatprep.subr.bf16.mxu0 0
      %268 = vmatpush1.bf16.msra.mxu0 0
      %269 = vmatprep.subr.bf16.mxu0 0
      %270 = vmatpush1.bf16.msra.mxu0 0
      %271 = vmatprep.subr.bf16.mxu0 0
      %272 = vmatpush1.bf16.msra.mxu0 0
      %273 = vmatprep.subr.bf16.mxu0 0
      %274 = vmatpush1.bf16.msra.mxu0 0
      %275 = vmatprep.subr.bf16.mxu0 0
      %276 = vmatpush1.bf16.msra.mxu0 0
      %277 = vmatprep.subr.bf16.mxu0 0
      %278 = vmatpush1.bf16.msra.mxu0 0
      %279 = vmatprep.subr.bf16.mxu0 0
      %280 = vmatpush1.bf16.msra.mxu0 0
      %281 = vmatprep.subr.bf16.mxu0 0
      %282 = vmatpush1.bf16.msra.mxu0 0
      %283 = vmatprep.subr.bf16.mxu0 0
      %284 = vmatpush1.bf16.msra.mxu0 0
      %285 = vmatprep.mubr.bf16.mxu0 0
      %286 = vmatmul.mubr.bf16.gmra.mrb[0].mxu0 %v251
      %v287 = vpop.f32.mrb[0].mxu0
      %v288 = vadd.f32 0.0, %v287
      %v289 = vpop.f32.mrb[0].mxu0
      %v290 = vpop.f32.mrb[0].mxu0
      %v291 = vadd.f32 0.0, %v290
      %v292 = vpop.f32.mrb[0].mxu0
      %293 = vdwg.mxu0
      %v294 = vpack.c.bf16 %v291, %v288
      %v295 = vld [vmem:[%s2] sm:$0xf]
      %v296 = vld [vmem:[%s2 + $0x4] sm:$0xf]
      %v297 = vld [vmem:[%s2 + $0x8] sm:$0xf]
      %v298 = vld [vmem:[%s2 + $0xc] sm:$0xf]
      %v299 = vld [vmem:[%s2 + $0x10] sm:$0x3]
      %s300 = scalar_lea.vmem %s1, 8
      %v301 = vld [vmem:[%s300] sm:$0xf]
      %v302 = vld [vmem:[%s300 + $0x4] sm:$0xf]
      %v305 = vunpack.c.l.b16 %v301
      %v306 = vunpack.c.l.b16 %v302
      %v307 = vpack.c.b16 %v306, %v305
      %v309 = vsel %vm249, %v307, 0
      %311 = vmatprep.subr.bf16.mxu0 0
      %312 = vmatpush1.bf16.msra.mxu0 %v245
      %313 = vmatprep.subr.bf16.mxu0 0
      %314 = vmatpush1.bf16.msra.mxu0 %v246
      %315 = vmatprep.subr.bf16.mxu0 0
      %316 = vmatpush1.bf16.msra.mxu0 0
      %317 = vmatprep.subr.bf16.mxu0 0
      %318 = vmatpush1.bf16.msra.mxu0 0
      %319 = vmatprep.subr.bf16.mxu0 0
      %320 = vmatpush1.bf16.msra.mxu0 0
      %321 = vmatprep.subr.bf16.mxu0 0
      %322 = vmatpush1.bf16.msra.mxu0 0
      %323 = vmatprep.subr.bf16.mxu0 0
      %324 = vmatpush1.bf16.msra.mxu0 0
      %325 = vmatprep.subr.bf16.mxu0 0
      %326 = vmatpush1.bf16.msra.mxu0 0
      %327 = vmatprep.subr.bf16.mxu0 0
      %328 = vmatpush1.bf16.msra.mxu0 0
      %329 = vmatprep.subr.bf16.mxu0 0
      %330 = vmatpush1.bf16.msra.mxu0 0
      %331 = vmatprep.subr.bf16.mxu0 0
      %332 = vmatpush1.bf16.msra.mxu0 0
      %333 = vmatprep.subr.bf16.mxu0 0
      %334 = vmatpush1.bf16.msra.mxu0 0
      %335 = vmatprep.subr.bf16.mxu0 0
      %336 = vmatpush1.bf16.msra.mxu0 0
      %337 = vmatprep.subr.bf16.mxu0 0
      %338 = vmatpush1.bf16.msra.mxu0 0
      %339 = vmatprep.subr.bf16.mxu0 0
      %340 = vmatpush1.bf16.msra.mxu0 0
      %341 = vmatprep.subr.bf16.mxu0 0
      %342 = vmatpush1.bf16.msra.mxu0 0
      %343 = vmatprep.mubr.bf16.mxu0 0
      %344 = vmatmul.mubr.bf16.gmra.mrb[0].mxu0 %v309
      %v345 = vpop.f32.mrb[0].mxu0
      %v346 = vadd.f32 0.0, %v345
      %v347 = vpop.f32.mrb[0].mxu0
      %v348 = vpop.f32.mrb[0].mxu0
      %v349 = vadd.f32 0.0, %v348
      %v350 = vpop.f32.mrb[0].mxu0
      %351 = vdwg.mxu0
      %v352 = vpack.c.bf16 %v349, %v346
      %s353 = scalar_lea.vmem %s2, 20
      %v354 = vld [vmem:[%s353] sm:$0xf]
      %v355 = vld [vmem:[%s353 + $0x4] sm:$0xf]
      %v356 = vld [vmem:[%s353 + $0x8] sm:$0xf]
      %v357 = vld [vmem:[%s353 + $0xc] sm:$0xf]
      %v358 = vld [vmem:[%s353 + $0x10] sm:$0x3]
      %v364 = vunpack.c.l.b16 %v354
      %v365 = vunpack.c.l.b16 %v355
      %v366 = vunpack.c.l.b16 %v356
      %v367 = vunpack.c.l.b16 %v357
      %v368 = vunpack.c.l.b16 %v358
      %v369 = vpack.c.b16 %v365, %v364
      %v370 = vpack.c.b16 %v367, %v366
      %v371 = vpack.c.b16 %v368, %v368
      %vm374 = vcmask 293888
      %v376 = vsel %vm374, %v352, 0
      %vm378 = vcmask 1041408
      %v380 = vsel %vm378, %v371, 0
      %382 = vmatprep.subr.bf16.mxu0 0
      %383 = vmatpush1.bf16.msra.mxu0 %v369
      %384 = vmatprep.subr.bf16.mxu0 0
      %385 = vmatpush1.bf16.msra.mxu0 %v370
      %386 = vmatprep.subr.bf16.mxu0 0
      %387 = vmatpush1.bf16.msra.mxu0 %v380
      %388 = vmatprep.subr.bf16.mxu0 0
      %389 = vmatpush1.bf16.msra.mxu0 0
      %390 = vmatprep.subr.bf16.mxu0 0
      %391 = vmatpush1.bf16.msra.mxu0 0
      %392 = vmatprep.subr.bf16.mxu0 0
      %393 = vmatpush1.bf16.msra.mxu0 0
      %394 = vmatprep.subr.bf16.mxu0 0
      %395 = vmatpush1.bf16.msra.mxu0 0
      %396 = vmatprep.subr.bf16.mxu0 0
      %397 = vmatpush1.bf16.msra.mxu0 0
      %398 = vmatprep.subr.bf16.mxu0 0
      %399 = vmatpush1.bf16.msra.mxu0 0
      %400 = vmatprep.subr.bf16.mxu0 0
      %401 = vmatpush1.bf16.msra.mxu0 0
      %402 = vmatprep.subr.bf16.mxu0 0
      %403 = vmatpush1.bf16.msra.mxu0 0
      %404 = vmatprep.subr.bf16.mxu0 0
      %405 = vmatpush1.bf16.msra.mxu0 0
      %406 = vmatprep.subr.bf16.mxu0 0
      %407 = vmatpush1.bf16.msra.mxu0 0
      %408 = vmatprep.subr.bf16.mxu0 0
      %409 = vmatpush1.bf16.msra.mxu0 0
      %410 = vmatprep.subr.bf16.mxu0 0
      %411 = vmatpush1.bf16.msra.mxu0 0
      %412 = vmatprep.subr.bf16.mxu0 0
      %413 = vmatpush1.bf16.msra.mxu0 0
      %414 = vmatprep.mubr.bf16.mxu0 0
      %415 = vmatmul.mubr.bf16.gmra.mrb[0].mxu0 %v376
      %v416 = vpop.f32.mrb[0].mxu0
      %v417 = vadd.f32 0.0, %v416
      %v418 = vpop.f32.mrb[0].mxu0
      %v419 = vpop.f32.mrb[0].mxu0
      %v420 = vadd.f32 0.0, %v419
      %v421 = vpop.f32.mrb[0].mxu0
      %422 = vdwg.mxu0
      %v428 = vunpack.c.l.b16 %v295
      %v429 = vunpack.c.l.b16 %v296
      %v430 = vunpack.c.l.b16 %v297
      %v431 = vunpack.c.l.b16 %v298
      %v432 = vunpack.c.l.b16 %v299
      %v433 = vpack.c.b16 %v429, %v428
      %v434 = vpack.c.b16 %v431, %v430
      %v435 = vpack.c.b16 %v432, %v432
      %v439 = vsel %vm374, %v294, 0
      %v442 = vsel %vm378, %v435, 0
      %444 = vmatprep.subr.bf16.mxu0 0
      %445 = vmatpush1.bf16.msra.mxu0 %v433
      %446 = vmatprep.subr.bf16.mxu0 0
      %447 = vmatpush1.bf16.msra.mxu0 %v434
      %448 = vmatprep.subr.bf16.mxu0 0
      %449 = vmatpush1.bf16.msra.mxu0 %v442
      %450 = vmatprep.subr.bf16.mxu0 0
      %451 = vmatpush1.bf16.msra.mxu0 0
      %452 = vmatprep.subr.bf16.mxu0 0
      %453 = vmatpush1.bf16.msra.mxu0 0
      %454 = vmatprep.subr.bf16.mxu0 0
      %455 = vmatpush1.bf16.msra.mxu0 0
      %456 = vmatprep.subr.bf16.mxu0 0
      %457 = vmatpush1.bf16.msra.mxu0 0
      %458 = vmatprep.subr.bf16.mxu0 0
      %459 = vmatpush1.bf16.msra.mxu0 0
      %460 = vmatprep.subr.bf16.mxu0 0
      %461 = vmatpush1.bf16.msra.mxu0 0
      %462 = vmatprep.subr.bf16.mxu0 0
      %463 = vmatpush1.bf16.msra.mxu0 0
      %464 = vmatprep.subr.bf16.mxu0 0
      %465 = vmatpush1.bf16.msra.mxu0 0
      %466 = vmatprep.subr.bf16.mxu0 0
      %467 = vmatpush1.bf16.msra.mxu0 0
      %468 = vmatprep.subr.bf16.mxu0 0
      %469 = vmatpush1.bf16.msra.mxu0 0
      %470 = vmatprep.subr.bf16.mxu0 0
      %471 = vmatpush1.bf16.msra.mxu0 0
      %472 = vmatprep.subr.bf16.mxu0 0
      %473 = vmatpush1.bf16.msra.mxu0 0
      %474 = vmatprep.subr.bf16.mxu0 0
      %475 = vmatpush1.bf16.msra.mxu0 0
      %476 = vmatprep.mubr.bf16.mxu0 0
      %477 = vmatmul.mubr.bf16.gmra.mrb[0].mxu0 %v439
      %v478 = vpop.f32.mrb[0].mxu0
      %v479 = vadd.f32 %v417, %v478
      %v480 = vpop.f32.mrb[0].mxu0
      %v481 = vpop.f32.mrb[0].mxu0
      %v482 = vadd.f32 %v420, %v481
      %v483 = vpop.f32.mrb[0].mxu0
      %484 = vdwg.mxu0
      %s485 = scalar_lea.vmem %s1, 16
      %v486 = vld [vmem:[%s485] sm:$0xf]
      %v487 = vld [vmem:[%s485 + $0x4] sm:$0xf]
      %v490 = vunpack.c.l.b16 %v486
      %v491 = vunpack.c.l.b16 %v487
      %v492 = vpack.c.b16 %v491, %v490
      %v494 = vsel %vm249, %v492, 0
      %496 = vmatprep.subr.bf16.mxu0 0
      %497 = vmatpush1.bf16.msra.mxu0 %v245
      %498 = vmatprep.subr.bf16.mxu0 0
      %499 = vmatpush1.bf16.msra.mxu0 %v246
      %500 = vmatprep.subr.bf16.mxu0 0
      %501 = vmatpush1.bf16.msra.mxu0 0
      %502 = vmatprep.subr.bf16.mxu0 0
      %503 = vmatpush1.bf16.msra.mxu0 0
      %504 = vmatprep.subr.bf16.mxu0 0
      %505 = vmatpush1.bf16.msra.mxu0 0
      %506 = vmatprep.subr.bf16.mxu0 0
      %507 = vmatpush1.bf16.msra.mxu0 0
      %508 = vmatprep.subr.bf16.mxu0 0
      %509 = vmatpush1.bf16.msra.mxu0 0
      %510 = vmatprep.subr.bf16.mxu0 0
      %511 = vmatpush1.bf16.msra.mxu0 0
      %512 = vmatprep.subr.bf16.mxu0 0
      %513 = vmatpush1.bf16.msra.mxu0 0
      %514 = vmatprep.subr.bf16.mxu0 0
      %515 = vmatpush1.bf16.msra.mxu0 0
      %516 = vmatprep.subr.bf16.mxu0 0
      %517 = vmatpush1.bf16.msra.mxu0 0
      %518 = vmatprep.subr.bf16.mxu0 0
      %519 = vmatpush1.bf16.msra.mxu0 0
      %520 = vmatprep.subr.bf16.mxu0 0
      %521 = vmatpush1.bf16.msra.mxu0 0
      %522 = vmatprep.subr.bf16.mxu0 0
      %523 = vmatpush1.bf16.msra.mxu0 0
      %524 = vmatprep.subr.bf16.mxu0 0
      %525 = vmatpush1.bf16.msra.mxu0 0
      %526 = vmatprep.subr.bf16.mxu0 0
      %527 = vmatpush1.bf16.msra.mxu0 0
      %528 = vmatprep.mubr.bf16.mxu0 0
      %529 = vmatmul.mubr.bf16.gmra.mrb[0].mxu0 %v494
      %v530 = vpop.f32.mrb[0].mxu0
      %v531 = vadd.f32 0.0, %v530
      %v532 = vpop.f32.mrb[0].mxu0
      %v533 = vpop.f32.mrb[0].mxu0
      %v534 = vadd.f32 0.0, %v533
      %v535 = vpop.f32.mrb[0].mxu0
      %536 = vdwg.mxu0
      %v537 = vpack.c.bf16 %v534, %v531
      %s538 = scalar_lea.vmem %s2, 40
      %v539 = vld [vmem:[%s538] sm:$0xf]
      %v540 = vld [vmem:[%s538 + $0x4] sm:$0xf]
      %v541 = vld [vmem:[%s538 + $0x8] sm:$0xf]
      %v542 = vld [vmem:[%s538 + $0xc] sm:$0xf]
      %v543 = vld [vmem:[%s538 + $0x10] sm:$0x3]
      %v549 = vunpack.c.l.b16 %v539
      %v550 = vunpack.c.l.b16 %v540
      %v551 = vunpack.c.l.b16 %v541
      %v552 = vunpack.c.l.b16 %v542
      %v553 = vunpack.c.l.b16 %v543
      %v554 = vpack.c.b16 %v550, %v549
      %v555 = vpack.c.b16 %v552, %v551
      %v556 = vpack.c.b16 %v553, %v553
      %v560 = vsel %vm374, %v537, 0
      %v563 = vsel %vm378, %v556, 0
      %565 = vmatprep.subr.bf16.mxu0 0
      %566 = vmatpush1.bf16.msra.mxu0 %v554
      %567 = vmatprep.subr.bf16.mxu0 0
      %568 = vmatpush1.bf16.msra.mxu0 %v555
      %569 = vmatprep.subr.bf16.mxu0 0
      %570 = vmatpush1.bf16.msra.mxu0 %v563
      %571 = vmatprep.subr.bf16.mxu0 0
      %572 = vmatpush1.bf16.msra.mxu0 0
      %573 = vmatprep.subr.bf16.mxu0 0
      %574 = vmatpush1.bf16.msra.mxu0 0
      %575 = vmatprep.subr.bf16.mxu0 0
      %576 = vmatpush1.bf16.msra.mxu0 0
      %577 = vmatprep.subr.bf16.mxu0 0
      %578 = vmatpush1.bf16.msra.mxu0 0
      %579 = vmatprep.subr.bf16.mxu0 0
      %580 = vmatpush1.bf16.msra.mxu0 0
      %581 = vmatprep.subr.bf16.mxu0 0
      %582 = vmatpush1.bf16.msra.mxu0 0
      %583 = vmatprep.subr.bf16.mxu0 0
      %584 = vmatpush1.bf16.msra.mxu0 0
      %585 = vmatprep.subr.bf16.mxu0 0
      %586 = vmatpush1.bf16.msra.mxu0 0
      %587 = vmatprep.subr.bf16.mxu0 0
      %588 = vmatpush1.bf16.msra.mxu0 0
      %589 = vmatprep.subr.bf16.mxu0 0
      %590 = vmatpush1.bf16.msra.mxu0 0
      %591 = vmatprep.subr.bf16.mxu0 0
      %592 = vmatpush1.bf16.msra.mxu0 0
      %593 = vmatprep.subr.bf16.mxu0 0
      %594 = vmatpush1.bf16.msra.mxu0 0
      %595 = vmatprep.subr.bf16.mxu0 0
      %596 = vmatpush1.bf16.msra.mxu0 0
      %597 = vmatprep.mubr.bf16.mxu0 0
      %598 = vmatmul.mubr.bf16.gmra.mrb[0].mxu0 %v560
      %v599 = vpop.f32.mrb[0].mxu0
      %v600 = vadd.f32 0.0, %v599
      %v601 = vpop.f32.mrb[0].mxu0
      %v602 = vpop.f32.mrb[0].mxu0
      %v603 = vadd.f32 0.0, %v602
      %v604 = vpop.f32.mrb[0].mxu0
      %605 = vdwg.mxu0
      %v606 = vadd.f32 %v479, %v600
      %v607 = vadd.f32 %v482, %v603
      %s608 = scalar_lea.vmem %s1, 24
      %v609 = vld [vmem:[%s608] sm:$0xf]
      %v610 = vld [vmem:[%s608 + $0x4] sm:$0xf]
      %v613 = vunpack.c.l.b16 %v609
      %v614 = vunpack.c.l.b16 %v610
      %v615 = vpack.c.b16 %v614, %v613
      %v617 = vsel %vm249, %v615, 0
      %619 = vmatprep.subr.bf16.mxu0 0
      %620 = vmatpush1.bf16.msra.mxu0 %v245
      %621 = vmatprep.subr.bf16.mxu0 0
      %622 = vmatpush1.bf16.msra.mxu0 %v246
      %623 = vmatprep.subr.bf16.mxu0 0
      %624 = vmatpush1.bf16.msra.mxu0 0
      %625 = vmatprep.subr.bf16.mxu0 0
      %626 = vmatpush1.bf16.msra.mxu0 0
      %627 = vmatprep.subr.bf16.mxu0 0
      %628 = vmatpush1.bf16.msra.mxu0 0
      %629 = vmatprep.subr.bf16.mxu0 0
      %630 = vmatpush1.bf16.msra.mxu0 0
      %631 = vmatprep.subr.bf16.mxu0 0
      %632 = vmatpush1.bf16.msra.mxu0 0
      %633 = vmatprep.subr.bf16.mxu0 0
      %634 = vmatpush1.bf16.msra.mxu0 0
      %635 = vmatprep.subr.bf16.mxu0 0
      %636 = vmatpush1.bf16.msra.mxu0 0
      %637 = vmatprep.subr.bf16.mxu0 0
      %638 = vmatpush1.bf16.msra.mxu0 0
      %639 = vmatprep.subr.bf16.mxu0 0
      %640 = vmatpush1.bf16.msra.mxu0 0
      %641 = vmatprep.subr.bf16.mxu0 0
      %642 = vmatpush1.bf16.msra.mxu0 0
      %643 = vmatprep.subr.bf16.mxu0 0
      %644 = vmatpush1.bf16.msra.mxu0 0
      %645 = vmatprep.subr.bf16.mxu0 0
      %646 = vmatpush1.bf16.msra.mxu0 0
      %647 = vmatprep.subr.bf16.mxu0 0
      %648 = vmatpush1.bf16.msra.mxu0 0
      %649 = vmatprep.subr.bf16.mxu0 0
      %650 = vmatpush1.bf16.msra.mxu0 0
      %651 = vmatprep.mubr.bf16.mxu0 0
      %652 = vmatmul.mubr.bf16.gmra.mrb[0].mxu0 %v617
      %v653 = vpop.f32.mrb[0].mxu0
      %v654 = vadd.f32 0.0, %v653
      %v655 = vpop.f32.mrb[0].mxu0
      %v656 = vpop.f32.mrb[0].mxu0
      %v657 = vadd.f32 0.0, %v656
      %v658 = vpop.f32.mrb[0].mxu0
      %659 = vdwg.mxu0
      %v660 = vpack.c.bf16 %v657, %v654
      %s661 = scalar_lea.vmem %s2, 60
      %v662 = vld [vmem:[%s661] sm:$0xf]
      %v663 = vld [vmem:[%s661 + $0x4] sm:$0xf]
      %v664 = vld [vmem:[%s661 + $0x8] sm:$0xf]
      %v665 = vld [vmem:[%s661 + $0xc] sm:$0xf]
      %v666 = vld [vmem:[%s661 + $0x10] sm:$0x3]
      %v672 = vunpack.c.l.b16 %v662
      %v673 = vunpack.c.l.b16 %v663
      %v674 = vunpack.c.l.b16 %v664
      %v675 = vunpack.c.l.b16 %v665
      %v676 = vunpack.c.l.b16 %v666
      %v677 = vpack.c.b16 %v673, %v672
      %v678 = vpack.c.b16 %v675, %v674
      %v679 = vpack.c.b16 %v676, %v676
      %v683 = vsel %vm374, %v660, 0
      %v686 = vsel %vm378, %v679, 0
      %688 = vmatprep.subr.bf16.mxu0 0
      %689 = vmatpush1.bf16.msra.mxu0 %v677
      %690 = vmatprep.subr.bf16.mxu0 0
      %691 = vmatpush1.bf16.msra.mxu0 %v678
      %692 = vmatprep.subr.bf16.mxu0 0
      %693 = vmatpush1.bf16.msra.mxu0 %v686
      %694 = vmatprep.subr.bf16.mxu0 0
      %695 = vmatpush1.bf16.msra.mxu0 0
      %696 = vmatprep.subr.bf16.mxu0 0
      %697 = vmatpush1.bf16.msra.mxu0 0
      %698 = vmatprep.subr.bf16.mxu0 0
      %699 = vmatpush1.bf16.msra.mxu0 0
      %700 = vmatprep.subr.bf16.mxu0 0
      %701 = vmatpush1.bf16.msra.mxu0 0
      %702 = vmatprep.subr.bf16.mxu0 0
      %703 = vmatpush1.bf16.msra.mxu0 0
      %704 = vmatprep.subr.bf16.mxu0 0
      %705 = vmatpush1.bf16.msra.mxu0 0
      %706 = vmatprep.subr.bf16.mxu0 0
      %707 = vmatpush1.bf16.msra.mxu0 0
      %708 = vmatprep.subr.bf16.mxu0 0
      %709 = vmatpush1.bf16.msra.mxu0 0
      %710 = vmatprep.subr.bf16.mxu0 0
      %711 = vmatpush1.bf16.msra.mxu0 0
      %712 = vmatprep.subr.bf16.mxu0 0
      %713 = vmatpush1.bf16.msra.mxu0 0
      %714 = vmatprep.subr.bf16.mxu0 0
      %715 = vmatpush1.bf16.msra.mxu0 0
      %716 = vmatprep.subr.bf16.mxu0 0
      %717 = vmatpush1.bf16.msra.mxu0 0
      %718 = vmatprep.subr.bf16.mxu0 0
      %719 = vmatpush1.bf16.msra.mxu0 0
      %720 = vmatprep.mubr.bf16.mxu0 0
      %721 = vmatmul.mubr.bf16.gmra.mrb[0].mxu0 %v683
      %v722 = vpop.f32.mrb[0].mxu0
      %v723 = vadd.f32 0.0, %v722
      %v724 = vpop.f32.mrb[0].mxu0
      %v725 = vpop.f32.mrb[0].mxu0
      %v726 = vadd.f32 0.0, %v725
      %v727 = vpop.f32.mrb[0].mxu0
      %728 = vdwg.mxu0
      %v729 = vadd.f32 %v606, %v723
      %v730 = vadd.f32 %v607, %v726
      %v731 = vld [vmem:[%s3] sm:$0xff]
      %v732 = vld [vmem:[%s3 + $0x8] sm:$0xff]
      %734 = vset.pattern.permute.xlu0 0
      %735 = vperm.xlu0 %734, %v731
      %v736 = vpop.permute.xlu0 %735
      %739 = vset.pattern.permute.xlu0 0
      %740 = vperm.xlu0 %739, %v732
      %v741 = vpop.permute.xlu0 %740
      %v743 = vadd.f32 %v729, %v736
      %v744 = vadd.f32 %v730, %v741
      %v745 = vld [vmem:[%s4] sm:$0x1]
      %v747 = vlaneseq
      %v748 = vshrl.u32 %v747, 7
      %v749 = vsub.s32 0, %v748
      %v750 = vrot.slane %v745, %v749
      %v752 = vmul.f32 %v743, %v750
      %v753 = vmul.f32 %v744, %v750
      %v754 = vpack.c.bf16 %v753, %v752
      %v756 = vunpack.c.l.b16 %v754
      %v757 = vunpack.c.h.b16 %v754
      %v758 = vpack.c.b16 %v756, %v756
      %v759 = vpack.c.b16 %v757, %v757
      %vm762 = vcmask 814080
      %763 = vst.msk [vmem:[%s224] sm:$0xf] %vm762, %v758
      %764 = vst.msk [vmem:[%s224 + $0x4] sm:$0xf] %vm762, %v759
      %p765 = scmp.lt.s32.totalorder %s16, 1
      %s766 = scalar_select %p765, %s16, 1
      %s767 = smul.addr %s766, 2
      %s768 = smul.addr %s767, 4
      %s769 = scalar_lea.vmem %s5, %s768
      // Predicated region
      $region41: #{unet_forward.10} parent=39 // pred_check
        %p770 = pneg %p144
      $region42: #{unet_forward.10} parent=39 // pred_check_branch
        %772 = sbr.rel (%p770) target = $region44
      $region43: #{unet_forward.10} parent=39 // pred_region
        _
      $region44: #{unet_forward.10} parent=39 // pred_fallthru
        _
    $region40: #{unet_forward.10} parent=5 // pred_fallthru
      _
    %p773 = scmp.le.s32.totalorder 2, %s11
    // Predicated region
    $region45: #{unet_forward.10} parent=5 // pred_check
      %p774 = pneg %p773
    $region46: #{unet_forward.10} parent=5 // pred_check_branch
      %776 = sbr.rel (%p774) target = $region48
    $region47: #{unet_forward.10} parent=5 // pred_region
      %s777 = ssub.s32 %s11, 2
      // Predicated region
      $region49: #{unet_forward.10} parent=47 // pred_check
        %p778 = pneg %p150
      $region50: #{unet_forward.10} parent=47 // pred_check_branch
        %780 = sbr.rel (%p778) target = $region52
      $region51: #{unet_forward.10} parent=47 // pred_region
        %p781 = scmp.lt.s32.totalorder %s17, 1
        %s782 = scalar_select %p781, %s17, 1
        %s783 = smul.addr %s782, 2
        %s784 = smul.addr %s783, 4
        %s785 = scalar_lea.vmem %s5, %s784
      $region52: #{unet_forward.10} parent=47 // pred_fallthru
        _
    $region48: #{unet_forward.10} parent=5 // pred_fallthru
      _
  $region6: #{unet_forward.10} parent=0 // loop_footer
    %s15 = sadd.s32 1, %s11
  $region7: #{unet_forward.10} parent=0 // loop_footer_branch
    %10 = sbr.rel target = $region3
  $region8: #{unet_forward.10} parent=0 // loop_exit
    _

// kernel: unet_forward.7
$region0: #{unet_forward.7}
  #allocation0 [shape = 'u32[]', space=smem, size = 0x4, offset = 0x4, fixed_abs, tag = 'smem constant byte address 0x4 - core index']
  #allocation1 [shape = 'u32[144,128]{1,0:T(1,128)}', space=vmem, size = 0x12000, scoped, tag = 'internal scratch']
  #allocation2 [shape = 'bf16[144,286]{1,0:T(16,128)(2,1)}', space=vmem, size = 0x1b000, scoped, tag = 'scratch operand']
  %s0 = inlined_call_operand.vmem [shape: bf16[2,16,324], index: 0, kind: input, shape index: {}]
  %s1 = inlined_call_operand.vmem [shape: bf16[16,144], index: 1, kind: input, shape index: {}]
  %s2 = inlined_call_operand.vmem [shape: f32[16,1], index: 2, kind: input, shape index: {}]
  %s3 = inlined_call_operand.vmem [shape: bf16[286,324], index: 3, kind: input, shape index: {}]
  %s4 = inlined_call_operand.vmem [shape: bf16[267,100], index: 4, kind: input, shape index: {}]
  %s5 = inlined_call_operand.vmem [shape: bf16[2,16,324], index: 5, kind: output, shape index: {0}]
  %s6 = inlined_call_operand.vmem [shape: bf16[2,16,100], index: 6, kind: output, shape index: {1}]
  %7 = xla_tuple %s5, %s6
  %s8 = sld [smem:[#allocation0]]
  $region61: #{unet_forward.7} parent=0
    _
  %s10 = ssub.s32 1, %s8
  %s11 = scalar_select 0, %s10, %s8
  loop: start=0, step=1, limit=4
  $region2: #{unet_forward.7} parent=0 // loop_pre_header
    _
  $region3: #{unet_forward.7} parent=0 // loop_header
    %s13 = sphi 0, %s17
    %p14 = scmp.ge.s32.totalorder %s13, 4
    %s23 = sphi 0, %s25
    %s26 = sphi 0, %s23
    %s27 = sphi 0, %s26
    %s43 = sphi 0, %s27
    %s47 = sphi 0, %s47
    %s49 = sphi 0, %s47
    %s50 = sphi 0, %s49
    %s64 = sphi 0, %s50
    %s68 = sphi 0, %s68
    %s70 = sphi 0, %s68
    %s71 = sphi 0, %s70
    %s85 = sphi 0, %s71
    %s89 = sphi 0, %s89
    %s91 = sphi 0, %s89
    %s92 = sphi 0, %s91
    %s106 = sphi 0, %s92
    %s110 = sphi 0, %s110
    %s112 = sphi 0, %s110
    %s113 = sphi 0, %s112
    %s127 = sphi 0, %s113
    %s133 = sphi 0, %s135
    %s136 = sphi 0, %s133
    %s137 = sphi 0, %s136
    %s153 = sphi 0, %s137
    %s159 = sphi 0, %s161
    %s162 = sphi 0, %s159
    %s163 = sphi 0, %s162
    %s179 = sphi 0, %s163
  $region4: #{unet_forward.7} parent=0 // loop_header_branch
    %16 = sbr.rel (%p14) target = $region8
  $region5: #{unet_forward.7} parent=0 // loop_body
    %s18 = ssub.s32 %s13, 1
    %s19 = ssub.s32 %s13, 2
    %s20 = sadd.s32 %s13, 1
    %s21 = ssub.s32 %s13, %s20
    %p22 = scmp.eq.s32.totalorder %s21, 0
    %s24 = sadd.s32 %s23, 1
    %s25 = scalar_select %p22, %s23, %s24
    %p28 = pneg %p22
    %p29 = scmp.eq.s32.totalorder %s13, 1
    %p30 = por %p28, %p29
    %p31 = scmp.ne.s32.totalorder %s23, %s26
    %p32 = scmp.eq.s32.totalorder %s13, 0
    %p33 = por %p31, %p32
    %p34 = scmp.ne.s32.totalorder %s23, %s26
    %p35 = scmp.eq.s32.totalorder %s18, 1
    %p36 = por %p34, %p35
    %p37 = scmp.ne.s32.totalorder %s26, %s27
    %p38 = scmp.eq.s32.totalorder %s18, 0
    %p39 = por %p37, %p38
    %p40 = scmp.ne.s32.totalorder %s26, %s27
    %p41 = scmp.eq.s32.totalorder %s19, 1
    %p42 = por %p40, %p41
    %p44 = scmp.ne.s32.totalorder %s27, %s43
    %p45 = scmp.eq.s32.totalorder %s19, 0
    %p46 = por %p44, %p45
    %s48 = sadd.s32 %s47, 1
    %p51 = scmp.eq.s32.totalorder %s13, 1
    %p52 = scmp.ne.s32.totalorder %s47, %s49
    %p53 = scmp.eq.s32.totalorder %s13, 0
    %p54 = por %p52, %p53
    %p55 = scmp.ne.s32.totalorder %s47, %s49
    %p56 = scmp.eq.s32.totalorder %s18, 1
    %p57 = por %p55, %p56
    %p58 = scmp.ne.s32.totalorder %s49, %s50
    %p59 = scmp.eq.s32.totalorder %s18, 0
    %p60 = por %p58, %p59
    %p61 = scmp.ne.s32.totalorder %s49, %s50
    %p62 = scmp.eq.s32.totalorder %s19, 1
    %p63 = por %p61, %p62
    %p65 = scmp.ne.s32.totalorder %s50, %s64
    %p66 = scmp.eq.s32.totalorder %s19, 0
    %p67 = por %p65, %p66
    %s69 = sadd.s32 %s68, 1
    %p72 = scmp.eq.s32.totalorder %s13, 1
    %p73 = scmp.ne.s32.totalorder %s68, %s70
    %p74 = scmp.eq.s32.totalorder %s13, 0
    %p75 = por %p73, %p74
    %p76 = scmp.ne.s32.totalorder %s68, %s70
    %p77 = scmp.eq.s32.totalorder %s18, 1
    %p78 = por %p76, %p77
    %p79 = scmp.ne.s32.totalorder %s70, %s71
    %p80 = scmp.eq.s32.totalorder %s18, 0
    %p81 = por %p79, %p80
    %p82 = scmp.ne.s32.totalorder %s70, %s71
    %p83 = scmp.eq.s32.totalorder %s19, 1
    %p84 = por %p82, %p83
    %p86 = scmp.ne.s32.totalorder %s71, %s85
    %p87 = scmp.eq.s32.totalorder %s19, 0
    %p88 = por %p86, %p87
    %s90 = sadd.s32 %s89, 1
    %p93 = scmp.eq.s32.totalorder %s13, 1
    %p94 = scmp.ne.s32.totalorder %s89, %s91
    %p95 = scmp.eq.s32.totalorder %s13, 0
    %p96 = por %p94, %p95
    %p97 = scmp.ne.s32.totalorder %s89, %s91
    %p98 = scmp.eq.s32.totalorder %s18, 1
    %p99 = por %p97, %p98
    %p100 = scmp.ne.s32.totalorder %s91, %s92
    %p101 = scmp.eq.s32.totalorder %s18, 0
    %p102 = por %p100, %p101
    %p103 = scmp.ne.s32.totalorder %s91, %s92
    %p104 = scmp.eq.s32.totalorder %s19, 1
    %p105 = por %p103, %p104
    %p107 = scmp.ne.s32.totalorder %s92, %s106
    %p108 = scmp.eq.s32.totalorder %s19, 0
    %p109 = por %p107, %p108
    %s111 = sadd.s32 %s110, 1
    %p114 = scmp.eq.s32.totalorder %s13, 1
    %p115 = scmp.ne.s32.totalorder %s110, %s112
    %p116 = scmp.eq.s32.totalorder %s13, 0
    %p117 = por %p115, %p116
    %p118 = scmp.ne.s32.totalorder %s110, %s112
    %p119 = scmp.eq.s32.totalorder %s18, 1
    %p120 = por %p118, %p119
    %p121 = scmp.ne.s32.totalorder %s112, %s113
    %p122 = scmp.eq.s32.totalorder %s18, 0
    %p123 = por %p121, %p122
    %p124 = scmp.ne.s32.totalorder %s112, %s113
    %p125 = scmp.eq.s32.totalorder %s19, 1
    %p126 = por %p124, %p125
    %p128 = scmp.ne.s32.totalorder %s113, %s127
    %p129 = scmp.eq.s32.totalorder %s19, 0
    %p130 = por %p128, %p129
    %s131 = ssub.s32 %s13, %s20
    %p132 = scmp.eq.s32.totalorder %s131, 0
    %s134 = sadd.s32 %s133, 1
    %s135 = scalar_select %p132, %s133, %s134
    %p138 = pneg %p132
    %p139 = scmp.eq.s32.totalorder %s13, 1
    %p140 = por %p138, %p139
    %p141 = scmp.ne.s32.totalorder %s133, %s136
    %p142 = scmp.eq.s32.totalorder %s13, 0
    %p143 = por %p141, %p142
    %p144 = scmp.ne.s32.totalorder %s133, %s136
    %p145 = scmp.eq.s32.totalorder %s18, 1
    %p146 = por %p144, %p145
    %p147 = scmp.ne.s32.totalorder %s136, %s137
    %p148 = scmp.eq.s32.totalorder %s18, 0
    %p149 = por %p147, %p148
    %p150 = scmp.ne.s32.totalorder %s136, %s137
    %p151 = scmp.eq.s32.totalorder %s19, 1
    %p152 = por %p150, %p151
    %p154 = scmp.ne.s32.totalorder %s137, %s153
    %p155 = scmp.eq.s32.totalorder %s19, 0
    %p156 = por %p154, %p155
    %s157 = ssub.s32 %s13, %s20
    %p158 = scmp.eq.s32.totalorder %s157, 0
    %s160 = sadd.s32 %s159, 1
    %s161 = scalar_select %p158, %s159, %s160
    %p164 = pneg %p158
    %p165 = scmp.eq.s32.totalorder %s13, 1
    %p166 = por %p164, %p165
    %p167 = scmp.ne.s32.totalorder %s159, %s162
    %p168 = scmp.eq.s32.totalorder %s13, 0
    %p169 = por %p167, %p168
    %p170 = scmp.ne.s32.totalorder %s159, %s162
    %p171 = scmp.eq.s32.totalorder %s18, 1
    %p172 = por %p170, %p171
    %p173 = scmp.ne.s32.totalorder %s162, %s163
    %p174 = scmp.eq.s32.totalorder %s18, 0
    %p175 = por %p173, %p174
    %p176 = scmp.ne.s32.totalorder %s162, %s163
    %p177 = scmp.eq.s32.totalorder %s19, 1
    %p178 = por %p176, %p177
    %p180 = scmp.ne.s32.totalorder %s163, %s179
    %p181 = scmp.eq.s32.totalorder %s19, 0
    %p182 = por %p180, %p181
    %p183 = scmp.le.s32.totalorder 1, %s13
    %p184 = scmp.lt.s32.totalorder %s13, 3
    %p185 = pnand %p183, %p184
    %p186 = pneg %p185
    // Predicated region
    $region9: #{unet_forward.7} parent=5 // pred_check
      _
    $region10: #{unet_forward.7} parent=5 // pred_check_branch
      %188 = sbr.rel (%p185) target = $region12
    $region11: #{unet_forward.7} parent=5 // pred_region
      %s189 = ssub.s32 %s13, 1
      // Predicated region
      $region13: #{unet_forward.7} parent=11 // pred_check
        %p190 = pneg %p60
      $region14: #{unet_forward.7} parent=11 // pred_check_branch
        %192 = sbr.rel (%p190) target = $region16
      $region15: #{unet_forward.7} parent=11 // pred_region
        _
      $region16: #{unet_forward.7} parent=11 // pred_fallthru
        _
      // Predicated region
      $region17: #{unet_forward.7} parent=11 // pred_check
        %p193 = pneg %p81
      $region18: #{unet_forward.7} parent=11 // pred_check_branch
        %195 = sbr.rel (%p193) target = $region20
      $region19: #{unet_forward.7} parent=11 // pred_region
        _
      $region20: #{unet_forward.7} parent=11 // pred_fallthru
        _
      // Predicated region
      $region21: #{unet_forward.7} parent=11 // pred_check
        %p196 = pneg %p102
      $region22: #{unet_forward.7} parent=11 // pred_check_branch
        %198 = sbr.rel (%p196) target = $region24
      $region23: #{unet_forward.7} parent=11 // pred_region
        _
      $region24: #{unet_forward.7} parent=11 // pred_fallthru
        _
      // Predicated region
      $region25: #{unet_forward.7} parent=11 // pred_check
        %p199 = pneg %p123
      $region26: #{unet_forward.7} parent=11 // pred_check_branch
        %201 = sbr.rel (%p199) target = $region28
      $region27: #{unet_forward.7} parent=11 // pred_region
        _
      $region28: #{unet_forward.7} parent=11 // pred_fallthru
        _
    $region12: #{unet_forward.7} parent=5 // pred_fallthru
      _
    %p202 = scmp.lt.s32.totalorder %s13, 2
    // Predicated region
    $region29: #{unet_forward.7} parent=5 // pred_check
      %p203 = pneg %p202
    $region30: #{unet_forward.7} parent=5 // pred_check_branch
      %205 = sbr.rel (%p203) target = $region32
    $region31: #{unet_forward.7} parent=5 // pred_region
      // Predicated region
      $region33: #{unet_forward.7} parent=31 // pred_check
        %p206 = pneg %p33
      $region34: #{unet_forward.7} parent=31 // pred_check_branch
        %208 = sbr.rel (%p206) target = $region36
      $region35: #{unet_forward.7} parent=31 // pred_region
        %p209 = scmp.lt.s32.totalorder %s13, 1
        %s210 = scalar_select %p209, %s13, 1
        %s211 = smul.addr %s210, 6
        %s212 = smul.addr %s211, 4
        %s213 = scalar_lea.vmem %s0, %s212
      $region36: #{unet_forward.7} parent=31 // pred_fallthru
        _
    $region32: #{unet_forward.7} parent=5 // pred_fallthru
      _
    %p214 = scmp.le.s32.totalorder 1, %s13
    %p215 = scmp.lt.s32.totalorder %s13, 3
    %p216 = pnand %p214, %p215
    %p217 = pneg %p216
    // Predicated region
    $region37: #{unet_forward.7} parent=5 // pred_check
      _
    $region38: #{unet_forward.7} parent=5 // pred_check_branch
      %219 = sbr.rel (%p216) target = $region40
    $region39: #{unet_forward.7} parent=5 // pred_region
      %s220 = ssub.s32 %s13, 1
      %p221 = scmp.lt.s32.totalorder %s18, 1
      %s222 = scalar_select %p221, %s18, 1
      %s223 = smul.addr %s222, 6
      %s224 = smul.addr %s223, 4
      %s225 = scalar_lea.vmem %s0, %s224
      %p226 = pneg %p39
      %p227 = pneg %p36
      %p228 = pneg %p60
      %p229 = pneg %p57
      %p230 = pneg %p81
      %p231 = pneg %p78
      %p232 = pneg %p102
      %p233 = pneg %p99
      %p234 = pneg %p123
      %p235 = pneg %p120
      %p236 = pneg %p149
      %p237 = pneg %p146
      %p238 = scmp.lt.s32.totalorder %s18, 1
      %s239 = scalar_select %p238, %s18, 1
      %s240 = smul.addr %s239, 6
      %s241 = smul.addr %s240, 4
      %s242 = scalar_lea.vmem %s5, %s241
      %p243 = pneg %p175
      %p244 = pneg %p172
      %p245 = scmp.lt.s32.totalorder %s18, 1
      %s246 = scalar_select %p245, %s18, 1
      %s247 = smul.addr %s246, 2
      %s248 = smul.addr %s247, 4
      %s249 = scalar_lea.vmem %s6, %s248
      %p250 = scmp.lt.s32.totalorder %s18, 1
      %s251 = scalar_select %p250, %s18, 1
      %s252 = smul.addr %s251, 6
      %s253 = smul.addr %s252, 4
      %s254 = scalar_lea.vmem %s0, %s253
      %p255 = scmp.lt.s32.totalorder %s18, 1
      %s256 = scalar_select %p255, %s18, 1
      %s257 = smul.addr %s256, 6
      %s258 = smul.addr %s257, 4
      %s259 = scalar_lea.vmem %s5, %s258
      %p260 = scmp.lt.s32.totalorder %s18, 1
      %s261 = scalar_select %p260, %s18, 1
      %s262 = smul.addr %s261, 2
      %s263 = smul.addr %s262, 4
      %s264 = scalar_lea.vmem %s6, %s263
      %v266 = vld [vmem:[%s254] sm:$0xff]
      %v267 = vld [vmem:[%s254 + $0x8] sm:$0xf]
      %v268 = vld [vmem:[%s254 + $0xc] sm:$0xff]
      %v269 = vld [vmem:[%s254 + $0x14] sm:$0xf]
      %v274 = vunpack.c.l.b16 %v266
      %v275 = vunpack.c.h.b16 %v266
      %v276 = vunpack.c.l.b16 %v267
      %v277 = vunpack.c.l.b16 %v268
      %v278 = vunpack.c.h.b16 %v268
      %v279 = vunpack.c.l.b16 %v269
      %v280 = vpack.c.b16 %v277, %v274
      %v281 = vpack.c.b16 %v278, %v275
      %v282 = vpack.c.b16 %v279, %v276
      %286 = vst [vmem:[#allocation2] sm:$0xff] %v280
      %287 = vst [vmem:[#allocation2 + $0x8] sm:$0xff] %v281
      %vm288 = vcmask 244736
      %289 = vst.msk [vmem:[#allocation2 + $0x10] sm:$0xff] %vm288, %v282
      %290 = vrot.lane.b32.xlu0 %v280, 127
      %v291 = vpop.permute.xlu0 %290
      %292 = vrot.lane.b32.xlu0 %v281, 127
      %v293 = vpop.permute.xlu0 %292
      %294 = vrot.lane.b32.xlu0 %v282, 127
      %v295 = vpop.permute.xlu0 %294
      %vm296 = vcmask 1039360
      %v297 = vsel %vm296, %v291, %v293
      %v298 = vsel %vm296, %v293, %v295
      %302 = vst [vmem:[#allocation2 + $0x18] sm:$0xff] %v297
      %303 = vst [vmem:[#allocation2 + $0x20] sm:$0xff] %v298
      %304 = vst.msk [vmem:[#allocation2 + $0x28] sm:$0xff] %vm288, %v295
      %305 = vrot.lane.b32.xlu0 %v280, 126
      %v306 = vpop.permute.xlu0 %305
      %307 = vrot.lane.b32.xlu0 %v281, 126
      %v308 = vpop.permute.xlu0 %307
      %309 = vrot.lane.b32.xlu0 %v282, 126
      %v310 = vpop.permute.xlu0 %309
      %vm311 = vcmask 1031168
      %v312 = vsel %vm311, %v306, %v308
      %v313 = vsel %vm311, %v308, %v310
      %317 = vst [vmem:[#allocation2 + $0x30] sm:$0xff] %v312
      %318 = vst [vmem:[#allocation2 + $0x38] sm:$0xff] %v313
      %319 = vst.msk [vmem:[#allocation2 + $0x40] sm:$0xff] %vm288, %v310
      %320 = vrot.lane.b32.xlu0 %v280, 110
      %v321 = vpop.permute.xlu0 %320
      %322 = vrot.lane.b32.xlu0 %v281, 110
      %v323 = vpop.permute.xlu0 %322
      %324 = vrot.lane.b32.xlu0 %v282, 110
      %v325 = vpop.permute.xlu0 %324
      %vm326 = vcmask 900096
      %v327 = vsel %vm326, %v321, %v323
      %v328 = vsel %vm326, %v323, %v325
      %332 = vst [vmem:[#allocation2 + $0x48] sm:$0xff] %v327
      %333 = vst [vmem:[#allocation2 + $0x50] sm:$0xff] %v328
      %334 = vst.msk [vmem:[#allocation2 + $0x58] sm:$0xff] %vm288, %v325
      %335 = vrot.lane.b32.xlu0 %v280, 109
      %v336 = vpop.permute.xlu0 %335
      %337 = vrot.lane.b32.xlu0 %v281, 109
      %v338 = vpop.permute.xlu0 %337
      %339 = vrot.lane.b32.xlu0 %v282, 109
      %v340 = vpop.permute.xlu0 %339
      %vm341 = vcmask 891904
      %v342 = vsel %vm341, %v336, %v338
      %v343 = vsel %vm341, %v338, %v340
      %347 = vst [vmem:[#allocation2 + $0x60] sm:$0xff] %v342
      %348 = vst [vmem:[#allocation2 + $0x68] sm:$0xff] %v343
      %349 = vst.msk [vmem:[#allocation2 + $0x70] sm:$0xff] %vm288, %v340
      %350 = vrot.lane.b32.xlu0 %v280, 108
      %v351 = vpop.permute.xlu0 %350
      %352 = vrot.lane.b32.xlu0 %v281, 108
      %v353 = vpop.permute.xlu0 %352
      %354 = vrot.lane.b32.xlu0 %v282, 108
      %v355 = vpop.permute.xlu0 %354
      %vm356 = vcmask 883712
      %v357 = vsel %vm356, %v351, %v353
      %v358 = vsel %vm356, %v353, %v355
      %362 = vst [vmem:[#allocation2 + $0x78] sm:$0xff] %v357
      %363 = vst [vmem:[#allocation2 + $0x80] sm:$0xff] %v358
      %364 = vst.msk [vmem:[#allocation2 + $0x88] sm:$0xff] %vm288, %v355
      %365 = vrot.lane.b32.xlu0 %v280, 92
      %v366 = vpop.permute.xlu0 %365
      %367 = vrot.lane.b32.xlu0 %v281, 92
      %v368 = vpop.permute.xlu0 %367
      %369 = vrot.lane.b32.xlu0 %v282, 92
      %v370 = vpop.permute.xlu0 %369
      %vm371 = vcmask 752640
      %v372 = vsel %vm371, %v366, %v368
      %v373 = vsel %vm371, %v368, %v370
      %377 = vst [vmem:[#allocation2 + $0x90] sm:$0xff] %v372
      %378 = vst [vmem:[#allocation2 + $0x98] sm:$0xff] %v373
      %379 = vst.msk [vmem:[#allocation2 + $0xa0] sm:$0xff] %vm288, %v370
      %380 = vrot.lane.b32.xlu0 %v280, 91
      %v381 = vpop.permute.xlu0 %380
      %382 = vrot.lane.b32.xlu0 %v281, 91
      %v383 = vpop.permute.xlu0 %382
      %384 = vrot.lane.b32.xlu0 %v282, 91
      %v385 = vpop.permute.xlu0 %384
      %vm386 = vcmask 744448
      %v387 = vsel %vm386, %v381, %v383
      %v388 = vsel %vm386, %v383, %v385
      %392 = vst [vmem:[#allocation2 + $0xa8] sm:$0xff] %v387
      %393 = vst [vmem:[#allocation2 + $0xb0] sm:$0xff] %v388
      %394 = vst.msk [vmem:[#allocation2 + $0xb8] sm:$0xff] %vm288, %v385
      %395 = vrot.lane.b32.xlu0 %v280, 90
      %v396 = vpop.permute.xlu0 %395
      %397 = vrot.lane.b32.xlu0 %v281, 90
      %v398 = vpop.permute.xlu0 %397
      %399 = vrot.lane.b32.xlu0 %v282, 90
      %v400 = vpop.permute.xlu0 %399
      %vm401 = vcmask 736256
      %v402 = vsel %vm401, %v396, %v398
      %v403 = vsel %vm401, %v398, %v400
      %407 = vst [vmem:[#allocation2 + $0xc0] sm:$0xff] %v402
      %408 = vst [vmem:[#allocation2 + $0xc8] sm:$0xff] %v403
      %409 = vst.msk [vmem:[#allocation2 + $0xd0] sm:$0xff] %vm288, %v400
      %v410 = vld [vmem:[%s1] sm:$0xff]
      %v411 = vld [vmem:[%s1 + $0x8] sm:$0xff]
      %v412 = vld [vmem:[#allocation2] sm:$0xff]
      %v413 = vld [vmem:[#allocation2 + $0x8] sm:$0xff]
      %v414 = vld [vmem:[#allocation2 + $0x10] sm:$0xff]
      %v415 = vld [vmem:[#allocation2 + $0x18] sm:$0xff]
      %v416 = vld [vmem:[#allocation2 + $0x20] sm:$0xff]
      %v417 = vld [vmem:[#allocation2 + $0x28] sm:$0xff]
      %v418 = vld [vmem:[#allocation2 + $0x30] sm:$0xff]
      %v419 = vld [vmem:[#allocation2 + $0x38] sm:$0xff]
      %v420 = vld [vmem:[#allocation2 + $0x40] sm:$0xff]
      %v421 = vld [vmem:[#allocation2 + $0x48] sm:$0xff]
      %v422 = vld [vmem:[#allocation2 + $0x50] sm:$0xff]
      %v423 = vld [vmem:[#allocation2 + $0x58] sm:$0xff]
      %v424 = vld [vmem:[#allocation2 + $0x60] sm:$0xff]
      %v425 = vld [vmem:[#allocation2 + $0x68] sm:$0xff]
      %v426 = vld [vmem:[#allocation2 + $0x70] sm:$0xff]
      %v427 = vld [vmem:[#allocation2 + $0x78] sm:$0xff]
      %v428 = vld [vmem:[#allocation2 + $0x80] sm:$0xff]
      %v429 = vld [vmem:[#allocation2 + $0x88] sm:$0xff]
      %v430 = vld [vmem:[#allocation2 + $0x90] sm:$0xff]
      %v431 = vld [vmem:[#allocation2 + $0x98] sm:$0xff]
      %v432 = vld [vmem:[#allocation2 + $0xa0] sm:$0xff]
      %v433 = vld [vmem:[#allocation2 + $0xa8] sm:$0xff]
      %v434 = vld [vmem:[#allocation2 + $0xb0] sm:$0xff]
      %v435 = vld [vmem:[#allocation2 + $0xb8] sm:$0xff]
      %v436 = vld [vmem:[#allocation2 + $0xc0] sm:$0xff]
      %v437 = vld [vmem:[#allocation2 + $0xc8] sm:$0xff]
      %v438 = vld [vmem:[#allocation2 + $0xd0] sm:$0xff]
      %v439 = vld [vmem:[%s2] sm:$0xff]
      %v440 = vld [vmem:[%s2 + $0x8] sm:$0xff]
      %442 = vset.pattern.permute.xlu0 0
      %443 = vperm.xlu0 %442, %v439
      %v444 = vpop.permute.xlu0 %443
      %447 = vset.pattern.permute.xlu0 0
      %448 = vperm.xlu0 %447, %v440
      %v449 = vpop.permute.xlu0 %448
      %v453 = vunpack.c.l.b16 %v410
      %v454 = vunpack.c.h.b16 %v410
      %v455 = vunpack.c.l.b16 %v411
      %v456 = vunpack.c.h.b16 %v411
      %v457 = vpack.c.b16 %v455, %v453
      %v458 = vpack.c.b16 %v456, %v454
      %vm460 = vcmask 130048
      %v462 = vsel %vm460, %v458, 0
      %464 = vmatprep.subr.bf16.mxu0 %v413
      %465 = vmatpush1.bf16.msra.mxu0 %v412
      %466 = vmatprep.subr.bf16.mxu0 %v416
      %467 = vmatpush1.bf16.msra.mxu0 %v415
      %468 = vmatprep.subr.bf16.mxu0 %v419
      %469 = vmatpush1.bf16.msra.mxu0 %v418
      %470 = vmatprep.subr.bf16.mxu0 %v422
      %471 = vmatpush1.bf16.msra.mxu0 %v421
      %472 = vmatprep.subr.bf16.mxu0 %v425
      %473 = vmatpush1.bf16.msra.mxu0 %v424
      %474 = vmatprep.subr.bf16.mxu0 %v428
      %475 = vmatpush1.bf16.msra.mxu0 %v427
      %476 = vmatprep.subr.bf16.mxu0 %v431
      %477 = vmatpush1.bf16.msra.mxu0 %v430
      %478 = vmatprep.subr.bf16.mxu0 %v434
      %479 = vmatpush1.bf16.msra.mxu0 %v433
      %480 = vmatprep.subr.bf16.mxu0 %v437
      %481 = vmatpush1.bf16.msra.mxu0 %v436
      %482 = vmatprep.subr.bf16.mxu0 0
      %483 = vmatpush1.bf16.msra.mxu0 0
      %484 = vmatprep.subr.bf16.mxu0 0
      %485 = vmatpush1.bf16.msra.mxu0 0
      %486 = vmatprep.subr.bf16.mxu0 0
      %487 = vmatpush1.bf16.msra.mxu0 0
      %488 = vmatprep.subr.bf16.mxu0 0
      %489 = vmatpush1.bf16.msra.mxu0 0
      %490 = vmatprep.subr.bf16.mxu0 0
      %491 = vmatpush1.bf16.msra.mxu0 0
      %492 = vmatprep.subr.bf16.mxu0 0
      %493 = vmatpush1.bf16.msra.mxu0 0
      %494 = vmatprep.subr.bf16.mxu0 0
      %495 = vmatpush1.bf16.msra.mxu0 0
      %496 = vmatprep.mubr.bf16.mxu0 %v462
      %497 = vmatmul.mubr.bf16.gmra.mrb[0].mxu0 %v457
      %v498 = vpop.f32.mrb[0].mxu0
      %v499 = vadd.f32 %v444, %v498
      %v500 = vpop.f32.mrb[0].mxu0
      %v501 = vadd.f32 %v444, %v500
      %v502 = vpop.f32.mrb[0].mxu0
      %v503 = vadd.f32 %v449, %v502
      %v504 = vpop.f32.mrb[0].mxu0
      %v505 = vadd.f32 %v449, %v504
      %506 = vdwg.mxu0
      %507 = vmatprep.subr.bf16.mxu0 0
      %508 = vmatpush1.bf16.msra.mxu0 %v414
      %509 = vmatprep.subr.bf16.mxu0 0
      %510 = vmatpush1.bf16.msra.mxu0 %v417
      %511 = vmatprep.subr.bf16.mxu0 0
      %512 = vmatpush1.bf16.msra.mxu0 %v420
      %513 = vmatprep.subr.bf16.mxu0 0
      %514 = vmatpush1.bf16.msra.mxu0 %v423
      %515 = vmatprep.subr.bf16.mxu0 0
      %516 = vmatpush1.bf16.msra.mxu0 %v426
      %517 = vmatprep.subr.bf16.mxu0 0
      %518 = vmatpush1.bf16.msra.mxu0 %v429
      %519 = vmatprep.subr.bf16.mxu0 0
      %520 = vmatpush1.bf16.msra.mxu0 %v432
      %521 = vmatprep.subr.bf16.mxu0 0
      %522 = vmatpush1.bf16.msra.mxu0 %v435
      %523 = vmatprep.subr.bf16.mxu0 0
      %524 = vmatpush1.bf16.msra.mxu0 %v438
      %525 = vmatprep.subr.bf16.mxu0 0
      %526 = vmatpush1.bf16.msra.mxu0 0
      %527 = vmatprep.subr.bf16.mxu0 0
      %528 = vmatpush1.bf16.msra.mxu0 0
      %529 = vmatprep.subr.bf16.mxu0 0
      %530 = vmatpush1.bf16.msra.mxu0 0
      %531 = vmatprep.subr.bf16.mxu0 0
      %532 = vmatpush1.bf16.msra.mxu0 0
      %533 = vmatprep.subr.bf16.mxu0 0
      %534 = vmatpush1.bf16.msra.mxu0 0
      %535 = vmatprep.subr.bf16.mxu0 0
      %536 = vmatpush1.bf16.msra.mxu0 0
      %537 = vmatprep.subr.bf16.mxu0 0
      %538 = vmatpush1.bf16.msra.mxu0 0
      %539 = vmatprep.mubr.bf16.mxu0 %v462
      %540 = vmatmul.mubr.bf16.gmra.mrb[0].mxu0 %v457
      %v541 = vpop.f32.mrb[0].mxu0
      %v542 = vadd.f32 %v444, %v541
      %v543 = vpop.f32.mrb[0].mxu0
      %v544 = vpop.f32.mrb[0].mxu0
      %v545 = vadd.f32 %v449, %v544
      %v546 = vpop.f32.mrb[0].mxu0
      %547 = vdwg.mxu0
      %v548 = vpack.c.bf16 %v503, %v499
      %v549 = vpack.c.bf16 %v505, %v501
      %v550 = vpack.c.bf16 %v545, %v542
      %v551 = vld [vmem:[%s3] sm:$0xff]
      %v552 = vld [vmem:[%s3 + $0x8] sm:$0xf]
      %v553 = vld [vmem:[%s3 + $0xc] sm:$0xff]
      %v554 = vld [vmem:[%s3 + $0x14] sm:$0xf]
      %v555 = vld [vmem:[%s3 + $0x18] sm:$0xff]
      %v556 = vld [vmem:[%s3 + $0x20] sm:$0xf]
      %v557 = vld [vmem:[%s3 + $0x24] sm:$0xff]
      %v558 = vld [vmem:[%s3 + $0x2c] sm:$0xf]
      %v559 = vld [vmem:[%s3 + $0x30] sm:$0xff]
      %v560 = vld [vmem:[%s3 + $0x38] sm:$0xf]
      %v561 = vld [vmem:[%s3 + $0x3c] sm:$0xff]
      %v562 = vld [vmem:[%s3 + $0x44] sm:$0xf]
      %v563 = vld [vmem:[%s3 + $0x48] sm:$0xff]
      %v564 = vld [vmem:[%s3 + $0x50] sm:$0xf]
      %v565 = vld [vmem:[%s3 + $0x54] sm:$0xff]
      %v566 = vld [vmem:[%s3 + $0x5c] sm:$0xf]
      %v567 = vld [vmem:[%s3 + $0x60] sm:$0xff]
      %v568 = vld [vmem:[%s3 + $0x68] sm:$0xf]
      %v569 = vld [vmem:[%s3 + $0x6c] sm:$0xff]
      %v570 = vld [vmem:[%s3 + $0x74] sm:$0xf]
      %v571 = vld [vmem:[%s3 + $0x78] sm:$0xff]
      %v572 = vld [vmem:[%s3 + $0x80] sm:$0xf]
      %v573 = vld [vmem:[%s3 + $0x84] sm:$0xff]
      %v574 = vld [vmem:[%s3 + $0x8c] sm:$0xf]
      %v575 = vld [vmem:[%s3 + $0x90] sm:$0xff]
      %v576 = vld [vmem:[%s3 + $0x98] sm:$0xf]
      %v577 = vld [vmem:[%s3 + $0x9c] sm:$0xff]
      %v578 = vld [vmem:[%s3 + $0xa4] sm:$0xf]
      %v579 = vld [vmem:[%s3 + $0xa8] sm:$0xff]
      %v580 = vld [vmem:[%s3 + $0xb0] sm:$0xf]
      %v581 = vld [vmem:[%s3 + $0xb4] sm:$0xff]
      %v582 = vld [vmem:[%s3 + $0xbc] sm:$0xf]
      %v583 = vld [vmem:[%s3 + $0xc0] sm:$0xff]
      %v584 = vld [vmem:[%s3 + $0xc8] sm:$0xf]
      %v585 = vld [vmem:[%s3 + $0xcc] sm:$0xff]
      %v586 = vld [vmem:[%s3 + $0xd4] sm:$0xf]
      %v587 = vld [vmem:[%s3 + $0xd8] sm:$0xff]
      %v588 = vld [vmem:[%s3 + $0xe0] sm:$0xf]
      %v589 = vld [vmem:[%s3 + $0xe4] sm:$0xff]
      %v590 = vld [vmem:[%s3 + $0xec] sm:$0xf]
      %v591 = vld [vmem:[%s3 + $0xf0] sm:$0xff]
      %v592 = vld [vmem:[%s3 + $0xf8] sm:$0xf]
      %v593 = vld [vmem:[%s3 + $0xfc] sm:$0xff]
      %v594 = vld [vmem:[%s3 + $0x104] sm:$0xf]
      %v595 = vld [vmem:[%s3 + $0x108] sm:$0xff]
      %v596 = vld [vmem:[%s3 + $0x110] sm:$0xf]
      %v597 = vld [vmem:[%s3 + $0x114] sm:$0xff]
      %v598 = vld [vmem:[%s3 + $0x11c] sm:$0xf]
      %v599 = vld [vmem:[%s3 + $0x120] sm:$0xff]
      %v600 = vld [vmem:[%s3 + $0x128] sm:$0xf]
      %v601 = vld [vmem:[%s3 + $0x12c] sm:$0xff]
      %v602 = vld [vmem:[%s3 + $0x134] sm:$0xf]
      %v603 = vld [vmem:[%s3 + $0x138] sm:$0xff]
      %v604 = vld [vmem:[%s3 + $0x140] sm:$0xf]
      %v605 = vld [vmem:[%s3 + $0x144] sm:$0xff]
      %v606 = vld [vmem:[%s3 + $0x14c] sm:$0xf]
      %v607 = vld [vmem:[%s3 + $0x150] sm:$0xff]
      %v608 = vld [vmem:[%s3 + $0x158] sm:$0xf]
      %v609 = vld [vmem:[%s3 + $0x15c] sm:$0xff]
      %v610 = vld [vmem:[%s3 + $0x164] sm:$0xf]
      %v611 = vld [vmem:[%s3 + $0x168] sm:$0xff]
      %v612 = vld [vmem:[%s3 + $0x170] sm:$0xf]
      %v613 = vld [vmem:[%s3 + $0x174] sm:$0xff]
      %v614 = vld [vmem:[%s3 + $0x17c] sm:$0xf]
      %v615 = vld [vmem:[%s3 + $0x180] sm:$0xff]
      %v616 = vld [vmem:[%s3 + $0x188] sm:$0xf]
      %v617 = vld [vmem:[%s3 + $0x18c] sm:$0xff]
      %v618 = vld [vmem:[%s3 + $0x194] sm:$0xf]
      %v619 = vld [vmem:[%s3 + $0x198] sm:$0xff]
      %v620 = vld [vmem:[%s3 + $0x1a0] sm:$0xf]
      %v621 = vld [vmem:[%s3 + $0x1a4] sm:$0x77]
      %v622 = vld [vmem:[%s3 + $0x1ac] sm:$0x7]
      %v695 = vunpack.c.l.b16 %v551
      %v696 = vunpack.c.h.b16 %v551
      %v697 = vunpack.c.l.b16 %v552
      %v698 = vunpack.c.l.b16 %v553
      %v699 = vunpack.c.h.b16 %v553
      %v700 = vunpack.c.l.b16 %v554
      %v701 = vunpack.c.l.b16 %v555
      %v702 = vunpack.c.h.b16 %v555
      %v703 = vunpack.c.l.b16 %v556
      %v704 = vunpack.c.l.b16 %v557
      %v705 = vunpack.c.h.b16 %v557
      %v706 = vunpack.c.l.b16 %v558
      %v707 = vunpack.c.l.b16 %v559
      %v708 = vunpack.c.h.b16 %v559
      %v709 = vunpack.c.l.b16 %v560
      %v710 = vunpack.c.l.b16 %v561
      %v711 = vunpack.c.h.b16 %v561
      %v712 = vunpack.c.l.b16 %v562
      %v713 = vunpack.c.l.b16 %v563
      %v714 = vunpack.c.h.b16 %v563
      %v715 = vunpack.c.l.b16 %v564
      %v716 = vunpack.c.l.b16 %v565
      %v717 = vunpack.c.h.b16 %v565
      %v718 = vunpack.c.l.b16 %v566
      %v719 = vunpack.c.l.b16 %v567
      %v720 = vunpack.c.h.b16 %v567
      %v721 = vunpack.c.l.b16 %v568
      %v722 = vunpack.c.l.b16 %v569
      %v723 = vunpack.c.h.b16 %v569
      %v724 = vunpack.c.l.b16 %v570
      %v725 = vunpack.c.l.b16 %v571
      %v726 = vunpack.c.h.b16 %v571
      %v727 = vunpack.c.l.b16 %v572
      %v728 = vunpack.c.l.b16 %v573
      %v729 = vunpack.c.h.b16 %v573
      %v730 = vunpack.c.l.b16 %v574
      %v731 = vunpack.c.l.b16 %v575
      %v732 = vunpack.c.h.b16 %v575
      %v733 = vunpack.c.l.b16 %v576
      %v734 = vunpack.c.l.b16 %v577
      %v735 = vunpack.c.h.b16 %v577
      %v736 = vunpack.c.l.b16 %v578
      %v737 = vunpack.c.l.b16 %v579
      %v738 = vunpack.c.h.b16 %v579
      %v739 = vunpack.c.l.b16 %v580
      %v740 = vunpack.c.l.b16 %v581
      %v741 = vunpack.c.h.b16 %v581
      %v742 = vunpack.c.l.b16 %v582
      %v743 = vunpack.c.l.b16 %v583
      %v744 = vunpack.c.h.b16 %v583
      %v745 = vunpack.c.l.b16 %v584
      %v746 = vunpack.c.l.b16 %v585
      %v747 = vunpack.c.h.b16 %v585
      %v748 = vunpack.c.l.b16 %v586
      %v749 = vunpack.c.l.b16 %v587
      %v750 = vunpack.c.h.b16 %v587
      %v751 = vunpack.c.l.b16 %v588
      %v752 = vunpack.c.l.b16 %v589
      %v753 = vunpack.c.h.b16 %v589
      %v754 = vunpack.c.l.b16 %v590
      %v755 = vunpack.c.l.b16 %v591
      %v756 = vunpack.c.h.b16 %v591
      %v757 = vunpack.c.l.b16 %v592
      %v758 = vunpack.c.l.b16 %v593
      %v759 = vunpack.c.h.b16 %v593
      %v760 = vunpack.c.l.b16 %v594
      %v761 = vunpack.c.l.b16 %v595
      %v762 = vunpack.c.h.b16 %v595
      %v763 = vunpack.c.l.b16 %v596
      %v764 = vunpack.c.l.b16 %v597
      %v765 = vunpack.c.h.b16 %v597
      %v766 = vunpack.c.l.b16 %v598
      %v767 = vunpack.c.l.b16 %v599
      %v768 = vunpack.c.h.b16 %v599
      %v769 = vunpack.c.l.b16 %v600
      %v770 = vunpack.c.l.b16 %v601
      %v771 = vunpack.c.h.b16 %v601
      %v772 = vunpack.c.l.b16 %v602
      %v773 = vunpack.c.l.b16 %v603
      %v774 = vunpack.c.h.b16 %v603
      %v775 = vunpack.c.l.b16 %v604
      %v776 = vunpack.c.l.b16 %v605
      %v777 = vunpack.c.h.b16 %v605
      %v778 = vunpack.c.l.b16 %v606
      %v779 = vunpack.c.l.b16 %v607
      %v780 = vunpack.c.h.b16 %v607
      %v781 = vunpack.c.l.b16 %v608
      %v782 = vunpack.c.l.b16 %v609
      %v783 = vunpack.c.h.b16 %v609
      %v784 = vunpack.c.l.b16 %v610
      %v785 = vunpack.c.l.b16 %v611
      %v786 = vunpack.c.h.b16 %v611
      %v787 = vunpack.c.l.b16 %v612
      %v788 = vunpack.c.l.b16 %v613
      %v789 = vunpack.c.h.b16 %v613
      %v790 = vunpack.c.l.b16 %v614
      %v791 = vunpack.c.l.b16 %v615
      %v792 = vunpack.c.h.b16 %v615
      %v793 = vunpack.c.l.b16 %v616
      %v794 = vunpack.c.l.b16 %v617
      %v795 = vunpack.c.h.b16 %v617
      %v796 = vunpack.c.l.b16 %v618
      %v797 = vunpack.c.l.b16 %v619
      %v798 = vunpack.c.h.b16 %v619
      %v799 = vunpack.c.l.b16 %v620
      %v800 = vunpack.c.l.b16 %v621
      %v801 = vunpack.c.h.b16 %v621
      %v802 = vunpack.c.l.b16 %v622
      %v803 = vpack.c.b16 %v698, %v695
      %v804 = vpack.c.b16 %v699, %v696
      %v805 = vpack.c.b16 %v700, %v697
      %v806 = vpack.c.b16 %v704, %v701
      %v807 = vpack.c.b16 %v705, %v702
      %v808 = vpack.c.b16 %v706, %v703
      %v809 = vpack.c.b16 %v710, %v707
      %v810 = vpack.c.b16 %v711, %v708
      %v811 = vpack.c.b16 %v712, %v709
      %v812 = vpack.c.b16 %v716, %v713
      %v813 = vpack.c.b16 %v717, %v714
      %v814 = vpack.c.b16 %v718, %v715
      %v815 = vpack.c.b16 %v722, %v719
      %v816 = vpack.c.b16 %v723, %v720
      %v817 = vpack.c.b16 %v724, %v721
      %v818 = vpack.c.b16 %v728, %v725
      %v819 = vpack.c.b16 %v729, %v726
      %v820 = vpack.c.b16 %v730, %v727
      %v821 = vpack.c.b16 %v734, %v731
      %v822 = vpack.c.b16 %v735, %v732
      %v823 = vpack.c.b16 %v736, %v733
      %v824 = vpack.c.b16 %v740, %v737
      %v825 = vpack.c.b16 %v741, %v738
      %v826 = vpack.c.b16 %v742, %v739
      %v827 = vpack.c.b16 %v746, %v743
      %v828 = vpack.c.b16 %v747, %v744
      %v829 = vpack.c.b16 %v748, %v745
      %v830 = vpack.c.b16 %v752, %v749
      %v831 = vpack.c.b16 %v753, %v750
      %v832 = vpack.c.b16 %v754, %v751
      %v833 = vpack.c.b16 %v758, %v755
      %v834 = vpack.c.b16 %v759, %v756
      %v835 = vpack.c.b16 %v760, %v757
      %v836 = vpack.c.b16 %v764, %v761
      %v837 = vpack.c.b16 %v765, %v762
      %v838 = vpack.c.b16 %v766, %v763
      %v839 = vpack.c.b16 %v770, %v767
      %v840 = vpack.c.b16 %v771, %v768
      %v841 = vpack.c.b16 %v772, %v769
      %v842 = vpack.c.b16 %v776, %v773
      %v843 = vpack.c.b16 %v777, %v774
      %v844 = vpack.c.b16 %v778, %v775
      %v845 = vpack.c.b16 %v782, %v779
      %v846 = vpack.c.b16 %v783, %v780
      %v847 = vpack.c.b16 %v784, %v781
      %v848 = vpack.c.b16 %v788, %v785
      %v849 = vpack.c.b16 %v789, %v786
      %v850 = vpack.c.b16 %v790, %v787
      %v851 = vpack.c.b16 %v794, %v791
      %v852 = vpack.c.b16 %v795, %v792
      %v853 = vpack.c.b16 %v796, %v793
      %v854 = vpack.c.b16 %v800, %v797
      %v855 = vpack.c.b16 %v801, %v798
      %v856 = vpack.c.b16 %v802, %v799
      %v909 = vsel %vm288, %v550, 0
      %vm911 = vcmask 1046528
      %v913 = vsel %vm911, %v854, 0
      %v916 = vsel %vm911, %v855, 0
      %v919 = vsel %vm911, %v856, 0
      %921 = vmatprep.subr.bf16.mxu0 %v804
      %922 = vmatpush1.bf16.msra.mxu0 %v803
      %923 = vmatprep.subr.bf16.mxu0 %v807
      %924 = vmatpush1.bf16.msra.mxu0 %v806
      %925 = vmatprep.subr.bf16.mxu0 %v810
      %926 = vmatpush1.bf16.msra.mxu0 %v809
      %927 = vmatprep.subr.bf16.mxu0 %v813
      %928 = vmatpush1.bf16.msra.mxu0 %v812
      %929 = vmatprep.subr.bf16.mxu0 %v816
      %930 = vmatpush1.bf16.msra.mxu0 %v815
      %931 = vmatprep.subr.bf16.mxu0 %v819
      %932 = vmatpush1.bf16.msra.mxu0 %v818
      %933 = vmatprep.subr.bf16.mxu0 %v822
      %934 = vmatpush1.bf16.msra.mxu0 %v821
      %935 = vmatprep.subr.bf16.mxu0 %v825
      %936 = vmatpush1.bf16.msra.mxu0 %v824
      %937 = vmatprep.subr.bf16.mxu0 %v828
      %938 = vmatpush1.bf16.msra.mxu0 %v827
      %939 = vmatprep.subr.bf16.mxu0 %v831
      %940 = vmatpush1.bf16.msra.mxu0 %v830
      %941 = vmatprep.subr.bf16.mxu0 %v834
      %942 = vmatpush1.bf16.msra.mxu0 %v833
      %943 = vmatprep.subr.bf16.mxu0 %v837
      %944 = vmatpush1.bf16.msra.mxu0 %v836
      %945 = vmatprep.subr.bf16.mxu0 %v840
      %946 = vmatpush1.bf16.msra.mxu0 %v839
      %947 = vmatprep.subr.bf16.mxu0 %v843
      %948 = vmatpush1.bf16.msra.mxu0 %v842
      %949 = vmatprep.subr.bf16.mxu0 %v846
      %950 = vmatpush1.bf16.msra.mxu0 %v845
      %951 = vmatprep.subr.bf16.mxu0 %v849
      %952 = vmatpush1.bf16.msra.mxu0 %v848
      %953 = vmatprep.mubr.bf16.mxu0 %v549
      %954 = vmatmul.mubr.bf16.gmra.mrb[0].mxu0 %v548
      %v955 = vpop.f32.mrb[0].mxu0
      %v956 = vadd.f32 0.0, %v955
      %v957 = vpop.f32.mrb[0].mxu0
      %v958 = vadd.f32 0.0, %v957
      %v959 = vpop.f32.mrb[0].mxu0
      %v960 = vadd.f32 0.0, %v959
      %v961 = vpop.f32.mrb[0].mxu0
      %v962 = vadd.f32 0.0, %v961
      %963 = vdwg.mxu0
      %964 = vmatprep.subr.bf16.mxu0 %v852
      %965 = vmatpush1.bf16.msra.mxu0 %v851
      %966 = vmatprep.subr.bf16.mxu0 %v916
      %967 = vmatpush1.bf16.msra.mxu0 %v913
      %968 = vmatprep.subr.bf16.mxu0 0
      %969 = vmatpush1.bf16.msra.mxu0 0
      %970 = vmatprep.subr.bf16.mxu0 0
      %971 = vmatpush1.bf16.msra.mxu0 0
      %972 = vmatprep.subr.bf16.mxu0 0
      %973 = vmatpush1.bf16.msra.mxu0 0
      %974 = vmatprep.subr.bf16.mxu0 0
      %975 = vmatpush1.bf16.msra.mxu0 0
      %976 = vmatprep.subr.bf16.mxu0 0
      %977 = vmatpush1.bf16.msra.mxu0 0
      %978 = vmatprep.subr.bf16.mxu0 0
      %979 = vmatpush1.bf16.msra.mxu0 0
      %980 = vmatprep.subr.bf16.mxu0 0
      %981 = vmatpush1.bf16.msra.mxu0 0
      %982 = vmatprep.subr.bf16.mxu0 0
      %983 = vmatpush1.bf16.msra.mxu0 0
      %984 = vmatprep.subr.bf16.mxu0 0
      %985 = vmatpush1.bf16.msra.mxu0 0
      %986 = vmatprep.subr.bf16.mxu0 0
      %987 = vmatpush1.bf16.msra.mxu0 0
      %988 = vmatprep.subr.bf16.mxu0 0
      %989 = vmatpush1.bf16.msra.mxu0 0
      %990 = vmatprep.subr.bf16.mxu0 0
      %991 = vmatpush1.bf16.msra.mxu0 0
      %992 = vmatprep.subr.bf16.mxu0 0
      %993 = vmatpush1.bf16.msra.mxu0 0
      %994 = vmatprep.subr.bf16.mxu0 0
      %995 = vmatpush1.bf16.msra.mxu0 0
      %996 = vmatprep.mubr.bf16.mxu0 0
      %997 = vmatmul.mubr.bf16.gmra.mrb[0].mxu0 %v909
      %v998 = vpop.f32.mrb[0].mxu0
      %v999 = vadd.f32 %v956, %v998
      %v1000 = vpop.f32.mrb[0].mxu0
      %v1001 = vadd.f32 %v958, %v1000
      %v1002 = vpop.f32.mrb[0].mxu0
      %v1003 = vadd.f32 %v960, %v1002
      %v1004 = vpop.f32.mrb[0].mxu0
      %v1005 = vadd.f32 %v962, %v1004
      %1006 = vdwg.mxu0
      %1007 = vmatprep.subr.bf16.mxu0 0
      %1008 = vmatpush1.bf16.msra.mxu0 %v805
      %1009 = vmatprep.subr.bf16.mxu0 0
      %1010 = vmatpush1.bf16.msra.mxu0 %v808
      %1011 = vmatprep.subr.bf16.mxu0 0
      %1012 = vmatpush1.bf16.msra.mxu0 %v811
      %1013 = vmatprep.subr.bf16.mxu0 0
      %1014 = vmatpush1.bf16.msra.mxu0 %v814
      %1015 = vmatprep.subr.bf16.mxu0 0
      %1016 = vmatpush1.bf16.msra.mxu0 %v817
      %1017 = vmatprep.subr.bf16.mxu0 0
      %1018 = vmatpush1.bf16.msra.mxu0 %v820
      %1019 = vmatprep.subr.bf16.mxu0 0
      %1020 = vmatpush1.bf16.msra.mxu0 %v823
      %1021 = vmatprep.subr.bf16.mxu0 0
      %1022 = vmatpush1.bf16.msra.mxu0 %v826
      %1023 = vmatprep.subr.bf16.mxu0 0
      %1024 = vmatpush1.bf16.msra.mxu0 %v829
      %1025 = vmatprep.subr.bf16.mxu0 0
      %1026 = vmatpush1.bf16.msra.mxu0 %v832
      %1027 = vmatprep.subr.bf16.mxu0 0
      %1028 = vmatpush1.bf16.msra.mxu0 %v835
      %1029 = vmatprep.subr.bf16.mxu0 0
      %1030 = vmatpush1.bf16.msra.mxu0 %v838
      %1031 = vmatprep.subr.bf16.mxu0 0
      %1032 = vmatpush1.bf16.msra.mxu0 %v841
      %1033 = vmatprep.subr.bf16.mxu0 0
      %1034 = vmatpush1.bf16.msra.mxu0 %v844
      %1035 = vmatprep.subr.bf16.mxu0 0
      %1036 = vmatpush1.bf16.msra.mxu0 %v847
      %1037 = vmatprep.subr.bf16.mxu0 0
      %1038 = vmatpush1.bf16.msra.mxu0 %v850
      %1039 = vmatprep.mubr.bf16.mxu0 %v549
      %1040 = vmatmul.mubr.bf16.gmra.mrb[0].mxu0 %v548
      %v1041 = vpop.f32.mrb[0].mxu0
      %v1042 = vadd.f32 0.0, %v1041
      %v1043 = vpop.f32.mrb[0].mxu0
      %v1044 = vpop.f32.mrb[0].mxu0
      %v1045 = vadd.f32 0.0, %v1044
      %v1046 = vpop.f32.mrb[0].mxu0
      %1047 = vdwg.mxu0
      %1048 = vmatprep.subr.bf16.mxu0 0
      %1049 = vmatpush1.bf16.msra.mxu0 %v853
      %1050 = vmatprep.subr.bf16.mxu0 0
      %1051 = vmatpush1.bf16.msra.mxu0 %v919
      %1052 = vmatprep.subr.bf16.mxu0 0
      %1053 = vmatpush1.bf16.msra.mxu0 0
      %1054 = vmatprep.subr.bf16.mxu0 0
      %1055 = vmatpush1.bf16.msra.mxu0 0
      %1056 = vmatprep.subr.bf16.mxu0 0
      %1057 = vmatpush1.bf16.msra.mxu0 0
      %1058 = vmatprep.subr.bf16.mxu0 0
      %1059 = vmatpush1.bf16.msra.mxu0 0
      %1060 = vmatprep.subr.bf16.mxu0 0
      %1061 = vmatpush1.bf16.msra.mxu0 0
      %1062 = vmatprep.subr.bf16.mxu0 0
      %1063 = vmatpush1.bf16.msra.mxu0 0
      %1064 = vmatprep.subr.bf16.mxu0 0
      %1065 = vmatpush1.bf16.msra.mxu0 0
      %1066 = vmatprep.subr.bf16.mxu0 0
      %1067 = vmatpush1.bf16.msra.mxu0 0
      %1068 = vmatprep.subr.bf16.mxu0 0
      %1069 = vmatpush1.bf16.msra.mxu0 0
      %1070 = vmatprep.subr.bf16.mxu0 0
      %1071 = vmatpush1.bf16.msra.mxu0 0
      %1072 = vmatprep.subr.bf16.mxu0 0
      %1073 = vmatpush1.bf16.msra.mxu0 0
      %1074 = vmatprep.subr.bf16.mxu0 0
      %1075 = vmatpush1.bf16.msra.mxu0 0
      %1076 = vmatprep.subr.bf16.mxu0 0
      %1077 = vmatpush1.bf16.msra.mxu0 0
      %1078 = vmatprep.subr.bf16.mxu0 0
      %1079 = vmatpush1.bf16.msra.mxu0 0
      %1080 = vmatprep.mubr.bf16.mxu0 0
      %1081 = vmatmul.mubr.bf16.gmra.mrb[0].mxu0 %v909
      %v1082 = vpop.f32.mrb[0].mxu0
      %v1083 = vadd.f32 %v1042, %v1082
      %v1084 = vpop.f32.mrb[0].mxu0
      %v1085 = vpop.f32.mrb[0].mxu0
      %v1086 = vadd.f32 %v1045, %v1085
      %v1087 = vpop.f32.mrb[0].mxu0
      %1088 = vdwg.mxu0
      %v1089 = vpack.c.bf16 %v1003, %v999
      %v1090 = vpack.c.bf16 %v1005, %v1001
      %v1091 = vpack.c.bf16 %v1086, %v1083
      %v1095 = vunpack.c.l.b16 %v1089
      %v1096 = vunpack.c.l.b16 %v1090
      %v1097 = vunpack.c.l.b16 %v1091
      %v1098 = vunpack.c.h.b16 %v1089
      %v1099 = vunpack.c.h.b16 %v1090
      %v1100 = vunpack.c.h.b16 %v1091
      %v1101 = vpack.c.b16 %v1096, %v1095
      %v1102 = vpack.c.b16 %v1097, %v1097
      %v1103 = vpack.c.b16 %v1099, %v1098
      %v1104 = vpack.c.b16 %v1100, %v1100
      %1109 = vst [vmem:[%s259] sm:$0xff] %v1101
      %vm1110 = vcmask 551936
      %1111 = vst.msk [vmem:[%s259 + $0x8] sm:$0xf] %vm1110, %v1102
      %1112 = vst [vmem:[%s259 + $0xc] sm:$0xff] %v1103
      %1113 = vst.msk [vmem:[%s259 + $0x14] sm:$0xf] %vm1110, %v1104
      %1120 = vrot.lane.b32.xlu0 %v499, 127
      %v1121 = vpop.permute.xlu0 %1120
      %1122 = vrot.lane.b32.xlu0 %v501, 127
      %v1123 = vpop.permute.xlu0 %1122
      %1124 = vrot.lane.b32.xlu0 %v542, 127
      %v1125 = vpop.permute.xlu0 %1124
      %1126 = vrot.lane.b32.xlu0 %v503, 127
      %v1127 = vpop.permute.xlu0 %1126
      %1128 = vrot.lane.b32.xlu0 %v505, 127
      %v1129 = vpop.permute.xlu0 %1128
      %1130 = vrot.lane.b32.xlu0 %v545, 127
      %v1131 = vpop.permute.xlu0 %1130
      %vm1132 = vcmask 1039360
      %v1133 = vsel %vm1132, %v1121, %v1123
      %v1134 = vsel %vm1132, %v1123, %v1125
      %v1135 = vsel %vm1132, %v1127, %v1129
      %v1136 = vsel %vm1132, %v1129, %v1131
      %v1143 = vmax.f32 %v499, %v1133
      %v1144 = vmax.f32 %v501, %v1134
      %v1145 = vmax.f32 %v542, %v1125
      %v1146 = vmax.f32 %v503, %v1135
      %v1147 = vmax.f32 %v505, %v1136
      %v1148 = vmax.f32 %v545, %v1131
      %1155 = vrot.lane.b32.xlu0 %v1143, 110
      %v1156 = vpop.permute.xlu0 %1155
      %1157 = vrot.lane.b32.xlu0 %v1144, 110
      %v1158 = vpop.permute.xlu0 %1157
      %1159 = vrot.lane.b32.xlu0 %v1145, 110
      %v1160 = vpop.permute.xlu0 %1159
      %1161 = vrot.lane.b32.xlu0 %v1146, 110
      %v1162 = vpop.permute.xlu0 %1161
      %1163 = vrot.lane.b32.xlu0 %v1147, 110
      %v1164 = vpop.permute.xlu0 %1163
      %1165 = vrot.lane.b32.xlu0 %v1148, 110
      %v1166 = vpop.permute.xlu0 %1165
      %vm1167 = vcmask 900096
      %v1168 = vsel %vm1167, %v1156, %v1158
      %v1169 = vsel %vm1167, %v1158, %v1160
      %v1170 = vsel %vm1167, %v1162, %v1164
      %v1171 = vsel %vm1167, %v1164, %v1166
      %v1178 = vmax.f32 %v1143, %v1168
      %v1179 = vmax.f32 %v1144, %v1169
      %v1180 = vmax.f32 %v1145, %v1160
      %v1181 = vmax.f32 %v1146, %v1170
      %v1182 = vmax.f32 %v1147, %v1171
      %v1183 = vmax.f32 %v1148, %v1166
      %v1184 = vpack.c.bf16 %v1181, %v1178
      %v1185 = vpack.c.bf16 %v1182, %v1179
      %v1186 = vpack.c.bf16 %v1183, %v1180
      %v1187 = vld [vmem:[%s4] sm:$0xf]
      %v1188 = vld [vmem:[%s4 + $0x4] sm:$0xf]
      %v1189 = vld [vmem:[%s4 + $0x8] sm:$0xf]
      %v1190 = vld [vmem:[%s4 + $0xc] sm:$0xf]
      %v1191 = vld [vmem:[%s4 + $0x10] sm:$0xf]
      %v1192 = vld [vmem:[%s4 + $0x14] sm:$0xf]
      %v1193 = vld [vmem:[%s4 + $0x18] sm:$0xf]
      %v1194 = vld [vmem:[%s4 + $0x1c] sm:$0xf]
      %v1195 = vld [vmem:[%s4 + $0x20] sm:$0xf]
      %v1196 = vld [vmem:[%s4 + $0x24] sm:$0xf]
      %v1197 = vld [vmem:[%s4 + $0x28] sm:$0xf]
      %v1198 = vld [vmem:[%s4 + $0x2c] sm:$0xf]
      %v1199 = vld [vmem:[%s4 + $0x30] sm:$0xf]
      %v1200 = vld [vmem:[%s4 + $0x34] sm:$0xf]
      %v1201 = vld [vmem:[%s4 + $0x38] sm:$0xf]
      %v1202 = vld [vmem:[%s4 + $0x3c] sm:$0xf]
      %v1203 = vld [vmem:[%s4 + $0x40] sm:$0xf]
      %v1204 = vld [vmem:[%s4 + $0x44] sm:$0xf]
      %v1205 = vld [vmem:[%s4 + $0x48] sm:$0xf]
      %v1206 = vld [vmem:[%s4 + $0x4c] sm:$0xf]
      %v1207 = vld [vmem:[%s4 + $0x50] sm:$0xf]
      %v1208 = vld [vmem:[%s4 + $0x54] sm:$0xf]
      %v1209 = vld [vmem:[%s4 + $0x58] sm:$0xf]
      %v1210 = vld [vmem:[%s4 + $0x5c] sm:$0xf]
      %v1211 = vld [vmem:[%s4 + $0x60] sm:$0xf]
      %v1212 = vld [vmem:[%s4 + $0x64] sm:$0xf]
      %v1213 = vld [vmem:[%s4 + $0x68] sm:$0xf]
      %v1214 = vld [vmem:[%s4 + $0x6c] sm:$0xf]
      %v1215 = vld [vmem:[%s4 + $0x70] sm:$0xf]
      %v1216 = vld [vmem:[%s4 + $0x74] sm:$0xf]
      %v1217 = vld [vmem:[%s4 + $0x78] sm:$0xf]
      %v1218 = vld [vmem:[%s4 + $0x7c] sm:$0xf]
      %v1219 = vld [vmem:[%s4 + $0x80] sm:$0xf]
      %v1220 = vld [vmem:[%s4 + $0x84] sm:$0x3]
      %v1255 = vunpack.c.l.b16 %v1187
      %v1256 = vunpack.c.l.b16 %v1188
      %v1257 = vunpack.c.l.b16 %v1189
      %v1258 = vunpack.c.l.b16 %v1190
      %v1259 = vunpack.c.l.b16 %v1191
      %v1260 = vunpack.c.l.b16 %v1192
      %v1261 = vunpack.c.l.b16 %v1193
      %v1262 = vunpack.c.l.b16 %v1194
      %v1263 = vunpack.c.l.b16 %v1195
      %v1264 = vunpack.c.l.b16 %v1196
      %v1265 = vunpack.c.l.b16 %v1197
      %v1266 = vunpack.c.l.b16 %v1198
      %v1267 = vunpack.c.l.b16 %v1199
      %v1268 = vunpack.c.l.b16 %v1200
      %v1269 = vunpack.c.l.b16 %v1201
      %v1270 = vunpack.c.l.b16 %v1202
      %v1271 = vunpack.c.l.b16 %v1203
      %v1272 = vunpack.c.l.b16 %v1204
      %v1273 = vunpack.c.l.b16 %v1205
      %v1274 = vunpack.c.l.b16 %v1206
      %v1275 = vunpack.c.l.b16 %v1207
      %v1276 = vunpack.c.l.b16 %v1208
      %v1277 = vunpack.c.l.b16 %v1209
      %v1278 = vunpack.c.l.b16 %v1210
      %v1279 = vunpack.c.l.b16 %v1211
      %v1280 = vunpack.c.l.b16 %v1212
      %v1281 = vunpack.c.l.b16 %v1213
      %v1282 = vunpack.c.l.b16 %v1214
      %v1283 = vunpack.c.l.b16 %v1215
      %v1284 = vunpack.c.l.b16 %v1216
      %v1285 = vunpack.c.l.b16 %v1217
      %v1286 = vunpack.c.l.b16 %v1218
      %v1287 = vunpack.c.l.b16 %v1219
      %v1288 = vunpack.c.l.b16 %v1220
      %v1289 = vpack.c.b16 %v1256, %v1255
      %v1290 = vpack.c.b16 %v1258, %v1257
      %v1291 = vpack.c.b16 %v1260, %v1259
      %v1292 = vpack.c.b16 %v1262, %v1261
      %v1293 = vpack.c.b16 %v1264, %v1263
      %v1294 = vpack.c.b16 %v1266, %v1265
      %v1295 = vpack.c.b16 %v1268, %v1267
      %v1296 = vpack.c.b16 %v1270, %v1269
      %v1297 = vpack.c.b16 %v1272, %v1271
      %v1298 = vpack.c.b16 %v1274, %v1273
      %v1299 = vpack.c.b16 %v1276, %v1275
      %v1300 = vpack.c.b16 %v1278, %v1277
      %v1301 = vpack.c.b16 %v1280, %v1279
      %v1302 = vpack.c.b16 %v1282, %v1281
      %v1303 = vpack.c.b16 %v1284, %v1283
      %v1304 = vpack.c.b16 %v1286, %v1285
      %v1305 = vpack.c.b16 %v1288, %v1287
      %vm1322 = vcmask 89088
      %v1324 = vsel %vm1322, %v1186, 0
      %vm1326 = vcmask 1044480
      %vm1327 = vcmask 1045504
      %v1328 = vsel %vm1326, 4294967295, 65535
      %v1329 = vsel %vm1327, %v1328, 0
      %v1331 = vand.u32 %v1305, %v1329
      %1333 = vmatprep.subr.bf16.mxu0 0
      %1334 = vmatpush1.bf16.msra.mxu0 %v1289
      %1335 = vmatprep.subr.bf16.mxu0 0
      %1336 = vmatpush1.bf16.msra.mxu0 %v1290
      %1337 = vmatprep.subr.bf16.mxu0 0
      %1338 = vmatpush1.bf16.msra.mxu0 %v1291
      %1339 = vmatprep.subr.bf16.mxu0 0
      %1340 = vmatpush1.bf16.msra.mxu0 %v1292
      %1341 = vmatprep.subr.bf16.mxu0 0
      %1342 = vmatpush1.bf16.msra.mxu0 %v1293
      %1343 = vmatprep.subr.bf16.mxu0 0
      %1344 = vmatpush1.bf16.msra.mxu0 %v1294
      %1345 = vmatprep.subr.bf16.mxu0 0
      %1346 = vmatpush1.bf16.msra.mxu0 %v1295
      %1347 = vmatprep.subr.bf16.mxu0 0
      %1348 = vmatpush1.bf16.msra.mxu0 %v1296
      %1349 = vmatprep.subr.bf16.mxu0 0
      %1350 = vmatpush1.bf16.msra.mxu0 %v1297
      %1351 = vmatprep.subr.bf16.mxu0 0
      %1352 = vmatpush1.bf16.msra.mxu0 %v1298
      %1353 = vmatprep.subr.bf16.mxu0 0
      %1354 = vmatpush1.bf16.msra.mxu0 %v1299
      %1355 = vmatprep.subr.bf16.mxu0 0
      %1356 = vmatpush1.bf16.msra.mxu0 %v1300
      %1357 = vmatprep.subr.bf16.mxu0 0
      %1358 = vmatpush1.bf16.msra.mxu0 %v1301
      %1359 = vmatprep.subr.bf16.mxu0 0
      %1360 = vmatpush1.bf16.msra.mxu0 %v1302
      %1361 = vmatprep.subr.bf16.mxu0 0
      %1362 = vmatpush1.bf16.msra.mxu0 %v1303
      %1363 = vmatprep.subr.bf16.mxu0 0
      %1364 = vmatpush1.bf16.msra.mxu0 %v1304
      %1365 = vmatprep.mubr.bf16.mxu0 %v1185
      %1366 = vmatmul.mubr.bf16.gmra.mrb[0].mxu0 %v1184
      %v1367 = vpop.f32.mrb[0].mxu0
      %v1368 = vadd.f32 0.0, %v1367
      %v1369 = vpop.f32.mrb[0].mxu0
      %v1370 = vpop.f32.mrb[0].mxu0
      %v1371 = vadd.f32 0.0, %v1370
      %v1372 = vpop.f32.mrb[0].mxu0
      %1373 = vdwg.mxu0
      %1374 = vmatprep.subr.bf16.mxu0 0
      %1375 = vmatpush1.bf16.msra.mxu0 %v1331
      %1376 = vmatprep.subr.bf16.mxu0 0
      %1377 = vmatpush1.bf16.msra.mxu0 0
      %1378 = vmatprep.subr.bf16.mxu0 0
      %1379 = vmatpush1.bf16.msra.mxu0 0
      %1380 = vmatprep.subr.bf16.mxu0 0
      %1381 = vmatpush1.bf16.msra.mxu0 0
      %1382 = vmatprep.subr.bf16.mxu0 0
      %1383 = vmatpush1.bf16.msra.mxu0 0
      %1384 = vmatprep.subr.bf16.mxu0 0
      %1385 = vmatpush1.bf16.msra.mxu0 0
      %1386 = vmatprep.subr.bf16.mxu0 0
      %1387 = vmatpush1.bf16.msra.mxu0 0
      %1388 = vmatprep.subr.bf16.mxu0 0
      %1389 = vmatpush1.bf16.msra.mxu0 0
      %1390 = vmatprep.subr.bf16.mxu0 0
      %1391 = vmatpush1.bf16.msra.mxu0 0
      %1392 = vmatprep.subr.bf16.mxu0 0
      %1393 = vmatpush1.bf16.msra.mxu0 0
      %1394 = vmatprep.subr.bf16.mxu0 0
      %1395 = vmatpush1.bf16.msra.mxu0 0
      %1396 = vmatprep.subr.bf16.mxu0 0
      %1397 = vmatpush1.bf16.msra.mxu0 0
      %1398 = vmatprep.subr.bf16.mxu0 0
      %1399 = vmatpush1.bf16.msra.mxu0 0
      %1400 = vmatprep.subr.bf16.mxu0 0
      %1401 = vmatpush1.bf16.msra.mxu0 0
      %1402 = vmatprep.subr.bf16.mxu0 0
      %1403 = vmatpush1.bf16.msra.mxu0 0
      %1404 = vmatprep.subr.bf16.mxu0 0
      %1405 = vmatpush1.bf16.msra.mxu0 0
      %1406 = vmatprep.mubr.bf16.mxu0 0
      %1407 = vmatmul.mubr.bf16.gmra.mrb[0].mxu0 %v1324
      %v1408 = vpop.f32.mrb[0].mxu0
      %v1409 = vadd.f32 %v1368, %v1408
      %v1410 = vpop.f32.mrb[0].mxu0
      %v1411 = vpop.f32.mrb[0].mxu0
      %v1412 = vadd.f32 %v1371, %v1411
      %v1413 = vpop.f32.mrb[0].mxu0
      %1414 = vdwg.mxu0
      %v1415 = vpack.c.bf16 %v1412, %v1409
      %v1417 = vunpack.c.l.b16 %v1415
      %v1418 = vunpack.c.h.b16 %v1415
      %v1419 = vpack.c.b16 %v1417, %v1417
      %v1420 = vpack.c.b16 %v1418, %v1418
      %vm1423 = vcmask 814080
      %1424 = vst.msk [vmem:[%s264] sm:$0xf] %vm1423, %v1419
      %1425 = vst.msk [vmem:[%s264 + $0x4] sm:$0xf] %vm1423, %v1420
      %p1426 = scmp.lt.s32.totalorder %s18, 1
      %s1427 = scalar_select %p1426, %s18, 1
      %s1428 = smul.addr %s1427, 6
      %s1429 = smul.addr %s1428, 4
      %s1430 = scalar_lea.vmem %s5, %s1429
      %p1431 = scmp.lt.s32.totalorder %s18, 1
      %s1432 = scalar_select %p1431, %s18, 1
      %s1433 = smul.addr %s1432, 2
      %s1434 = smul.addr %s1433, 4
      %s1435 = scalar_lea.vmem %s6, %s1434
      // Predicated region
      $region41: #{unet_forward.7} parent=39 // pred_check
        %p1436 = pneg %p146
      $region42: #{unet_forward.7} parent=39 // pred_check_branch
        %1438 = sbr.rel (%p1436) target = $region44
      $region43: #{unet_forward.7} parent=39 // pred_region
        _
      $region44: #{unet_forward.7} parent=39 // pred_fallthru
        _
      // Predicated region
      $region45: #{unet_forward.7} parent=39 // pred_check
        %p1439 = pneg %p172
      $region46: #{unet_forward.7} parent=39 // pred_check_branch
        %1441 = sbr.rel (%p1439) target = $region48
      $region47: #{unet_forward.7} parent=39 // pred_region
        _
      $region48: #{unet_forward.7} parent=39 // pred_fallthru
        _
    $region40: #{unet_forward.7} parent=5 // pred_fallthru
      _
    %p1442 = scmp.le.s32.totalorder 2, %s13
    // Predicated region
    $region49: #{unet_forward.7} parent=5 // pred_check
      %p1443 = pneg %p1442
    $region50: #{unet_forward.7} parent=5 // pred_check_branch
      %1445 = sbr.rel (%p1443) target = $region52
    $region51: #{unet_forward.7} parent=5 // pred_region
      %s1446 = ssub.s32 %s13, 2
      // Predicated region
      $region53: #{unet_forward.7} parent=51 // pred_check
        %p1447 = pneg %p152
      $region54: #{unet_forward.7} parent=51 // pred_check_branch
        %1449 = sbr.rel (%p1447) target = $region56
      $region55: #{unet_forward.7} parent=51 // pred_region
        %p1450 = scmp.lt.s32.totalorder %s19, 1
        %s1451 = scalar_select %p1450, %s19, 1
        %s1452 = smul.addr %s1451, 6
        %s1453 = smul.addr %s1452, 4
        %s1454 = scalar_lea.vmem %s5, %s1453
      $region56: #{unet_forward.7} parent=51 // pred_fallthru
        _
      // Predicated region
      $region57: #{unet_forward.7} parent=51 // pred_check
        %p1455 = pneg %p178
      $region58: #{unet_forward.7} parent=51 // pred_check_branch
        %1457 = sbr.rel (%p1455) target = $region60
      $region59: #{unet_forward.7} parent=51 // pred_region
        %p1458 = scmp.lt.s32.totalorder %s19, 1
        %s1459 = scalar_select %p1458, %s19, 1
        %s1460 = smul.addr %s1459, 2
        %s1461 = smul.addr %s1460, 4
        %s1462 = scalar_lea.vmem %s6, %s1461
      $region60: #{unet_forward.7} parent=51 // pred_fallthru
        _
    $region52: #{unet_forward.7} parent=5 // pred_fallthru
      _
  $region6: #{unet_forward.7} parent=0 // loop_footer
    %s17 = sadd.s32 1, %s13
  $region7: #{unet_forward.7} parent=0 // loop_footer_branch
    %12 = sbr.rel target = $region3
  $region8: #{unet_forward.7} parent=0 // loop_exit
    _

// kernel: unet_forward.11
$region0: #{unet_forward.11}
  #allocation0 [shape = 'u32[]', space=smem, size = 0x4, offset = 0x4, fixed_abs, tag = 'smem constant byte address 0x4 - core index']
  #allocation1 [shape = 'u32[144,128]{1,0:T(1,128)}', space=vmem, size = 0x12000, scoped, tag = 'internal scratch']
  #allocation2 [shape = 'bf16[288,78]{1,0:T(16,128)(2,1)}', space=vmem, size = 0x12000, scoped, tag = 'scratch operand']
  %s0 = inlined_call_operand.vmem [shape: bf16[2,16,100], index: 0, kind: input, shape index: {}]
  %s1 = inlined_call_operand.vmem [shape: bf16[2,16,100], index: 1, kind: input, shape index: {}]
  %s2 = inlined_call_operand.vmem [shape: bf16[16,288], index: 2, kind: input, shape index: {}]
  %s3 = inlined_call_operand.vmem [shape: f32[16,1], index: 3, kind: input, shape index: {}]
  %s4 = inlined_call_operand.vmem [shape: bf16[78,100], index: 4, kind: input, shape index: {}]
  %s5 = inlined_call_operand.vmem [shape: bf16[2,16,100], index: 5, kind: output, shape index: {}]
  %s6 = sld [smem:[#allocation0]]
  $region53: #{unet_forward.11} parent=0
    _
  %s8 = ssub.s32 1, %s6
  %s9 = scalar_select 0, %s8, %s6
  loop: start=0, step=1, limit=4
  $region2: #{unet_forward.11} parent=0 // loop_pre_header
    _
  $region3: #{unet_forward.11} parent=0 // loop_header
    %s11 = sphi 0, %s15
    %p12 = scmp.ge.s32.totalorder %s11, 4
    %s21 = sphi 0, %s23
    %s24 = sphi 0, %s21
    %s25 = sphi 0, %s24
    %s41 = sphi 0, %s25
    %s47 = sphi 0, %s49
    %s50 = sphi 0, %s47
    %s51 = sphi 0, %s50
    %s67 = sphi 0, %s51
    %s71 = sphi 0, %s71
    %s73 = sphi 0, %s71
    %s74 = sphi 0, %s73
    %s88 = sphi 0, %s74
    %s92 = sphi 0, %s92
    %s94 = sphi 0, %s92
    %s95 = sphi 0, %s94
    %s109 = sphi 0, %s95
    %s113 = sphi 0, %s113
    %s115 = sphi 0, %s113
    %s116 = sphi 0, %s115
    %s130 = sphi 0, %s116
    %s136 = sphi 0, %s138
    %s139 = sphi 0, %s136
    %s140 = sphi 0, %s139
    %s156 = sphi 0, %s140
  $region4: #{unet_forward.11} parent=0 // loop_header_branch
    %14 = sbr.rel (%p12) target = $region8
  $region5: #{unet_forward.11} parent=0 // loop_body
    %s16 = ssub.s32 %s11, 1
    %s17 = ssub.s32 %s11, 2
    %s18 = sadd.s32 %s11, 1
    %s19 = ssub.s32 %s11, %s18
    %p20 = scmp.eq.s32.totalorder %s19, 0
    %s22 = sadd.s32 %s21, 1
    %s23 = scalar_select %p20, %s21, %s22
    %p26 = pneg %p20
    %p27 = scmp.eq.s32.totalorder %s11, 1
    %p28 = por %p26, %p27
    %p29 = scmp.ne.s32.totalorder %s21, %s24
    %p30 = scmp.eq.s32.totalorder %s11, 0
    %p31 = por %p29, %p30
    %p32 = scmp.ne.s32.totalorder %s21, %s24
    %p33 = scmp.eq.s32.totalorder %s16, 1
    %p34 = por %p32, %p33
    %p35 = scmp.ne.s32.totalorder %s24, %s25
    %p36 = scmp.eq.s32.totalorder %s16, 0
    %p37 = por %p35, %p36
    %p38 = scmp.ne.s32.totalorder %s24, %s25
    %p39 = scmp.eq.s32.totalorder %s17, 1
    %p40 = por %p38, %p39
    %p42 = scmp.ne.s32.totalorder %s25, %s41
    %p43 = scmp.eq.s32.totalorder %s17, 0
    %p44 = por %p42, %p43
    %s45 = ssub.s32 %s11, %s18
    %p46 = scmp.eq.s32.totalorder %s45, 0
    %s48 = sadd.s32 %s47, 1
    %s49 = scalar_select %p46, %s47, %s48
    %p52 = pneg %p46
    %p53 = scmp.eq.s32.totalorder %s11, 1
    %p54 = por %p52, %p53
    %p55 = scmp.ne.s32.totalorder %s47, %s50
    %p56 = scmp.eq.s32.totalorder %s11, 0
    %p57 = por %p55, %p56
    %p58 = scmp.ne.s32.totalorder %s47, %s50
    %p59 = scmp.eq.s32.totalorder %s16, 1
    %p60 = por %p58, %p59
    %p61 = scmp.ne.s32.totalorder %s50, %s51
    %p62 = scmp.eq.s32.totalorder %s16, 0
    %p63 = por %p61, %p62
    %p64 = scmp.ne.s32.totalorder %s50, %s51
    %p65 = scmp.eq.s32.totalorder %s17, 1
    %p66 = por %p64, %p65
    %p68 = scmp.ne.s32.totalorder %s51, %s67
    %p69 = scmp.eq.s32.totalorder %s17, 0
    %p70 = por %p68, %p69
    %s72 = sadd.s32 %s71, 1
    %p75 = scmp.eq.s32.totalorder %s11, 1
    %p76 = scmp.ne.s32.totalorder %s71, %s73
    %p77 = scmp.eq.s32.totalorder %s11, 0
    %p78 = por %p76, %p77
    %p79 = scmp.ne.s32.totalorder %s71, %s73
    %p80 = scmp.eq.s32.totalorder %s16, 1
    %p81 = por %p79, %p80
    %p82 = scmp.ne.s32.totalorder %s73, %s74
    %p83 = scmp.eq.s32.totalorder %s16, 0
    %p84 = por %p82, %p83
    %p85 = scmp.ne.s32.totalorder %s73, %s74
    %p86 = scmp.eq.s32.totalorder %s17, 1
    %p87 = por %p85, %p86
    %p89 = scmp.ne.s32.totalorder %s74, %s88
    %p90 = scmp.eq.s32.totalorder %s17, 0
    %p91 = por %p89, %p90
    %s93 = sadd.s32 %s92, 1
    %p96 = scmp.eq.s32.totalorder %s11, 1
    %p97 = scmp.ne.s32.totalorder %s92, %s94
    %p98 = scmp.eq.s32.totalorder %s11, 0
    %p99 = por %p97, %p98
    %p100 = scmp.ne.s32.totalorder %s92, %s94
    %p101 = scmp.eq.s32.totalorder %s16, 1
    %p102 = por %p100, %p101
    %p103 = scmp.ne.s32.totalorder %s94, %s95
    %p104 = scmp.eq.s32.totalorder %s16, 0
    %p105 = por %p103, %p104
    %p106 = scmp.ne.s32.totalorder %s94, %s95
    %p107 = scmp.eq.s32.totalorder %s17, 1
    %p108 = por %p106, %p107
    %p110 = scmp.ne.s32.totalorder %s95, %s109
    %p111 = scmp.eq.s32.totalorder %s17, 0
    %p112 = por %p110, %p111
    %s114 = sadd.s32 %s113, 1
    %p117 = scmp.eq.s32.totalorder %s11, 1
    %p118 = scmp.ne.s32.totalorder %s113, %s115
    %p119 = scmp.eq.s32.totalorder %s11, 0
    %p120 = por %p118, %p119
    %p121 = scmp.ne.s32.totalorder %s113, %s115
    %p122 = scmp.eq.s32.totalorder %s16, 1
    %p123 = por %p121, %p122
    %p124 = scmp.ne.s32.totalorder %s115, %s116
    %p125 = scmp.eq.s32.totalorder %s16, 0
    %p126 = por %p124, %p125
    %p127 = scmp.ne.s32.totalorder %s115, %s116
    %p128 = scmp.eq.s32.totalorder %s17, 1
    %p129 = por %p127, %p128
    %p131 = scmp.ne.s32.totalorder %s116, %s130
    %p132 = scmp.eq.s32.totalorder %s17, 0
    %p133 = por %p131, %p132
    %s134 = ssub.s32 %s11, %s18
    %p135 = scmp.eq.s32.totalorder %s134, 0
    %s137 = sadd.s32 %s136, 1
    %s138 = scalar_select %p135, %s136, %s137
    %p141 = pneg %p135
    %p142 = scmp.eq.s32.totalorder %s11, 1
    %p143 = por %p141, %p142
    %p144 = scmp.ne.s32.totalorder %s136, %s139
    %p145 = scmp.eq.s32.totalorder %s11, 0
    %p146 = por %p144, %p145
    %p147 = scmp.ne.s32.totalorder %s136, %s139
    %p148 = scmp.eq.s32.totalorder %s16, 1
    %p149 = por %p147, %p148
    %p150 = scmp.ne.s32.totalorder %s139, %s140
    %p151 = scmp.eq.s32.totalorder %s16, 0
    %p152 = por %p150, %p151
    %p153 = scmp.ne.s32.totalorder %s139, %s140
    %p154 = scmp.eq.s32.totalorder %s17, 1
    %p155 = por %p153, %p154
    %p157 = scmp.ne.s32.totalorder %s140, %s156
    %p158 = scmp.eq.s32.totalorder %s17, 0
    %p159 = por %p157, %p158
    %p160 = scmp.le.s32.totalorder 1, %s11
    %p161 = scmp.lt.s32.totalorder %s11, 3
    %p162 = pnand %p160, %p161
    %p163 = pneg %p162
    // Predicated region
    $region9: #{unet_forward.11} parent=5 // pred_check
      _
    $region10: #{unet_forward.11} parent=5 // pred_check_branch
      %165 = sbr.rel (%p162) target = $region12
    $region11: #{unet_forward.11} parent=5 // pred_region
      %s166 = ssub.s32 %s11, 1
      // Predicated region
      $region13: #{unet_forward.11} parent=11 // pred_check
        %p167 = pneg %p84
      $region14: #{unet_forward.11} parent=11 // pred_check_branch
        %169 = sbr.rel (%p167) target = $region16
      $region15: #{unet_forward.11} parent=11 // pred_region
        _
      $region16: #{unet_forward.11} parent=11 // pred_fallthru
        _
      // Predicated region
      $region17: #{unet_forward.11} parent=11 // pred_check
        %p170 = pneg %p105
      $region18: #{unet_forward.11} parent=11 // pred_check_branch
        %172 = sbr.rel (%p170) target = $region20
      $region19: #{unet_forward.11} parent=11 // pred_region
        _
      $region20: #{unet_forward.11} parent=11 // pred_fallthru
        _
      // Predicated region
      $region21: #{unet_forward.11} parent=11 // pred_check
        %p173 = pneg %p126
      $region22: #{unet_forward.11} parent=11 // pred_check_branch
        %175 = sbr.rel (%p173) target = $region24
      $region23: #{unet_forward.11} parent=11 // pred_region
        _
      $region24: #{unet_forward.11} parent=11 // pred_fallthru
        _
    $region12: #{unet_forward.11} parent=5 // pred_fallthru
      _
    %p176 = scmp.lt.s32.totalorder %s11, 2
    // Predicated region
    $region25: #{unet_forward.11} parent=5 // pred_check
      %p177 = pneg %p176
    $region26: #{unet_forward.11} parent=5 // pred_check_branch
      %179 = sbr.rel (%p177) target = $region28
    $region27: #{unet_forward.11} parent=5 // pred_region
      // Predicated region
      $region29: #{unet_forward.11} parent=27 // pred_check
        %p180 = pneg %p31
      $region30: #{unet_forward.11} parent=27 // pred_check_branch
        %182 = sbr.rel (%p180) target = $region32
      $region31: #{unet_forward.11} parent=27 // pred_region
        %p183 = scmp.lt.s32.totalorder %s11, 1
        %s184 = scalar_select %p183, %s11, 1
        %s185 = smul.addr %s184, 2
        %s186 = smul.addr %s185, 4
        %s187 = scalar_lea.vmem %s0, %s186
      $region32: #{unet_forward.11} parent=27 // pred_fallthru
        _
      // Predicated region
      $region33: #{unet_forward.11} parent=27 // pred_check
        %p188 = pneg %p57
      $region34: #{unet_forward.11} parent=27 // pred_check_branch
        %190 = sbr.rel (%p188) target = $region36
      $region35: #{unet_forward.11} parent=27 // pred_region
        %p191 = scmp.lt.s32.totalorder %s11, 1
        %s192 = scalar_select %p191, %s11, 1
        %s193 = smul.addr %s192, 2
        %s194 = smul.addr %s193, 4
        %s195 = scalar_lea.vmem %s1, %s194
      $region36: #{unet_forward.11} parent=27 // pred_fallthru
        _
    $region28: #{unet_forward.11} parent=5 // pred_fallthru
      _
    %p196 = scmp.le.s32.totalorder 1, %s11
    %p197 = scmp.lt.s32.totalorder %s11, 3
    %p198 = pnand %p196, %p197
    %p199 = pneg %p198
    // Predicated region
    $region37: #{unet_forward.11} parent=5 // pred_check
      _
    $region38: #{unet_forward.11} parent=5 // pred_check_branch
      %201 = sbr.rel (%p198) target = $region40
    $region39: #{unet_forward.11} parent=5 // pred_region
      %s202 = ssub.s32 %s11, 1
      %p203 = scmp.lt.s32.totalorder %s16, 1
      %s204 = scalar_select %p203, %s16, 1
      %s205 = smul.addr %s204, 2
      %s206 = smul.addr %s205, 4
      %s207 = scalar_lea.vmem %s0, %s206
      %p208 = pneg %p37
      %p209 = pneg %p34
      %p210 = scmp.lt.s32.totalorder %s16, 1
      %s211 = scalar_select %p210, %s16, 1
      %s212 = smul.addr %s211, 2
      %s213 = smul.addr %s212, 4
      %s214 = scalar_lea.vmem %s1, %s213
      %p215 = pneg %p63
      %p216 = pneg %p60
      %p217 = pneg %p84
      %p218 = pneg %p81
      %p219 = pneg %p105
      %p220 = pneg %p102
      %p221 = pneg %p126
      %p222 = pneg %p123
      %p223 = pneg %p152
      %p224 = pneg %p149
      %p225 = scmp.lt.s32.totalorder %s16, 1
      %s226 = scalar_select %p225, %s16, 1
      %s227 = smul.addr %s226, 2
      %s228 = smul.addr %s227, 4
      %s229 = scalar_lea.vmem %s5, %s228
      %p230 = scmp.lt.s32.totalorder %s16, 1
      %s231 = scalar_select %p230, %s16, 1
      %s232 = smul.addr %s231, 2
      %s233 = smul.addr %s232, 4
      %s234 = scalar_lea.vmem %s0, %s233
      %p235 = scmp.lt.s32.totalorder %s16, 1
      %s236 = scalar_select %p235, %s16, 1
      %s237 = smul.addr %s236, 2
      %s238 = smul.addr %s237, 4
      %s239 = scalar_lea.vmem %s1, %s238
      %p240 = scmp.lt.s32.totalorder %s16, 1
      %s241 = scalar_select %p240, %s16, 1
      %s242 = smul.addr %s241, 2
      %s243 = smul.addr %s242, 4
      %s244 = scalar_lea.vmem %s5, %s243
      %v246 = vld [vmem:[%s234] sm:$0xf]
      %v247 = vld [vmem:[%s234 + $0x4] sm:$0xf]
      %v250 = vunpack.c.l.b16 %v246
      %v251 = vunpack.c.l.b16 %v247
      %v252 = vpack.c.b16 %v251, %v250
      %vm254 = vcmask 637952
      %255 = vst.msk [vmem:[#allocation2] sm:$0xff] %vm254, %v252
      %256 = vrot.lane.b32.xlu0 %v252, 127
      %v257 = vpop.permute.xlu0 %256
      %259 = vst.msk [vmem:[#allocation2 + $0x8] sm:$0xff] %vm254, %v257
      %260 = vrot.lane.b32.xlu0 %v252, 126
      %v261 = vpop.permute.xlu0 %260
      %263 = vst.msk [vmem:[#allocation2 + $0x10] sm:$0xff] %vm254, %v261
      %264 = vrot.lane.b32.xlu0 %v252, 118
      %v265 = vpop.permute.xlu0 %264
      %267 = vst.msk [vmem:[#allocation2 + $0x18] sm:$0xff] %vm254, %v265
      %268 = vrot.lane.b32.xlu0 %v252, 117
      %v269 = vpop.permute.xlu0 %268
      %271 = vst.msk [vmem:[#allocation2 + $0x20] sm:$0xff] %vm254, %v269
      %272 = vrot.lane.b32.xlu0 %v252, 116
      %v273 = vpop.permute.xlu0 %272
      %275 = vst.msk [vmem:[#allocation2 + $0x28] sm:$0xff] %vm254, %v273
      %276 = vrot.lane.b32.xlu0 %v252, 108
      %v277 = vpop.permute.xlu0 %276
      %279 = vst.msk [vmem:[#allocation2 + $0x30] sm:$0xff] %vm254, %v277
      %280 = vrot.lane.b32.xlu0 %v252, 107
      %v281 = vpop.permute.xlu0 %280
      %283 = vst.msk [vmem:[#allocation2 + $0x38] sm:$0xff] %vm254, %v281
      %284 = vrot.lane.b32.xlu0 %v252, 106
      %v285 = vpop.permute.xlu0 %284
      %287 = vst.msk [vmem:[#allocation2 + $0x40] sm:$0xff] %vm254, %v285
      %v288 = vld [vmem:[%s239] sm:$0xf]
      %v289 = vld [vmem:[%s239 + $0x4] sm:$0xf]
      %v292 = vunpack.c.l.b16 %v288
      %v293 = vunpack.c.l.b16 %v289
      %v294 = vpack.c.b16 %v293, %v292
      %296 = vst.msk [vmem:[#allocation2 + $0x48] sm:$0xff] %vm254, %v294
      %297 = vrot.lane.b32.xlu0 %v294, 127
      %v298 = vpop.permute.xlu0 %297
      %300 = vst.msk [vmem:[#allocation2 + $0x50] sm:$0xff] %vm254, %v298
      %301 = vrot.lane.b32.xlu0 %v294, 126
      %v302 = vpop.permute.xlu0 %301
      %304 = vst.msk [vmem:[#allocation2 + $0x58] sm:$0xff] %vm254, %v302
      %305 = vrot.lane.b32.xlu0 %v294, 118
      %v306 = vpop.permute.xlu0 %305
      %308 = vst.msk [vmem:[#allocation2 + $0x60] sm:$0xff] %vm254, %v306
      %309 = vrot.lane.b32.xlu0 %v294, 117
      %v310 = vpop.permute.xlu0 %309
      %312 = vst.msk [vmem:[#allocation2 + $0x68] sm:$0xff] %vm254, %v310
      %313 = vrot.lane.b32.xlu0 %v294, 116
      %v314 = vpop.permute.xlu0 %313
      %316 = vst.msk [vmem:[#allocation2 + $0x70] sm:$0xff] %vm254, %v314
      %317 = vrot.lane.b32.xlu0 %v294, 108
      %v318 = vpop.permute.xlu0 %317
      %320 = vst.msk [vmem:[#allocation2 + $0x78] sm:$0xff] %vm254, %v318
      %321 = vrot.lane.b32.xlu0 %v294, 107
      %v322 = vpop.permute.xlu0 %321
      %324 = vst.msk [vmem:[#allocation2 + $0x80] sm:$0xff] %vm254, %v322
      %325 = vrot.lane.b32.xlu0 %v294, 106
      %v326 = vpop.permute.xlu0 %325
      %328 = vst.msk [vmem:[#allocation2 + $0x88] sm:$0xff] %vm254, %v326
      %v329 = vld [vmem:[%s2] sm:$0xff]
      %v330 = vld [vmem:[%s2 + $0x8] sm:$0xf]
      %v331 = vld [vmem:[%s2 + $0xc] sm:$0xff]
      %v332 = vld [vmem:[%s2 + $0x14] sm:$0xf]
      %v333 = vld [vmem:[#allocation2] sm:$0xff]
      %v334 = vld [vmem:[#allocation2 + $0x8] sm:$0xff]
      %v335 = vld [vmem:[#allocation2 + $0x10] sm:$0xff]
      %v336 = vld [vmem:[#allocation2 + $0x18] sm:$0xff]
      %v337 = vld [vmem:[#allocation2 + $0x20] sm:$0xff]
      %v338 = vld [vmem:[#allocation2 + $0x28] sm:$0xff]
      %v339 = vld [vmem:[#allocation2 + $0x30] sm:$0xff]
      %v340 = vld [vmem:[#allocation2 + $0x38] sm:$0xff]
      %v341 = vld [vmem:[#allocation2 + $0x40] sm:$0xff]
      %v342 = vld [vmem:[#allocation2 + $0x48] sm:$0xff]
      %v343 = vld [vmem:[#allocation2 + $0x50] sm:$0xff]
      %v344 = vld [vmem:[#allocation2 + $0x58] sm:$0xff]
      %v345 = vld [vmem:[#allocation2 + $0x60] sm:$0xff]
      %v346 = vld [vmem:[#allocation2 + $0x68] sm:$0xff]
      %v347 = vld [vmem:[#allocation2 + $0x70] sm:$0xff]
      %v348 = vld [vmem:[#allocation2 + $0x78] sm:$0xff]
      %v349 = vld [vmem:[#allocation2 + $0x80] sm:$0xff]
      %v350 = vld [vmem:[#allocation2 + $0x88] sm:$0xff]
      %v351 = vld [vmem:[%s3] sm:$0xff]
      %v352 = vld [vmem:[%s3 + $0x8] sm:$0xff]
      %354 = vset.pattern.permute.xlu0 0
      %355 = vperm.xlu0 %354, %v351
      %v356 = vpop.permute.xlu0 %355
      %359 = vset.pattern.permute.xlu0 0
      %360 = vperm.xlu0 %359, %v352
      %v361 = vpop.permute.xlu0 %360
      %v367 = vunpack.c.l.b16 %v329
      %v368 = vunpack.c.h.b16 %v329
      %v369 = vunpack.c.l.b16 %v330
      %v370 = vunpack.c.l.b16 %v331
      %v371 = vunpack.c.h.b16 %v331
      %v372 = vunpack.c.l.b16 %v332
      %v373 = vpack.c.b16 %v370, %v367
      %v374 = vpack.c.b16 %v371, %v368
      %v375 = vpack.c.b16 %v372, %v369
      %vm378 = vcmask 261120
      %v380 = vsel %vm378, %v375, 0
      %382 = vmatprep.subr.bf16.mxu0 0
      %383 = vmatpush1.bf16.msra.mxu0 %v333
      %384 = vmatprep.subr.bf16.mxu0 0
      %385 = vmatpush1.bf16.msra.mxu0 %v334
      %386 = vmatprep.subr.bf16.mxu0 0
      %387 = vmatpush1.bf16.msra.mxu0 %v335
      %388 = vmatprep.subr.bf16.mxu0 0
      %389 = vmatpush1.bf16.msra.mxu0 %v336
      %390 = vmatprep.subr.bf16.mxu0 0
      %391 = vmatpush1.bf16.msra.mxu0 %v337
      %392 = vmatprep.subr.bf16.mxu0 0
      %393 = vmatpush1.bf16.msra.mxu0 %v338
      %394 = vmatprep.subr.bf16.mxu0 0
      %395 = vmatpush1.bf16.msra.mxu0 %v339
      %396 = vmatprep.subr.bf16.mxu0 0
      %397 = vmatpush1.bf16.msra.mxu0 %v340
      %398 = vmatprep.subr.bf16.mxu0 0
      %399 = vmatpush1.bf16.msra.mxu0 %v341
      %400 = vmatprep.subr.bf16.mxu0 0
      %401 = vmatpush1.bf16.msra.mxu0 %v342
      %402 = vmatprep.subr.bf16.mxu0 0
      %403 = vmatpush1.bf16.msra.mxu0 %v343
      %404 = vmatprep.subr.bf16.mxu0 0
      %405 = vmatpush1.bf16.msra.mxu0 %v344
      %406 = vmatprep.subr.bf16.mxu0 0
      %407 = vmatpush1.bf16.msra.mxu0 %v345
      %408 = vmatprep.subr.bf16.mxu0 0
      %409 = vmatpush1.bf16.msra.mxu0 %v346
      %410 = vmatprep.subr.bf16.mxu0 0
      %411 = vmatpush1.bf16.msra.mxu0 %v347
      %412 = vmatprep.subr.bf16.mxu0 0
      %413 = vmatpush1.bf16.msra.mxu0 %v348
      %414 = vmatprep.mubr.bf16.mxu0 %v374
      %415 = vmatmul.mubr.bf16.gmra.mrb[0].mxu0 %v373
      %v416 = vpop.f32.mrb[0].mxu0
      %v417 = vadd.f32 %v356, %v416
      %v418 = vpop.f32.mrb[0].mxu0
      %v419 = vpop.f32.mrb[0].mxu0
      %v420 = vadd.f32 %v361, %v419
      %v421 = vpop.f32.mrb[0].mxu0
      %422 = vdwg.mxu0
      %423 = vmatprep.subr.bf16.mxu0 0
      %424 = vmatpush1.bf16.msra.mxu0 %v349
      %425 = vmatprep.subr.bf16.mxu0 0
      %426 = vmatpush1.bf16.msra.mxu0 %v350
      %427 = vmatprep.subr.bf16.mxu0 0
      %428 = vmatpush1.bf16.msra.mxu0 0
      %429 = vmatprep.subr.bf16.mxu0 0
      %430 = vmatpush1.bf16.msra.mxu0 0
      %431 = vmatprep.subr.bf16.mxu0 0
      %432 = vmatpush1.bf16.msra.mxu0 0
      %433 = vmatprep.subr.bf16.mxu0 0
      %434 = vmatpush1.bf16.msra.mxu0 0
      %435 = vmatprep.subr.bf16.mxu0 0
      %436 = vmatpush1.bf16.msra.mxu0 0
      %437 = vmatprep.subr.bf16.mxu0 0
      %438 = vmatpush1.bf16.msra.mxu0 0
      %439 = vmatprep.subr.bf16.mxu0 0
      %440 = vmatpush1.bf16.msra.mxu0 0
      %441 = vmatprep.subr.bf16.mxu0 0
      %442 = vmatpush1.bf16.msra.mxu0 0
      %443 = vmatprep.subr.bf16.mxu0 0
      %444 = vmatpush1.bf16.msra.mxu0 0
      %445 = vmatprep.subr.bf16.mxu0 0
      %446 = vmatpush1.bf16.msra.mxu0 0
      %447 = vmatprep.subr.bf16.mxu0 0
      %448 = vmatpush1.bf16.msra.mxu0 0
      %449 = vmatprep.subr.bf16.mxu0 0
      %450 = vmatpush1.bf16.msra.mxu0 0
      %451 = vmatprep.subr.bf16.mxu0 0
      %452 = vmatpush1.bf16.msra.mxu0 0
      %453 = vmatprep.subr.bf16.mxu0 0
      %454 = vmatpush1.bf16.msra.mxu0 0
      %455 = vmatprep.mubr.bf16.mxu0 0
      %456 = vmatmul.mubr.bf16.gmra.mrb[0].mxu0 %v380
      %v457 = vpop.f32.mrb[0].mxu0
      %v458 = vadd.f32 %v417, %v457
      %v459 = vpop.f32.mrb[0].mxu0
      %v460 = vpop.f32.mrb[0].mxu0
      %v461 = vadd.f32 %v420, %v460
      %v462 = vpop.f32.mrb[0].mxu0
      %463 = vdwg.mxu0
      %v464 = vpack.c.bf16 %v461, %v458
      %v465 = vld [vmem:[%s4] sm:$0xf]
      %v466 = vld [vmem:[%s4 + $0x4] sm:$0xf]
      %v467 = vld [vmem:[%s4 + $0x8] sm:$0xf]
      %v468 = vld [vmem:[%s4 + $0xc] sm:$0xf]
      %v469 = vld [vmem:[%s4 + $0x10] sm:$0xf]
      %v470 = vld [vmem:[%s4 + $0x14] sm:$0xf]
      %v471 = vld [vmem:[%s4 + $0x18] sm:$0xf]
      %v472 = vld [vmem:[%s4 + $0x1c] sm:$0xf]
      %v473 = vld [vmem:[%s4 + $0x20] sm:$0xf]
      %v474 = vld [vmem:[%s4 + $0x24] sm:$0x7]
      %v485 = vunpack.c.l.b16 %v465
      %v486 = vunpack.c.l.b16 %v466
      %v487 = vunpack.c.l.b16 %v467
      %v488 = vunpack.c.l.b16 %v468
      %v489 = vunpack.c.l.b16 %v469
      %v490 = vunpack.c.l.b16 %v470
      %v491 = vunpack.c.l.b16 %v471
      %v492 = vunpack.c.l.b16 %v472
      %v493 = vunpack.c.l.b16 %v473
      %v494 = vunpack.c.l.b16 %v474
      %v495 = vpack.c.b16 %v486, %v485
      %v496 = vpack.c.b16 %v488, %v487
      %v497 = vpack.c.b16 %v490, %v489
      %v498 = vpack.c.b16 %v492, %v491
      %v499 = vpack.c.b16 %v494, %v493
      %v505 = vsel %vm254, %v464, 0
      %vm507 = vcmask 1046528
      %v509 = vsel %vm507, %v499, 0
      %511 = vmatprep.subr.bf16.mxu0 0
      %512 = vmatpush1.bf16.msra.mxu0 %v495
      %513 = vmatprep.subr.bf16.mxu0 0
      %514 = vmatpush1.bf16.msra.mxu0 %v496
      %515 = vmatprep.subr.bf16.mxu0 0
      %516 = vmatpush1.bf16.msra.mxu0 %v497
      %517 = vmatprep.subr.bf16.mxu0 0
      %518 = vmatpush1.bf16.msra.mxu0 %v498
      %519 = vmatprep.subr.bf16.mxu0 0
      %520 = vmatpush1.bf16.msra.mxu0 %v509
      %521 = vmatprep.subr.bf16.mxu0 0
      %522 = vmatpush1.bf16.msra.mxu0 0
      %523 = vmatprep.subr.bf16.mxu0 0
      %524 = vmatpush1.bf16.msra.mxu0 0
      %525 = vmatprep.subr.bf16.mxu0 0
      %526 = vmatpush1.bf16.msra.mxu0 0
      %527 = vmatprep.subr.bf16.mxu0 0
      %528 = vmatpush1.bf16.msra.mxu0 0
      %529 = vmatprep.subr.bf16.mxu0 0
      %530 = vmatpush1.bf16.msra.mxu0 0
      %531 = vmatprep.subr.bf16.mxu0 0
      %532 = vmatpush1.bf16.msra.mxu0 0
      %533 = vmatprep.subr.bf16.mxu0 0
      %534 = vmatpush1.bf16.msra.mxu0 0
      %535 = vmatprep.subr.bf16.mxu0 0
      %536 = vmatpush1.bf16.msra.mxu0 0
      %537 = vmatprep.subr.bf16.mxu0 0
      %538 = vmatpush1.bf16.msra.mxu0 0
      %539 = vmatprep.subr.bf16.mxu0 0
      %540 = vmatpush1.bf16.msra.mxu0 0
      %541 = vmatprep.subr.bf16.mxu0 0
      %542 = vmatpush1.bf16.msra.mxu0 0
      %543 = vmatprep.mubr.bf16.mxu0 0
      %544 = vmatmul.mubr.bf16.gmra.mrb[0].mxu0 %v505
      %v545 = vpop.f32.mrb[0].mxu0
      %v546 = vadd.f32 0.0, %v545
      %v547 = vpop.f32.mrb[0].mxu0
      %v548 = vpop.f32.mrb[0].mxu0
      %v549 = vadd.f32 0.0, %v548
      %v550 = vpop.f32.mrb[0].mxu0
      %551 = vdwg.mxu0
      %v552 = vpack.c.bf16 %v549, %v546
      %v554 = vunpack.c.l.b16 %v552
      %v555 = vunpack.c.h.b16 %v552
      %v556 = vpack.c.b16 %v554, %v554
      %v557 = vpack.c.b16 %v555, %v555
      %vm560 = vcmask 814080
      %561 = vst.msk [vmem:[%s244] sm:$0xf] %vm560, %v556
      %562 = vst.msk [vmem:[%s244 + $0x4] sm:$0xf] %vm560, %v557
      %p563 = scmp.lt.s32.totalorder %s16, 1
      %s564 = scalar_select %p563, %s16, 1
      %s565 = smul.addr %s564, 2
      %s566 = smul.addr %s565, 4
      %s567 = scalar_lea.vmem %s5, %s566
      // Predicated region
      $region41: #{unet_forward.11} parent=39 // pred_check
        %p568 = pneg %p149
      $region42: #{unet_forward.11} parent=39 // pred_check_branch
        %570 = sbr.rel (%p568) target = $region44
      $region43: #{unet_forward.11} parent=39 // pred_region
        _
      $region44: #{unet_forward.11} parent=39 // pred_fallthru
        _
    $region40: #{unet_forward.11} parent=5 // pred_fallthru
      _
    %p571 = scmp.le.s32.totalorder 2, %s11
    // Predicated region
    $region45: #{unet_forward.11} parent=5 // pred_check
      %p572 = pneg %p571
    $region46: #{unet_forward.11} parent=5 // pred_check_branch
      %574 = sbr.rel (%p572) target = $region48
    $region47: #{unet_forward.11} parent=5 // pred_region
      %s575 = ssub.s32 %s11, 2
      // Predicated region
      $region49: #{unet_forward.11} parent=47 // pred_check
        %p576 = pneg %p155
      $region50: #{unet_forward.11} parent=47 // pred_check_branch
        %578 = sbr.rel (%p576) target = $region52
      $region51: #{unet_forward.11} parent=47 // pred_region
        %p579 = scmp.lt.s32.totalorder %s17, 1
        %s580 = scalar_select %p579, %s17, 1
        %s581 = smul.addr %s580, 2
        %s582 = smul.addr %s581, 4
        %s583 = scalar_lea.vmem %s5, %s582
      $region52: #{unet_forward.11} parent=47 // pred_fallthru
        _
    $region48: #{unet_forward.11} parent=5 // pred_fallthru
      _
  $region6: #{unet_forward.11} parent=0 // loop_footer
    %s15 = sadd.s32 1, %s11
  $region7: #{unet_forward.11} parent=0 // loop_footer_branch
    %10 = sbr.rel target = $region3
  $region8: #{unet_forward.11} parent=0 // loop_exit
    _

// kernel: unet_forward.12
$region0: #{unet_forward.12}
  #allocation0 [shape = 'u32[]', space=smem, size = 0x4, offset = 0x4, fixed_abs, tag = 'smem constant byte address 0x4 - core index']
  #allocation1 [shape = 'u32[144,128]{1,0:T(1,128)}', space=vmem, size = 0x12000, scoped, tag = 'internal scratch']
  %s0 = inlined_call_operand.vmem [shape: bf16[2,16,100], index: 0, kind: input, shape index: {}]
  %s1 = inlined_call_operand.vmem [shape: bf16[4,16,16], index: 1, kind: input, shape index: {}]
  %s2 = inlined_call_operand.vmem [shape: bf16[4,100,324], index: 2, kind: input, shape index: {}]
  %s3 = inlined_call_operand.vmem [shape: f32[16,1], index: 3, kind: input, shape index: {}]
  %s4 = inlined_call_operand.vmem [shape: f32[1,324], index: 4, kind: input, shape index: {}]
  %s5 = inlined_call_operand.vmem [shape: bf16[2,16,324], index: 5, kind: output, shape index: {}]
  %s6 = sld [smem:[#allocation0]]
  $region53: #{unet_forward.12} parent=0
    _
  %s8 = ssub.s32 1, %s6
  %s9 = scalar_select 0, %s8, %s6
  loop: start=0, step=1, limit=4
  $region2: #{unet_forward.12} parent=0 // loop_pre_header
    _
  $region3: #{unet_forward.12} parent=0 // loop_header
    %s11 = sphi 0, %s15
    %p12 = scmp.ge.s32.totalorder %s11, 4
    %s21 = sphi 0, %s23
    %s24 = sphi 0, %s21
    %s25 = sphi 0, %s24
    %s41 = sphi 0, %s25
    %s45 = sphi 0, %s45
    %s47 = sphi 0, %s45
    %s48 = sphi 0, %s47
    %s62 = sphi 0, %s48
    %s66 = sphi 0, %s66
    %s68 = sphi 0, %s66
    %s69 = sphi 0, %s68
    %s83 = sphi 0, %s69
    %s87 = sphi 0, %s87
    %s89 = sphi 0, %s87
    %s90 = sphi 0, %s89
    %s104 = sphi 0, %s90
    %s108 = sphi 0, %s108
    %s110 = sphi 0, %s108
    %s111 = sphi 0, %s110
    %s125 = sphi 0, %s111
    %s131 = sphi 0, %s133
    %s134 = sphi 0, %s131
    %s135 = sphi 0, %s134
    %s151 = sphi 0, %s135
  $region4: #{unet_forward.12} parent=0 // loop_header_branch
    %14 = sbr.rel (%p12) target = $region8
  $region5: #{unet_forward.12} parent=0 // loop_body
    %s16 = ssub.s32 %s11, 1
    %s17 = ssub.s32 %s11, 2
    %s18 = sadd.s32 %s11, 1
    %s19 = ssub.s32 %s11, %s18
    %p20 = scmp.eq.s32.totalorder %s19, 0
    %s22 = sadd.s32 %s21, 1
    %s23 = scalar_select %p20, %s21, %s22
    %p26 = pneg %p20
    %p27 = scmp.eq.s32.totalorder %s11, 1
    %p28 = por %p26, %p27
    %p29 = scmp.ne.s32.totalorder %s21, %s24
    %p30 = scmp.eq.s32.totalorder %s11, 0
    %p31 = por %p29, %p30
    %p32 = scmp.ne.s32.totalorder %s21, %s24
    %p33 = scmp.eq.s32.totalorder %s16, 1
    %p34 = por %p32, %p33
    %p35 = scmp.ne.s32.totalorder %s24, %s25
    %p36 = scmp.eq.s32.totalorder %s16, 0
    %p37 = por %p35, %p36
    %p38 = scmp.ne.s32.totalorder %s24, %s25
    %p39 = scmp.eq.s32.totalorder %s17, 1
    %p40 = por %p38, %p39
    %p42 = scmp.ne.s32.totalorder %s25, %s41
    %p43 = scmp.eq.s32.totalorder %s17, 0
    %p44 = por %p42, %p43
    %s46 = sadd.s32 %s45, 1
    %p49 = scmp.eq.s32.totalorder %s11, 1
    %p50 = scmp.ne.s32.totalorder %s45, %s47
    %p51 = scmp.eq.s32.totalorder %s11, 0
    %p52 = por %p50, %p51
    %p53 = scmp.ne.s32.totalorder %s45, %s47
    %p54 = scmp.eq.s32.totalorder %s16, 1
    %p55 = por %p53, %p54
    %p56 = scmp.ne.s32.totalorder %s47, %s48
    %p57 = scmp.eq.s32.totalorder %s16, 0
    %p58 = por %p56, %p57
    %p59 = scmp.ne.s32.totalorder %s47, %s48
    %p60 = scmp.eq.s32.totalorder %s17, 1
    %p61 = por %p59, %p60
    %p63 = scmp.ne.s32.totalorder %s48, %s62
    %p64 = scmp.eq.s32.totalorder %s17, 0
    %p65 = por %p63, %p64
    %s67 = sadd.s32 %s66, 1
    %p70 = scmp.eq.s32.totalorder %s11, 1
    %p71 = scmp.ne.s32.totalorder %s66, %s68
    %p72 = scmp.eq.s32.totalorder %s11, 0
    %p73 = por %p71, %p72
    %p74 = scmp.ne.s32.totalorder %s66, %s68
    %p75 = scmp.eq.s32.totalorder %s16, 1
    %p76 = por %p74, %p75
    %p77 = scmp.ne.s32.totalorder %s68, %s69
    %p78 = scmp.eq.s32.totalorder %s16, 0
    %p79 = por %p77, %p78
    %p80 = scmp.ne.s32.totalorder %s68, %s69
    %p81 = scmp.eq.s32.totalorder %s17, 1
    %p82 = por %p80, %p81
    %p84 = scmp.ne.s32.totalorder %s69, %s83
    %p85 = scmp.eq.s32.totalorder %s17, 0
    %p86 = por %p84, %p85
    %s88 = sadd.s32 %s87, 1
    %p91 = scmp.eq.s32.totalorder %s11, 1
    %p92 = scmp.ne.s32.totalorder %s87, %s89
    %p93 = scmp.eq.s32.totalorder %s11, 0
    %p94 = por %p92, %p93
    %p95 = scmp.ne.s32.totalorder %s87, %s89
    %p96 = scmp.eq.s32.totalorder %s16, 1
    %p97 = por %p95, %p96
    %p98 = scmp.ne.s32.totalorder %s89, %s90
    %p99 = scmp.eq.s32.totalorder %s16, 0
    %p100 = por %p98, %p99
    %p101 = scmp.ne.s32.totalorder %s89, %s90
    %p102 = scmp.eq.s32.totalorder %s17, 1
    %p103 = por %p101, %p102
    %p105 = scmp.ne.s32.totalorder %s90, %s104
    %p106 = scmp.eq.s32.totalorder %s17, 0
    %p107 = por %p105, %p106
    %s109 = sadd.s32 %s108, 1
    %p112 = scmp.eq.s32.totalorder %s11, 1
    %p113 = scmp.ne.s32.totalorder %s108, %s110
    %p114 = scmp.eq.s32.totalorder %s11, 0
    %p115 = por %p113, %p114
    %p116 = scmp.ne.s32.totalorder %s108, %s110
    %p117 = scmp.eq.s32.totalorder %s16, 1
    %p118 = por %p116, %p117
    %p119 = scmp.ne.s32.totalorder %s110, %s111
    %p120 = scmp.eq.s32.totalorder %s16, 0
    %p121 = por %p119, %p120
    %p122 = scmp.ne.s32.totalorder %s110, %s111
    %p123 = scmp.eq.s32.totalorder %s17, 1
    %p124 = por %p122, %p123
    %p126 = scmp.ne.s32.totalorder %s111, %s125
    %p127 = scmp.eq.s32.totalorder %s17, 0
    %p128 = por %p126, %p127
    %s129 = ssub.s32 %s11, %s18
    %p130 = scmp.eq.s32.totalorder %s129, 0
    %s132 = sadd.s32 %s131, 1
    %s133 = scalar_select %p130, %s131, %s132
    %p136 = pneg %p130
    %p137 = scmp.eq.s32.totalorder %s11, 1
    %p138 = por %p136, %p137
    %p139 = scmp.ne.s32.totalorder %s131, %s134
    %p140 = scmp.eq.s32.totalorder %s11, 0
    %p141 = por %p139, %p140
    %p142 = scmp.ne.s32.totalorder %s131, %s134
    %p143 = scmp.eq.s32.totalorder %s16, 1
    %p144 = por %p142, %p143
    %p145 = scmp.ne.s32.totalorder %s134, %s135
    %p146 = scmp.eq.s32.totalorder %s16, 0
    %p147 = por %p145, %p146
    %p148 = scmp.ne.s32.totalorder %s134, %s135
    %p149 = scmp.eq.s32.totalorder %s17, 1
    %p150 = por %p148, %p149
    %p152 = scmp.ne.s32.totalorder %s135, %s151
    %p153 = scmp.eq.s32.totalorder %s17, 0
    %p154 = por %p152, %p153
    %p155 = scmp.le.s32.totalorder 1, %s11
    %p156 = scmp.lt.s32.totalorder %s11, 3
    %p157 = pnand %p155, %p156
    %p158 = pneg %p157
    // Predicated region
    $region9: #{unet_forward.12} parent=5 // pred_check
      _
    $region10: #{unet_forward.12} parent=5 // pred_check_branch
      %160 = sbr.rel (%p157) target = $region12
    $region11: #{unet_forward.12} parent=5 // pred_region
      %s161 = ssub.s32 %s11, 1
      // Predicated region
      $region13: #{unet_forward.12} parent=11 // pred_check
        %p162 = pneg %p58
      $region14: #{unet_forward.12} parent=11 // pred_check_branch
        %164 = sbr.rel (%p162) target = $region16
      $region15: #{unet_forward.12} parent=11 // pred_region
        _
      $region16: #{unet_forward.12} parent=11 // pred_fallthru
        _
      // Predicated region
      $region17: #{unet_forward.12} parent=11 // pred_check
        %p165 = pneg %p79
      $region18: #{unet_forward.12} parent=11 // pred_check_branch
        %167 = sbr.rel (%p165) target = $region20
      $region19: #{unet_forward.12} parent=11 // pred_region
        _
      $region20: #{unet_forward.12} parent=11 // pred_fallthru
        _
      // Predicated region
      $region21: #{unet_forward.12} parent=11 // pred_check
        %p168 = pneg %p100
      $region22: #{unet_forward.12} parent=11 // pred_check_branch
        %170 = sbr.rel (%p168) target = $region24
      $region23: #{unet_forward.12} parent=11 // pred_region
        _
      $region24: #{unet_forward.12} parent=11 // pred_fallthru
        _
      // Predicated region
      $region25: #{unet_forward.12} parent=11 // pred_check
        %p171 = pneg %p121
      $region26: #{unet_forward.12} parent=11 // pred_check_branch
        %173 = sbr.rel (%p171) target = $region28
      $region27: #{unet_forward.12} parent=11 // pred_region
        _
      $region28: #{unet_forward.12} parent=11 // pred_fallthru
        _
    $region12: #{unet_forward.12} parent=5 // pred_fallthru
      _
    %p174 = scmp.lt.s32.totalorder %s11, 2
    // Predicated region
    $region29: #{unet_forward.12} parent=5 // pred_check
      %p175 = pneg %p174
    $region30: #{unet_forward.12} parent=5 // pred_check_branch
      %177 = sbr.rel (%p175) target = $region32
    $region31: #{unet_forward.12} parent=5 // pred_region
      // Predicated region
      $region33: #{unet_forward.12} parent=31 // pred_check
        %p178 = pneg %p31
      $region34: #{unet_forward.12} parent=31 // pred_check_branch
        %180 = sbr.rel (%p178) target = $region36
      $region35: #{unet_forward.12} parent=31 // pred_region
        %p181 = scmp.lt.s32.totalorder %s11, 1
        %s182 = scalar_select %p181, %s11, 1
        %s183 = smul.addr %s182, 2
        %s184 = smul.addr %s183, 4
        %s185 = scalar_lea.vmem %s0, %s184
      $region36: #{unet_forward.12} parent=31 // pred_fallthru
        _
    $region32: #{unet_forward.12} parent=5 // pred_fallthru
      _
    %p186 = scmp.le.s32.totalorder 1, %s11
    %p187 = scmp.lt.s32.totalorder %s11, 3
    %p188 = pnand %p186, %p187
    %p189 = pneg %p188
    // Predicated region
    $region37: #{unet_forward.12} parent=5 // pred_check
      _
    $region38: #{unet_forward.12} parent=5 // pred_check_branch
      %191 = sbr.rel (%p188) target = $region40
    $region39: #{unet_forward.12} parent=5 // pred_region
      %s192 = ssub.s32 %s11, 1
      %p193 = scmp.lt.s32.totalorder %s16, 1
      %s194 = scalar_select %p193, %s16, 1
      %s195 = smul.addr %s194, 2
      %s196 = smul.addr %s195, 4
      %s197 = scalar_lea.vmem %s0, %s196
      %p198 = pneg %p37
      %p199 = pneg %p34
      %p200 = pneg %p58
      %p201 = pneg %p55
      %p202 = pneg %p79
      %p203 = pneg %p76
      %p204 = pneg %p100
      %p205 = pneg %p97
      %p206 = pneg %p121
      %p207 = pneg %p118
      %p208 = pneg %p147
      %p209 = pneg %p144
      %p210 = scmp.lt.s32.totalorder %s16, 1
      %s211 = scalar_select %p210, %s16, 1
      %s212 = smul.addr %s211, 6
      %s213 = smul.addr %s212, 4
      %s214 = scalar_lea.vmem %s5, %s213
      %p215 = scmp.lt.s32.totalorder %s16, 1
      %s216 = scalar_select %p215, %s16, 1
      %s217 = smul.addr %s216, 2
      %s218 = smul.addr %s217, 4
      %s219 = scalar_lea.vmem %s0, %s218
      %p220 = scmp.lt.s32.totalorder %s16, 1
      %s221 = scalar_select %p220, %s16, 1
      %s222 = smul.addr %s221, 6
      %s223 = smul.addr %s222, 4
      %s224 = scalar_lea.vmem %s5, %s223
      %v226 = vld [vmem:[%s219] sm:$0xf]
      %v227 = vld [vmem:[%s219 + $0x4] sm:$0xf]
      %v228 = vld [vmem:[%s1] sm:$0xf]
      %v229 = vld [vmem:[%s1 + $0x4] sm:$0xf]
      %v232 = vunpack.c.l.b16 %v228
      %v233 = vunpack.c.l.b16 %v229
      %v234 = vpack.c.b16 %v233, %v232
      %v237 = vunpack.c.l.b16 %v226
      %v238 = vunpack.c.l.b16 %v227
      %v239 = vpack.c.b16 %v238, %v237
      %vm241 = vcmask 130048
      %v243 = vsel %vm241, %v234, 0
      %245 = vmatprep.subr.bf16.mxu0 0
      %246 = vmatpush1.bf16.msra.mxu0 %v239
      %247 = vmatprep.subr.bf16.mxu0 0
      %248 = vmatpush1.bf16.msra.mxu0 0
      %249 = vmatprep.subr.bf16.mxu0 0
      %250 = vmatpush1.bf16.msra.mxu0 0
      %251 = vmatprep.subr.bf16.mxu0 0
      %252 = vmatpush1.bf16.msra.mxu0 0
      %253 = vmatprep.subr.bf16.mxu0 0
      %254 = vmatpush1.bf16.msra.mxu0 0
      %255 = vmatprep.subr.bf16.mxu0 0
      %256 = vmatpush1.bf16.msra.mxu0 0
      %257 = vmatprep.subr.bf16.mxu0 0
      %258 = vmatpush1.bf16.msra.mxu0 0
      %259 = vmatprep.subr.bf16.mxu0 0
      %260 = vmatpush1.bf16.msra.mxu0 0
      %261 = vmatprep.subr.bf16.mxu0 0
      %262 = vmatpush1.bf16.msra.mxu0 0
      %263 = vmatprep.subr.bf16.mxu0 0
      %264 = vmatpush1.bf16.msra.mxu0 0
      %265 = vmatprep.subr.bf16.mxu0 0
      %266 = vmatpush1.bf16.msra.mxu0 0
      %267 = vmatprep.subr.bf16.mxu0 0
      %268 = vmatpush1.bf16.msra.mxu0 0
      %269 = vmatprep.subr.bf16.mxu0 0
      %270 = vmatpush1.bf16.msra.mxu0 0
      %271 = vmatprep.subr.bf16.mxu0 0
      %272 = vmatpush1.bf16.msra.mxu0 0
      %273 = vmatprep.subr.bf16.mxu0 0
      %274 = vmatpush1.bf16.msra.mxu0 0
      %275 = vmatprep.subr.bf16.mxu0 0
      %276 = vmatpush1.bf16.msra.mxu0 0
      %277 = vmatprep.mubr.bf16.mxu0 0
      %278 = vmatmul.mubr.bf16.gmra.mrb[0].mxu0 %v243
      %v279 = vpop.f32.mrb[0].mxu0
      %v280 = vadd.f32 0.0, %v279
      %v281 = vpop.f32.mrb[0].mxu0
      %v282 = vpop.f32.mrb[0].mxu0
      %v283 = vadd.f32 0.0, %v282
      %v284 = vpop.f32.mrb[0].mxu0
      %285 = vdwg.mxu0
      %v286 = vpack.c.bf16 %v283, %v280
      %v287 = vld [vmem:[%s2] sm:$0xff]
      %v288 = vld [vmem:[%s2 + $0x8] sm:$0xf]
      %v289 = vld [vmem:[%s2 + $0xc] sm:$0xff]
      %v290 = vld [vmem:[%s2 + $0x14] sm:$0xf]
      %v291 = vld [vmem:[%s2 + $0x18] sm:$0xff]
      %v292 = vld [vmem:[%s2 + $0x20] sm:$0xf]
      %v293 = vld [vmem:[%s2 + $0x24] sm:$0xff]
      %v294 = vld [vmem:[%s2 + $0x2c] sm:$0xf]
      %v295 = vld [vmem:[%s2 + $0x30] sm:$0xff]
      %v296 = vld [vmem:[%s2 + $0x38] sm:$0xf]
      %v297 = vld [vmem:[%s2 + $0x3c] sm:$0xff]
      %v298 = vld [vmem:[%s2 + $0x44] sm:$0xf]
      %v299 = vld [vmem:[%s2 + $0x48] sm:$0xff]
      %v300 = vld [vmem:[%s2 + $0x50] sm:$0xf]
      %v301 = vld [vmem:[%s2 + $0x54] sm:$0xff]
      %v302 = vld [vmem:[%s2 + $0x5c] sm:$0xf]
      %v303 = vld [vmem:[%s2 + $0x60] sm:$0xff]
      %v304 = vld [vmem:[%s2 + $0x68] sm:$0xf]
      %v305 = vld [vmem:[%s2 + $0x6c] sm:$0xff]
      %v306 = vld [vmem:[%s2 + $0x74] sm:$0xf]
      %v307 = vld [vmem:[%s2 + $0x78] sm:$0xff]
      %v308 = vld [vmem:[%s2 + $0x80] sm:$0xf]
      %v309 = vld [vmem:[%s2 + $0x84] sm:$0xff]
      %v310 = vld [vmem:[%s2 + $0x8c] sm:$0xf]
      %v311 = vld [vmem:[%s2 + $0x90] sm:$0x33]
      %v312 = vld [vmem:[%s2 + $0x98] sm:$0x3]
      %s313 = scalar_lea.vmem %s1, 8
      %v314 = vld [vmem:[%s313] sm:$0xf]
      %v315 = vld [vmem:[%s313 + $0x4] sm:$0xf]
      %v318 = vunpack.c.l.b16 %v314
      %v319 = vunpack.c.l.b16 %v315
      %v320 = vpack.c.b16 %v319, %v318
      %v322 = vsel %vm241, %v320, 0
      %324 = vmatprep.subr.bf16.mxu0 0
      %325 = vmatpush1.bf16.msra.mxu0 %v239
      %326 = vmatprep.subr.bf16.mxu0 0
      %327 = vmatpush1.bf16.msra.mxu0 0
      %328 = vmatprep.subr.bf16.mxu0 0
      %329 = vmatpush1.bf16.msra.mxu0 0
      %330 = vmatprep.subr.bf16.mxu0 0
      %331 = vmatpush1.bf16.msra.mxu0 0
      %332 = vmatprep.subr.bf16.mxu0 0
      %333 = vmatpush1.bf16.msra.mxu0 0
      %334 = vmatprep.subr.bf16.mxu0 0
      %335 = vmatpush1.bf16.msra.mxu0 0
      %336 = vmatprep.subr.bf16.mxu0 0
      %337 = vmatpush1.bf16.msra.mxu0 0
      %338 = vmatprep.subr.bf16.mxu0 0
      %339 = vmatpush1.bf16.msra.mxu0 0
      %340 = vmatprep.subr.bf16.mxu0 0
      %341 = vmatpush1.bf16.msra.mxu0 0
      %342 = vmatprep.subr.bf16.mxu0 0
      %343 = vmatpush1.bf16.msra.mxu0 0
      %344 = vmatprep.subr.bf16.mxu0 0
      %345 = vmatpush1.bf16.msra.mxu0 0
      %346 = vmatprep.subr.bf16.mxu0 0
      %347 = vmatpush1.bf16.msra.mxu0 0
      %348 = vmatprep.subr.bf16.mxu0 0
      %349 = vmatpush1.bf16.msra.mxu0 0
      %350 = vmatprep.subr.bf16.mxu0 0
      %351 = vmatpush1.bf16.msra.mxu0 0
      %352 = vmatprep.subr.bf16.mxu0 0
      %353 = vmatpush1.bf16.msra.mxu0 0
      %354 = vmatprep.subr.bf16.mxu0 0
      %355 = vmatpush1.bf16.msra.mxu0 0
      %356 = vmatprep.mubr.bf16.mxu0 0
      %357 = vmatmul.mubr.bf16.gmra.mrb[0].mxu0 %v322
      %v358 = vpop.f32.mrb[0].mxu0
      %v359 = vadd.f32 0.0, %v358
      %v360 = vpop.f32.mrb[0].mxu0
      %v361 = vpop.f32.mrb[0].mxu0
      %v362 = vadd.f32 0.0, %v361
      %v363 = vpop.f32.mrb[0].mxu0
      %364 = vdwg.mxu0
      %v365 = vpack.c.bf16 %v362, %v359
      %s366 = scalar_lea.vmem %s2, 156
      %v367 = vld [vmem:[%s366] sm:$0xff]
      %v368 = vld [vmem:[%s366 + $0x8] sm:$0xf]
      %v369 = vld [vmem:[%s366 + $0xc] sm:$0xff]
      %v370 = vld [vmem:[%s366 + $0x14] sm:$0xf]
      %v371 = vld [vmem:[%s366 + $0x18] sm:$0xff]
      %v372 = vld [vmem:[%s366 + $0x20] sm:$0xf]
      %v373 = vld [vmem:[%s366 + $0x24] sm:$0xff]
      %v374 = vld [vmem:[%s366 + $0x2c] sm:$0xf]
      %v375 = vld [vmem:[%s366 + $0x30] sm:$0xff]
      %v376 = vld [vmem:[%s366 + $0x38] sm:$0xf]
      %v377 = vld [vmem:[%s366 + $0x3c] sm:$0xff]
      %v378 = vld [vmem:[%s366 + $0x44] sm:$0xf]
      %v379 = vld [vmem:[%s366 + $0x48] sm:$0xff]
      %v380 = vld [vmem:[%s366 + $0x50] sm:$0xf]
      %v381 = vld [vmem:[%s366 + $0x54] sm:$0xff]
      %v382 = vld [vmem:[%s366 + $0x5c] sm:$0xf]
      %v383 = vld [vmem:[%s366 + $0x60] sm:$0xff]
      %v384 = vld [vmem:[%s366 + $0x68] sm:$0xf]
      %v385 = vld [vmem:[%s366 + $0x6c] sm:$0xff]
      %v386 = vld [vmem:[%s366 + $0x74] sm:$0xf]
      %v387 = vld [vmem:[%s366 + $0x78] sm:$0xff]
      %v388 = vld [vmem:[%s366 + $0x80] sm:$0xf]
      %v389 = vld [vmem:[%s366 + $0x84] sm:$0xff]
      %v390 = vld [vmem:[%s366 + $0x8c] sm:$0xf]
      %v391 = vld [vmem:[%s366 + $0x90] sm:$0x33]
      %v392 = vld [vmem:[%s366 + $0x98] sm:$0x3]
      %v419 = vunpack.c.l.b16 %v367
      %v420 = vunpack.c.h.b16 %v367
      %v421 = vunpack.c.l.b16 %v368
      %v422 = vunpack.c.l.b16 %v369
      %v423 = vunpack.c.h.b16 %v369
      %v424 = vunpack.c.l.b16 %v370
      %v425 = vunpack.c.l.b16 %v371
      %v426 = vunpack.c.h.b16 %v371
      %v427 = vunpack.c.l.b16 %v372
      %v428 = vunpack.c.l.b16 %v373
      %v429 = vunpack.c.h.b16 %v373
      %v430 = vunpack.c.l.b16 %v374
      %v431 = vunpack.c.l.b16 %v375
      %v432 = vunpack.c.h.b16 %v375
      %v433 = vunpack.c.l.b16 %v376
      %v434 = vunpack.c.l.b16 %v377
      %v435 = vunpack.c.h.b16 %v377
      %v436 = vunpack.c.l.b16 %v378
      %v437 = vunpack.c.l.b16 %v379
      %v438 = vunpack.c.h.b16 %v379
      %v439 = vunpack.c.l.b16 %v380
      %v440 = vunpack.c.l.b16 %v381
      %v441 = vunpack.c.h.b16 %v381
      %v442 = vunpack.c.l.b16 %v382
      %v443 = vunpack.c.l.b16 %v383
      %v444 = vunpack.c.h.b16 %v383
      %v445 = vunpack.c.l.b16 %v384
      %v446 = vunpack.c.l.b16 %v385
      %v447 = vunpack.c.h.b16 %v385
      %v448 = vunpack.c.l.b16 %v386
      %v449 = vunpack.c.l.b16 %v387
      %v450 = vunpack.c.h.b16 %v387
      %v451 = vunpack.c.l.b16 %v388
      %v452 = vunpack.c.l.b16 %v389
      %v453 = vunpack.c.h.b16 %v389
      %v454 = vunpack.c.l.b16 %v390
      %v455 = vunpack.c.l.b16 %v391
      %v456 = vunpack.c.h.b16 %v391
      %v457 = vunpack.c.l.b16 %v392
      %v458 = vpack.c.b16 %v422, %v419
      %v459 = vpack.c.b16 %v423, %v420
      %v460 = vpack.c.b16 %v424, %v421
      %v461 = vpack.c.b16 %v428, %v425
      %v462 = vpack.c.b16 %v429, %v426
      %v463 = vpack.c.b16 %v430, %v427
      %v464 = vpack.c.b16 %v434, %v431
      %v465 = vpack.c.b16 %v435, %v432
      %v466 = vpack.c.b16 %v436, %v433
      %v467 = vpack.c.b16 %v440, %v437
      %v468 = vpack.c.b16 %v441, %v438
      %v469 = vpack.c.b16 %v442, %v439
      %v470 = vpack.c.b16 %v446, %v443
      %v471 = vpack.c.b16 %v447, %v444
      %v472 = vpack.c.b16 %v448, %v445
      %v473 = vpack.c.b16 %v452, %v449
      %v474 = vpack.c.b16 %v453, %v450
      %v475 = vpack.c.b16 %v454, %v451
      %v476 = vpack.c.b16 %v455, %v455
      %v477 = vpack.c.b16 %v456, %v456
      %v478 = vpack.c.b16 %v457, %v457
      %vm497 = vcmask 818176
      %v499 = vsel %vm497, %v365, 0
      %vm501 = vcmask 1041408
      %v503 = vsel %vm501, %v476, 0
      %v506 = vsel %vm501, %v477, 0
      %v509 = vsel %vm501, %v478, 0
      %511 = vmatprep.subr.bf16.mxu0 %v459
      %512 = vmatpush1.bf16.msra.mxu0 %v458
      %513 = vmatprep.subr.bf16.mxu0 %v462
      %514 = vmatpush1.bf16.msra.mxu0 %v461
      %515 = vmatprep.subr.bf16.mxu0 %v465
      %516 = vmatpush1.bf16.msra.mxu0 %v464
      %517 = vmatprep.subr.bf16.mxu0 %v468
      %518 = vmatpush1.bf16.msra.mxu0 %v467
      %519 = vmatprep.subr.bf16.mxu0 %v471
      %520 = vmatpush1.bf16.msra.mxu0 %v470
      %521 = vmatprep.subr.bf16.mxu0 %v474
      %522 = vmatpush1.bf16.msra.mxu0 %v473
      %523 = vmatprep.subr.bf16.mxu0 %v506
      %524 = vmatpush1.bf16.msra.mxu0 %v503
      %525 = vmatprep.subr.bf16.mxu0 0
      %526 = vmatpush1.bf16.msra.mxu0 0
      %527 = vmatprep.subr.bf16.mxu0 0
      %528 = vmatpush1.bf16.msra.mxu0 0
      %529 = vmatprep.subr.bf16.mxu0 0
      %530 = vmatpush1.bf16.msra.mxu0 0
      %531 = vmatprep.subr.bf16.mxu0 0
      %532 = vmatpush1.bf16.msra.mxu0 0
      %533 = vmatprep.subr.bf16.mxu0 0
      %534 = vmatpush1.bf16.msra.mxu0 0
      %535 = vmatprep.subr.bf16.mxu0 0
      %536 = vmatpush1.bf16.msra.mxu0 0
      %537 = vmatprep.subr.bf16.mxu0 0
      %538 = vmatpush1.bf16.msra.mxu0 0
      %539 = vmatprep.subr.bf16.mxu0 0
      %540 = vmatpush1.bf16.msra.mxu0 0
      %541 = vmatprep.subr.bf16.mxu0 0
      %542 = vmatpush1.bf16.msra.mxu0 0
      %543 = vmatprep.mubr.bf16.mxu0 0
      %544 = vmatmul.mubr.bf16.gmra.mrb[0].mxu0 %v499
      %v545 = vpop.f32.mrb[0].mxu0
      %v546 = vadd.f32 0.0, %v545
      %v547 = vpop.f32.mrb[0].mxu0
      %v548 = vadd.f32 0.0, %v547
      %v549 = vpop.f32.mrb[0].mxu0
      %v550 = vadd.f32 0.0, %v549
      %v551 = vpop.f32.mrb[0].mxu0
      %v552 = vadd.f32 0.0, %v551
      %553 = vdwg.mxu0
      %554 = vmatprep.subr.bf16.mxu0 0
      %555 = vmatpush1.bf16.msra.mxu0 %v460
      %556 = vmatprep.subr.bf16.mxu0 0
      %557 = vmatpush1.bf16.msra.mxu0 %v463
      %558 = vmatprep.subr.bf16.mxu0 0
      %559 = vmatpush1.bf16.msra.mxu0 %v466
      %560 = vmatprep.subr.bf16.mxu0 0
      %561 = vmatpush1.bf16.msra.mxu0 %v469
      %562 = vmatprep.subr.bf16.mxu0 0
      %563 = vmatpush1.bf16.msra.mxu0 %v472
      %564 = vmatprep.subr.bf16.mxu0 0
      %565 = vmatpush1.bf16.msra.mxu0 %v475
      %566 = vmatprep.subr.bf16.mxu0 0
      %567 = vmatpush1.bf16.msra.mxu0 %v509
      %568 = vmatprep.subr.bf16.mxu0 0
      %569 = vmatpush1.bf16.msra.mxu0 0
      %570 = vmatprep.subr.bf16.mxu0 0
      %571 = vmatpush1.bf16.msra.mxu0 0
      %572 = vmatprep.subr.bf16.mxu0 0
      %573 = vmatpush1.bf16.msra.mxu0 0
      %574 = vmatprep.subr.bf16.mxu0 0
      %575 = vmatpush1.bf16.msra.mxu0 0
      %576 = vmatprep.subr.bf16.mxu0 0
      %577 = vmatpush1.bf16.msra.mxu0 0
      %578 = vmatprep.subr.bf16.mxu0 0
      %579 = vmatpush1.bf16.msra.mxu0 0
      %580 = vmatprep.subr.bf16.mxu0 0
      %581 = vmatpush1.bf16.msra.mxu0 0
      %582 = vmatprep.subr.bf16.mxu0 0
      %583 = vmatpush1.bf16.msra.mxu0 0
      %584 = vmatprep.subr.bf16.mxu0 0
      %585 = vmatpush1.bf16.msra.mxu0 0
      %586 = vmatprep.mubr.bf16.mxu0 0
      %587 = vmatmul.mubr.bf16.gmra.mrb[0].mxu0 %v499
      %v588 = vpop.f32.mrb[0].mxu0
      %v589 = vadd.f32 0.0, %v588
      %v590 = vpop.f32.mrb[0].mxu0
      %v591 = vpop.f32.mrb[0].mxu0
      %v592 = vadd.f32 0.0, %v591
      %v593 = vpop.f32.mrb[0].mxu0
      %594 = vdwg.mxu0
      %v621 = vunpack.c.l.b16 %v287
      %v622 = vunpack.c.h.b16 %v287
      %v623 = vunpack.c.l.b16 %v288
      %v624 = vunpack.c.l.b16 %v289
      %v625 = vunpack.c.h.b16 %v289
      %v626 = vunpack.c.l.b16 %v290
      %v627 = vunpack.c.l.b16 %v291
      %v628 = vunpack.c.h.b16 %v291
      %v629 = vunpack.c.l.b16 %v292
      %v630 = vunpack.c.l.b16 %v293
      %v631 = vunpack.c.h.b16 %v293
      %v632 = vunpack.c.l.b16 %v294
      %v633 = vunpack.c.l.b16 %v295
      %v634 = vunpack.c.h.b16 %v295
      %v635 = vunpack.c.l.b16 %v296
      %v636 = vunpack.c.l.b16 %v297
      %v637 = vunpack.c.h.b16 %v297
      %v638 = vunpack.c.l.b16 %v298
      %v639 = vunpack.c.l.b16 %v299
      %v640 = vunpack.c.h.b16 %v299
      %v641 = vunpack.c.l.b16 %v300
      %v642 = vunpack.c.l.b16 %v301
      %v643 = vunpack.c.h.b16 %v301
      %v644 = vunpack.c.l.b16 %v302
      %v645 = vunpack.c.l.b16 %v303
      %v646 = vunpack.c.h.b16 %v303
      %v647 = vunpack.c.l.b16 %v304
      %v648 = vunpack.c.l.b16 %v305
      %v649 = vunpack.c.h.b16 %v305
      %v650 = vunpack.c.l.b16 %v306
      %v651 = vunpack.c.l.b16 %v307
      %v652 = vunpack.c.h.b16 %v307
      %v653 = vunpack.c.l.b16 %v308
      %v654 = vunpack.c.l.b16 %v309
      %v655 = vunpack.c.h.b16 %v309
      %v656 = vunpack.c.l.b16 %v310
      %v657 = vunpack.c.l.b16 %v311
      %v658 = vunpack.c.h.b16 %v311
      %v659 = vunpack.c.l.b16 %v312
      %v660 = vpack.c.b16 %v624, %v621
      %v661 = vpack.c.b16 %v625, %v622
      %v662 = vpack.c.b16 %v626, %v623
      %v663 = vpack.c.b16 %v630, %v627
      %v664 = vpack.c.b16 %v631, %v628
      %v665 = vpack.c.b16 %v632, %v629
      %v666 = vpack.c.b16 %v636, %v633
      %v667 = vpack.c.b16 %v637, %v634
      %v668 = vpack.c.b16 %v638, %v635
      %v669 = vpack.c.b16 %v642, %v639
      %v670 = vpack.c.b16 %v643, %v640
      %v671 = vpack.c.b16 %v644, %v641
      %v672 = vpack.c.b16 %v648, %v645
      %v673 = vpack.c.b16 %v649, %v646
      %v674 = vpack.c.b16 %v650, %v647
      %v675 = vpack.c.b16 %v654, %v651
      %v676 = vpack.c.b16 %v655, %v652
      %v677 = vpack.c.b16 %v656, %v653
      %v678 = vpack.c.b16 %v657, %v657
      %v679 = vpack.c.b16 %v658, %v658
      %v680 = vpack.c.b16 %v659, %v659
      %v700 = vsel %vm497, %v286, 0
      %v703 = vsel %vm501, %v678, 0
      %v706 = vsel %vm501, %v679, 0
      %v709 = vsel %vm501, %v680, 0
      %711 = vmatprep.subr.bf16.mxu0 %v661
      %712 = vmatpush1.bf16.msra.mxu0 %v660
      %713 = vmatprep.subr.bf16.mxu0 %v664
      %714 = vmatpush1.bf16.msra.mxu0 %v663
      %715 = vmatprep.subr.bf16.mxu0 %v667
      %716 = vmatpush1.bf16.msra.mxu0 %v666
      %717 = vmatprep.subr.bf16.mxu0 %v670
      %718 = vmatpush1.bf16.msra.mxu0 %v669
      %719 = vmatprep.subr.bf16.mxu0 %v673
      %720 = vmatpush1.bf16.msra.mxu0 %v672
      %721 = vmatprep.subr.bf16.mxu0 %v676
      %722 = vmatpush1.bf16.msra.mxu0 %v675
      %723 = vmatprep.subr.bf16.mxu0 %v706
      %724 = vmatpush1.bf16.msra.mxu0 %v703
      %725 = vmatprep.subr.bf16.mxu0 0
      %726 = vmatpush1.bf16.msra.mxu0 0
      %727 = vmatprep.subr.bf16.mxu0 0
      %728 = vmatpush1.bf16.msra.mxu0 0
      %729 = vmatprep.subr.bf16.mxu0 0
      %730 = vmatpush1.bf16.msra.mxu0 0
      %731 = vmatprep.subr.bf16.mxu0 0
      %732 = vmatpush1.bf16.msra.mxu0 0
      %733 = vmatprep.subr.bf16.mxu0 0
      %734 = vmatpush1.bf16.msra.mxu0 0
      %735 = vmatprep.subr.bf16.mxu0 0
      %736 = vmatpush1.bf16.msra.mxu0 0
      %737 = vmatprep.subr.bf16.mxu0 0
      %738 = vmatpush1.bf16.msra.mxu0 0
      %739 = vmatprep.subr.bf16.mxu0 0
      %740 = vmatpush1.bf16.msra.mxu0 0
      %741 = vmatprep.subr.bf16.mxu0 0
      %742 = vmatpush1.bf16.msra.mxu0 0
      %743 = vmatprep.mubr.bf16.mxu0 0
      %744 = vmatmul.mubr.bf16.gmra.mrb[0].mxu0 %v700
      %v745 = vpop.f32.mrb[0].mxu0
      %v746 = vadd.f32 %v546, %v745
      %v747 = vpop.f32.mrb[0].mxu0
      %v748 = vadd.f32 %v548, %v747
      %v749 = vpop.f32.mrb[0].mxu0
      %v750 = vadd.f32 %v550, %v749
      %v751 = vpop.f32.mrb[0].mxu0
      %v752 = vadd.f32 %v552, %v751
      %753 = vdwg.mxu0
      %754 = vmatprep.subr.bf16.mxu0 0
      %755 = vmatpush1.bf16.msra.mxu0 %v662
      %756 = vmatprep.subr.bf16.mxu0 0
      %757 = vmatpush1.bf16.msra.mxu0 %v665
      %758 = vmatprep.subr.bf16.mxu0 0
      %759 = vmatpush1.bf16.msra.mxu0 %v668
      %760 = vmatprep.subr.bf16.mxu0 0
      %761 = vmatpush1.bf16.msra.mxu0 %v671
      %762 = vmatprep.subr.bf16.mxu0 0
      %763 = vmatpush1.bf16.msra.mxu0 %v674
      %764 = vmatprep.subr.bf16.mxu0 0
      %765 = vmatpush1.bf16.msra.mxu0 %v677
      %766 = vmatprep.subr.bf16.mxu0 0
      %767 = vmatpush1.bf16.msra.mxu0 %v709
      %768 = vmatprep.subr.bf16.mxu0 0
      %769 = vmatpush1.bf16.msra.mxu0 0
      %770 = vmatprep.subr.bf16.mxu0 0
      %771 = vmatpush1.bf16.msra.mxu0 0
      %772 = vmatprep.subr.bf16.mxu0 0
      %773 = vmatpush1.bf16.msra.mxu0 0
      %774 = vmatprep.subr.bf16.mxu0 0
      %775 = vmatpush1.bf16.msra.mxu0 0
      %776 = vmatprep.subr.bf16.mxu0 0
      %777 = vmatpush1.bf16.msra.mxu0 0
      %778 = vmatprep.subr.bf16.mxu0 0
      %779 = vmatpush1.bf16.msra.mxu0 0
      %780 = vmatprep.subr.bf16.mxu0 0
      %781 = vmatpush1.bf16.msra.mxu0 0
      %782 = vmatprep.subr.bf16.mxu0 0
      %783 = vmatpush1.bf16.msra.mxu0 0
      %784 = vmatprep.subr.bf16.mxu0 0
      %785 = vmatpush1.bf16.msra.mxu0 0
      %786 = vmatprep.mubr.bf16.mxu0 0
      %787 = vmatmul.mubr.bf16.gmra.mrb[0].mxu0 %v700
      %v788 = vpop.f32.mrb[0].mxu0
      %v789 = vadd.f32 %v589, %v788
      %v790 = vpop.f32.mrb[0].mxu0
      %v791 = vpop.f32.mrb[0].mxu0
      %v792 = vadd.f32 %v592, %v791
      %v793 = vpop.f32.mrb[0].mxu0
      %794 = vdwg.mxu0
      %s795 = scalar_lea.vmem %s1, 16
      %v796 = vld [vmem:[%s795] sm:$0xf]
      %v797 = vld [vmem:[%s795 + $0x4] sm:$0xf]
      %v800 = vunpack.c.l.b16 %v796
      %v801 = vunpack.c.l.b16 %v797
      %v802 = vpack.c.b16 %v801, %v800
      %v804 = vsel %vm241, %v802, 0
      %806 = vmatprep.subr.bf16.mxu0 0
      %807 = vmatpush1.bf16.msra.mxu0 %v239
      %808 = vmatprep.subr.bf16.mxu0 0
      %809 = vmatpush1.bf16.msra.mxu0 0
      %810 = vmatprep.subr.bf16.mxu0 0
      %811 = vmatpush1.bf16.msra.mxu0 0
      %812 = vmatprep.subr.bf16.mxu0 0
      %813 = vmatpush1.bf16.msra.mxu0 0
      %814 = vmatprep.subr.bf16.mxu0 0
      %815 = vmatpush1.bf16.msra.mxu0 0
      %816 = vmatprep.subr.bf16.mxu0 0
      %817 = vmatpush1.bf16.msra.mxu0 0
      %818 = vmatprep.subr.bf16.mxu0 0
      %819 = vmatpush1.bf16.msra.mxu0 0
      %820 = vmatprep.subr.bf16.mxu0 0
      %821 = vmatpush1.bf16.msra.mxu0 0
      %822 = vmatprep.subr.bf16.mxu0 0
      %823 = vmatpush1.bf16.msra.mxu0 0
      %824 = vmatprep.subr.bf16.mxu0 0
      %825 = vmatpush1.bf16.msra.mxu0 0
      %826 = vmatprep.subr.bf16.mxu0 0
      %827 = vmatpush1.bf16.msra.mxu0 0
      %828 = vmatprep.subr.bf16.mxu0 0
      %829 = vmatpush1.bf16.msra.mxu0 0
      %830 = vmatprep.subr.bf16.mxu0 0
      %831 = vmatpush1.bf16.msra.mxu0 0
      %832 = vmatprep.subr.bf16.mxu0 0
      %833 = vmatpush1.bf16.msra.mxu0 0
      %834 = vmatprep.subr.bf16.mxu0 0
      %835 = vmatpush1.bf16.msra.mxu0 0
      %836 = vmatprep.subr.bf16.mxu0 0
      %837 = vmatpush1.bf16.msra.mxu0 0
      %838 = vmatprep.mubr.bf16.mxu0 0
      %839 = vmatmul.mubr.bf16.gmra.mrb[0].mxu0 %v804
      %v840 = vpop.f32.mrb[0].mxu0
      %v841 = vadd.f32 0.0, %v840
      %v842 = vpop.f32.mrb[0].mxu0
      %v843 = vpop.f32.mrb[0].mxu0
      %v844 = vadd.f32 0.0, %v843
      %v845 = vpop.f32.mrb[0].mxu0
      %846 = vdwg.mxu0
      %v847 = vpack.c.bf16 %v844, %v841
      %s848 = scalar_lea.vmem %s2, 312
      %v849 = vld [vmem:[%s848] sm:$0xff]
      %v850 = vld [vmem:[%s848 + $0x8] sm:$0xf]
      %v851 = vld [vmem:[%s848 + $0xc] sm:$0xff]
      %v852 = vld [vmem:[%s848 + $0x14] sm:$0xf]
      %v853 = vld [vmem:[%s848 + $0x18] sm:$0xff]
      %v854 = vld [vmem:[%s848 + $0x20] sm:$0xf]
      %v855 = vld [vmem:[%s848 + $0x24] sm:$0xff]
      %v856 = vld [vmem:[%s848 + $0x2c] sm:$0xf]
      %v857 = vld [vmem:[%s848 + $0x30] sm:$0xff]
      %v858 = vld [vmem:[%s848 + $0x38] sm:$0xf]
      %v859 = vld [vmem:[%s848 + $0x3c] sm:$0xff]
      %v860 = vld [vmem:[%s848 + $0x44] sm:$0xf]
      %v861 = vld [vmem:[%s848 + $0x48] sm:$0xff]
      %v862 = vld [vmem:[%s848 + $0x50] sm:$0xf]
      %v863 = vld [vmem:[%s848 + $0x54] sm:$0xff]
      %v864 = vld [vmem:[%s848 + $0x5c] sm:$0xf]
      %v865 = vld [vmem:[%s848 + $0x60] sm:$0xff]
      %v866 = vld [vmem:[%s848 + $0x68] sm:$0xf]
      %v867 = vld [vmem:[%s848 + $0x6c] sm:$0xff]
      %v868 = vld [vmem:[%s848 + $0x74] sm:$0xf]
      %v869 = vld [vmem:[%s848 + $0x78] sm:$0xff]
      %v870 = vld [vmem:[%s848 + $0x80] sm:$0xf]
      %v871 = vld [vmem:[%s848 + $0x84] sm:$0xff]
      %v872 = vld [vmem:[%s848 + $0x8c] sm:$0xf]
      %v873 = vld [vmem:[%s848 + $0x90] sm:$0x33]
      %v874 = vld [vmem:[%s848 + $0x98] sm:$0x3]
      %v901 = vunpack.c.l.b16 %v849
      %v902 = vunpack.c.h.b16 %v849
      %v903 = vunpack.c.l.b16 %v850
      %v904 = vunpack.c.l.b16 %v851
      %v905 = vunpack.c.h.b16 %v851
      %v906 = vunpack.c.l.b16 %v852
      %v907 = vunpack.c.l.b16 %v853
      %v908 = vunpack.c.h.b16 %v853
      %v909 = vunpack.c.l.b16 %v854
      %v910 = vunpack.c.l.b16 %v855
      %v911 = vunpack.c.h.b16 %v855
      %v912 = vunpack.c.l.b16 %v856
      %v913 = vunpack.c.l.b16 %v857
      %v914 = vunpack.c.h.b16 %v857
      %v915 = vunpack.c.l.b16 %v858
      %v916 = vunpack.c.l.b16 %v859
      %v917 = vunpack.c.h.b16 %v859
      %v918 = vunpack.c.l.b16 %v860
      %v919 = vunpack.c.l.b16 %v861
      %v920 = vunpack.c.h.b16 %v861
      %v921 = vunpack.c.l.b16 %v862
      %v922 = vunpack.c.l.b16 %v863
      %v923 = vunpack.c.h.b16 %v863
      %v924 = vunpack.c.l.b16 %v864
      %v925 = vunpack.c.l.b16 %v865
      %v926 = vunpack.c.h.b16 %v865
      %v927 = vunpack.c.l.b16 %v866
      %v928 = vunpack.c.l.b16 %v867
      %v929 = vunpack.c.h.b16 %v867
      %v930 = vunpack.c.l.b16 %v868
      %v931 = vunpack.c.l.b16 %v869
      %v932 = vunpack.c.h.b16 %v869
      %v933 = vunpack.c.l.b16 %v870
      %v934 = vunpack.c.l.b16 %v871
      %v935 = vunpack.c.h.b16 %v871
      %v936 = vunpack.c.l.b16 %v872
      %v937 = vunpack.c.l.b16 %v873
      %v938 = vunpack.c.h.b16 %v873
      %v939 = vunpack.c.l.b16 %v874
      %v940 = vpack.c.b16 %v904, %v901
      %v941 = vpack.c.b16 %v905, %v902
      %v942 = vpack.c.b16 %v906, %v903
      %v943 = vpack.c.b16 %v910, %v907
      %v944 = vpack.c.b16 %v911, %v908
      %v945 = vpack.c.b16 %v912, %v909
      %v946 = vpack.c.b16 %v916, %v913
      %v947 = vpack.c.b16 %v917, %v914
      %v948 = vpack.c.b16 %v918, %v915
      %v949 = vpack.c.b16 %v922, %v919
      %v950 = vpack.c.b16 %v923, %v920
      %v951 = vpack.c.b16 %v924, %v921
      %v952 = vpack.c.b16 %v928, %v925
      %v953 = vpack.c.b16 %v929, %v926
      %v954 = vpack.c.b16 %v930, %v927
      %v955 = vpack.c.b16 %v934, %v931
      %v956 = vpack.c.b16 %v935, %v932
      %v957 = vpack.c.b16 %v936, %v933
      %v958 = vpack.c.b16 %v937, %v937
      %v959 = vpack.c.b16 %v938, %v938
      %v960 = vpack.c.b16 %v939, %v939
      %v980 = vsel %vm497, %v847, 0
      %v983 = vsel %vm501, %v958, 0
      %v986 = vsel %vm501, %v959, 0
      %v989 = vsel %vm501, %v960, 0
      %991 = vmatprep.subr.bf16.mxu0 %v941
      %992 = vmatpush1.bf16.msra.mxu0 %v940
      %993 = vmatprep.subr.bf16.mxu0 %v944
      %994 = vmatpush1.bf16.msra.mxu0 %v943
      %995 = vmatprep.subr.bf16.mxu0 %v947
      %996 = vmatpush1.bf16.msra.mxu0 %v946
      %997 = vmatprep.subr.bf16.mxu0 %v950
      %998 = vmatpush1.bf16.msra.mxu0 %v949
      %999 = vmatprep.subr.bf16.mxu0 %v953
      %1000 = vmatpush1.bf16.msra.mxu0 %v952
      %1001 = vmatprep.subr.bf16.mxu0 %v956
      %1002 = vmatpush1.bf16.msra.mxu0 %v955
      %1003 = vmatprep.subr.bf16.mxu0 %v986
      %1004 = vmatpush1.bf16.msra.mxu0 %v983
      %1005 = vmatprep.subr.bf16.mxu0 0
      %1006 = vmatpush1.bf16.msra.mxu0 0
      %1007 = vmatprep.subr.bf16.mxu0 0
      %1008 = vmatpush1.bf16.msra.mxu0 0
      %1009 = vmatprep.subr.bf16.mxu0 0
      %1010 = vmatpush1.bf16.msra.mxu0 0
      %1011 = vmatprep.subr.bf16.mxu0 0
      %1012 = vmatpush1.bf16.msra.mxu0 0
      %1013 = vmatprep.subr.bf16.mxu0 0
      %1014 = vmatpush1.bf16.msra.mxu0 0
      %1015 = vmatprep.subr.bf16.mxu0 0
      %1016 = vmatpush1.bf16.msra.mxu0 0
      %1017 = vmatprep.subr.bf16.mxu0 0
      %1018 = vmatpush1.bf16.msra.mxu0 0
      %1019 = vmatprep.subr.bf16.mxu0 0
      %1020 = vmatpush1.bf16.msra.mxu0 0
      %1021 = vmatprep.subr.bf16.mxu0 0
      %1022 = vmatpush1.bf16.msra.mxu0 0
      %1023 = vmatprep.mubr.bf16.mxu0 0
      %1024 = vmatmul.mubr.bf16.gmra.mrb[0].mxu0 %v980
      %v1025 = vpop.f32.mrb[0].mxu0
      %v1026 = vadd.f32 0.0, %v1025
      %v1027 = vpop.f32.mrb[0].mxu0
      %v1028 = vadd.f32 0.0, %v1027
      %v1029 = vpop.f32.mrb[0].mxu0
      %v1030 = vadd.f32 0.0, %v1029
      %v1031 = vpop.f32.mrb[0].mxu0
      %v1032 = vadd.f32 0.0, %v1031
      %1033 = vdwg.mxu0
      %1034 = vmatprep.subr.bf16.mxu0 0
      %1035 = vmatpush1.bf16.msra.mxu0 %v942
      %1036 = vmatprep.subr.bf16.mxu0 0
      %1037 = vmatpush1.bf16.msra.mxu0 %v945
      %1038 = vmatprep.subr.bf16.mxu0 0
      %1039 = vmatpush1.bf16.msra.mxu0 %v948
      %1040 = vmatprep.subr.bf16.mxu0 0
      %1041 = vmatpush1.bf16.msra.mxu0 %v951
      %1042 = vmatprep.subr.bf16.mxu0 0
      %1043 = vmatpush1.bf16.msra.mxu0 %v954
      %1044 = vmatprep.subr.bf16.mxu0 0
      %1045 = vmatpush1.bf16.msra.mxu0 %v957
      %1046 = vmatprep.subr.bf16.mxu0 0
      %1047 = vmatpush1.bf16.msra.mxu0 %v989
      %1048 = vmatprep.subr.bf16.mxu0 0
      %1049 = vmatpush1.bf16.msra.mxu0 0
      %1050 = vmatprep.subr.bf16.mxu0 0
      %1051 = vmatpush1.bf16.msra.mxu0 0
      %1052 = vmatprep.subr.bf16.mxu0 0
      %1053 = vmatpush1.bf16.msra.mxu0 0
      %1054 = vmatprep.subr.bf16.mxu0 0
      %1055 = vmatpush1.bf16.msra.mxu0 0
      %1056 = vmatprep.subr.bf16.mxu0 0
      %1057 = vmatpush1.bf16.msra.mxu0 0
      %1058 = vmatprep.subr.bf16.mxu0 0
      %1059 = vmatpush1.bf16.msra.mxu0 0
      %1060 = vmatprep.subr.bf16.mxu0 0
      %1061 = vmatpush1.bf16.msra.mxu0 0
      %1062 = vmatprep.subr.bf16.mxu0 0
      %1063 = vmatpush1.bf16.msra.mxu0 0
      %1064 = vmatprep.subr.bf16.mxu0 0
      %1065 = vmatpush1.bf16.msra.mxu0 0
      %1066 = vmatprep.mubr.bf16.mxu0 0
      %1067 = vmatmul.mubr.bf16.gmra.mrb[0].mxu0 %v980
      %v1068 = vpop.f32.mrb[0].mxu0
      %v1069 = vadd.f32 0.0, %v1068
      %v1070 = vpop.f32.mrb[0].mxu0
      %v1071 = vpop.f32.mrb[0].mxu0
      %v1072 = vadd.f32 0.0, %v1071
      %v1073 = vpop.f32.mrb[0].mxu0
      %1074 = vdwg.mxu0
      %v1075 = vadd.f32 %v746, %v1026
      %v1076 = vadd.f32 %v748, %v1028
      %v1077 = vadd.f32 %v789, %v1069
      %v1078 = vadd.f32 %v750, %v1030
      %v1079 = vadd.f32 %v752, %v1032
      %v1080 = vadd.f32 %v792, %v1072
      %s1081 = scalar_lea.vmem %s1, 24
      %v1082 = vld [vmem:[%s1081] sm:$0xf]
      %v1083 = vld [vmem:[%s1081 + $0x4] sm:$0xf]
      %v1086 = vunpack.c.l.b16 %v1082
      %v1087 = vunpack.c.l.b16 %v1083
      %v1088 = vpack.c.b16 %v1087, %v1086
      %v1090 = vsel %vm241, %v1088, 0
      %1092 = vmatprep.subr.bf16.mxu0 0
      %1093 = vmatpush1.bf16.msra.mxu0 %v239
      %1094 = vmatprep.subr.bf16.mxu0 0
      %1095 = vmatpush1.bf16.msra.mxu0 0
      %1096 = vmatprep.subr.bf16.mxu0 0
      %1097 = vmatpush1.bf16.msra.mxu0 0
      %1098 = vmatprep.subr.bf16.mxu0 0
      %1099 = vmatpush1.bf16.msra.mxu0 0
      %1100 = vmatprep.subr.bf16.mxu0 0
      %1101 = vmatpush1.bf16.msra.mxu0 0
      %1102 = vmatprep.subr.bf16.mxu0 0
      %1103 = vmatpush1.bf16.msra.mxu0 0
      %1104 = vmatprep.subr.bf16.mxu0 0
      %1105 = vmatpush1.bf16.msra.mxu0 0
      %1106 = vmatprep.subr.bf16.mxu0 0
      %1107 = vmatpush1.bf16.msra.mxu0 0
      %1108 = vmatprep.subr.bf16.mxu0 0
      %1109 = vmatpush1.bf16.msra.mxu0 0
      %1110 = vmatprep.subr.bf16.mxu0 0
      %1111 = vmatpush1.bf16.msra.mxu0 0
      %1112 = vmatprep.subr.bf16.mxu0 0
      %1113 = vmatpush1.bf16.msra.mxu0 0
      %1114 = vmatprep.subr.bf16.mxu0 0
      %1115 = vmatpush1.bf16.msra.mxu0 0
      %1116 = vmatprep.subr.bf16.mxu0 0
      %1117 = vmatpush1.bf16.msra.mxu0 0
      %1118 = vmatprep.subr.bf16.mxu0 0
      %1119 = vmatpush1.bf16.msra.mxu0 0
      %1120 = vmatprep.subr.bf16.mxu0 0
      %1121 = vmatpush1.bf16.msra.mxu0 0
      %1122 = vmatprep.subr.bf16.mxu0 0
      %1123 = vmatpush1.bf16.msra.mxu0 0
      %1124 = vmatprep.mubr.bf16.mxu0 0
      %1125 = vmatmul.mubr.bf16.gmra.mrb[0].mxu0 %v1090
      %v1126 = vpop.f32.mrb[0].mxu0
      %v1127 = vadd.f32 0.0, %v1126
      %v1128 = vpop.f32.mrb[0].mxu0
      %v1129 = vpop.f32.mrb[0].mxu0
      %v1130 = vadd.f32 0.0, %v1129
      %v1131 = vpop.f32.mrb[0].mxu0
      %1132 = vdwg.mxu0
      %v1133 = vpack.c.bf16 %v1130, %v1127
      %s1134 = scalar_lea.vmem %s2, 468
      %v1135 = vld [vmem:[%s1134] sm:$0xff]
      %v1136 = vld [vmem:[%s1134 + $0x8] sm:$0xf]
      %v1137 = vld [vmem:[%s1134 + $0xc] sm:$0xff]
      %v1138 = vld [vmem:[%s1134 + $0x14] sm:$0xf]
      %v1139 = vld [vmem:[%s1134 + $0x18] sm:$0xff]
      %v1140 = vld [vmem:[%s1134 + $0x20] sm:$0xf]
      %v1141 = vld [vmem:[%s1134 + $0x24] sm:$0xff]
      %v1142 = vld [vmem:[%s1134 + $0x2c] sm:$0xf]
      %v1143 = vld [vmem:[%s1134 + $0x30] sm:$0xff]
      %v1144 = vld [vmem:[%s1134 + $0x38] sm:$0xf]
      %v1145 = vld [vmem:[%s1134 + $0x3c] sm:$0xff]
      %v1146 = vld [vmem:[%s1134 + $0x44] sm:$0xf]
      %v1147 = vld [vmem:[%s1134 + $0x48] sm:$0xff]
      %v1148 = vld [vmem:[%s1134 + $0x50] sm:$0xf]
      %v1149 = vld [vmem:[%s1134 + $0x54] sm:$0xff]
      %v1150 = vld [vmem:[%s1134 + $0x5c] sm:$0xf]
      %v1151 = vld [vmem:[%s1134 + $0x60] sm:$0xff]
      %v1152 = vld [vmem:[%s1134 + $0x68] sm:$0xf]
      %v1153 = vld [vmem:[%s1134 + $0x6c] sm:$0xff]
      %v1154 = vld [vmem:[%s1134 + $0x74] sm:$0xf]
      %v1155 = vld [vmem:[%s1134 + $0x78] sm:$0xff]
      %v1156 = vld [vmem:[%s1134 + $0x80] sm:$0xf]
      %v1157 = vld [vmem:[%s1134 + $0x84] sm:$0xff]
      %v1158 = vld [vmem:[%s1134 + $0x8c] sm:$0xf]
      %v1159 = vld [vmem:[%s1134 + $0x90] sm:$0x33]
      %v1160 = vld [vmem:[%s1134 + $0x98] sm:$0x3]
      %v1187 = vunpack.c.l.b16 %v1135
      %v1188 = vunpack.c.h.b16 %v1135
      %v1189 = vunpack.c.l.b16 %v1136
      %v1190 = vunpack.c.l.b16 %v1137
      %v1191 = vunpack.c.h.b16 %v1137
      %v1192 = vunpack.c.l.b16 %v1138
      %v1193 = vunpack.c.l.b16 %v1139
      %v1194 = vunpack.c.h.b16 %v1139
      %v1195 = vunpack.c.l.b16 %v1140
      %v1196 = vunpack.c.l.b16 %v1141
      %v1197 = vunpack.c.h.b16 %v1141
      %v1198 = vunpack.c.l.b16 %v1142
      %v1199 = vunpack.c.l.b16 %v1143
      %v1200 = vunpack.c.h.b16 %v1143
      %v1201 = vunpack.c.l.b16 %v1144
      %v1202 = vunpack.c.l.b16 %v1145
      %v1203 = vunpack.c.h.b16 %v1145
      %v1204 = vunpack.c.l.b16 %v1146
      %v1205 = vunpack.c.l.b16 %v1147
      %v1206 = vunpack.c.h.b16 %v1147
      %v1207 = vunpack.c.l.b16 %v1148
      %v1208 = vunpack.c.l.b16 %v1149
      %v1209 = vunpack.c.h.b16 %v1149
      %v1210 = vunpack.c.l.b16 %v1150
      %v1211 = vunpack.c.l.b16 %v1151
      %v1212 = vunpack.c.h.b16 %v1151
      %v1213 = vunpack.c.l.b16 %v1152
      %v1214 = vunpack.c.l.b16 %v1153
      %v1215 = vunpack.c.h.b16 %v1153
      %v1216 = vunpack.c.l.b16 %v1154
      %v1217 = vunpack.c.l.b16 %v1155
      %v1218 = vunpack.c.h.b16 %v1155
      %v1219 = vunpack.c.l.b16 %v1156
      %v1220 = vunpack.c.l.b16 %v1157
      %v1221 = vunpack.c.h.b16 %v1157
      %v1222 = vunpack.c.l.b16 %v1158
      %v1223 = vunpack.c.l.b16 %v1159
      %v1224 = vunpack.c.h.b16 %v1159
      %v1225 = vunpack.c.l.b16 %v1160
      %v1226 = vpack.c.b16 %v1190, %v1187
      %v1227 = vpack.c.b16 %v1191, %v1188
      %v1228 = vpack.c.b16 %v1192, %v1189
      %v1229 = vpack.c.b16 %v1196, %v1193
      %v1230 = vpack.c.b16 %v1197, %v1194
      %v1231 = vpack.c.b16 %v1198, %v1195
      %v1232 = vpack.c.b16 %v1202, %v1199
      %v1233 = vpack.c.b16 %v1203, %v1200
      %v1234 = vpack.c.b16 %v1204, %v1201
      %v1235 = vpack.c.b16 %v1208, %v1205
      %v1236 = vpack.c.b16 %v1209, %v1206
      %v1237 = vpack.c.b16 %v1210, %v1207
      %v1238 = vpack.c.b16 %v1214, %v1211
      %v1239 = vpack.c.b16 %v1215, %v1212
      %v1240 = vpack.c.b16 %v1216, %v1213
      %v1241 = vpack.c.b16 %v1220, %v1217
      %v1242 = vpack.c.b16 %v1221, %v1218
      %v1243 = vpack.c.b16 %v1222, %v1219
      %v1244 = vpack.c.b16 %v1223, %v1223
      %v1245 = vpack.c.b16 %v1224, %v1224
      %v1246 = vpack.c.b16 %v1225, %v1225
      %v1266 = vsel %vm497, %v1133, 0
      %v1269 = vsel %vm501, %v1244, 0
      %v1272 = vsel %vm501, %v1245, 0
      %v1275 = vsel %vm501, %v1246, 0
      %1277 = vmatprep.subr.bf16.mxu0 %v1227
      %1278 = vmatpush1.bf16.msra.mxu0 %v1226
      %1279 = vmatprep.subr.bf16.mxu0 %v1230
      %1280 = vmatpush1.bf16.msra.mxu0 %v1229
      %1281 = vmatprep.subr.bf16.mxu0 %v1233
      %1282 = vmatpush1.bf16.msra.mxu0 %v1232
      %1283 = vmatprep.subr.bf16.mxu0 %v1236
      %1284 = vmatpush1.bf16.msra.mxu0 %v1235
      %1285 = vmatprep.subr.bf16.mxu0 %v1239
      %1286 = vmatpush1.bf16.msra.mxu0 %v1238
      %1287 = vmatprep.subr.bf16.mxu0 %v1242
      %1288 = vmatpush1.bf16.msra.mxu0 %v1241
      %1289 = vmatprep.subr.bf16.mxu0 %v1272
      %1290 = vmatpush1.bf16.msra.mxu0 %v1269
      %1291 = vmatprep.subr.bf16.mxu0 0
      %1292 = vmatpush1.bf16.msra.mxu0 0
      %1293 = vmatprep.subr.bf16.mxu0 0
      %1294 = vmatpush1.bf16.msra.mxu0 0
      %1295 = vmatprep.subr.bf16.mxu0 0
      %1296 = vmatpush1.bf16.msra.mxu0 0
      %1297 = vmatprep.subr.bf16.mxu0 0
      %1298 = vmatpush1.bf16.msra.mxu0 0
      %1299 = vmatprep.subr.bf16.mxu0 0
      %1300 = vmatpush1.bf16.msra.mxu0 0
      %1301 = vmatprep.subr.bf16.mxu0 0
      %1302 = vmatpush1.bf16.msra.mxu0 0
      %1303 = vmatprep.subr.bf16.mxu0 0
      %1304 = vmatpush1.bf16.msra.mxu0 0
      %1305 = vmatprep.subr.bf16.mxu0 0
      %1306 = vmatpush1.bf16.msra.mxu0 0
      %1307 = vmatprep.subr.bf16.mxu0 0
      %1308 = vmatpush1.bf16.msra.mxu0 0
      %1309 = vmatprep.mubr.bf16.mxu0 0
      %1310 = vmatmul.mubr.bf16.gmra.mrb[0].mxu0 %v1266
      %v1311 = vpop.f32.mrb[0].mxu0
      %v1312 = vadd.f32 0.0, %v1311
      %v1313 = vpop.f32.mrb[0].mxu0
      %v1314 = vadd.f32 0.0, %v1313
      %v1315 = vpop.f32.mrb[0].mxu0
      %v1316 = vadd.f32 0.0, %v1315
      %v1317 = vpop.f32.mrb[0].mxu0
      %v1318 = vadd.f32 0.0, %v1317
      %1319 = vdwg.mxu0
      %1320 = vmatprep.subr.bf16.mxu0 0
      %1321 = vmatpush1.bf16.msra.mxu0 %v1228
      %1322 = vmatprep.subr.bf16.mxu0 0
      %1323 = vmatpush1.bf16.msra.mxu0 %v1231
      %1324 = vmatprep.subr.bf16.mxu0 0
      %1325 = vmatpush1.bf16.msra.mxu0 %v1234
      %1326 = vmatprep.subr.bf16.mxu0 0
      %1327 = vmatpush1.bf16.msra.mxu0 %v1237
      %1328 = vmatprep.subr.bf16.mxu0 0
      %1329 = vmatpush1.bf16.msra.mxu0 %v1240
      %1330 = vmatprep.subr.bf16.mxu0 0
      %1331 = vmatpush1.bf16.msra.mxu0 %v1243
      %1332 = vmatprep.subr.bf16.mxu0 0
      %1333 = vmatpush1.bf16.msra.mxu0 %v1275
      %1334 = vmatprep.subr.bf16.mxu0 0
      %1335 = vmatpush1.bf16.msra.mxu0 0
      %1336 = vmatprep.subr.bf16.mxu0 0
      %1337 = vmatpush1.bf16.msra.mxu0 0
      %1338 = vmatprep.subr.bf16.mxu0 0
      %1339 = vmatpush1.bf16.msra.mxu0 0
      %1340 = vmatprep.subr.bf16.mxu0 0
      %1341 = vmatpush1.bf16.msra.mxu0 0
      %1342 = vmatprep.subr.bf16.mxu0 0
      %1343 = vmatpush1.bf16.msra.mxu0 0
      %1344 = vmatprep.subr.bf16.mxu0 0
      %1345 = vmatpush1.bf16.msra.mxu0 0
      %1346 = vmatprep.subr.bf16.mxu0 0
      %1347 = vmatpush1.bf16.msra.mxu0 0
      %1348 = vmatprep.subr.bf16.mxu0 0
      %1349 = vmatpush1.bf16.msra.mxu0 0
      %1350 = vmatprep.subr.bf16.mxu0 0
      %1351 = vmatpush1.bf16.msra.mxu0 0
      %1352 = vmatprep.mubr.bf16.mxu0 0
      %1353 = vmatmul.mubr.bf16.gmra.mrb[0].mxu0 %v1266
      %v1354 = vpop.f32.mrb[0].mxu0
      %v1355 = vadd.f32 0.0, %v1354
      %v1356 = vpop.f32.mrb[0].mxu0
      %v1357 = vpop.f32.mrb[0].mxu0
      %v1358 = vadd.f32 0.0, %v1357
      %v1359 = vpop.f32.mrb[0].mxu0
      %1360 = vdwg.mxu0
      %v1361 = vadd.f32 %v1075, %v1312
      %v1362 = vadd.f32 %v1076, %v1314
      %v1363 = vadd.f32 %v1077, %v1355
      %v1364 = vadd.f32 %v1078, %v1316
      %v1365 = vadd.f32 %v1079, %v1318
      %v1366 = vadd.f32 %v1080, %v1358
      %v1367 = vld [vmem:[%s3] sm:$0xff]
      %v1368 = vld [vmem:[%s3 + $0x8] sm:$0xff]
      %1370 = vset.pattern.permute.xlu0 0
      %1371 = vperm.xlu0 %1370, %v1367
      %v1372 = vpop.permute.xlu0 %1371
      %1375 = vset.pattern.permute.xlu0 0
      %1376 = vperm.xlu0 %1375, %v1368
      %v1377 = vpop.permute.xlu0 %1376
      %v1379 = vadd.f32 %v1361, %v1372
      %v1380 = vadd.f32 %v1362, %v1372
      %v1381 = vadd.f32 %v1363, %v1372
      %v1382 = vadd.f32 %v1364, %v1377
      %v1383 = vadd.f32 %v1365, %v1377
      %v1384 = vadd.f32 %v1366, %v1377
      %v1385 = vld [vmem:[%s4] sm:$0x7]
      %v1387 = vlaneseq
      %v1388 = vshrl.u32 %v1387, 7
      %v1389 = vsub.s32 0, %v1388
      %v1390 = vrot.slane %v1385, %v1389
      %v1391 = vlaneseq
      %v1392 = vshrl.u32 %v1391, 7
      %v1393 = vsub.s32 1, %v1392
      %v1394 = vrot.slane %v1385, %v1393
      %v1395 = vlaneseq
      %v1396 = vshrl.u32 %v1395, 7
      %v1397 = vsub.s32 2, %v1396
      %v1398 = vrot.slane %v1385, %v1397
      %v1402 = vmul.f32 %v1379, %v1390
      %v1403 = vmul.f32 %v1380, %v1394
      %v1404 = vmul.f32 %v1381, %v1398
      %v1405 = vmul.f32 %v1382, %v1390
      %v1406 = vmul.f32 %v1383, %v1394
      %v1407 = vmul.f32 %v1384, %v1398
      %v1408 = vpack.c.bf16 %v1405, %v1402
      %v1409 = vpack.c.bf16 %v1406, %v1403
      %v1410 = vpack.c.bf16 %v1407, %v1404
      %v1414 = vunpack.c.l.b16 %v1408
      %v1415 = vunpack.c.l.b16 %v1409
      %v1416 = vunpack.c.l.b16 %v1410
      %v1417 = vunpack.c.h.b16 %v1408
      %v1418 = vunpack.c.h.b16 %v1409
      %v1419 = vunpack.c.h.b16 %v1410
      %v1420 = vpack.c.b16 %v1415, %v1414
      %v1421 = vpack.c.b16 %v1416, %v1416
      %v1422 = vpack.c.b16 %v1418, %v1417
      %v1423 = vpack.c.b16 %v1419, %v1419
      %1428 = vst [vmem:[%s224] sm:$0xff] %v1420
      %vm1429 = vcmask 551936
      %1430 = vst.msk [vmem:[%s224 + $0x8] sm:$0xf] %vm1429, %v1421
      %1431 = vst [vmem:[%s224 + $0xc] sm:$0xff] %v1422
      %1432 = vst.msk [vmem:[%s224 + $0x14] sm:$0xf] %vm1429, %v1423
      %p1433 = scmp.lt.s32.totalorder %s16, 1
      %s1434 = scalar_select %p1433, %s16, 1
      %s1435 = smul.addr %s1434, 6
      %s1436 = smul.addr %s1435, 4
      %s1437 = scalar_lea.vmem %s5, %s1436
      // Predicated region
      $region41: #{unet_forward.12} parent=39 // pred_check
        %p1438 = pneg %p144
      $region42: #{unet_forward.12} parent=39 // pred_check_branch
        %1440 = sbr.rel (%p1438) target = $region44
      $region43: #{unet_forward.12} parent=39 // pred_region
        _
      $region44: #{unet_forward.12} parent=39 // pred_fallthru
        _
    $region40: #{unet_forward.12} parent=5 // pred_fallthru
      _
    %p1441 = scmp.le.s32.totalorder 2, %s11
    // Predicated region
    $region45: #{unet_forward.12} parent=5 // pred_check
      %p1442 = pneg %p1441
    $region46: #{unet_forward.12} parent=5 // pred_check_branch
      %1444 = sbr.rel (%p1442) target = $region48
    $region47: #{unet_forward.12} parent=5 // pred_region
      %s1445 = ssub.s32 %s11, 2
      // Predicated region
      $region49: #{unet_forward.12} parent=47 // pred_check
        %p1446 = pneg %p150
      $region50: #{unet_forward.12} parent=47 // pred_check_branch
        %1448 = sbr.rel (%p1446) target = $region52
      $region51: #{unet_forward.12} parent=47 // pred_region
        %p1449 = scmp.lt.s32.totalorder %s17, 1
        %s1450 = scalar_select %p1449, %s17, 1
        %s1451 = smul.addr %s1450, 6
        %s1452 = smul.addr %s1451, 4
        %s1453 = scalar_lea.vmem %s5, %s1452
      $region52: #{unet_forward.12} parent=47 // pred_fallthru
        _
    $region48: #{unet_forward.12} parent=5 // pred_fallthru
      _
  $region6: #{unet_forward.12} parent=0 // loop_footer
    %s15 = sadd.s32 1, %s11
  $region7: #{unet_forward.12} parent=0 // loop_footer_branch
    %10 = sbr.rel target = $region3
  $region8: #{unet_forward.12} parent=0 // loop_exit
    _

// kernel: unet_forward.13
$region0: #{unet_forward.13}
  #allocation0 [shape = 'u32[]', space=smem, size = 0x4, offset = 0x4, fixed_abs, tag = 'smem constant byte address 0x4 - core index']
  #allocation1 [shape = 'u32[144,128]{1,0:T(1,128)}', space=vmem, size = 0x12000, scoped, tag = 'internal scratch']
  #allocation2 [shape = 'bf16[288,286]{1,0:T(16,128)(2,1)}', space=vmem, size = 0x36000, scoped, tag = 'scratch operand']
  %s0 = inlined_call_operand.vmem [shape: bf16[2,16,324], index: 0, kind: input, shape index: {}]
  %s1 = inlined_call_operand.vmem [shape: bf16[2,16,324], index: 1, kind: input, shape index: {}]
  %s2 = inlined_call_operand.vmem [shape: bf16[16,288], index: 2, kind: input, shape index: {}]
  %s3 = inlined_call_operand.vmem [shape: f32[16,1], index: 3, kind: input, shape index: {}]
  %s4 = inlined_call_operand.vmem [shape: bf16[286,324], index: 4, kind: input, shape index: {}]
  %s5 = inlined_call_operand.vmem [shape: bf16[2,16,324], index: 5, kind: output, shape index: {}]
  %s6 = sld [smem:[#allocation0]]
  $region53: #{unet_forward.13} parent=0
    _
  %s8 = ssub.s32 1, %s6
  %s9 = scalar_select 0, %s8, %s6
  loop: start=0, step=1, limit=4
  $region2: #{unet_forward.13} parent=0 // loop_pre_header
    _
  $region3: #{unet_forward.13} parent=0 // loop_header
    %s11 = sphi 0, %s15
    %p12 = scmp.ge.s32.totalorder %s11, 4
    %s21 = sphi 0, %s23
    %s24 = sphi 0, %s21
    %s25 = sphi 0, %s24
    %s41 = sphi 0, %s25
    %s47 = sphi 0, %s49
    %s50 = sphi 0, %s47
    %s51 = sphi 0, %s50
    %s67 = sphi 0, %s51
    %s71 = sphi 0, %s71
    %s73 = sphi 0, %s71
    %s74 = sphi 0, %s73
    %s88 = sphi 0, %s74
    %s92 = sphi 0, %s92
    %s94 = sphi 0, %s92
    %s95 = sphi 0, %s94
    %s109 = sphi 0, %s95
    %s113 = sphi 0, %s113
    %s115 = sphi 0, %s113
    %s116 = sphi 0, %s115
    %s130 = sphi 0, %s116
    %s136 = sphi 0, %s138
    %s139 = sphi 0, %s136
    %s140 = sphi 0, %s139
    %s156 = sphi 0, %s140
  $region4: #{unet_forward.13} parent=0 // loop_header_branch
    %14 = sbr.rel (%p12) target = $region8
  $region5: #{unet_forward.13} parent=0 // loop_body
    %s16 = ssub.s32 %s11, 1
    %s17 = ssub.s32 %s11, 2
    %s18 = sadd.s32 %s11, 1
    %s19 = ssub.s32 %s11, %s18
    %p20 = scmp.eq.s32.totalorder %s19, 0
    %s22 = sadd.s32 %s21, 1
    %s23 = scalar_select %p20, %s21, %s22
    %p26 = pneg %p20
    %p27 = scmp.eq.s32.totalorder %s11, 1
    %p28 = por %p26, %p27
    %p29 = scmp.ne.s32.totalorder %s21, %s24
    %p30 = scmp.eq.s32.totalorder %s11, 0
    %p31 = por %p29, %p30
    %p32 = scmp.ne.s32.totalorder %s21, %s24
    %p33 = scmp.eq.s32.totalorder %s16, 1
    %p34 = por %p32, %p33
    %p35 = scmp.ne.s32.totalorder %s24, %s25
    %p36 = scmp.eq.s32.totalorder %s16, 0
    %p37 = por %p35, %p36
    %p38 = scmp.ne.s32.totalorder %s24, %s25
    %p39 = scmp.eq.s32.totalorder %s17, 1
    %p40 = por %p38, %p39
    %p42 = scmp.ne.s32.totalorder %s25, %s41
    %p43 = scmp.eq.s32.totalorder %s17, 0
    %p44 = por %p42, %p43
    %s45 = ssub.s32 %s11, %s18
    %p46 = scmp.eq.s32.totalorder %s45, 0
    %s48 = sadd.s32 %s47, 1
    %s49 = scalar_select %p46, %s47, %s48
    %p52 = pneg %p46
    %p53 = scmp.eq.s32.totalorder %s11, 1
    %p54 = por %p52, %p53
    %p55 = scmp.ne.s32.totalorder %s47, %s50
    %p56 = scmp.eq.s32.totalorder %s11, 0
    %p57 = por %p55, %p56
    %p58 = scmp.ne.s32.totalorder %s47, %s50
    %p59 = scmp.eq.s32.totalorder %s16, 1
    %p60 = por %p58, %p59
    %p61 = scmp.ne.s32.totalorder %s50, %s51
    %p62 = scmp.eq.s32.totalorder %s16, 0
    %p63 = por %p61, %p62
    %p64 = scmp.ne.s32.totalorder %s50, %s51
    %p65 = scmp.eq.s32.totalorder %s17, 1
    %p66 = por %p64, %p65
    %p68 = scmp.ne.s32.totalorder %s51, %s67
    %p69 = scmp.eq.s32.totalorder %s17, 0
    %p70 = por %p68, %p69
    %s72 = sadd.s32 %s71, 1
    %p75 = scmp.eq.s32.totalorder %s11, 1
    %p76 = scmp.ne.s32.totalorder %s71, %s73
    %p77 = scmp.eq.s32.totalorder %s11, 0
    %p78 = por %p76, %p77
    %p79 = scmp.ne.s32.totalorder %s71, %s73
    %p80 = scmp.eq.s32.totalorder %s16, 1
    %p81 = por %p79, %p80
    %p82 = scmp.ne.s32.totalorder %s73, %s74
    %p83 = scmp.eq.s32.totalorder %s16, 0
    %p84 = por %p82, %p83
    %p85 = scmp.ne.s32.totalorder %s73, %s74
    %p86 = scmp.eq.s32.totalorder %s17, 1
    %p87 = por %p85, %p86
    %p89 = scmp.ne.s32.totalorder %s74, %s88
    %p90 = scmp.eq.s32.totalorder %s17, 0
    %p91 = por %p89, %p90
    %s93 = sadd.s32 %s92, 1
    %p96 = scmp.eq.s32.totalorder %s11, 1
    %p97 = scmp.ne.s32.totalorder %s92, %s94
    %p98 = scmp.eq.s32.totalorder %s11, 0
    %p99 = por %p97, %p98
    %p100 = scmp.ne.s32.totalorder %s92, %s94
    %p101 = scmp.eq.s32.totalorder %s16, 1
    %p102 = por %p100, %p101
    %p103 = scmp.ne.s32.totalorder %s94, %s95
    %p104 = scmp.eq.s32.totalorder %s16, 0
    %p105 = por %p103, %p104
    %p106 = scmp.ne.s32.totalorder %s94, %s95
    %p107 = scmp.eq.s32.totalorder %s17, 1
    %p108 = por %p106, %p107
    %p110 = scmp.ne.s32.totalorder %s95, %s109
    %p111 = scmp.eq.s32.totalorder %s17, 0
    %p112 = por %p110, %p111
    %s114 = sadd.s32 %s113, 1
    %p117 = scmp.eq.s32.totalorder %s11, 1
    %p118 = scmp.ne.s32.totalorder %s113, %s115
    %p119 = scmp.eq.s32.totalorder %s11, 0
    %p120 = por %p118, %p119
    %p121 = scmp.ne.s32.totalorder %s113, %s115
    %p122 = scmp.eq.s32.totalorder %s16, 1
    %p123 = por %p121, %p122
    %p124 = scmp.ne.s32.totalorder %s115, %s116
    %p125 = scmp.eq.s32.totalorder %s16, 0
    %p126 = por %p124, %p125
    %p127 = scmp.ne.s32.totalorder %s115, %s116
    %p128 = scmp.eq.s32.totalorder %s17, 1
    %p129 = por %p127, %p128
    %p131 = scmp.ne.s32.totalorder %s116, %s130
    %p132 = scmp.eq.s32.totalorder %s17, 0
    %p133 = por %p131, %p132
    %s134 = ssub.s32 %s11, %s18
    %p135 = scmp.eq.s32.totalorder %s134, 0
    %s137 = sadd.s32 %s136, 1
    %s138 = scalar_select %p135, %s136, %s137
    %p141 = pneg %p135
    %p142 = scmp.eq.s32.totalorder %s11, 1
    %p143 = por %p141, %p142
    %p144 = scmp.ne.s32.totalorder %s136, %s139
    %p145 = scmp.eq.s32.totalorder %s11, 0
    %p146 = por %p144, %p145
    %p147 = scmp.ne.s32.totalorder %s136, %s139
    %p148 = scmp.eq.s32.totalorder %s16, 1
    %p149 = por %p147, %p148
    %p150 = scmp.ne.s32.totalorder %s139, %s140
    %p151 = scmp.eq.s32.totalorder %s16, 0
    %p152 = por %p150, %p151
    %p153 = scmp.ne.s32.totalorder %s139, %s140
    %p154 = scmp.eq.s32.totalorder %s17, 1
    %p155 = por %p153, %p154
    %p157 = scmp.ne.s32.totalorder %s140, %s156
    %p158 = scmp.eq.s32.totalorder %s17, 0
    %p159 = por %p157, %p158
    %p160 = scmp.le.s32.totalorder 1, %s11
    %p161 = scmp.lt.s32.totalorder %s11, 3
    %p162 = pnand %p160, %p161
    %p163 = pneg %p162
    // Predicated region
    $region9: #{unet_forward.13} parent=5 // pred_check
      _
    $region10: #{unet_forward.13} parent=5 // pred_check_branch
      %165 = sbr.rel (%p162) target = $region12
    $region11: #{unet_forward.13} parent=5 // pred_region
      %s166 = ssub.s32 %s11, 1
      // Predicated region
      $region13: #{unet_forward.13} parent=11 // pred_check
        %p167 = pneg %p84
      $region14: #{unet_forward.13} parent=11 // pred_check_branch
        %169 = sbr.rel (%p167) target = $region16
      $region15: #{unet_forward.13} parent=11 // pred_region
        _
      $region16: #{unet_forward.13} parent=11 // pred_fallthru
        _
      // Predicated region
      $region17: #{unet_forward.13} parent=11 // pred_check
        %p170 = pneg %p105
      $region18: #{unet_forward.13} parent=11 // pred_check_branch
        %172 = sbr.rel (%p170) target = $region20
      $region19: #{unet_forward.13} parent=11 // pred_region
        _
      $region20: #{unet_forward.13} parent=11 // pred_fallthru
        _
      // Predicated region
      $region21: #{unet_forward.13} parent=11 // pred_check
        %p173 = pneg %p126
      $region22: #{unet_forward.13} parent=11 // pred_check_branch
        %175 = sbr.rel (%p173) target = $region24
      $region23: #{unet_forward.13} parent=11 // pred_region
        _
      $region24: #{unet_forward.13} parent=11 // pred_fallthru
        _
    $region12: #{unet_forward.13} parent=5 // pred_fallthru
      _
    %p176 = scmp.lt.s32.totalorder %s11, 2
    // Predicated region
    $region25: #{unet_forward.13} parent=5 // pred_check
      %p177 = pneg %p176
    $region26: #{unet_forward.13} parent=5 // pred_check_branch
      %179 = sbr.rel (%p177) target = $region28
    $region27: #{unet_forward.13} parent=5 // pred_region
      // Predicated region
      $region29: #{unet_forward.13} parent=27 // pred_check
        %p180 = pneg %p31
      $region30: #{unet_forward.13} parent=27 // pred_check_branch
        %182 = sbr.rel (%p180) target = $region32
      $region31: #{unet_forward.13} parent=27 // pred_region
        %p183 = scmp.lt.s32.totalorder %s11, 1
        %s184 = scalar_select %p183, %s11, 1
        %s185 = smul.addr %s184, 6
        %s186 = smul.addr %s185, 4
        %s187 = scalar_lea.vmem %s0, %s186
      $region32: #{unet_forward.13} parent=27 // pred_fallthru
        _
      // Predicated region
      $region33: #{unet_forward.13} parent=27 // pred_check
        %p188 = pneg %p57
      $region34: #{unet_forward.13} parent=27 // pred_check_branch
        %190 = sbr.rel (%p188) target = $region36
      $region35: #{unet_forward.13} parent=27 // pred_region
        %p191 = scmp.lt.s32.totalorder %s11, 1
        %s192 = scalar_select %p191, %s11, 1
        %s193 = smul.addr %s192, 6
        %s194 = smul.addr %s193, 4
        %s195 = scalar_lea.vmem %s1, %s194
      $region36: #{unet_forward.13} parent=27 // pred_fallthru
        _
    $region28: #{unet_forward.13} parent=5 // pred_fallthru
      _
    %p196 = scmp.le.s32.totalorder 1, %s11
    %p197 = scmp.lt.s32.totalorder %s11, 3
    %p198 = pnand %p196, %p197
    %p199 = pneg %p198
    // Predicated region
    $region37: #{unet_forward.13} parent=5 // pred_check
      _
    $region38: #{unet_forward.13} parent=5 // pred_check_branch
      %201 = sbr.rel (%p198) target = $region40
    $region39: #{unet_forward.13} parent=5 // pred_region
      %s202 = ssub.s32 %s11, 1
      %p203 = scmp.lt.s32.totalorder %s16, 1
      %s204 = scalar_select %p203, %s16, 1
      %s205 = smul.addr %s204, 6
      %s206 = smul.addr %s205, 4
      %s207 = scalar_lea.vmem %s0, %s206
      %p208 = pneg %p37
      %p209 = pneg %p34
      %p210 = scmp.lt.s32.totalorder %s16, 1
      %s211 = scalar_select %p210, %s16, 1
      %s212 = smul.addr %s211, 6
      %s213 = smul.addr %s212, 4
      %s214 = scalar_lea.vmem %s1, %s213
      %p215 = pneg %p63
      %p216 = pneg %p60
      %p217 = pneg %p84
      %p218 = pneg %p81
      %p219 = pneg %p105
      %p220 = pneg %p102
      %p221 = pneg %p126
      %p222 = pneg %p123
      %p223 = pneg %p152
      %p224 = pneg %p149
      %p225 = scmp.lt.s32.totalorder %s16, 1
      %s226 = scalar_select %p225, %s16, 1
      %s227 = smul.addr %s226, 6
      %s228 = smul.addr %s227, 4
      %s229 = scalar_lea.vmem %s5, %s228
      %p230 = scmp.lt.s32.totalorder %s16, 1
      %s231 = scalar_select %p230, %s16, 1
      %s232 = smul.addr %s231, 6
      %s233 = smul.addr %s232, 4
      %s234 = scalar_lea.vmem %s0, %s233
      %p235 = scmp.lt.s32.totalorder %s16, 1
      %s236 = scalar_select %p235, %s16, 1
      %s237 = smul.addr %s236, 6
      %s238 = smul.addr %s237, 4
      %s239 = scalar_lea.vmem %s1, %s238
      %p240 = scmp.lt.s32.totalorder %s16, 1
      %s241 = scalar_select %p240, %s16, 1
      %s242 = smul.addr %s241, 6
      %s243 = smul.addr %s242, 4
      %s244 = scalar_lea.vmem %s5, %s243
      %v246 = vld [vmem:[%s234] sm:$0xff]
      %v247 = vld [vmem:[%s234 + $0x8] sm:$0xf]
      %v248 = vld [vmem:[%s234 + $0xc] sm:$0xff]
      %v249 = vld [vmem:[%s234 + $0x14] sm:$0xf]
      %v254 = vunpack.c.l.b16 %v246
      %v255 = vunpack.c.h.b16 %v246
      %v256 = vunpack.c.l.b16 %v247
      %v257 = vunpack.c.l.b16 %v248
      %v258 = vunpack.c.h.b16 %v248
      %v259 = vunpack.c.l.b16 %v249
      %v260 = vpack.c.b16 %v257, %v254
      %v261 = vpack.c.b16 %v258, %v255
      %v262 = vpack.c.b16 %v259, %v256
      %266 = vst [vmem:[#allocation2] sm:$0xff] %v260
      %267 = vst [vmem:[#allocation2 + $0x8] sm:$0xff] %v261
      %vm268 = vcmask 244736
      %269 = vst.msk [vmem:[#allocation2 + $0x10] sm:$0xff] %vm268, %v262
      %270 = vrot.lane.b32.xlu0 %v260, 127
      %v271 = vpop.permute.xlu0 %270
      %272 = vrot.lane.b32.xlu0 %v261, 127
      %v273 = vpop.permute.xlu0 %272
      %274 = vrot.lane.b32.xlu0 %v262, 127
      %v275 = vpop.permute.xlu0 %274
      %vm276 = vcmask 1039360
      %v277 = vsel %vm276, %v271, %v273
      %v278 = vsel %vm276, %v273, %v275
      %282 = vst [vmem:[#allocation2 + $0x18] sm:$0xff] %v277
      %283 = vst [vmem:[#allocation2 + $0x20] sm:$0xff] %v278
      %284 = vst.msk [vmem:[#allocation2 + $0x28] sm:$0xff] %vm268, %v275
      %285 = vrot.lane.b32.xlu0 %v260, 126
      %v286 = vpop.permute.xlu0 %285
      %287 = vrot.lane.b32.xlu0 %v261, 126
      %v288 = vpop.permute.xlu0 %287
      %289 = vrot.lane.b32.xlu0 %v262, 126
      %v290 = vpop.permute.xlu0 %289
      %vm291 = vcmask 1031168
      %v292 = vsel %vm291, %v286, %v288
      %v293 = vsel %vm291, %v288, %v290
      %297 = vst [vmem:[#allocation2 + $0x30] sm:$0xff] %v292
      %298 = vst [vmem:[#allocation2 + $0x38] sm:$0xff] %v293
      %299 = vst.msk [vmem:[#allocation2 + $0x40] sm:$0xff] %vm268, %v290
      %300 = vrot.lane.b32.xlu0 %v260, 110
      %v301 = vpop.permute.xlu0 %300
      %302 = vrot.lane.b32.xlu0 %v261, 110
      %v303 = vpop.permute.xlu0 %302
      %304 = vrot.lane.b32.xlu0 %v262, 110
      %v305 = vpop.permute.xlu0 %304
      %vm306 = vcmask 900096
      %v307 = vsel %vm306, %v301, %v303
      %v308 = vsel %vm306, %v303, %v305
      %312 = vst [vmem:[#allocation2 + $0x48] sm:$0xff] %v307
      %313 = vst [vmem:[#allocation2 + $0x50] sm:$0xff] %v308
      %314 = vst.msk [vmem:[#allocation2 + $0x58] sm:$0xff] %vm268, %v305
      %315 = vrot.lane.b32.xlu0 %v260, 109
      %v316 = vpop.permute.xlu0 %315
      %317 = vrot.lane.b32.xlu0 %v261, 109
      %v318 = vpop.permute.xlu0 %317
      %319 = vrot.lane.b32.xlu0 %v262, 109
      %v320 = vpop.permute.xlu0 %319
      %vm321 = vcmask 891904
      %v322 = vsel %vm321, %v316, %v318
      %v323 = vsel %vm321, %v318, %v320
      %327 = vst [vmem:[#allocation2 + $0x60] sm:$0xff] %v322
      %328 = vst [vmem:[#allocation2 + $0x68] sm:$0xff] %v323
      %329 = vst.msk [vmem:[#allocation2 + $0x70] sm:$0xff] %vm268, %v320
      %330 = vrot.lane.b32.xlu0 %v260, 108
      %v331 = vpop.permute.xlu0 %330
      %332 = vrot.lane.b32.xlu0 %v261, 108
      %v333 = vpop.permute.xlu0 %332
      %334 = vrot.lane.b32.xlu0 %v262, 108
      %v335 = vpop.permute.xlu0 %334
      %vm336 = vcmask 883712
      %v337 = vsel %vm336, %v331, %v333
      %v338 = vsel %vm336, %v333, %v335
      %342 = vst [vmem:[#allocation2 + $0x78] sm:$0xff] %v337
      %343 = vst [vmem:[#allocation2 + $0x80] sm:$0xff] %v338
      %344 = vst.msk [vmem:[#allocation2 + $0x88] sm:$0xff] %vm268, %v335
      %345 = vrot.lane.b32.xlu0 %v260, 92
      %v346 = vpop.permute.xlu0 %345
      %347 = vrot.lane.b32.xlu0 %v261, 92
      %v348 = vpop.permute.xlu0 %347
      %349 = vrot.lane.b32.xlu0 %v262, 92
      %v350 = vpop.permute.xlu0 %349
      %vm351 = vcmask 752640
      %v352 = vsel %vm351, %v346, %v348
      %v353 = vsel %vm351, %v348, %v350
      %357 = vst [vmem:[#allocation2 + $0x90] sm:$0xff] %v352
      %358 = vst [vmem:[#allocation2 + $0x98] sm:$0xff] %v353
      %359 = vst.msk [vmem:[#allocation2 + $0xa0] sm:$0xff] %vm268, %v350
      %360 = vrot.lane.b32.xlu0 %v260, 91
      %v361 = vpop.permute.xlu0 %360
      %362 = vrot.lane.b32.xlu0 %v261, 91
      %v363 = vpop.permute.xlu0 %362
      %364 = vrot.lane.b32.xlu0 %v262, 91
      %v365 = vpop.permute.xlu0 %364
      %vm366 = vcmask 744448
      %v367 = vsel %vm366, %v361, %v363
      %v368 = vsel %vm366, %v363, %v365
      %372 = vst [vmem:[#allocation2 + $0xa8] sm:$0xff] %v367
      %373 = vst [vmem:[#allocation2 + $0xb0] sm:$0xff] %v368
      %374 = vst.msk [vmem:[#allocation2 + $0xb8] sm:$0xff] %vm268, %v365
      %375 = vrot.lane.b32.xlu0 %v260, 90
      %v376 = vpop.permute.xlu0 %375
      %377 = vrot.lane.b32.xlu0 %v261, 90
      %v378 = vpop.permute.xlu0 %377
      %379 = vrot.lane.b32.xlu0 %v262, 90
      %v380 = vpop.permute.xlu0 %379
      %vm381 = vcmask 736256
      %v382 = vsel %vm381, %v376, %v378
      %v383 = vsel %vm381, %v378, %v380
      %387 = vst [vmem:[#allocation2 + $0xc0] sm:$0xff] %v382
      %388 = vst [vmem:[#allocation2 + $0xc8] sm:$0xff] %v383
      %389 = vst.msk [vmem:[#allocation2 + $0xd0] sm:$0xff] %vm268, %v380
      %v390 = vld [vmem:[%s239] sm:$0xff]
      %v391 = vld [vmem:[%s239 + $0x8] sm:$0xf]
      %v392 = vld [vmem:[%s239 + $0xc] sm:$0xff]
      %v393 = vld [vmem:[%s239 + $0x14] sm:$0xf]
      %v398 = vunpack.c.l.b16 %v390
      %v399 = vunpack.c.h.b16 %v390
      %v400 = vunpack.c.l.b16 %v391
      %v401 = vunpack.c.l.b16 %v392
      %v402 = vunpack.c.h.b16 %v392
      %v403 = vunpack.c.l.b16 %v393
      %v404 = vpack.c.b16 %v401, %v398
      %v405 = vpack.c.b16 %v402, %v399
      %v406 = vpack.c.b16 %v403, %v400
      %410 = vst [vmem:[#allocation2 + $0xd8] sm:$0xff] %v404
      %411 = vst [vmem:[#allocation2 + $0xe0] sm:$0xff] %v405
      %412 = vst.msk [vmem:[#allocation2 + $0xe8] sm:$0xff] %vm268, %v406
      %413 = vrot.lane.b32.xlu0 %v404, 127
      %v414 = vpop.permute.xlu0 %413
      %415 = vrot.lane.b32.xlu0 %v405, 127
      %v416 = vpop.permute.xlu0 %415
      %417 = vrot.lane.b32.xlu0 %v406, 127
      %v418 = vpop.permute.xlu0 %417
      %v419 = vsel %vm276, %v414, %v416
      %v420 = vsel %vm276, %v416, %v418
      %424 = vst [vmem:[#allocation2 + $0xf0] sm:$0xff] %v419
      %425 = vst [vmem:[#allocation2 + $0xf8] sm:$0xff] %v420
      %426 = vst.msk [vmem:[#allocation2 + $0x100] sm:$0xff] %vm268, %v418
      %427 = vrot.lane.b32.xlu0 %v404, 126
      %v428 = vpop.permute.xlu0 %427
      %429 = vrot.lane.b32.xlu0 %v405, 126
      %v430 = vpop.permute.xlu0 %429
      %431 = vrot.lane.b32.xlu0 %v406, 126
      %v432 = vpop.permute.xlu0 %431
      %v433 = vsel %vm291, %v428, %v430
      %v434 = vsel %vm291, %v430, %v432
      %438 = vst [vmem:[#allocation2 + $0x108] sm:$0xff] %v433
      %439 = vst [vmem:[#allocation2 + $0x110] sm:$0xff] %v434
      %440 = vst.msk [vmem:[#allocation2 + $0x118] sm:$0xff] %vm268, %v432
      %441 = vrot.lane.b32.xlu0 %v404, 110
      %v442 = vpop.permute.xlu0 %441
      %443 = vrot.lane.b32.xlu0 %v405, 110
      %v444 = vpop.permute.xlu0 %443
      %445 = vrot.lane.b32.xlu0 %v406, 110
      %v446 = vpop.permute.xlu0 %445
      %v447 = vsel %vm306, %v442, %v444
      %v448 = vsel %vm306, %v444, %v446
      %452 = vst [vmem:[#allocation2 + $0x120] sm:$0xff] %v447
      %453 = vst [vmem:[#allocation2 + $0x128] sm:$0xff] %v448
      %454 = vst.msk [vmem:[#allocation2 + $0x130] sm:$0xff] %vm268, %v446
      %455 = vrot.lane.b32.xlu0 %v404, 109
      %v456 = vpop.permute.xlu0 %455
      %457 = vrot.lane.b32.xlu0 %v405, 109
      %v458 = vpop.permute.xlu0 %457
      %459 = vrot.lane.b32.xlu0 %v406, 109
      %v460 = vpop.permute.xlu0 %459
      %v461 = vsel %vm321, %v456, %v458
      %v462 = vsel %vm321, %v458, %v460
      %466 = vst [vmem:[#allocation2 + $0x138] sm:$0xff] %v461
      %467 = vst [vmem:[#allocation2 + $0x140] sm:$0xff] %v462
      %468 = vst.msk [vmem:[#allocation2 + $0x148] sm:$0xff] %vm268, %v460
      %469 = vrot.lane.b32.xlu0 %v404, 108
      %v470 = vpop.permute.xlu0 %469
      %471 = vrot.lane.b32.xlu0 %v405, 108
      %v472 = vpop.permute.xlu0 %471
      %473 = vrot.lane.b32.xlu0 %v406, 108
      %v474 = vpop.permute.xlu0 %473
      %v475 = vsel %vm336, %v470, %v472
      %v476 = vsel %vm336, %v472, %v474
      %480 = vst [vmem:[#allocation2 + $0x150] sm:$0xff] %v475
      %481 = vst [vmem:[#allocation2 + $0x158] sm:$0xff] %v476
      %482 = vst.msk [vmem:[#allocation2 + $0x160] sm:$0xff] %vm268, %v474
      %483 = vrot.lane.b32.xlu0 %v404, 92
      %v484 = vpop.permute.xlu0 %483
      %485 = vrot.lane.b32.xlu0 %v405, 92
      %v486 = vpop.permute.xlu0 %485
      %487 = vrot.lane.b32.xlu0 %v406, 92
      %v488 = vpop.permute.xlu0 %487
      %v489 = vsel %vm351, %v484, %v486
      %v490 = vsel %vm351, %v486, %v488
      %494 = vst [vmem:[#allocation2 + $0x168] sm:$0xff] %v489
      %495 = vst [vmem:[#allocation2 + $0x170] sm:$0xff] %v490
      %496 = vst.msk [vmem:[#allocation2 + $0x178] sm:$0xff] %vm268, %v488
      %497 = vrot.lane.b32.xlu0 %v404, 91
      %v498 = vpop.permute.xlu0 %497
      %499 = vrot.lane.b32.xlu0 %v405, 91
      %v500 = vpop.permute.xlu0 %499
      %501 = vrot.lane.b32.xlu0 %v406, 91
      %v502 = vpop.permute.xlu0 %501
      %v503 = vsel %vm366, %v498, %v500
      %v504 = vsel %vm366, %v500, %v502
      %508 = vst [vmem:[#allocation2 + $0x180] sm:$0xff] %v503
      %509 = vst [vmem:[#allocation2 + $0x188] sm:$0xff] %v504
      %510 = vst.msk [vmem:[#allocation2 + $0x190] sm:$0xff] %vm268, %v502
      %511 = vrot.lane.b32.xlu0 %v404, 90
      %v512 = vpop.permute.xlu0 %511
      %513 = vrot.lane.b32.xlu0 %v405, 90
      %v514 = vpop.permute.xlu0 %513
      %515 = vrot.lane.b32.xlu0 %v406, 90
      %v516 = vpop.permute.xlu0 %515
      %v517 = vsel %vm381, %v512, %v514
      %v518 = vsel %vm381, %v514, %v516
      %522 = vst [vmem:[#allocation2 + $0x198] sm:$0xff] %v517
      %523 = vst [vmem:[#allocation2 + $0x1a0] sm:$0xff] %v518
      %524 = vst.msk [vmem:[#allocation2 + $0x1a8] sm:$0xff] %vm268, %v516
      %v525 = vld [vmem:[%s2] sm:$0xff]
      %v526 = vld [vmem:[%s2 + $0x8] sm:$0xf]
      %v527 = vld [vmem:[%s2 + $0xc] sm:$0xff]
      %v528 = vld [vmem:[%s2 + $0x14] sm:$0xf]
      %v529 = vld [vmem:[#allocation2] sm:$0xff]
      %v530 = vld [vmem:[#allocation2 + $0x8] sm:$0xff]
      %v531 = vld [vmem:[#allocation2 + $0x10] sm:$0xff]
      %v532 = vld [vmem:[#allocation2 + $0x18] sm:$0xff]
      %v533 = vld [vmem:[#allocation2 + $0x20] sm:$0xff]
      %v534 = vld [vmem:[#allocation2 + $0x28] sm:$0xff]
      %v535 = vld [vmem:[#allocation2 + $0x30] sm:$0xff]
      %v536 = vld [vmem:[#allocation2 + $0x38] sm:$0xff]
      %v537 = vld [vmem:[#allocation2 + $0x40] sm:$0xff]
      %v538 = vld [vmem:[#allocation2 + $0x48] sm:$0xff]
      %v539 = vld [vmem:[#allocation2 + $0x50] sm:$0xff]
      %v540 = vld [vmem:[#allocation2 + $0x58] sm:$0xff]
      %v541 = vld [vmem:[#allocation2 + $0x60] sm:$0xff]
      %v542 = vld [vmem:[#allocation2 + $0x68] sm:$0xff]
      %v543 = vld [vmem:[#allocation2 + $0x70] sm:$0xff]
      %v544 = vld [vmem:[#allocation2 + $0x78] sm:$0xff]
      %v545 = vld [vmem:[#allocation2 + $0x80] sm:$0xff]
      %v546 = vld [vmem:[#allocation2 + $0x88] sm:$0xff]
      %v547 = vld [vmem:[#allocation2 + $0x90] sm:$0xff]
      %v548 = vld [vmem:[#allocation2 + $0x98] sm:$0xff]
      %v549 = vld [vmem:[#allocation2 + $0xa0] sm:$0xff]
      %v550 = vld [vmem:[#allocation2 + $0xa8] sm:$0xff]
      %v551 = vld [vmem:[#allocation2 + $0xb0] sm:$0xff]
      %v552 = vld [vmem:[#allocation2 + $0xb8] sm:$0xff]
      %v553 = vld [vmem:[#allocation2 + $0xc0] sm:$0xff]
      %v554 = vld [vmem:[#allocation2 + $0xc8] sm:$0xff]
      %v555 = vld [vmem:[#allocation2 + $0xd0] sm:$0xff]
      %v556 = vld [vmem:[#allocation2 + $0xd8] sm:$0xff]
      %v557 = vld [vmem:[#allocation2 + $0xe0] sm:$0xff]
      %v558 = vld [vmem:[#allocation2 + $0xe8] sm:$0xff]
      %v559 = vld [vmem:[#allocation2 + $0xf0] sm:$0xff]
      %v560 = vld [vmem:[#allocation2 + $0xf8] sm:$0xff]
      %v561 = vld [vmem:[#allocation2 + $0x100] sm:$0xff]
      %v562 = vld [vmem:[#allocation2 + $0x108] sm:$0xff]
      %v563 = vld [vmem:[#allocation2 + $0x110] sm:$0xff]
      %v564 = vld [vmem:[#allocation2 + $0x118] sm:$0xff]
      %v565 = vld [vmem:[#allocation2 + $0x120] sm:$0xff]
      %v566 = vld [vmem:[#allocation2 + $0x128] sm:$0xff]
      %v567 = vld [vmem:[#allocation2 + $0x130] sm:$0xff]
      %v568 = vld [vmem:[#allocation2 + $0x138] sm:$0xff]
      %v569 = vld [vmem:[#allocation2 + $0x140] sm:$0xff]
      %v570 = vld [vmem:[#allocation2 + $0x148] sm:$0xff]
      %v571 = vld [vmem:[#allocation2 + $0x150] sm:$0xff]
      %v572 = vld [vmem:[#allocation2 + $0x158] sm:$0xff]
      %v573 = vld [vmem:[#allocation2 + $0x160] sm:$0xff]
      %v574 = vld [vmem:[#allocation2 + $0x168] sm:$0xff]
      %v575 = vld [vmem:[#allocation2 + $0x170] sm:$0xff]
      %v576 = vld [vmem:[#allocation2 + $0x178] sm:$0xff]
      %v577 = vld [vmem:[#allocation2 + $0x180] sm:$0xff]
      %v578 = vld [vmem:[#allocation2 + $0x188] sm:$0xff]
      %v579 = vld [vmem:[#allocation2 + $0x190] sm:$0xff]
      %v580 = vld [vmem:[#allocation2 + $0x198] sm:$0xff]
      %v581 = vld [vmem:[#allocation2 + $0x1a0] sm:$0xff]
      %v582 = vld [vmem:[#allocation2 + $0x1a8] sm:$0xff]
      %v583 = vld [vmem:[%s3] sm:$0xff]
      %v584 = vld [vmem:[%s3 + $0x8] sm:$0xff]
      %586 = vset.pattern.permute.xlu0 0
      %587 = vperm.xlu0 %586, %v583
      %v588 = vpop.permute.xlu0 %587
      %591 = vset.pattern.permute.xlu0 0
      %592 = vperm.xlu0 %591, %v584
      %v593 = vpop.permute.xlu0 %592
      %v599 = vunpack.c.l.b16 %v525
      %v600 = vunpack.c.h.b16 %v525
      %v601 = vunpack.c.l.b16 %v526
      %v602 = vunpack.c.l.b16 %v527
      %v603 = vunpack.c.h.b16 %v527
      %v604 = vunpack.c.l.b16 %v528
      %v605 = vpack.c.b16 %v602, %v599
      %v606 = vpack.c.b16 %v603, %v600
      %v607 = vpack.c.b16 %v604, %v601
      %vm610 = vcmask 261120
      %v612 = vsel %vm610, %v607, 0
      %614 = vmatprep.subr.bf16.mxu0 %v530
      %615 = vmatpush1.bf16.msra.mxu0 %v529
      %616 = vmatprep.subr.bf16.mxu0 %v533
      %617 = vmatpush1.bf16.msra.mxu0 %v532
      %618 = vmatprep.subr.bf16.mxu0 %v536
      %619 = vmatpush1.bf16.msra.mxu0 %v535
      %620 = vmatprep.subr.bf16.mxu0 %v539
      %621 = vmatpush1.bf16.msra.mxu0 %v538
      %622 = vmatprep.subr.bf16.mxu0 %v542
      %623 = vmatpush1.bf16.msra.mxu0 %v541
      %624 = vmatprep.subr.bf16.mxu0 %v545
      %625 = vmatpush1.bf16.msra.mxu0 %v544
      %626 = vmatprep.subr.bf16.mxu0 %v548
      %627 = vmatpush1.bf16.msra.mxu0 %v547
      %628 = vmatprep.subr.bf16.mxu0 %v551
      %629 = vmatpush1.bf16.msra.mxu0 %v550
      %630 = vmatprep.subr.bf16.mxu0 %v554
      %631 = vmatpush1.bf16.msra.mxu0 %v553
      %632 = vmatprep.subr.bf16.mxu0 %v557
      %633 = vmatpush1.bf16.msra.mxu0 %v556
      %634 = vmatprep.subr.bf16.mxu0 %v560
      %635 = vmatpush1.bf16.msra.mxu0 %v559
      %636 = vmatprep.subr.bf16.mxu0 %v563
      %637 = vmatpush1.bf16.msra.mxu0 %v562
      %638 = vmatprep.subr.bf16.mxu0 %v566
      %639 = vmatpush1.bf16.msra.mxu0 %v565
      %640 = vmatprep.subr.bf16.mxu0 %v569
      %641 = vmatpush1.bf16.msra.mxu0 %v568
      %642 = vmatprep.subr.bf16.mxu0 %v572
      %643 = vmatpush1.bf16.msra.mxu0 %v571
      %644 = vmatprep.subr.bf16.mxu0 %v575
      %645 = vmatpush1.bf16.msra.mxu0 %v574
      %646 = vmatprep.mubr.bf16.mxu0 %v606
      %647 = vmatmul.mubr.bf16.gmra.mrb[0].mxu0 %v605
      %v648 = vpop.f32.mrb[0].mxu0
      %v649 = vadd.f32 %v588, %v648
      %v650 = vpop.f32.mrb[0].mxu0
      %v651 = vadd.f32 %v588, %v650
      %v652 = vpop.f32.mrb[0].mxu0
      %v653 = vadd.f32 %v593, %v652
      %v654 = vpop.f32.mrb[0].mxu0
      %v655 = vadd.f32 %v593, %v654
      %656 = vdwg.mxu0
      %657 = vmatprep.subr.bf16.mxu0 %v578
      %658 = vmatpush1.bf16.msra.mxu0 %v577
      %659 = vmatprep.subr.bf16.mxu0 %v581
      %660 = vmatpush1.bf16.msra.mxu0 %v580
      %661 = vmatprep.subr.bf16.mxu0 0
      %662 = vmatpush1.bf16.msra.mxu0 0
      %663 = vmatprep.subr.bf16.mxu0 0
      %664 = vmatpush1.bf16.msra.mxu0 0
      %665 = vmatprep.subr.bf16.mxu0 0
      %666 = vmatpush1.bf16.msra.mxu0 0
      %667 = vmatprep.subr.bf16.mxu0 0
      %668 = vmatpush1.bf16.msra.mxu0 0
      %669 = vmatprep.subr.bf16.mxu0 0
      %670 = vmatpush1.bf16.msra.mxu0 0
      %671 = vmatprep.subr.bf16.mxu0 0
      %672 = vmatpush1.bf16.msra.mxu0 0
      %673 = vmatprep.subr.bf16.mxu0 0
      %674 = vmatpush1.bf16.msra.mxu0 0
      %675 = vmatprep.subr.bf16.mxu0 0
      %676 = vmatpush1.bf16.msra.mxu0 0
      %677 = vmatprep.subr.bf16.mxu0 0
      %678 = vmatpush1.bf16.msra.mxu0 0
      %679 = vmatprep.subr.bf16.mxu0 0
      %680 = vmatpush1.bf16.msra.mxu0 0
      %681 = vmatprep.subr.bf16.mxu0 0
      %682 = vmatpush1.bf16.msra.mxu0 0
      %683 = vmatprep.subr.bf16.mxu0 0
      %684 = vmatpush1.bf16.msra.mxu0 0
      %685 = vmatprep.subr.bf16.mxu0 0
      %686 = vmatpush1.bf16.msra.mxu0 0
      %687 = vmatprep.subr.bf16.mxu0 0
      %688 = vmatpush1.bf16.msra.mxu0 0
      %689 = vmatprep.mubr.bf16.mxu0 0
      %690 = vmatmul.mubr.bf16.gmra.mrb[0].mxu0 %v612
      %v691 = vpop.f32.mrb[0].mxu0
      %v692 = vadd.f32 %v649, %v691
      %v693 = vpop.f32.mrb[0].mxu0
      %v694 = vadd.f32 %v651, %v693
      %v695 = vpop.f32.mrb[0].mxu0
      %v696 = vadd.f32 %v653, %v695
      %v697 = vpop.f32.mrb[0].mxu0
      %v698 = vadd.f32 %v655, %v697
      %699 = vdwg.mxu0
      %700 = vmatprep.subr.bf16.mxu0 0
      %701 = vmatpush1.bf16.msra.mxu0 %v531
      %702 = vmatprep.subr.bf16.mxu0 0
      %703 = vmatpush1.bf16.msra.mxu0 %v534
      %704 = vmatprep.subr.bf16.mxu0 0
      %705 = vmatpush1.bf16.msra.mxu0 %v537
      %706 = vmatprep.subr.bf16.mxu0 0
      %707 = vmatpush1.bf16.msra.mxu0 %v540
      %708 = vmatprep.subr.bf16.mxu0 0
      %709 = vmatpush1.bf16.msra.mxu0 %v543
      %710 = vmatprep.subr.bf16.mxu0 0
      %711 = vmatpush1.bf16.msra.mxu0 %v546
      %712 = vmatprep.subr.bf16.mxu0 0
      %713 = vmatpush1.bf16.msra.mxu0 %v549
      %714 = vmatprep.subr.bf16.mxu0 0
      %715 = vmatpush1.bf16.msra.mxu0 %v552
      %716 = vmatprep.subr.bf16.mxu0 0
      %717 = vmatpush1.bf16.msra.mxu0 %v555
      %718 = vmatprep.subr.bf16.mxu0 0
      %719 = vmatpush1.bf16.msra.mxu0 %v558
      %720 = vmatprep.subr.bf16.mxu0 0
      %721 = vmatpush1.bf16.msra.mxu0 %v561
      %722 = vmatprep.subr.bf16.mxu0 0
      %723 = vmatpush1.bf16.msra.mxu0 %v564
      %724 = vmatprep.subr.bf16.mxu0 0
      %725 = vmatpush1.bf16.msra.mxu0 %v567
      %726 = vmatprep.subr.bf16.mxu0 0
      %727 = vmatpush1.bf16.msra.mxu0 %v570
      %728 = vmatprep.subr.bf16.mxu0 0
      %729 = vmatpush1.bf16.msra.mxu0 %v573
      %730 = vmatprep.subr.bf16.mxu0 0
      %731 = vmatpush1.bf16.msra.mxu0 %v576
      %732 = vmatprep.mubr.bf16.mxu0 %v606
      %733 = vmatmul.mubr.bf16.gmra.mrb[0].mxu0 %v605
      %v734 = vpop.f32.mrb[0].mxu0
      %v735 = vadd.f32 %v588, %v734
      %v736 = vpop.f32.mrb[0].mxu0
      %v737 = vpop.f32.mrb[0].mxu0
      %v738 = vadd.f32 %v593, %v737
      %v739 = vpop.f32.mrb[0].mxu0
      %740 = vdwg.mxu0
      %741 = vmatprep.subr.bf16.mxu0 0
      %742 = vmatpush1.bf16.msra.mxu0 %v579
      %743 = vmatprep.subr.bf16.mxu0 0
      %744 = vmatpush1.bf16.msra.mxu0 %v582
      %745 = vmatprep.subr.bf16.mxu0 0
      %746 = vmatpush1.bf16.msra.mxu0 0
      %747 = vmatprep.subr.bf16.mxu0 0
      %748 = vmatpush1.bf16.msra.mxu0 0
      %749 = vmatprep.subr.bf16.mxu0 0
      %750 = vmatpush1.bf16.msra.mxu0 0
      %751 = vmatprep.subr.bf16.mxu0 0
      %752 = vmatpush1.bf16.msra.mxu0 0
      %753 = vmatprep.subr.bf16.mxu0 0
      %754 = vmatpush1.bf16.msra.mxu0 0
      %755 = vmatprep.subr.bf16.mxu0 0
      %756 = vmatpush1.bf16.msra.mxu0 0
      %757 = vmatprep.subr.bf16.mxu0 0
      %758 = vmatpush1.bf16.msra.mxu0 0
      %759 = vmatprep.subr.bf16.mxu0 0
      %760 = vmatpush1.bf16.msra.mxu0 0
      %761 = vmatprep.subr.bf16.mxu0 0
      %762 = vmatpush1.bf16.msra.mxu0 0
      %763 = vmatprep.subr.bf16.mxu0 0
      %764 = vmatpush1.bf16.msra.mxu0 0
      %765 = vmatprep.subr.bf16.mxu0 0
      %766 = vmatpush1.bf16.msra.mxu0 0
      %767 = vmatprep.subr.bf16.mxu0 0
      %768 = vmatpush1.bf16.msra.mxu0 0
      %769 = vmatprep.subr.bf16.mxu0 0
      %770 = vmatpush1.bf16.msra.mxu0 0
      %771 = vmatprep.subr.bf16.mxu0 0
      %772 = vmatpush1.bf16.msra.mxu0 0
      %773 = vmatprep.mubr.bf16.mxu0 0
      %774 = vmatmul.mubr.bf16.gmra.mrb[0].mxu0 %v612
      %v775 = vpop.f32.mrb[0].mxu0
      %v776 = vadd.f32 %v735, %v775
      %v777 = vpop.f32.mrb[0].mxu0
      %v778 = vpop.f32.mrb[0].mxu0
      %v779 = vadd.f32 %v738, %v778
      %v780 = vpop.f32.mrb[0].mxu0
      %781 = vdwg.mxu0
      %v782 = vpack.c.bf16 %v696, %v692
      %v783 = vpack.c.bf16 %v698, %v694
      %v784 = vpack.c.bf16 %v779, %v776
      %v785 = vld [vmem:[%s4] sm:$0xff]
      %v786 = vld [vmem:[%s4 + $0x8] sm:$0xf]
      %v787 = vld [vmem:[%s4 + $0xc] sm:$0xff]
      %v788 = vld [vmem:[%s4 + $0x14] sm:$0xf]
      %v789 = vld [vmem:[%s4 + $0x18] sm:$0xff]
      %v790 = vld [vmem:[%s4 + $0x20] sm:$0xf]
      %v791 = vld [vmem:[%s4 + $0x24] sm:$0xff]
      %v792 = vld [vmem:[%s4 + $0x2c] sm:$0xf]
      %v793 = vld [vmem:[%s4 + $0x30] sm:$0xff]
      %v794 = vld [vmem:[%s4 + $0x38] sm:$0xf]
      %v795 = vld [vmem:[%s4 + $0x3c] sm:$0xff]
      %v796 = vld [vmem:[%s4 + $0x44] sm:$0xf]
      %v797 = vld [vmem:[%s4 + $0x48] sm:$0xff]
      %v798 = vld [vmem:[%s4 + $0x50] sm:$0xf]
      %v799 = vld [vmem:[%s4 + $0x54] sm:$0xff]
      %v800 = vld [vmem:[%s4 + $0x5c] sm:$0xf]
      %v801 = vld [vmem:[%s4 + $0x60] sm:$0xff]
      %v802 = vld [vmem:[%s4 + $0x68] sm:$0xf]
      %v803 = vld [vmem:[%s4 + $0x6c] sm:$0xff]
      %v804 = vld [vmem:[%s4 + $0x74] sm:$0xf]
      %v805 = vld [vmem:[%s4 + $0x78] sm:$0xff]
      %v806 = vld [vmem:[%s4 + $0x80] sm:$0xf]
      %v807 = vld [vmem:[%s4 + $0x84] sm:$0xff]
      %v808 = vld [vmem:[%s4 + $0x8c] sm:$0xf]
      %v809 = vld [vmem:[%s4 + $0x90] sm:$0xff]
      %v810 = vld [vmem:[%s4 + $0x98] sm:$0xf]
      %v811 = vld [vmem:[%s4 + $0x9c] sm:$0xff]
      %v812 = vld [vmem:[%s4 + $0xa4] sm:$0xf]
      %v813 = vld [vmem:[%s4 + $0xa8] sm:$0xff]
      %v814 = vld [vmem:[%s4 + $0xb0] sm:$0xf]
      %v815 = vld [vmem:[%s4 + $0xb4] sm:$0xff]
      %v816 = vld [vmem:[%s4 + $0xbc] sm:$0xf]
      %v817 = vld [vmem:[%s4 + $0xc0] sm:$0xff]
      %v818 = vld [vmem:[%s4 + $0xc8] sm:$0xf]
      %v819 = vld [vmem:[%s4 + $0xcc] sm:$0xff]
      %v820 = vld [vmem:[%s4 + $0xd4] sm:$0xf]
      %v821 = vld [vmem:[%s4 + $0xd8] sm:$0xff]
      %v822 = vld [vmem:[%s4 + $0xe0] sm:$0xf]
      %v823 = vld [vmem:[%s4 + $0xe4] sm:$0xff]
      %v824 = vld [vmem:[%s4 + $0xec] sm:$0xf]
      %v825 = vld [vmem:[%s4 + $0xf0] sm:$0xff]
      %v826 = vld [vmem:[%s4 + $0xf8] sm:$0xf]
      %v827 = vld [vmem:[%s4 + $0xfc] sm:$0xff]
      %v828 = vld [vmem:[%s4 + $0x104] sm:$0xf]
      %v829 = vld [vmem:[%s4 + $0x108] sm:$0xff]
      %v830 = vld [vmem:[%s4 + $0x110] sm:$0xf]
      %v831 = vld [vmem:[%s4 + $0x114] sm:$0xff]
      %v832 = vld [vmem:[%s4 + $0x11c] sm:$0xf]
      %v833 = vld [vmem:[%s4 + $0x120] sm:$0xff]
      %v834 = vld [vmem:[%s4 + $0x128] sm:$0xf]
      %v835 = vld [vmem:[%s4 + $0x12c] sm:$0xff]
      %v836 = vld [vmem:[%s4 + $0x134] sm:$0xf]
      %v837 = vld [vmem:[%s4 + $0x138] sm:$0xff]
      %v838 = vld [vmem:[%s4 + $0x140] sm:$0xf]
      %v839 = vld [vmem:[%s4 + $0x144] sm:$0xff]
      %v840 = vld [vmem:[%s4 + $0x14c] sm:$0xf]
      %v841 = vld [vmem:[%s4 + $0x150] sm:$0xff]
      %v842 = vld [vmem:[%s4 + $0x158] sm:$0xf]
      %v843 = vld [vmem:[%s4 + $0x15c] sm:$0xff]
      %v844 = vld [vmem:[%s4 + $0x164] sm:$0xf]
      %v845 = vld [vmem:[%s4 + $0x168] sm:$0xff]
      %v846 = vld [vmem:[%s4 + $0x170] sm:$0xf]
      %v847 = vld [vmem:[%s4 + $0x174] sm:$0xff]
      %v848 = vld [vmem:[%s4 + $0x17c] sm:$0xf]
      %v849 = vld [vmem:[%s4 + $0x180] sm:$0xff]
      %v850 = vld [vmem:[%s4 + $0x188] sm:$0xf]
      %v851 = vld [vmem:[%s4 + $0x18c] sm:$0xff]
      %v852 = vld [vmem:[%s4 + $0x194] sm:$0xf]
      %v853 = vld [vmem:[%s4 + $0x198] sm:$0xff]
      %v854 = vld [vmem:[%s4 + $0x1a0] sm:$0xf]
      %v855 = vld [vmem:[%s4 + $0x1a4] sm:$0x77]
      %v856 = vld [vmem:[%s4 + $0x1ac] sm:$0x7]
      %v929 = vunpack.c.l.b16 %v785
      %v930 = vunpack.c.h.b16 %v785
      %v931 = vunpack.c.l.b16 %v786
      %v932 = vunpack.c.l.b16 %v787
      %v933 = vunpack.c.h.b16 %v787
      %v934 = vunpack.c.l.b16 %v788
      %v935 = vunpack.c.l.b16 %v789
      %v936 = vunpack.c.h.b16 %v789
      %v937 = vunpack.c.l.b16 %v790
      %v938 = vunpack.c.l.b16 %v791
      %v939 = vunpack.c.h.b16 %v791
      %v940 = vunpack.c.l.b16 %v792
      %v941 = vunpack.c.l.b16 %v793
      %v942 = vunpack.c.h.b16 %v793
      %v943 = vunpack.c.l.b16 %v794
      %v944 = vunpack.c.l.b16 %v795
      %v945 = vunpack.c.h.b16 %v795
      %v946 = vunpack.c.l.b16 %v796
      %v947 = vunpack.c.l.b16 %v797
      %v948 = vunpack.c.h.b16 %v797
      %v949 = vunpack.c.l.b16 %v798
      %v950 = vunpack.c.l.b16 %v799
      %v951 = vunpack.c.h.b16 %v799
      %v952 = vunpack.c.l.b16 %v800
      %v953 = vunpack.c.l.b16 %v801
      %v954 = vunpack.c.h.b16 %v801
      %v955 = vunpack.c.l.b16 %v802
      %v956 = vunpack.c.l.b16 %v803
      %v957 = vunpack.c.h.b16 %v803
      %v958 = vunpack.c.l.b16 %v804
      %v959 = vunpack.c.l.b16 %v805
      %v960 = vunpack.c.h.b16 %v805
      %v961 = vunpack.c.l.b16 %v806
      %v962 = vunpack.c.l.b16 %v807
      %v963 = vunpack.c.h.b16 %v807
      %v964 = vunpack.c.l.b16 %v808
      %v965 = vunpack.c.l.b16 %v809
      %v966 = vunpack.c.h.b16 %v809
      %v967 = vunpack.c.l.b16 %v810
      %v968 = vunpack.c.l.b16 %v811
      %v969 = vunpack.c.h.b16 %v811
      %v970 = vunpack.c.l.b16 %v812
      %v971 = vunpack.c.l.b16 %v813
      %v972 = vunpack.c.h.b16 %v813
      %v973 = vunpack.c.l.b16 %v814
      %v974 = vunpack.c.l.b16 %v815
      %v975 = vunpack.c.h.b16 %v815
      %v976 = vunpack.c.l.b16 %v816
      %v977 = vunpack.c.l.b16 %v817
      %v978 = vunpack.c.h.b16 %v817
      %v979 = vunpack.c.l.b16 %v818
      %v980 = vunpack.c.l.b16 %v819
      %v981 = vunpack.c.h.b16 %v819
      %v982 = vunpack.c.l.b16 %v820
      %v983 = vunpack.c.l.b16 %v821
      %v984 = vunpack.c.h.b16 %v821
      %v985 = vunpack.c.l.b16 %v822
      %v986 = vunpack.c.l.b16 %v823
      %v987 = vunpack.c.h.b16 %v823
      %v988 = vunpack.c.l.b16 %v824
      %v989 = vunpack.c.l.b16 %v825
      %v990 = vunpack.c.h.b16 %v825
      %v991 = vunpack.c.l.b16 %v826
      %v992 = vunpack.c.l.b16 %v827
      %v993 = vunpack.c.h.b16 %v827
      %v994 = vunpack.c.l.b16 %v828
      %v995 = vunpack.c.l.b16 %v829
      %v996 = vunpack.c.h.b16 %v829
      %v997 = vunpack.c.l.b16 %v830
      %v998 = vunpack.c.l.b16 %v831
      %v999 = vunpack.c.h.b16 %v831
      %v1000 = vunpack.c.l.b16 %v832
      %v1001 = vunpack.c.l.b16 %v833
      %v1002 = vunpack.c.h.b16 %v833
      %v1003 = vunpack.c.l.b16 %v834
      %v1004 = vunpack.c.l.b16 %v835
      %v1005 = vunpack.c.h.b16 %v835
      %v1006 = vunpack.c.l.b16 %v836
      %v1007 = vunpack.c.l.b16 %v837
      %v1008 = vunpack.c.h.b16 %v837
      %v1009 = vunpack.c.l.b16 %v838
      %v1010 = vunpack.c.l.b16 %v839
      %v1011 = vunpack.c.h.b16 %v839
      %v1012 = vunpack.c.l.b16 %v840
      %v1013 = vunpack.c.l.b16 %v841
      %v1014 = vunpack.c.h.b16 %v841
      %v1015 = vunpack.c.l.b16 %v842
      %v1016 = vunpack.c.l.b16 %v843
      %v1017 = vunpack.c.h.b16 %v843
      %v1018 = vunpack.c.l.b16 %v844
      %v1019 = vunpack.c.l.b16 %v845
      %v1020 = vunpack.c.h.b16 %v845
      %v1021 = vunpack.c.l.b16 %v846
      %v1022 = vunpack.c.l.b16 %v847
      %v1023 = vunpack.c.h.b16 %v847
      %v1024 = vunpack.c.l.b16 %v848
      %v1025 = vunpack.c.l.b16 %v849
      %v1026 = vunpack.c.h.b16 %v849
      %v1027 = vunpack.c.l.b16 %v850
      %v1028 = vunpack.c.l.b16 %v851
      %v1029 = vunpack.c.h.b16 %v851
      %v1030 = vunpack.c.l.b16 %v852
      %v1031 = vunpack.c.l.b16 %v853
      %v1032 = vunpack.c.h.b16 %v853
      %v1033 = vunpack.c.l.b16 %v854
      %v1034 = vunpack.c.l.b16 %v855
      %v1035 = vunpack.c.h.b16 %v855
      %v1036 = vunpack.c.l.b16 %v856
      %v1037 = vpack.c.b16 %v932, %v929
      %v1038 = vpack.c.b16 %v933, %v930
      %v1039 = vpack.c.b16 %v934, %v931
      %v1040 = vpack.c.b16 %v938, %v935
      %v1041 = vpack.c.b16 %v939, %v936
      %v1042 = vpack.c.b16 %v940, %v937
      %v1043 = vpack.c.b16 %v944, %v941
      %v1044 = vpack.c.b16 %v945, %v942
      %v1045 = vpack.c.b16 %v946, %v943
      %v1046 = vpack.c.b16 %v950, %v947
      %v1047 = vpack.c.b16 %v951, %v948
      %v1048 = vpack.c.b16 %v952, %v949
      %v1049 = vpack.c.b16 %v956, %v953
      %v1050 = vpack.c.b16 %v957, %v954
      %v1051 = vpack.c.b16 %v958, %v955
      %v1052 = vpack.c.b16 %v962, %v959
      %v1053 = vpack.c.b16 %v963, %v960
      %v1054 = vpack.c.b16 %v964, %v961
      %v1055 = vpack.c.b16 %v968, %v965
      %v1056 = vpack.c.b16 %v969, %v966
      %v1057 = vpack.c.b16 %v970, %v967
      %v1058 = vpack.c.b16 %v974, %v971
      %v1059 = vpack.c.b16 %v975, %v972
      %v1060 = vpack.c.b16 %v976, %v973
      %v1061 = vpack.c.b16 %v980, %v977
      %v1062 = vpack.c.b16 %v981, %v978
      %v1063 = vpack.c.b16 %v982, %v979
      %v1064 = vpack.c.b16 %v986, %v983
      %v1065 = vpack.c.b16 %v987, %v984
      %v1066 = vpack.c.b16 %v988, %v985
      %v1067 = vpack.c.b16 %v992, %v989
      %v1068 = vpack.c.b16 %v993, %v990
      %v1069 = vpack.c.b16 %v994, %v991
      %v1070 = vpack.c.b16 %v998, %v995
      %v1071 = vpack.c.b16 %v999, %v996
      %v1072 = vpack.c.b16 %v1000, %v997
      %v1073 = vpack.c.b16 %v1004, %v1001
      %v1074 = vpack.c.b16 %v1005, %v1002
      %v1075 = vpack.c.b16 %v1006, %v1003
      %v1076 = vpack.c.b16 %v1010, %v1007
      %v1077 = vpack.c.b16 %v1011, %v1008
      %v1078 = vpack.c.b16 %v1012, %v1009
      %v1079 = vpack.c.b16 %v1016, %v1013
      %v1080 = vpack.c.b16 %v1017, %v1014
      %v1081 = vpack.c.b16 %v1018, %v1015
      %v1082 = vpack.c.b16 %v1022, %v1019
      %v1083 = vpack.c.b16 %v1023, %v1020
      %v1084 = vpack.c.b16 %v1024, %v1021
      %v1085 = vpack.c.b16 %v1028, %v1025
      %v1086 = vpack.c.b16 %v1029, %v1026
      %v1087 = vpack.c.b16 %v1030, %v1027
      %v1088 = vpack.c.b16 %v1034, %v1031
      %v1089 = vpack.c.b16 %v1035, %v1032
      %v1090 = vpack.c.b16 %v1036, %v1033
      %v1143 = vsel %vm268, %v784, 0
      %vm1145 = vcmask 1046528
      %v1147 = vsel %vm1145, %v1088, 0
      %v1150 = vsel %vm1145, %v1089, 0
      %v1153 = vsel %vm1145, %v1090, 0
      %1155 = vmatprep.subr.bf16.mxu0 %v1038
      %1156 = vmatpush1.bf16.msra.mxu0 %v1037
      %1157 = vmatprep.subr.bf16.mxu0 %v1041
      %1158 = vmatpush1.bf16.msra.mxu0 %v1040
      %1159 = vmatprep.subr.bf16.mxu0 %v1044
      %1160 = vmatpush1.bf16.msra.mxu0 %v1043
      %1161 = vmatprep.subr.bf16.mxu0 %v1047
      %1162 = vmatpush1.bf16.msra.mxu0 %v1046
      %1163 = vmatprep.subr.bf16.mxu0 %v1050
      %1164 = vmatpush1.bf16.msra.mxu0 %v1049
      %1165 = vmatprep.subr.bf16.mxu0 %v1053
      %1166 = vmatpush1.bf16.msra.mxu0 %v1052
      %1167 = vmatprep.subr.bf16.mxu0 %v1056
      %1168 = vmatpush1.bf16.msra.mxu0 %v1055
      %1169 = vmatprep.subr.bf16.mxu0 %v1059
      %1170 = vmatpush1.bf16.msra.mxu0 %v1058
      %1171 = vmatprep.subr.bf16.mxu0 %v1062
      %1172 = vmatpush1.bf16.msra.mxu0 %v1061
      %1173 = vmatprep.subr.bf16.mxu0 %v1065
      %1174 = vmatpush1.bf16.msra.mxu0 %v1064
      %1175 = vmatprep.subr.bf16.mxu0 %v1068
      %1176 = vmatpush1.bf16.msra.mxu0 %v1067
      %1177 = vmatprep.subr.bf16.mxu0 %v1071
      %1178 = vmatpush1.bf16.msra.mxu0 %v1070
      %1179 = vmatprep.subr.bf16.mxu0 %v1074
      %1180 = vmatpush1.bf16.msra.mxu0 %v1073
      %1181 = vmatprep.subr.bf16.mxu0 %v1077
      %1182 = vmatpush1.bf16.msra.mxu0 %v1076
      %1183 = vmatprep.subr.bf16.mxu0 %v1080
      %1184 = vmatpush1.bf16.msra.mxu0 %v1079
      %1185 = vmatprep.subr.bf16.mxu0 %v1083
      %1186 = vmatpush1.bf16.msra.mxu0 %v1082
      %1187 = vmatprep.mubr.bf16.mxu0 %v783
      %1188 = vmatmul.mubr.bf16.gmra.mrb[0].mxu0 %v782
      %v1189 = vpop.f32.mrb[0].mxu0
      %v1190 = vadd.f32 0.0, %v1189
      %v1191 = vpop.f32.mrb[0].mxu0
      %v1192 = vadd.f32 0.0, %v1191
      %v1193 = vpop.f32.mrb[0].mxu0
      %v1194 = vadd.f32 0.0, %v1193
      %v1195 = vpop.f32.mrb[0].mxu0
      %v1196 = vadd.f32 0.0, %v1195
      %1197 = vdwg.mxu0
      %1198 = vmatprep.subr.bf16.mxu0 %v1086
      %1199 = vmatpush1.bf16.msra.mxu0 %v1085
      %1200 = vmatprep.subr.bf16.mxu0 %v1150
      %1201 = vmatpush1.bf16.msra.mxu0 %v1147
      %1202 = vmatprep.subr.bf16.mxu0 0
      %1203 = vmatpush1.bf16.msra.mxu0 0
      %1204 = vmatprep.subr.bf16.mxu0 0
      %1205 = vmatpush1.bf16.msra.mxu0 0
      %1206 = vmatprep.subr.bf16.mxu0 0
      %1207 = vmatpush1.bf16.msra.mxu0 0
      %1208 = vmatprep.subr.bf16.mxu0 0
      %1209 = vmatpush1.bf16.msra.mxu0 0
      %1210 = vmatprep.subr.bf16.mxu0 0
      %1211 = vmatpush1.bf16.msra.mxu0 0
      %1212 = vmatprep.subr.bf16.mxu0 0
      %1213 = vmatpush1.bf16.msra.mxu0 0
      %1214 = vmatprep.subr.bf16.mxu0 0
      %1215 = vmatpush1.bf16.msra.mxu0 0
      %1216 = vmatprep.subr.bf16.mxu0 0
      %1217 = vmatpush1.bf16.msra.mxu0 0
      %1218 = vmatprep.subr.bf16.mxu0 0
      %1219 = vmatpush1.bf16.msra.mxu0 0
      %1220 = vmatprep.subr.bf16.mxu0 0
      %1221 = vmatpush1.bf16.msra.mxu0 0
      %1222 = vmatprep.subr.bf16.mxu0 0
      %1223 = vmatpush1.bf16.msra.mxu0 0
      %1224 = vmatprep.subr.bf16.mxu0 0
      %1225 = vmatpush1.bf16.msra.mxu0 0
      %1226 = vmatprep.subr.bf16.mxu0 0
      %1227 = vmatpush1.bf16.msra.mxu0 0
      %1228 = vmatprep.subr.bf16.mxu0 0
      %1229 = vmatpush1.bf16.msra.mxu0 0
      %1230 = vmatprep.mubr.bf16.mxu0 0
      %1231 = vmatmul.mubr.bf16.gmra.mrb[0].mxu0 %v1143
      %v1232 = vpop.f32.mrb[0].mxu0
      %v1233 = vadd.f32 %v1190, %v1232
      %v1234 = vpop.f32.mrb[0].mxu0
      %v1235 = vadd.f32 %v1192, %v1234
      %v1236 = vpop.f32.mrb[0].mxu0
      %v1237 = vadd.f32 %v1194, %v1236
      %v1238 = vpop.f32.mrb[0].mxu0
      %v1239 = vadd.f32 %v1196, %v1238
      %1240 = vdwg.mxu0
      %1241 = vmatprep.subr.bf16.mxu0 0
      %1242 = vmatpush1.bf16.msra.mxu0 %v1039
      %1243 = vmatprep.subr.bf16.mxu0 0
      %1244 = vmatpush1.bf16.msra.mxu0 %v1042
      %1245 = vmatprep.subr.bf16.mxu0 0
      %1246 = vmatpush1.bf16.msra.mxu0 %v1045
      %1247 = vmatprep.subr.bf16.mxu0 0
      %1248 = vmatpush1.bf16.msra.mxu0 %v1048
      %1249 = vmatprep.subr.bf16.mxu0 0
      %1250 = vmatpush1.bf16.msra.mxu0 %v1051
      %1251 = vmatprep.subr.bf16.mxu0 0
      %1252 = vmatpush1.bf16.msra.mxu0 %v1054
      %1253 = vmatprep.subr.bf16.mxu0 0
      %1254 = vmatpush1.bf16.msra.mxu0 %v1057
      %1255 = vmatprep.subr.bf16.mxu0 0
      %1256 = vmatpush1.bf16.msra.mxu0 %v1060
      %1257 = vmatprep.subr.bf16.mxu0 0
      %1258 = vmatpush1.bf16.msra.mxu0 %v1063
      %1259 = vmatprep.subr.bf16.mxu0 0
      %1260 = vmatpush1.bf16.msra.mxu0 %v1066
      %1261 = vmatprep.subr.bf16.mxu0 0
      %1262 = vmatpush1.bf16.msra.mxu0 %v1069
      %1263 = vmatprep.subr.bf16.mxu0 0
      %1264 = vmatpush1.bf16.msra.mxu0 %v1072
      %1265 = vmatprep.subr.bf16.mxu0 0
      %1266 = vmatpush1.bf16.msra.mxu0 %v1075
      %1267 = vmatprep.subr.bf16.mxu0 0
      %1268 = vmatpush1.bf16.msra.mxu0 %v1078
      %1269 = vmatprep.subr.bf16.mxu0 0
      %1270 = vmatpush1.bf16.msra.mxu0 %v1081
      %1271 = vmatprep.subr.bf16.mxu0 0
      %1272 = vmatpush1.bf16.msra.mxu0 %v1084
      %1273 = vmatprep.mubr.bf16.mxu0 %v783
      %1274 = vmatmul.mubr.bf16.gmra.mrb[0].mxu0 %v782
      %v1275 = vpop.f32.mrb[0].mxu0
      %v1276 = vadd.f32 0.0, %v1275
      %v1277 = vpop.f32.mrb[0].mxu0
      %v1278 = vpop.f32.mrb[0].mxu0
      %v1279 = vadd.f32 0.0, %v1278
      %v1280 = vpop.f32.mrb[0].mxu0
      %1281 = vdwg.mxu0
      %1282 = vmatprep.subr.bf16.mxu0 0
      %1283 = vmatpush1.bf16.msra.mxu0 %v1087
      %1284 = vmatprep.subr.bf16.mxu0 0
      %1285 = vmatpush1.bf16.msra.mxu0 %v1153
      %1286 = vmatprep.subr.bf16.mxu0 0
      %1287 = vmatpush1.bf16.msra.mxu0 0
      %1288 = vmatprep.subr.bf16.mxu0 0
      %1289 = vmatpush1.bf16.msra.mxu0 0
      %1290 = vmatprep.subr.bf16.mxu0 0
      %1291 = vmatpush1.bf16.msra.mxu0 0
      %1292 = vmatprep.subr.bf16.mxu0 0
      %1293 = vmatpush1.bf16.msra.mxu0 0
      %1294 = vmatprep.subr.bf16.mxu0 0
      %1295 = vmatpush1.bf16.msra.mxu0 0
      %1296 = vmatprep.subr.bf16.mxu0 0
      %1297 = vmatpush1.bf16.msra.mxu0 0
      %1298 = vmatprep.subr.bf16.mxu0 0
      %1299 = vmatpush1.bf16.msra.mxu0 0
      %1300 = vmatprep.subr.bf16.mxu0 0
      %1301 = vmatpush1.bf16.msra.mxu0 0
      %1302 = vmatprep.subr.bf16.mxu0 0
      %1303 = vmatpush1.bf16.msra.mxu0 0
      %1304 = vmatprep.subr.bf16.mxu0 0
      %1305 = vmatpush1.bf16.msra.mxu0 0
      %1306 = vmatprep.subr.bf16.mxu0 0
      %1307 = vmatpush1.bf16.msra.mxu0 0
      %1308 = vmatprep.subr.bf16.mxu0 0
      %1309 = vmatpush1.bf16.msra.mxu0 0
      %1310 = vmatprep.subr.bf16.mxu0 0
      %1311 = vmatpush1.bf16.msra.mxu0 0
      %1312 = vmatprep.subr.bf16.mxu0 0
      %1313 = vmatpush1.bf16.msra.mxu0 0
      %1314 = vmatprep.mubr.bf16.mxu0 0
      %1315 = vmatmul.mubr.bf16.gmra.mrb[0].mxu0 %v1143
      %v1316 = vpop.f32.mrb[0].mxu0
      %v1317 = vadd.f32 %v1276, %v1316
      %v1318 = vpop.f32.mrb[0].mxu0
      %v1319 = vpop.f32.mrb[0].mxu0
      %v1320 = vadd.f32 %v1279, %v1319
      %v1321 = vpop.f32.mrb[0].mxu0
      %1322 = vdwg.mxu0
      %v1323 = vpack.c.bf16 %v1237, %v1233
      %v1324 = vpack.c.bf16 %v1239, %v1235
      %v1325 = vpack.c.bf16 %v1320, %v1317
      %v1329 = vunpack.c.l.b16 %v1323
      %v1330 = vunpack.c.l.b16 %v1324
      %v1331 = vunpack.c.l.b16 %v1325
      %v1332 = vunpack.c.h.b16 %v1323
      %v1333 = vunpack.c.h.b16 %v1324
      %v1334 = vunpack.c.h.b16 %v1325
      %v1335 = vpack.c.b16 %v1330, %v1329
      %v1336 = vpack.c.b16 %v1331, %v1331
      %v1337 = vpack.c.b16 %v1333, %v1332
      %v1338 = vpack.c.b16 %v1334, %v1334
      %1343 = vst [vmem:[%s244] sm:$0xff] %v1335
      %vm1344 = vcmask 551936
      %1345 = vst.msk [vmem:[%s244 + $0x8] sm:$0xf] %vm1344, %v1336
      %1346 = vst [vmem:[%s244 + $0xc] sm:$0xff] %v1337
      %1347 = vst.msk [vmem:[%s244 + $0x14] sm:$0xf] %vm1344, %v1338
      %p1348 = scmp.lt.s32.totalorder %s16, 1
      %s1349 = scalar_select %p1348, %s16, 1
      %s1350 = smul.addr %s1349, 6
      %s1351 = smul.addr %s1350, 4
      %s1352 = scalar_lea.vmem %s5, %s1351
      // Predicated region
      $region41: #{unet_forward.13} parent=39 // pred_check
        %p1353 = pneg %p149
      $region42: #{unet_forward.13} parent=39 // pred_check_branch
        %1355 = sbr.rel (%p1353) target = $region44
      $region43: #{unet_forward.13} parent=39 // pred_region
        _
      $region44: #{unet_forward.13} parent=39 // pred_fallthru
        _
    $region40: #{unet_forward.13} parent=5 // pred_fallthru
      _
    %p1356 = scmp.le.s32.totalorder 2, %s11
    // Predicated region
    $region45: #{unet_forward.13} parent=5 // pred_check
      %p1357 = pneg %p1356
    $region46: #{unet_forward.13} parent=5 // pred_check_branch
      %1359 = sbr.rel (%p1357) target = $region48
    $region47: #{unet_forward.13} parent=5 // pred_region
      %s1360 = ssub.s32 %s11, 2
      // Predicated region
      $region49: #{unet_forward.13} parent=47 // pred_check
        %p1361 = pneg %p155
      $region50: #{unet_forward.13} parent=47 // pred_check_branch
        %1363 = sbr.rel (%p1361) target = $region52
      $region51: #{unet_forward.13} parent=47 // pred_region
        %p1364 = scmp.lt.s32.totalorder %s17, 1
        %s1365 = scalar_select %p1364, %s17, 1
        %s1366 = smul.addr %s1365, 6
        %s1367 = smul.addr %s1366, 4
        %s1368 = scalar_lea.vmem %s5, %s1367
      $region52: #{unet_forward.13} parent=47 // pred_fallthru
        _
    $region48: #{unet_forward.13} parent=5 // pred_fallthru
      _
  $region6: #{unet_forward.13} parent=0 // loop_footer
    %s15 = sadd.s32 1, %s11
  $region7: #{unet_forward.13} parent=0 // loop_footer_branch
    %10 = sbr.rel target = $region3
  $region8: #{unet_forward.13} parent=0 // loop_exit
    _

</llo_original>
